<compile_context>
chip_gen: v7x
topology: tpu7x:2x2x1
jax: 0.10.0
libtpu: 0.0.40
codegen_flags: <defaults>
</compile_context>

<pallas_src>
import functools
import numpy as np
import jax
import jax.numpy as jnp
from jax.experimental import pallas as pl

LEAKY_SLOPE = 0.01  # torch nn.LeakyReLU default


# ----------------------------- fused Pallas kernel ------------------------------

def _leaky(v):
    return jnp.where(v > 0, v, LEAKY_SLOPE * v)


def _fused_forward_kernel(x_ref, wc1_ref, bc1_ref, wc2_ref, bc2_ref, wd1_ref, bd1_ref,
                          m1_ref, m2_ref, m3_ref,
                          g_ref, c0_ref, w1_ref, b1_ref, w2_ref, b2_ref, w3_ref, b3_ref,
                          o_ref, *, n_dec, c1, l0p, l1p, l2p, l_out):
    def mm(a, b):
        return jnp.dot(a, b, preferred_element_type=jnp.float32)

    # fused foil+wing encoders (block-diagonal weights) + decoder-input hidden layer
    x = x_ref[...]                                              # (B, 24)
    h1 = _leaky(mm(x, wc1_ref[...]) + bc1_ref[...])             # (B, 48)  [wing | foil]
    enc = mm(h1, wc2_ref[...]) + bc2_ref[...]                   # (B, 24)  [foil | wing]
    d1 = _leaky(mm(enc, wd1_ref[...]) + bd1_ref[...])           # (B, h_d1)

    k1 = w1_ref.shape[1]
    k3 = w3_ref.shape[1]

    for d in range(n_dec):                                      # static unroll (2 decoders)
        # stage 0: (dense-2 o reshape o upsample(5->24) o conv3 + LeakyReLU) folded
        y0 = _leaky(mm(d1, g_ref[d]) + c0_ref[d])               # (B, c1*l0p)
        # relayout (B, c1*l0p) -> (c1*B, l0p): lane-aligned (B,128) slices, sublane concat
        x1 = jnp.concatenate(
            [y0[:, c * l0p:(c + 1) * l0p] for c in range(c1)], axis=0)

        # stage 1: upsample 24->100 + conv3 + LeakyReLU
        t1 = mm(x1, m1_ref[...])                                # (c1*B, k1*l1p)
        a1 = mm(w1_ref[d, 0], t1[:, :l1p])
        for k in range(1, k1):
            a1 = a1 + mm(w1_ref[d, k], t1[:, k * l1p:(k + 1) * l1p])
        x2 = _leaky(a1 + b1_ref[d])                             # (c2*B, l1p)

        # stage 2: upsample 100->321 + 1x1 bottleneck conv + LeakyReLU
        t2 = mm(x2, m2_ref[...])                                # (c2*B, l2p)
        x3 = _leaky(mm(w2_ref[d], t2) + b2_ref[d])              # (cb*B, l2p)

        # stage 3: final conv3 (shifted-identity "upsample"), no activation
        t3 = mm(x3, m3_ref[...])                                # (cb*B, k3*l2p)
        a3 = mm(w3_ref[d, 0], t3[:, :l2p])
        for k in range(1, k3):
            a3 = a3 + mm(w3_ref[d, k], t3[:, k * l2p:(k + 1) * l2p])
        y3 = a3 + b3_ref[d]                                     # (B, l2p); rows = batch
        o_ref[:, d, :] = y3[:, :l_out]


def model_forward(inputs, packed, dims, n_dec):
    c1, l0p, l1p, l2p, l_out = dims
    B = inputs.shape[0]
    kernel = functools.partial(_fused_forward_kernel, n_dec=n_dec, c1=c1,
                               l0p=l0p, l1p=l1p, l2p=l2p, l_out=l_out)
    # No grid / no BlockSpecs: single invocation, every operand fully VMEM-resident.
    return pl.pallas_call(
        kernel,
        out_shape=jax.ShapeDtypeStruct((B, n_dec, l_out), jnp.float32),
    )(inputs,
      packed['wc1'], packed['bc1'], packed['wc2'], packed['bc2'],
      packed['wd1'], packed['bd1'],
      packed['m1'], packed['m2'], packed['m3'],
      packed['g'], packed['c0'], packed['w1'], packed['b1'],
      packed['w2'], packed['b2'], packed['w3'], packed['b3'])


# ------------------------- parameter init (deterministic) -------------------------

def _uniform(key, shape, bound):
    return jax.random.uniform(key, shape, jnp.float32, -bound, bound)


def init_linear(key, fin, fout):
    kw, kb = jax.random.split(key)
    bound = 1.0 / np.sqrt(fin)
    return _uniform(kw, (fin, fout), bound), _uniform(kb, (fout,), bound)


def init_conv(key, cin, cout, K):
    kw, kb = jax.random.split(key)
    bound = 1.0 / np.sqrt(cin * K)
    return _uniform(kw, (cout, cin, K), bound), _uniform(kb, (cout,), bound)


def init_mlp(key, fin, hidden, fout):
    dims = [fin] + list(hidden) + [fout]
    keys = jax.random.split(key, len(dims) - 1)
    return [init_linear(k, dims[i], dims[i + 1]) for i, k in enumerate(keys)]


def init_raw_params(key, h_e1, h_e2, h_d1, h_d2, last_size, h_out):
    ks = jax.random.split(key, 3 + h_out)
    mid = max(h_d2[2] // 2, 1)
    decoders = []
    for i in range(h_out):
        k0, k1, k2, k3 = jax.random.split(ks[3 + i], 4)
        decoders.append(dict(
            c0=init_conv(k0, h_d2[0], h_d2[1], 3),
            c1=init_conv(k1, h_d2[1], h_d2[2], 3),
            b0=init_conv(k2, h_d2[2], mid, 1),
            b1=init_conv(k3, mid, 1, 3),
        ))
    return dict(
        foil=init_mlp(ks[0], 21, h_e1[:-1], h_e1[-1]),
        wing=init_mlp(ks[1], 3, h_e2[:-1], h_e2[-1]),
        dec_in=init_mlp(ks[2], h_e1[-1] + h_e2[-1], h_d1, h_d2[0] * last_size),
        decoders=decoders,
    )


# ------------------------- host-side operator folding / packing -------------------------

def _interp_matrix(lin, lout):
    """nn.Upsample(mode='linear', align_corners=False) as an (lin, lout) matrix."""
    j = np.arange(lout)
    src = np.clip((j + 0.5) * lin / lout - 0.5, 0.0, lin - 1)
    i0 = np.floor(src).astype(np.int64)
    i1 = np.minimum(i0 + 1, lin - 1)
    w1 = (src - i0).astype(np.float32)
    m = np.zeros((lin, lout), np.float32)
    m[i0, j] += (1.0 - w1)
    m[i1, j] += w1
    return m


def _shifted_stack(base, K, lin_pad, lout_pad):
    """K conv-shifted copies of `base` (lin, lout), zero-padded to (lin_pad, lout_pad)."""
    lin, lout = base.shape
    pad = (K - 1) // 2
    out = np.zeros((K, lin_pad, lout_pad), np.float32)
    for k in range(K):
        s = k - pad
        l0, l1 = max(0, -s), min(lout, lout - s)
        out[k, :lin, l0:l1] = base[:, l0 + s:l1 + s]
    return out


def _pad128(n):
    return ((n + 127) // 128) * 128


def pack_params(raw, B, sizes, last_size, h_d2):
    L0, L1, L2 = sizes
    C0d, C1, C2 = h_d2
    CB = max(C2 // 2, 1)
    L0P, L1P, L2P = _pad128(L0), _pad128(L1), _pad128(L2)

    # --- fuse foil/wing encoders into block-diagonal dense layers ---
    wing, foil = raw['wing'], raw['foil']
    assert len(wing) == len(foil) == 2  # TODO(synk): kernel signature assumes 1 hidden layer
    enc_layers = []
    for i in range(2):
        Ww, bw = np.asarray(wing[i][0]), np.asarray(wing[i][1])
        Wf, bf = np.asarray(foil[i][0]), np.asarray(foil[i][1])
        rw, cw = Ww.shape
        rf, cf = Wf.shape
        W = np.zeros((rw + rf, cw + cf), np.float32)
        if i < 1:   # hidden: inputs [wing | foil] -> hidden [wing | foil]
            W[:rw, :cw] = Ww
            W[rw:, cw:] = Wf
            b = np.concatenate([bw, bf]).astype(np.float32)
        else:       # output order [foil | wing] to match torch.concatenate((foil, wing), 1)
            W[:rw, cf:] = Ww
            W[rw:, :cf] = Wf
            b = np.concatenate([bf, bw]).astype(np.float32)
        enc_layers.append((W, b))
    (wc1, bc1), (wc2, bc2) = enc_layers

    # --- decoder-input mlp: hidden layer stays dense, final layer folded per decoder ---
    dec_in = raw['dec_in']
    assert len(dec_in) == 2  # TODO(synk): kernel signature assumes len(h_d1) == 1
    wd1, bd1 = np.asarray(dec_in[0][0]), np.asarray(dec_in[0][1])
    wd2, bd2 = np.asarray(dec_in[1][0]), np.asarray(dec_in[1][1])

    # --- shared upsample / shift operators (lane-padded, zero rows beyond valid length) ---
    m0s = _shifted_stack(_interp_matrix(last_size, L0), 3, last_size, L0P)   # (3, 5, 128)
    m1s = _shifted_stack(_interp_matrix(L0, L1), 3, L0P, L1P)                # (3, 128, 128)
    m2s = _shifted_stack(_interp_matrix(L1, L2), 1, L1P, L2P)                # (1, 128, 384)
    m3s = _shifted_stack(np.eye(L2, dtype=np.float32), 3, L2P, L2P)          # (3, 384, 384)
    m1cat = np.concatenate(list(m1s), axis=1)
    m2cat = m2s[0]
    m3cat = np.concatenate(list(m3s), axis=1)

    # --- per-decoder folded weights ---
    eyeB = np.eye(B, dtype=np.float32)
    wd2r = wd2.reshape(wd2.shape[0], C0d, last_size)
    bd2r = bd2.reshape(C0d, last_size)
    Gs, C0s, W1s, B1s, W2s, B2s, W3s, B3s = ([] for _ in range(8))
    for dec in raw['decoders']:
        W0, b0 = np.asarray(dec['c0'][0]), np.asarray(dec['c0'][1])   # (C1, C0, 3)
        W1, b1 = np.asarray(dec['c1'][0]), np.asarray(dec['c1'][1])   # (C2, C1, 3)
        W2, b2 = np.asarray(dec['b0'][0]), np.asarray(dec['b0'][1])   # (CB, C2, 1)
        W3, b3 = np.asarray(dec['b1'][0]), np.asarray(dec['b1'][1])   # (1,  CB, 3)
        # fold dense-2 + reshape + upsample(5->24) + conv3 into a single matrix
        G = np.einsum('ock,fcl,kln->fon', W0, wd2r, m0s)              # (F, C1, L0P)
        C0f = np.einsum('ock,cl,kln->on', W0, bd2r, m0s) + b0[:, None]
        Gs.append(G.reshape(wd2.shape[0], C1 * L0P).astype(np.float32))
        C0s.append(C0f.reshape(1, C1 * L0P).astype(np.float32))
        W1s.append(np.stack([np.kron(W1[:, :, k], eyeB) for k in range(3)]))
        B1s.append(np.repeat(b1, B)[:, None].astype(np.float32))
        W2s.append(np.kron(W2[:, :, 0], eyeB))
        B2s.append(np.repeat(b2, B)[:, None].astype(np.float32))
        W3s.append(np.stack([np.kron(W3[:, :, k], eyeB) for k in range(3)]))
        B3s.append(np.repeat(b3, B)[:, None].astype(np.float32))

    packed = dict(
        wc1=wc1, bc1=bc1[None, :], wc2=wc2, bc2=bc2[None, :],
        wd1=wd1, bd1=bd1[None, :],
        m1=m1cat, m2=m2cat, m3=m3cat,
        g=np.stack(Gs), c0=np.stack(C0s),
        w1=np.stack(W1s), b1=np.stack(B1s),
        w2=np.stack(W2s), b2=np.stack(B2s),
        w3=np.stack(W3s), b3=np.stack(B3s),
    )
    packed = {k: jnp.asarray(np.asarray(v, dtype=np.float32)) for k, v in packed.items()}
    return packed, (C1, L0P, L1P, L2P, L2)


# ------------------------- pure-JAX reference (correctness check) -------------------------

def reference_forward(inputs, raw, sizes, last_size, h_d2):
    def mlp(x, layers):
        n = len(layers)
        for i, (W, b) in enumerate(layers):
            x = x @ W + b
            if i < n - 1:
                x = _leaky(x)
        return x

    def upsample(x, lout):
        m = jnp.asarray(_interp_matrix(x.shape[-1], lout))
        return jnp.einsum('bcl,lm->bcm', x, m)

    def conv(x, W, b):
        K = W.shape[2]
        pad = (K - 1) // 2
        L = x.shape[-1]
        xp = jnp.pad(x, ((0, 0), (0, 0), (pad, pad)))
        acc = b[None, :, None]
        for k in range(K):
            acc = acc + jnp.einsum('oi,bil->bol', W[:, :, k], xp[:, :, k:k + L])
        return acc

    foil = mlp(inputs[:, 3:], raw['foil'])
    wing = mlp(inputs[:, :3], raw['wing'])
    enc = jnp.concatenate([foil, wing], axis=1)
    h = mlp(enc, raw['dec_in']).reshape(inputs.shape[0], h_d2[0], last_size)
    outs = []
    for dec in raw['decoders']:
        y = _leaky(conv(upsample(h, sizes[0]), *dec['c0']))
        y = _leaky(conv(upsample(y, sizes[1]), *dec['c1']))
        y = _leaky(conv(upsample(y, sizes[2]), *dec['b0']))
        y = conv(y, *dec['b1'])
        outs.append(y)
    return jnp.concatenate(outs, axis=1)


# ----------------------------------- main -----------------------------------

if __name__ == "__main__":
    h_e1 = [32, 16]          # foil encoder: 21 -> 32 -> 16
    h_e2 = [16, 8]           # wing encoder: 3 -> 16 -> 8
    h_d1 = [64]              # decoder-input mlp hidden dims
    h_d2 = [32, 16, 16]      # conv decoder channel dims
    sizes = [24, 100, 321]
    last_size = 5
    h_out = 2
    B = 8                    # batch folded into sublanes (tile-aligned)

    root = jax.random.PRNGKey(0)
    kp, kx = jax.random.split(root)
    raw = init_raw_params(kp, h_e1, h_e2, h_d1, h_d2, last_size, h_out)
    packed, dims = pack_params(raw, B, sizes, last_size, h_d2)
    inputs = jax.random.normal(kx, (B, 3 + 21), jnp.float32)   # [:, :3]=wing, [:, 3:]=foil

    fwd = jax.jit(lambda x, p: model_forward(x, p, dims, h_out))
    out = jax.block_until_ready(fwd(inputs, packed))

    assert out.shape == (B, h_out, sizes[-1]), out.shape
    assert bool(jnp.all(jnp.isfinite(out)))

    ref = reference_forward(inputs, raw, sizes, last_size, h_d2)
    max_err = float(jnp.max(jnp.abs(out - ref)))
    assert jnp.allclose(out, ref, rtol=2e-3, atol=2e-3), max_err

    print("KERNEL_OK")
</pallas_src>

<mosaic_0001>
module attributes {stable_mosaic.version = 11 : i64} {
  func.func @_fused_forward_kernel(%arg0: memref<8x24xf32, #tpu.memory_space<vmem>>, %arg1: memref<24x48xf32, #tpu.memory_space<vmem>>, %arg2: memref<1x48xf32, #tpu.memory_space<vmem>>, %arg3: memref<48x24xf32, #tpu.memory_space<vmem>>, %arg4: memref<1x24xf32, #tpu.memory_space<vmem>>, %arg5: memref<24x64xf32, #tpu.memory_space<vmem>>, %arg6: memref<1x64xf32, #tpu.memory_space<vmem>>, %arg7: memref<128x384xf32, #tpu.memory_space<vmem>>, %arg8: memref<128x384xf32, #tpu.memory_space<vmem>>, %arg9: memref<384x1152xf32, #tpu.memory_space<vmem>>, %arg10: memref<2x64x2048xf32, #tpu.memory_space<vmem>>, %arg11: memref<2x1x2048xf32, #tpu.memory_space<vmem>>, %arg12: memref<2x3x128x128xf32, #tpu.memory_space<vmem>>, %arg13: memref<2x128x1xf32, #tpu.memory_space<vmem>>, %arg14: memref<2x64x128xf32, #tpu.memory_space<vmem>>, %arg15: memref<2x64x1xf32, #tpu.memory_space<vmem>>, %arg16: memref<2x3x8x64xf32, #tpu.memory_space<vmem>>, %arg17: memref<2x8x1xf32, #tpu.memory_space<vmem>>, %arg18: memref<8x2x321xf32, #tpu.memory_space<vmem>>) attributes {dimension_semantics = [], scalar_prefetch = 0 : i64, scratch_operands = 0 : i64, tpu.core_type = #tpu.core_type<tc>} {
    %c0 = arith.constant 0 : index
    %c0_0 = arith.constant 0 : index
    %0 = vector.load %arg0[%c0, %c0_0] : memref<8x24xf32, #tpu.memory_space<vmem>>, vector<8x24xf32>
    %c0_1 = arith.constant 0 : index
    %c0_2 = arith.constant 0 : index
    %1 = vector.load %arg1[%c0_1, %c0_2] : memref<24x48xf32, #tpu.memory_space<vmem>>, vector<24x48xf32>
    %cst = arith.constant dense<0.000000e+00> : vector<8x48xf32>
    %2 = tpu.matmul %0, %1, %cst {dimension_numbers = #tpu.dot_dimension_numbers<[1], [0], [0], [1], [0, 0, 1, 1], [], []>} : vector<8x24xf32>, vector<24x48xf32>, vector<8x48xf32> -> vector<8x48xf32>
    %c0_3 = arith.constant 0 : index
    %c0_4 = arith.constant 0 : index
    %3 = vector.load %arg2[%c0_3, %c0_4] : memref<1x48xf32, #tpu.memory_space<vmem>>, vector<1x48xf32>
    %4 = vector.broadcast %3 : vector<1x48xf32> to vector<8x48xf32>
    %5 = arith.addf %2, %4 : vector<8x48xf32>
    %cst_5 = arith.constant 0.000000e+00 : f32
    %6 = vector.broadcast %cst_5 : f32 to vector<8x48xf32>
    %7 = arith.cmpf ogt, %5, %6 : vector<8x48xf32>
    %cst_6 = arith.constant 0.00999999977 : f32
    %8 = vector.broadcast %cst_6 : f32 to vector<8x48xf32>
    %9 = arith.mulf %8, %5 : vector<8x48xf32>
    %10 = arith.select %7, %5, %9 : vector<8x48xi1>, vector<8x48xf32>
    %c0_7 = arith.constant 0 : index
    %c0_8 = arith.constant 0 : index
    %11 = vector.load %arg3[%c0_7, %c0_8] : memref<48x24xf32, #tpu.memory_space<vmem>>, vector<48x24xf32>
    %cst_9 = arith.constant dense<0.000000e+00> : vector<8x24xf32>
    %12 = tpu.matmul %10, %11, %cst_9 {dimension_numbers = #tpu.dot_dimension_numbers<[1], [0], [0], [1], [0, 0, 1, 1], [], []>} : vector<8x48xf32>, vector<48x24xf32>, vector<8x24xf32> -> vector<8x24xf32>
    %c0_10 = arith.constant 0 : index
    %c0_11 = arith.constant 0 : index
    %13 = vector.load %arg4[%c0_10, %c0_11] : memref<1x24xf32, #tpu.memory_space<vmem>>, vector<1x24xf32>
    %14 = vector.broadcast %13 : vector<1x24xf32> to vector<8x24xf32>
    %15 = arith.addf %12, %14 : vector<8x24xf32>
    %c0_12 = arith.constant 0 : index
    %c0_13 = arith.constant 0 : index
    %16 = vector.load %arg5[%c0_12, %c0_13] : memref<24x64xf32, #tpu.memory_space<vmem>>, vector<24x64xf32>
    %cst_14 = arith.constant dense<0.000000e+00> : vector<8x64xf32>
    %17 = tpu.matmul %15, %16, %cst_14 {dimension_numbers = #tpu.dot_dimension_numbers<[1], [0], [0], [1], [0, 0, 1, 1], [], []>} : vector<8x24xf32>, vector<24x64xf32>, vector<8x64xf32> -> vector<8x64xf32>
    %c0_15 = arith.constant 0 : index
    %c0_16 = arith.constant 0 : index
    %18 = vector.load %arg6[%c0_15, %c0_16] : memref<1x64xf32, #tpu.memory_space<vmem>>, vector<1x64xf32>
    %19 = vector.broadcast %18 : vector<1x64xf32> to vector<8x64xf32>
    %20 = arith.addf %17, %19 : vector<8x64xf32>
    %cst_17 = arith.constant 0.000000e+00 : f32
    %21 = vector.broadcast %cst_17 : f32 to vector<8x64xf32>
    %22 = arith.cmpf ogt, %20, %21 : vector<8x64xf32>
    %cst_18 = arith.constant 0.00999999977 : f32
    %23 = vector.broadcast %cst_18 : f32 to vector<8x64xf32>
    %24 = arith.mulf %23, %20 : vector<8x64xf32>
    %25 = arith.select %22, %20, %24 : vector<8x64xi1>, vector<8x64xf32>
    %c0_19 = arith.constant 0 : index
    %c0_20 = arith.constant 0 : index
    %c0_21 = arith.constant 0 : index
    %26 = vector.load %arg10[%c0_19, %c0_20, %c0_21] : memref<2x64x2048xf32, #tpu.memory_space<vmem>>, vector<1x64x2048xf32>
    %27 = vector.shape_cast %26 : vector<1x64x2048xf32> to vector<64x2048xf32>
    %cst_22 = arith.constant dense<0.000000e+00> : vector<8x2048xf32>
    %28 = tpu.matmul %25, %27, %cst_22 {dimension_numbers = #tpu.dot_dimension_numbers<[1], [0], [0], [1], [0, 0, 1, 1], [], []>} : vector<8x64xf32>, vector<64x2048xf32>, vector<8x2048xf32> -> vector<8x2048xf32>
    %c0_23 = arith.constant 0 : index
    %c0_24 = arith.constant 0 : index
    %c0_25 = arith.constant 0 : index
    %29 = vector.load %arg11[%c0_23, %c0_24, %c0_25] : memref<2x1x2048xf32, #tpu.memory_space<vmem>>, vector<1x1x2048xf32>
    %30 = vector.shape_cast %29 : vector<1x1x2048xf32> to vector<1x2048xf32>
    %31 = vector.broadcast %30 : vector<1x2048xf32> to vector<8x2048xf32>
    %32 = arith.addf %28, %31 : vector<8x2048xf32>
    %cst_26 = arith.constant 0.000000e+00 : f32
    %33 = vector.broadcast %cst_26 : f32 to vector<8x2048xf32>
    %34 = arith.cmpf ogt, %32, %33 : vector<8x2048xf32>
    %cst_27 = arith.constant 0.00999999977 : f32
    %35 = vector.broadcast %cst_27 : f32 to vector<8x2048xf32>
    %36 = arith.mulf %35, %32 : vector<8x2048xf32>
    %37 = arith.select %34, %32, %36 : vector<8x2048xi1>, vector<8x2048xf32>
    %38 = vector.extract_strided_slice %37 {offsets = [0, 0], sizes = [8, 128], strides = [1, 1]} : vector<8x2048xf32> to vector<8x128xf32>
    %39 = vector.extract_strided_slice %37 {offsets = [0, 128], sizes = [8, 128], strides = [1, 1]} : vector<8x2048xf32> to vector<8x128xf32>
    %40 = vector.extract_strided_slice %37 {offsets = [0, 256], sizes = [8, 128], strides = [1, 1]} : vector<8x2048xf32> to vector<8x128xf32>
    %41 = vector.extract_strided_slice %37 {offsets = [0, 384], sizes = [8, 128], strides = [1, 1]} : vector<8x2048xf32> to vector<8x128xf32>
    %42 = vector.extract_strided_slice %37 {offsets = [0, 512], sizes = [8, 128], strides = [1, 1]} : vector<8x2048xf32> to vector<8x128xf32>
    %43 = vector.extract_strided_slice %37 {offsets = [0, 640], sizes = [8, 128], strides = [1, 1]} : vector<8x2048xf32> to vector<8x128xf32>
    %44 = vector.extract_strided_slice %37 {offsets = [0, 768], sizes = [8, 128], strides = [1, 1]} : vector<8x2048xf32> to vector<8x128xf32>
    %45 = vector.extract_strided_slice %37 {offsets = [0, 896], sizes = [8, 128], strides = [1, 1]} : vector<8x2048xf32> to vector<8x128xf32>
    %46 = vector.extract_strided_slice %37 {offsets = [0, 1024], sizes = [8, 128], strides = [1, 1]} : vector<8x2048xf32> to vector<8x128xf32>
    %47 = vector.extract_strided_slice %37 {offsets = [0, 1152], sizes = [8, 128], strides = [1, 1]} : vector<8x2048xf32> to vector<8x128xf32>
    %48 = vector.extract_strided_slice %37 {offsets = [0, 1280], sizes = [8, 128], strides = [1, 1]} : vector<8x2048xf32> to vector<8x128xf32>
    %49 = vector.extract_strided_slice %37 {offsets = [0, 1408], sizes = [8, 128], strides = [1, 1]} : vector<8x2048xf32> to vector<8x128xf32>
    %50 = vector.extract_strided_slice %37 {offsets = [0, 1536], sizes = [8, 128], strides = [1, 1]} : vector<8x2048xf32> to vector<8x128xf32>
    %51 = vector.extract_strided_slice %37 {offsets = [0, 1664], sizes = [8, 128], strides = [1, 1]} : vector<8x2048xf32> to vector<8x128xf32>
    %52 = vector.extract_strided_slice %37 {offsets = [0, 1792], sizes = [8, 128], strides = [1, 1]} : vector<8x2048xf32> to vector<8x128xf32>
    %53 = vector.extract_strided_slice %37 {offsets = [0, 1920], sizes = [8, 128], strides = [1, 1]} : vector<8x2048xf32> to vector<8x128xf32>
    %54 = tpu.concatenate %38, %39, %40, %41, %42, %43, %44, %45, %46, %47, %48, %49, %50, %51, %52, %53 in 0 : vector<8x128xf32>, vector<8x128xf32>, vector<8x128xf32>, vector<8x128xf32>, vector<8x128xf32>, vector<8x128xf32>, vector<8x128xf32>, vector<8x128xf32>, vector<8x128xf32>, vector<8x128xf32>, vector<8x128xf32>, vector<8x128xf32>, vector<8x128xf32>, vector<8x128xf32>, vector<8x128xf32>, vector<8x128xf32> -> vector<128x128xf32>
    %c0_28 = arith.constant 0 : index
    %c0_29 = arith.constant 0 : index
    %55 = vector.load %arg7[%c0_28, %c0_29] : memref<128x384xf32, #tpu.memory_space<vmem>>, vector<128x384xf32>
    %cst_30 = arith.constant dense<0.000000e+00> : vector<128x384xf32>
    %56 = tpu.matmul %54, %55, %cst_30 {dimension_numbers = #tpu.dot_dimension_numbers<[1], [0], [0], [1], [0, 0, 1, 1], [], []>} : vector<128x128xf32>, vector<128x384xf32>, vector<128x384xf32> -> vector<128x384xf32>
    %c0_31 = arith.constant 0 : index
    %c0_32 = arith.constant 0 : index
    %c0_33 = arith.constant 0 : index
    %c0_34 = arith.constant 0 : index
    %57 = vector.load %arg12[%c0_31, %c0_32, %c0_33, %c0_34] : memref<2x3x128x128xf32, #tpu.memory_space<vmem>>, vector<1x1x128x128xf32>
    %58 = vector.shape_cast %57 : vector<1x1x128x128xf32> to vector<128x128xf32>
    %59 = vector.extract_strided_slice %56 {offsets = [0, 0], sizes = [128, 128], strides = [1, 1]} : vector<128x384xf32> to vector<128x128xf32>
    %cst_35 = arith.constant dense<0.000000e+00> : vector<128x128xf32>
    %60 = tpu.matmul %58, %59, %cst_35 {dimension_numbers = #tpu.dot_dimension_numbers<[1], [0], [0], [1], [0, 0, 1, 1], [], []>} : vector<128x128xf32>, vector<128x128xf32>, vector<128x128xf32> -> vector<128x128xf32>
    %c0_36 = arith.constant 0 : index
    %c1 = arith.constant 1 : index
    %c0_37 = arith.constant 0 : index
    %c0_38 = arith.constant 0 : index
    %61 = vector.load %arg12[%c0_36, %c1, %c0_37, %c0_38] : memref<2x3x128x128xf32, #tpu.memory_space<vmem>>, vector<1x1x128x128xf32>
    %62 = vector.shape_cast %61 : vector<1x1x128x128xf32> to vector<128x128xf32>
    %63 = vector.extract_strided_slice %56 {offsets = [0, 128], sizes = [128, 128], strides = [1, 1]} : vector<128x384xf32> to vector<128x128xf32>
    %cst_39 = arith.constant dense<0.000000e+00> : vector<128x128xf32>
    %64 = tpu.matmul %62, %63, %cst_39 {dimension_numbers = #tpu.dot_dimension_numbers<[1], [0], [0], [1], [0, 0, 1, 1], [], []>} : vector<128x128xf32>, vector<128x128xf32>, vector<128x128xf32> -> vector<128x128xf32>
    %65 = arith.addf %60, %64 : vector<128x128xf32>
    %c0_40 = arith.constant 0 : index
    %c2 = arith.constant 2 : index
    %c0_41 = arith.constant 0 : index
    %c0_42 = arith.constant 0 : index
    %66 = vector.load %arg12[%c0_40, %c2, %c0_41, %c0_42] : memref<2x3x128x128xf32, #tpu.memory_space<vmem>>, vector<1x1x128x128xf32>
    %67 = vector.shape_cast %66 : vector<1x1x128x128xf32> to vector<128x128xf32>
    %68 = vector.extract_strided_slice %56 {offsets = [0, 256], sizes = [128, 128], strides = [1, 1]} : vector<128x384xf32> to vector<128x128xf32>
    %cst_43 = arith.constant dense<0.000000e+00> : vector<128x128xf32>
    %69 = tpu.matmul %67, %68, %cst_43 {dimension_numbers = #tpu.dot_dimension_numbers<[1], [0], [0], [1], [0, 0, 1, 1], [], []>} : vector<128x128xf32>, vector<128x128xf32>, vector<128x128xf32> -> vector<128x128xf32>
    %70 = arith.addf %65, %69 : vector<128x128xf32>
    %c0_44 = arith.constant 0 : index
    %c0_45 = arith.constant 0 : index
    %c0_46 = arith.constant 0 : index
    %71 = vector.load %arg13[%c0_44, %c0_45, %c0_46] : memref<2x128x1xf32, #tpu.memory_space<vmem>>, vector<1x128x1xf32>
    %72 = vector.shape_cast %71 : vector<1x128x1xf32> to vector<128x1xf32>
    %73 = vector.broadcast %72 : vector<128x1xf32> to vector<128x128xf32>
    %74 = arith.addf %70, %73 : vector<128x128xf32>
    %cst_47 = arith.constant 0.000000e+00 : f32
    %75 = vector.broadcast %cst_47 : f32 to vector<128x128xf32>
    %76 = arith.cmpf ogt, %74, %75 : vector<128x128xf32>
    %cst_48 = arith.constant 0.00999999977 : f32
    %77 = vector.broadcast %cst_48 : f32 to vector<128x128xf32>
    %78 = arith.mulf %77, %74 : vector<128x128xf32>
    %79 = arith.select %76, %74, %78 : vector<128x128xi1>, vector<128x128xf32>
    %c0_49 = arith.constant 0 : index
    %c0_50 = arith.constant 0 : index
    %80 = vector.load %arg8[%c0_49, %c0_50] : memref<128x384xf32, #tpu.memory_space<vmem>>, vector<128x384xf32>
    %cst_51 = arith.constant dense<0.000000e+00> : vector<128x384xf32>
    %81 = tpu.matmul %79, %80, %cst_51 {dimension_numbers = #tpu.dot_dimension_numbers<[1], [0], [0], [1], [0, 0, 1, 1], [], []>} : vector<128x128xf32>, vector<128x384xf32>, vector<128x384xf32> -> vector<128x384xf32>
    %c0_52 = arith.constant 0 : index
    %c0_53 = arith.constant 0 : index
    %c0_54 = arith.constant 0 : index
    %82 = vector.load %arg14[%c0_52, %c0_53, %c0_54] : memref<2x64x128xf32, #tpu.memory_space<vmem>>, vector<1x64x128xf32>
    %83 = vector.shape_cast %82 : vector<1x64x128xf32> to vector<64x128xf32>
    %cst_55 = arith.constant dense<0.000000e+00> : vector<64x384xf32>
    %84 = tpu.matmul %83, %81, %cst_55 {dimension_numbers = #tpu.dot_dimension_numbers<[1], [0], [0], [1], [0, 0, 1, 1], [], []>} : vector<64x128xf32>, vector<128x384xf32>, vector<64x384xf32> -> vector<64x384xf32>
    %c0_56 = arith.constant 0 : index
    %c0_57 = arith.constant 0 : index
    %c0_58 = arith.constant 0 : index
    %85 = vector.load %arg15[%c0_56, %c0_57, %c0_58] : memref<2x64x1xf32, #tpu.memory_space<vmem>>, vector<1x64x1xf32>
    %86 = vector.shape_cast %85 : vector<1x64x1xf32> to vector<64x1xf32>
    %87 = vector.broadcast %86 : vector<64x1xf32> to vector<64x384xf32>
    %88 = arith.addf %84, %87 : vector<64x384xf32>
    %cst_59 = arith.constant 0.000000e+00 : f32
    %89 = vector.broadcast %cst_59 : f32 to vector<64x384xf32>
    %90 = arith.cmpf ogt, %88, %89 : vector<64x384xf32>
    %cst_60 = arith.constant 0.00999999977 : f32
    %91 = vector.broadcast %cst_60 : f32 to vector<64x384xf32>
    %92 = arith.mulf %91, %88 : vector<64x384xf32>
    %93 = arith.select %90, %88, %92 : vector<64x384xi1>, vector<64x384xf32>
    %c0_61 = arith.constant 0 : index
    %c0_62 = arith.constant 0 : index
    %94 = vector.load %arg9[%c0_61, %c0_62] : memref<384x1152xf32, #tpu.memory_space<vmem>>, vector<384x1152xf32>
    %cst_63 = arith.constant dense<0.000000e+00> : vector<64x1152xf32>
    %95 = tpu.matmul %93, %94, %cst_63 {dimension_numbers = #tpu.dot_dimension_numbers<[1], [0], [0], [1], [0, 0, 1, 1], [], []>} : vector<64x384xf32>, vector<384x1152xf32>, vector<64x1152xf32> -> vector<64x1152xf32>
    %c0_64 = arith.constant 0 : index
    %c0_65 = arith.constant 0 : index
    %c0_66 = arith.constant 0 : index
    %c0_67 = arith.constant 0 : index
    %96 = vector.load %arg16[%c0_64, %c0_65, %c0_66, %c0_67] : memref<2x3x8x64xf32, #tpu.memory_space<vmem>>, vector<1x1x8x64xf32>
    %97 = vector.shape_cast %96 : vector<1x1x8x64xf32> to vector<8x64xf32>
    %98 = vector.extract_strided_slice %95 {offsets = [0, 0], sizes = [64, 384], strides = [1, 1]} : vector<64x1152xf32> to vector<64x384xf32>
    %cst_68 = arith.constant dense<0.000000e+00> : vector<8x384xf32>
    %99 = tpu.matmul %97, %98, %cst_68 {dimension_numbers = #tpu.dot_dimension_numbers<[1], [0], [0], [1], [0, 0, 1, 1], [], []>} : vector<8x64xf32>, vector<64x384xf32>, vector<8x384xf32> -> vector<8x384xf32>
    %c0_69 = arith.constant 0 : index
    %c1_70 = arith.constant 1 : index
    %c0_71 = arith.constant 0 : index
    %c0_72 = arith.constant 0 : index
    %100 = vector.load %arg16[%c0_69, %c1_70, %c0_71, %c0_72] : memref<2x3x8x64xf32, #tpu.memory_space<vmem>>, vector<1x1x8x64xf32>
    %101 = vector.shape_cast %100 : vector<1x1x8x64xf32> to vector<8x64xf32>
    %102 = vector.extract_strided_slice %95 {offsets = [0, 384], sizes = [64, 384], strides = [1, 1]} : vector<64x1152xf32> to vector<64x384xf32>
    %cst_73 = arith.constant dense<0.000000e+00> : vector<8x384xf32>
    %103 = tpu.matmul %101, %102, %cst_73 {dimension_numbers = #tpu.dot_dimension_numbers<[1], [0], [0], [1], [0, 0, 1, 1], [], []>} : vector<8x64xf32>, vector<64x384xf32>, vector<8x384xf32> -> vector<8x384xf32>
    %104 = arith.addf %99, %103 : vector<8x384xf32>
    %c0_74 = arith.constant 0 : index
    %c2_75 = arith.constant 2 : index
    %c0_76 = arith.constant 0 : index
    %c0_77 = arith.constant 0 : index
    %105 = vector.load %arg16[%c0_74, %c2_75, %c0_76, %c0_77] : memref<2x3x8x64xf32, #tpu.memory_space<vmem>>, vector<1x1x8x64xf32>
    %106 = vector.shape_cast %105 : vector<1x1x8x64xf32> to vector<8x64xf32>
    %107 = vector.extract_strided_slice %95 {offsets = [0, 768], sizes = [64, 384], strides = [1, 1]} : vector<64x1152xf32> to vector<64x384xf32>
    %cst_78 = arith.constant dense<0.000000e+00> : vector<8x384xf32>
    %108 = tpu.matmul %106, %107, %cst_78 {dimension_numbers = #tpu.dot_dimension_numbers<[1], [0], [0], [1], [0, 0, 1, 1], [], []>} : vector<8x64xf32>, vector<64x384xf32>, vector<8x384xf32> -> vector<8x384xf32>
    %109 = arith.addf %104, %108 : vector<8x384xf32>
    %c0_79 = arith.constant 0 : index
    %c0_80 = arith.constant 0 : index
    %c0_81 = arith.constant 0 : index
    %110 = vector.load %arg17[%c0_79, %c0_80, %c0_81] : memref<2x8x1xf32, #tpu.memory_space<vmem>>, vector<1x8x1xf32>
    %111 = vector.shape_cast %110 : vector<1x8x1xf32> to vector<8x1xf32>
    %112 = vector.broadcast %111 : vector<8x1xf32> to vector<8x384xf32>
    %113 = arith.addf %109, %112 : vector<8x384xf32>
    %114 = vector.extract_strided_slice %113 {offsets = [0, 0], sizes = [8, 321], strides = [1, 1]} : vector<8x384xf32> to vector<8x321xf32>
    %c0_82 = arith.constant 0 : index
    %c0_83 = arith.constant 0 : index
    %c0_84 = arith.constant 0 : index
    %115 = vector.load %arg18[%c0_82, %c0_83, %c0_84] : memref<8x2x321xf32, #tpu.memory_space<vmem>>, vector<8x1x321xf32>
    %116 = vector.shape_cast %115 : vector<8x1x321xf32> to vector<8x321xf32>
    %117 = vector.shape_cast %114 : vector<8x321xf32> to vector<8x1x321xf32>
    tpu.vector_store %arg18[%c0_82, %c0_83, %c0_84], %117 {strides = array<i32>} : memref<8x2x321xf32, #tpu.memory_space<vmem>>, vector<8x1x321xf32>,
    %c1_85 = arith.constant 1 : index
    %c0_86 = arith.constant 0 : index
    %c0_87 = arith.constant 0 : index
    %118 = vector.load %arg10[%c1_85, %c0_86, %c0_87] : memref<2x64x2048xf32, #tpu.memory_space<vmem>>, vector<1x64x2048xf32>
    %119 = vector.shape_cast %118 : vector<1x64x2048xf32> to vector<64x2048xf32>
    %cst_88 = arith.constant dense<0.000000e+00> : vector<8x2048xf32>
    %120 = tpu.matmul %25, %119, %cst_88 {dimension_numbers = #tpu.dot_dimension_numbers<[1], [0], [0], [1], [0, 0, 1, 1], [], []>} : vector<8x64xf32>, vector<64x2048xf32>, vector<8x2048xf32> -> vector<8x2048xf32>
    %c1_89 = arith.constant 1 : index
    %c0_90 = arith.constant 0 : index
    %c0_91 = arith.constant 0 : index
    %121 = vector.load %arg11[%c1_89, %c0_90, %c0_91] : memref<2x1x2048xf32, #tpu.memory_space<vmem>>, vector<1x1x2048xf32>
    %122 = vector.shape_cast %121 : vector<1x1x2048xf32> to vector<1x2048xf32>
    %123 = vector.broadcast %122 : vector<1x2048xf32> to vector<8x2048xf32>
    %124 = arith.addf %120, %123 : vector<8x2048xf32>
    %cst_92 = arith.constant 0.000000e+00 : f32
    %125 = vector.broadcast %cst_92 : f32 to vector<8x2048xf32>
    %126 = arith.cmpf ogt, %124, %125 : vector<8x2048xf32>
    %cst_93 = arith.constant 0.00999999977 : f32
    %127 = vector.broadcast %cst_93 : f32 to vector<8x2048xf32>
    %128 = arith.mulf %127, %124 : vector<8x2048xf32>
    %129 = arith.select %126, %124, %128 : vector<8x2048xi1>, vector<8x2048xf32>
    %130 = vector.extract_strided_slice %129 {offsets = [0, 0], sizes = [8, 128], strides = [1, 1]} : vector<8x2048xf32> to vector<8x128xf32>
    %131 = vector.extract_strided_slice %129 {offsets = [0, 128], sizes = [8, 128], strides = [1, 1]} : vector<8x2048xf32> to vector<8x128xf32>
    %132 = vector.extract_strided_slice %129 {offsets = [0, 256], sizes = [8, 128], strides = [1, 1]} : vector<8x2048xf32> to vector<8x128xf32>
    %133 = vector.extract_strided_slice %129 {offsets = [0, 384], sizes = [8, 128], strides = [1, 1]} : vector<8x2048xf32> to vector<8x128xf32>
    %134 = vector.extract_strided_slice %129 {offsets = [0, 512], sizes = [8, 128], strides = [1, 1]} : vector<8x2048xf32> to vector<8x128xf32>
    %135 = vector.extract_strided_slice %129 {offsets = [0, 640], sizes = [8, 128], strides = [1, 1]} : vector<8x2048xf32> to vector<8x128xf32>
    %136 = vector.extract_strided_slice %129 {offsets = [0, 768], sizes = [8, 128], strides = [1, 1]} : vector<8x2048xf32> to vector<8x128xf32>
    %137 = vector.extract_strided_slice %129 {offsets = [0, 896], sizes = [8, 128], strides = [1, 1]} : vector<8x2048xf32> to vector<8x128xf32>
    %138 = vector.extract_strided_slice %129 {offsets = [0, 1024], sizes = [8, 128], strides = [1, 1]} : vector<8x2048xf32> to vector<8x128xf32>
    %139 = vector.extract_strided_slice %129 {offsets = [0, 1152], sizes = [8, 128], strides = [1, 1]} : vector<8x2048xf32> to vector<8x128xf32>
    %140 = vector.extract_strided_slice %129 {offsets = [0, 1280], sizes = [8, 128], strides = [1, 1]} : vector<8x2048xf32> to vector<8x128xf32>
    %141 = vector.extract_strided_slice %129 {offsets = [0, 1408], sizes = [8, 128], strides = [1, 1]} : vector<8x2048xf32> to vector<8x128xf32>
    %142 = vector.extract_strided_slice %129 {offsets = [0, 1536], sizes = [8, 128], strides = [1, 1]} : vector<8x2048xf32> to vector<8x128xf32>
    %143 = vector.extract_strided_slice %129 {offsets = [0, 1664], sizes = [8, 128], strides = [1, 1]} : vector<8x2048xf32> to vector<8x128xf32>
    %144 = vector.extract_strided_slice %129 {offsets = [0, 1792], sizes = [8, 128], strides = [1, 1]} : vector<8x2048xf32> to vector<8x128xf32>
    %145 = vector.extract_strided_slice %129 {offsets = [0, 1920], sizes = [8, 128], strides = [1, 1]} : vector<8x2048xf32> to vector<8x128xf32>
    %146 = tpu.concatenate %130, %131, %132, %133, %134, %135, %136, %137, %138, %139, %140, %141, %142, %143, %144, %145 in 0 : vector<8x128xf32>, vector<8x128xf32>, vector<8x128xf32>, vector<8x128xf32>, vector<8x128xf32>, vector<8x128xf32>, vector<8x128xf32>, vector<8x128xf32>, vector<8x128xf32>, vector<8x128xf32>, vector<8x128xf32>, vector<8x128xf32>, vector<8x128xf32>, vector<8x128xf32>, vector<8x128xf32>, vector<8x128xf32> -> vector<128x128xf32>
    %c0_94 = arith.constant 0 : index
    %c0_95 = arith.constant 0 : index
    %147 = vector.load %arg7[%c0_94, %c0_95] : memref<128x384xf32, #tpu.memory_space<vmem>>, vector<128x384xf32>
    %cst_96 = arith.constant dense<0.000000e+00> : vector<128x384xf32>
    %148 = tpu.matmul %146, %147, %cst_96 {dimension_numbers = #tpu.dot_dimension_numbers<[1], [0], [0], [1], [0, 0, 1, 1], [], []>} : vector<128x128xf32>, vector<128x384xf32>, vector<128x384xf32> -> vector<128x384xf32>
    %c1_97 = arith.constant 1 : index
    %c0_98 = arith.constant 0 : index
    %c0_99 = arith.constant 0 : index
    %c0_100 = arith.constant 0 : index
    %149 = vector.load %arg12[%c1_97, %c0_98, %c0_99, %c0_100] : memref<2x3x128x128xf32, #tpu.memory_space<vmem>>, vector<1x1x128x128xf32>
    %150 = vector.shape_cast %149 : vector<1x1x128x128xf32> to vector<128x128xf32>
    %151 = vector.extract_strided_slice %148 {offsets = [0, 0], sizes = [128, 128], strides = [1, 1]} : vector<128x384xf32> to vector<128x128xf32>
    %cst_101 = arith.constant dense<0.000000e+00> : vector<128x128xf32>
    %152 = tpu.matmul %150, %151, %cst_101 {dimension_numbers = #tpu.dot_dimension_numbers<[1], [0], [0], [1], [0, 0, 1, 1], [], []>} : vector<128x128xf32>, vector<128x128xf32>, vector<128x128xf32> -> vector<128x128xf32>
    %c1_102 = arith.constant 1 : index
    %c1_103 = arith.constant 1 : index
    %c0_104 = arith.constant 0 : index
    %c0_105 = arith.constant 0 : index
    %153 = vector.load %arg12[%c1_102, %c1_103, %c0_104, %c0_105] : memref<2x3x128x128xf32, #tpu.memory_space<vmem>>, vector<1x1x128x128xf32>
    %154 = vector.shape_cast %153 : vector<1x1x128x128xf32> to vector<128x128xf32>
    %155 = vector.extract_strided_slice %148 {offsets = [0, 128], sizes = [128, 128], strides = [1, 1]} : vector<128x384xf32> to vector<128x128xf32>
    %cst_106 = arith.constant dense<0.000000e+00> : vector<128x128xf32>
    %156 = tpu.matmul %154, %155, %cst_106 {dimension_numbers = #tpu.dot_dimension_numbers<[1], [0], [0], [1], [0, 0, 1, 1], [], []>} : vector<128x128xf32>, vector<128x128xf32>, vector<128x128xf32> -> vector<128x128xf32>
    %157 = arith.addf %152, %156 : vector<128x128xf32>
    %c1_107 = arith.constant 1 : index
    %c2_108 = arith.constant 2 : index
    %c0_109 = arith.constant 0 : index
    %c0_110 = arith.constant 0 : index
    %158 = vector.load %arg12[%c1_107, %c2_108, %c0_109, %c0_110] : memref<2x3x128x128xf32, #tpu.memory_space<vmem>>, vector<1x1x128x128xf32>
    %159 = vector.shape_cast %158 : vector<1x1x128x128xf32> to vector<128x128xf32>
    %160 = vector.extract_strided_slice %148 {offsets = [0, 256], sizes = [128, 128], strides = [1, 1]} : vector<128x384xf32> to vector<128x128xf32>
    %cst_111 = arith.constant dense<0.000000e+00> : vector<128x128xf32>
    %161 = tpu.matmul %159, %160, %cst_111 {dimension_numbers = #tpu.dot_dimension_numbers<[1], [0], [0], [1], [0, 0, 1, 1], [], []>} : vector<128x128xf32>, vector<128x128xf32>, vector<128x128xf32> -> vector<128x128xf32>
    %162 = arith.addf %157, %161 : vector<128x128xf32>
    %c1_112 = arith.constant 1 : index
    %c0_113 = arith.constant 0 : index
    %c0_114 = arith.constant 0 : index
    %163 = vector.load %arg13[%c1_112, %c0_113, %c0_114] : memref<2x128x1xf32, #tpu.memory_space<vmem>>, vector<1x128x1xf32>
    %164 = vector.shape_cast %163 : vector<1x128x1xf32> to vector<128x1xf32>
    %165 = vector.broadcast %164 : vector<128x1xf32> to vector<128x128xf32>
    %166 = arith.addf %162, %165 : vector<128x128xf32>
    %cst_115 = arith.constant 0.000000e+00 : f32
    %167 = vector.broadcast %cst_115 : f32 to vector<128x128xf32>
    %168 = arith.cmpf ogt, %166, %167 : vector<128x128xf32>
    %cst_116 = arith.constant 0.00999999977 : f32
    %169 = vector.broadcast %cst_116 : f32 to vector<128x128xf32>
    %170 = arith.mulf %169, %166 : vector<128x128xf32>
    %171 = arith.select %168, %166, %170 : vector<128x128xi1>, vector<128x128xf32>
    %c0_117 = arith.constant 0 : index
    %c0_118 = arith.constant 0 : index
    %172 = vector.load %arg8[%c0_117, %c0_118] : memref<128x384xf32, #tpu.memory_space<vmem>>, vector<128x384xf32>
    %cst_119 = arith.constant dense<0.000000e+00> : vector<128x384xf32>
    %173 = tpu.matmul %171, %172, %cst_119 {dimension_numbers = #tpu.dot_dimension_numbers<[1], [0], [0], [1], [0, 0, 1, 1], [], []>} : vector<128x128xf32>, vector<128x384xf32>, vector<128x384xf32> -> vector<128x384xf32>
    %c1_120 = arith.constant 1 : index
    %c0_121 = arith.constant 0 : index
    %c0_122 = arith.constant 0 : index
    %174 = vector.load %arg14[%c1_120, %c0_121, %c0_122] : memref<2x64x128xf32, #tpu.memory_space<vmem>>, vector<1x64x128xf32>
    %175 = vector.shape_cast %174 : vector<1x64x128xf32> to vector<64x128xf32>
    %cst_123 = arith.constant dense<0.000000e+00> : vector<64x384xf32>
    %176 = tpu.matmul %175, %173, %cst_123 {dimension_numbers = #tpu.dot_dimension_numbers<[1], [0], [0], [1], [0, 0, 1, 1], [], []>} : vector<64x128xf32>, vector<128x384xf32>, vector<64x384xf32> -> vector<64x384xf32>
    %c1_124 = arith.constant 1 : index
    %c0_125 = arith.constant 0 : index
    %c0_126 = arith.constant 0 : index
    %177 = vector.load %arg15[%c1_124, %c0_125, %c0_126] : memref<2x64x1xf32, #tpu.memory_space<vmem>>, vector<1x64x1xf32>
    %178 = vector.shape_cast %177 : vector<1x64x1xf32> to vector<64x1xf32>
    %179 = vector.broadcast %178 : vector<64x1xf32> to vector<64x384xf32>
    %180 = arith.addf %176, %179 : vector<64x384xf32>
    %cst_127 = arith.constant 0.000000e+00 : f32
    %181 = vector.broadcast %cst_127 : f32 to vector<64x384xf32>
    %182 = arith.cmpf ogt, %180, %181 : vector<64x384xf32>
    %cst_128 = arith.constant 0.00999999977 : f32
    %183 = vector.broadcast %cst_128 : f32 to vector<64x384xf32>
    %184 = arith.mulf %183, %180 : vector<64x384xf32>
    %185 = arith.select %182, %180, %184 : vector<64x384xi1>, vector<64x384xf32>
    %c0_129 = arith.constant 0 : index
    %c0_130 = arith.constant 0 : index
    %186 = vector.load %arg9[%c0_129, %c0_130] : memref<384x1152xf32, #tpu.memory_space<vmem>>, vector<384x1152xf32>
    %cst_131 = arith.constant dense<0.000000e+00> : vector<64x1152xf32>
    %187 = tpu.matmul %185, %186, %cst_131 {dimension_numbers = #tpu.dot_dimension_numbers<[1], [0], [0], [1], [0, 0, 1, 1], [], []>} : vector<64x384xf32>, vector<384x1152xf32>, vector<64x1152xf32> -> vector<64x1152xf32>
    %c1_132 = arith.constant 1 : index
    %c0_133 = arith.constant 0 : index
    %c0_134 = arith.constant 0 : index
    %c0_135 = arith.constant 0 : index
    %188 = vector.load %arg16[%c1_132, %c0_133, %c0_134, %c0_135] : memref<2x3x8x64xf32, #tpu.memory_space<vmem>>, vector<1x1x8x64xf32>
    %189 = vector.shape_cast %188 : vector<1x1x8x64xf32> to vector<8x64xf32>
    %190 = vector.extract_strided_slice %187 {offsets = [0, 0], sizes = [64, 384], strides = [1, 1]} : vector<64x1152xf32> to vector<64x384xf32>
    %cst_136 = arith.constant dense<0.000000e+00> : vector<8x384xf32>
    %191 = tpu.matmul %189, %190, %cst_136 {dimension_numbers = #tpu.dot_dimension_numbers<[1], [0], [0], [1], [0, 0, 1, 1], [], []>} : vector<8x64xf32>, vector<64x384xf32>, vector<8x384xf32> -> vector<8x384xf32>
    %c1_137 = arith.constant 1 : index
    %c1_138 = arith.constant 1 : index
    %c0_139 = arith.constant 0 : index
    %c0_140 = arith.constant 0 : index
    %192 = vector.load %arg16[%c1_137, %c1_138, %c0_139, %c0_140] : memref<2x3x8x64xf32, #tpu.memory_space<vmem>>, vector<1x1x8x64xf32>
    %193 = vector.shape_cast %192 : vector<1x1x8x64xf32> to vector<8x64xf32>
    %194 = vector.extract_strided_slice %187 {offsets = [0, 384], sizes = [64, 384], strides = [1, 1]} : vector<64x1152xf32> to vector<64x384xf32>
    %cst_141 = arith.constant dense<0.000000e+00> : vector<8x384xf32>
    %195 = tpu.matmul %193, %194, %cst_141 {dimension_numbers = #tpu.dot_dimension_numbers<[1], [0], [0], [1], [0, 0, 1, 1], [], []>} : vector<8x64xf32>, vector<64x384xf32>, vector<8x384xf32> -> vector<8x384xf32>
    %196 = arith.addf %191, %195 : vector<8x384xf32>
    %c1_142 = arith.constant 1 : index
    %c2_143 = arith.constant 2 : index
    %c0_144 = arith.constant 0 : index
    %c0_145 = arith.constant 0 : index
    %197 = vector.load %arg16[%c1_142, %c2_143, %c0_144, %c0_145] : memref<2x3x8x64xf32, #tpu.memory_space<vmem>>, vector<1x1x8x64xf32>
    %198 = vector.shape_cast %197 : vector<1x1x8x64xf32> to vector<8x64xf32>
    %199 = vector.extract_strided_slice %187 {offsets = [0, 768], sizes = [64, 384], strides = [1, 1]} : vector<64x1152xf32> to vector<64x384xf32>
    %cst_146 = arith.constant dense<0.000000e+00> : vector<8x384xf32>
    %200 = tpu.matmul %198, %199, %cst_146 {dimension_numbers = #tpu.dot_dimension_numbers<[1], [0], [0], [1], [0, 0, 1, 1], [], []>} : vector<8x64xf32>, vector<64x384xf32>, vector<8x384xf32> -> vector<8x384xf32>
    %201 = arith.addf %196, %200 : vector<8x384xf32>
    %c1_147 = arith.constant 1 : index
    %c0_148 = arith.constant 0 : index
    %c0_149 = arith.constant 0 : index
    %202 = vector.load %arg17[%c1_147, %c0_148, %c0_149] : memref<2x8x1xf32, #tpu.memory_space<vmem>>, vector<1x8x1xf32>
    %203 = vector.shape_cast %202 : vector<1x8x1xf32> to vector<8x1xf32>
    %204 = vector.broadcast %203 : vector<8x1xf32> to vector<8x384xf32>
    %205 = arith.addf %201, %204 : vector<8x384xf32>
    %206 = vector.extract_strided_slice %205 {offsets = [0, 0], sizes = [8, 321], strides = [1, 1]} : vector<8x384xf32> to vector<8x321xf32>
    %c0_150 = arith.constant 0 : index
    %c1_151 = arith.constant 1 : index
    %c0_152 = arith.constant 0 : index
    %207 = vector.load %arg18[%c0_150, %c1_151, %c0_152] : memref<8x2x321xf32, #tpu.memory_space<vmem>>, vector<8x1x321xf32>
    %208 = vector.shape_cast %207 : vector<8x1x321xf32> to vector<8x321xf32>
    %209 = vector.shape_cast %206 : vector<8x321xf32> to vector<8x1x321xf32>
    tpu.vector_store %arg18[%c0_150, %c1_151, %c0_152], %209 {strides = array<i32>} : memref<8x2x321xf32, #tpu.memory_space<vmem>>, vector<8x1x321xf32>,
    return
  }
}

</mosaic_0001>

<llo_original>
// kernel: _lambda_.1
$region0: #{_lambda_.1}
  #allocation0 [shape = 'u32[]', space=smem, size = 0x4, offset = 0x4, fixed_abs, tag = 'smem constant byte address 0x4 - core index']
  #allocation1 [shape = 'u32[144,128]{1,0:T(1,128)}', space=vmem, size = 0x12000, scoped, tag = 'internal scratch']
  %s0 = inlined_call_operand.hbm [shape: f32[8,24], index: 0, kind: input, shape index: {}]
  %s1 = inlined_call_operand.hbm [shape: f32[24,48], index: 1, kind: input, shape index: {}]
  %s2 = inlined_call_operand.hbm [shape: f32[1,48], index: 2, kind: input, shape index: {}]
  %s3 = inlined_call_operand.vmem [shape: f32[48,24], index: 3, kind: input, shape index: {}]
  %s4 = inlined_call_operand.hbm [shape: f32[1,24], index: 4, kind: input, shape index: {}]
  %s5 = inlined_call_operand.hbm [shape: f32[24,64], index: 5, kind: input, shape index: {}]
  %s6 = inlined_call_operand.hbm [shape: f32[1,64], index: 6, kind: input, shape index: {}]
  %s7 = inlined_call_operand.hbm [shape: f32[128,384], index: 7, kind: input, shape index: {}]
  %s8 = inlined_call_operand.hbm [shape: f32[128,384], index: 8, kind: input, shape index: {}]
  %s9 = inlined_call_operand.hbm [shape: f32[384,1152], index: 9, kind: input, shape index: {}]
  %s10 = inlined_call_operand.hbm [shape: f32[2,64,2048], index: 10, kind: input, shape index: {}]
  %s11 = inlined_call_operand.hbm [shape: f32[2,1,2048], index: 11, kind: input, shape index: {}]
  %s12 = inlined_call_operand.hbm [shape: f32[2,3,128,128], index: 12, kind: input, shape index: {}]
  %s13 = inlined_call_operand.vmem [shape: f32[2,128,1], index: 13, kind: input, shape index: {}]
  %s14 = inlined_call_operand.hbm [shape: f32[2,64,128], index: 14, kind: input, shape index: {}]
  %s15 = inlined_call_operand.vmem [shape: f32[2,64,1], index: 15, kind: input, shape index: {}]
  %s16 = inlined_call_operand.hbm [shape: f32[2,3,8,64], index: 16, kind: input, shape index: {}]
  %s17 = inlined_call_operand.vmem [shape: f32[2,8,1], index: 17, kind: input, shape index: {}]
  %s18 = inlined_call_operand.hbm [shape: f32[8,2,321], index: 18, kind: output, shape index: {}]
  %s19 = sld [smem:[#allocation0]]
  $region138: #{_lambda_.1} parent=0
    _
  %s21 = ssub.s32 1, %s19
  %s22 = scalar_select 0, %s21, %s19
  $region1: #{_lambda_.1} parent=0
    #allocation2 [shape = 'u8[4096]{0}', space=vmem, size = 0x1000, scoped, tag = 'input window, operand 0, single buffered']
    #allocation3 [shape = 's32[1]{0}', space=sflag, size = 0x4, scoped, tag = 'scoped memory for _lambda_.1']
    #allocation4 [shape = 's32[1]{0}', space=sflag, size = 0x4, scoped, tag = 'scoped memory for _lambda_.1']
    #allocation5 [shape = 'u8[12288]{0}', space=vmem, size = 0x3000, scoped, tag = 'input window, operand 1, single buffered']
    #allocation6 [shape = 's32[1]{0}', space=sflag, size = 0x4, scoped, tag = 'scoped memory for _lambda_.1']
    #allocation7 [shape = 'u8[512]{0}', space=vmem, size = 0x400, scoped, tag = 'input window, operand 2, single buffered']
    #allocation8 [shape = 'u8[512]{0}', space=vmem, size = 0x400, scoped, tag = 'input window, operand 4, single buffered']
    #allocation9 [shape = 's32[1]{0}', space=sflag, size = 0x4, scoped, tag = 'scoped memory for _lambda_.1']
    #allocation10 [shape = 'u8[12288]{0}', space=vmem, size = 0x3000, scoped, tag = 'input window, operand 5, single buffered']
    #allocation11 [shape = 'u8[512]{0}', space=vmem, size = 0x400, scoped, tag = 'input window, operand 6, single buffered']
    #allocation12 [shape = 's32[1]{0}', space=sflag, size = 0x4, scoped, tag = 'scoped memory for _lambda_.1']
    #allocation13 [shape = 'u8[196608]{0}', space=vmem, size = 0x30000, scoped, tag = 'input window, operand 7, single buffered']
    #allocation14 [shape = 'u8[196608]{0}', space=vmem, size = 0x30000, scoped, tag = 'input window, operand 8, single buffered']
    #allocation15 [shape = 's32[1]{0}', space=sflag, size = 0x4, scoped, tag = 'scoped memory for _lambda_.1']
    #allocation16 [shape = 'u8[1769472]{0}', space=vmem, size = 0x1b0000, scoped, tag = 'input window, operand 9, single buffered']
    #allocation17 [shape = 'u8[1048576]{0}', space=vmem, size = 0x100000, scoped, tag = 'input window, operand 10, single buffered']
    #allocation18 [shape = 's32[1]{0}', space=sflag, size = 0x4, scoped, tag = 'scoped memory for _lambda_.1']
    #allocation19 [shape = 'u8[16384]{0}', space=vmem, size = 0x4000, scoped, tag = 'input window, operand 11, single buffered']
    #allocation20 [shape = 'u8[393216]{0}', space=vmem, size = 0x60000, scoped, tag = 'input window, operand 12, single buffered']
    #allocation21 [shape = 's32[1]{0}', space=sflag, size = 0x4, scoped, tag = 'scoped memory for _lambda_.1']
    #allocation22 [shape = 'u8[65536]{0}', space=vmem, size = 0x10000, scoped, tag = 'input window, operand 14, single buffered']
    #allocation23 [shape = 'u8[24576]{0}', space=vmem, size = 0x6000, scoped, tag = 'input window, operand 16, single buffered']
    #allocation24 [shape = 's32[1]{0}', space=sflag, size = 0x4, scoped, tag = 'scoped memory for _lambda_.1']
    #allocation25 [shape = 'u8[24576]{0}', space=vmem, size = 0x6000, scoped, tag = 'output window, operand 0, single buffered']
    %23 = vsyncpa [#allocation3], 0
    %24 = vsyncpa [#allocation6], 0
    %25 = vsyncpa [#allocation9], 0
    %26 = vsyncpa [#allocation12], 0
    %27 = vsyncpa [#allocation15], 0
    %28 = vsyncpa [#allocation18], 0
    %29 = vsyncpa [#allocation21], 0
    %30 = vsyncpa [#allocation24], 0
    %31 = vsyncpa [#allocation4], 0
    // Predicated region
    $region2: #{_lambda_.1} parent=1 // pred_check
      _
    $region3: #{_lambda_.1} parent=1 // pred_check_branch
      %33 = sbr.rel (0) target = $region5
    $region4: #{_lambda_.1} parent=1 // pred_region
      %s35 = ssub.s32 128, 128
      %36 = vsyncadd [#allocation3], %s35
      %s38 = sshll.u32 [#allocation2], 4
      %s39 = int_to_ptr.vmem [resolvable:$true] %s38
      %41 = dma.hbm_to_vmem [thread:$0]  %s0, 128, %s39, [#allocation3]
    $region5: #{_lambda_.1} parent=1 // pred_fallthru
      _
    // Predicated region
    $region6: #{_lambda_.1} parent=1 // pred_check
      _
    $region7: #{_lambda_.1} parent=1 // pred_check_branch
      %43 = sbr.rel (0) target = $region9
    $region8: #{_lambda_.1} parent=1 // pred_region
      %s45 = ssub.s32 384, 384
      %46 = vsyncadd [#allocation6], %s45
      %s47 = sshll.u32 [#allocation5], 4
      %s48 = int_to_ptr.vmem [resolvable:$true] %s47
      %53 = dma.hbm_to_vmem [thread:$0]  %s1, 384, %s48, [#allocation6], 128, 128, 8
    $region9: #{_lambda_.1} parent=1 // pred_fallthru
      _
    // Predicated region
    $region10: #{_lambda_.1} parent=1 // pred_check
      _
    $region11: #{_lambda_.1} parent=1 // pred_check_branch
      %55 = sbr.rel (0) target = $region13
    $region12: #{_lambda_.1} parent=1 // pred_region
      %s57 = ssub.s32 16, 16
      %58 = vsyncadd [#allocation6], %s57
      %s60 = sshll.u32 [#allocation7], 4
      %s61 = int_to_ptr.vmem [resolvable:$true] %s60
      %63 = dma.hbm_to_vmem [thread:$0]  %s2, 16, %s61, [#allocation6]
    $region13: #{_lambda_.1} parent=1 // pred_fallthru
      _
    // Predicated region
    $region14: #{_lambda_.1} parent=1 // pred_check
      _
    $region15: #{_lambda_.1} parent=1 // pred_check_branch
      %65 = sbr.rel (0) target = $region17
    $region16: #{_lambda_.1} parent=1 // pred_region
      _
    $region17: #{_lambda_.1} parent=1 // pred_fallthru
      _
    // Predicated region
    $region18: #{_lambda_.1} parent=1 // pred_check
      _
    $region19: #{_lambda_.1} parent=1 // pred_check_branch
      %67 = sbr.rel (0) target = $region21
    $region20: #{_lambda_.1} parent=1 // pred_region
      %s69 = ssub.s32 16, 16
      %70 = vsyncadd [#allocation9], %s69
      %s72 = sshll.u32 [#allocation8], 4
      %s73 = int_to_ptr.vmem [resolvable:$true] %s72
      %75 = dma.hbm_to_vmem [thread:$0]  %s4, 16, %s73, [#allocation9]
    $region21: #{_lambda_.1} parent=1 // pred_fallthru
      _
    // Predicated region
    $region22: #{_lambda_.1} parent=1 // pred_check
      _
    $region23: #{_lambda_.1} parent=1 // pred_check_branch
      %77 = sbr.rel (0) target = $region25
    $region24: #{_lambda_.1} parent=1 // pred_region
      %s79 = ssub.s32 384, 384
      %80 = vsyncadd [#allocation9], %s79
      %s81 = sshll.u32 [#allocation10], 4
      %s82 = int_to_ptr.vmem [resolvable:$true] %s81
      %87 = dma.hbm_to_vmem [thread:$0]  %s5, 384, %s82, [#allocation9], 128, 128, 8
    $region25: #{_lambda_.1} parent=1 // pred_fallthru
      _
    // Predicated region
    $region26: #{_lambda_.1} parent=1 // pred_check
      _
    $region27: #{_lambda_.1} parent=1 // pred_check_branch
      %89 = sbr.rel (0) target = $region29
    $region28: #{_lambda_.1} parent=1 // pred_region
      %s91 = ssub.s32 16, 16
      %92 = vsyncadd [#allocation12], %s91
      %s94 = sshll.u32 [#allocation11], 4
      %s95 = int_to_ptr.vmem [resolvable:$true] %s94
      %97 = dma.hbm_to_vmem [thread:$0]  %s6, 16, %s95, [#allocation12]
    $region29: #{_lambda_.1} parent=1 // pred_fallthru
      _
    // Predicated region
    $region30: #{_lambda_.1} parent=1 // pred_check
      _
    $region31: #{_lambda_.1} parent=1 // pred_check_branch
      %99 = sbr.rel (0) target = $region33
    $region32: #{_lambda_.1} parent=1 // pred_region
      %s101 = ssub.s32 6144, 6144
      %102 = vsyncadd [#allocation12], %s101
      %s103 = sshll.u32 [#allocation13], 4
      %s104 = int_to_ptr.vmem [resolvable:$true] %s103
      %109 = dma.hbm_to_vmem [thread:$0]  %s7, 6144, %s104, [#allocation12], 384, 384, 24
    $region33: #{_lambda_.1} parent=1 // pred_fallthru
      _
    // Predicated region
    $region34: #{_lambda_.1} parent=1 // pred_check
      _
    $region35: #{_lambda_.1} parent=1 // pred_check_branch
      %111 = sbr.rel (0) target = $region37
    $region36: #{_lambda_.1} parent=1 // pred_region
      %s113 = ssub.s32 6144, 6144
      %114 = vsyncadd [#allocation15], %s113
      %s115 = sshll.u32 [#allocation14], 4
      %s116 = int_to_ptr.vmem [resolvable:$true] %s115
      %121 = dma.hbm_to_vmem [thread:$0]  %s8, 6144, %s116, [#allocation15], 384, 384, 24
    $region37: #{_lambda_.1} parent=1 // pred_fallthru
      _
    // Predicated region
    $region38: #{_lambda_.1} parent=1 // pred_check
      _
    $region39: #{_lambda_.1} parent=1 // pred_check_branch
      %123 = sbr.rel (0) target = $region41
    $region40: #{_lambda_.1} parent=1 // pred_region
      %s125 = ssub.s32 55296, 55296
      %126 = vsyncadd [#allocation15], %s125
      %s127 = sshll.u32 [#allocation16], 4
      %s128 = int_to_ptr.vmem [resolvable:$true] %s127
      %133 = dma.hbm_to_vmem [thread:$0]  %s9, 55296, %s128, [#allocation15], 1152, 1152, 72
    $region41: #{_lambda_.1} parent=1 // pred_fallthru
      _
    // Predicated region
    $region42: #{_lambda_.1} parent=1 // pred_check
      _
    $region43: #{_lambda_.1} parent=1 // pred_check_branch
      %135 = sbr.rel (0) target = $region45
    $region44: #{_lambda_.1} parent=1 // pred_region
      %s137 = ssub.s32 32768, 32768
      %138 = vsyncadd [#allocation18], %s137
      %s139 = sshll.u32 [#allocation17], 4
      %s140 = int_to_ptr.vmem [resolvable:$true] %s139
      %145 = dma.hbm_to_vmem [thread:$0]  %s10, 32768, %s140, [#allocation18], 2048, 2048, 128
    $region45: #{_lambda_.1} parent=1 // pred_fallthru
      _
    // Predicated region
    $region46: #{_lambda_.1} parent=1 // pred_check
      _
    $region47: #{_lambda_.1} parent=1 // pred_check_branch
      %147 = sbr.rel (0) target = $region49
    $region48: #{_lambda_.1} parent=1 // pred_region
      %s149 = ssub.s32 512, 512
      %150 = vsyncadd [#allocation18], %s149
      %s151 = sshll.u32 [#allocation19], 4
      %s152 = int_to_ptr.vmem [resolvable:$true] %s151
      %157 = dma.hbm_to_vmem [thread:$0]  %s11, 512, %s152, [#allocation18], 256, 256, 16
    $region49: #{_lambda_.1} parent=1 // pred_fallthru
      _
    // Predicated region
    $region50: #{_lambda_.1} parent=1 // pred_check
      _
    $region51: #{_lambda_.1} parent=1 // pred_check_branch
      %159 = sbr.rel (0) target = $region53
    $region52: #{_lambda_.1} parent=1 // pred_region
      %s161 = ssub.s32 12288, 12288
      %162 = vsyncadd [#allocation21], %s161
      %s163 = sshll.u32 [#allocation20], 4
      %s164 = int_to_ptr.vmem [resolvable:$true] %s163
      %169 = dma.hbm_to_vmem [thread:$0]  %s12, 12288, %s164, [#allocation21], 128, 128, 8
    $region53: #{_lambda_.1} parent=1 // pred_fallthru
      _
    // Predicated region
    $region54: #{_lambda_.1} parent=1 // pred_check
      _
    $region55: #{_lambda_.1} parent=1 // pred_check_branch
      %171 = sbr.rel (0) target = $region57
    $region56: #{_lambda_.1} parent=1 // pred_region
      _
    $region57: #{_lambda_.1} parent=1 // pred_fallthru
      _
    // Predicated region
    $region58: #{_lambda_.1} parent=1 // pred_check
      _
    $region59: #{_lambda_.1} parent=1 // pred_check_branch
      %173 = sbr.rel (0) target = $region61
    $region60: #{_lambda_.1} parent=1 // pred_region
      %s175 = ssub.s32 2048, 2048
      %176 = vsyncadd [#allocation21], %s175
      %s177 = sshll.u32 [#allocation22], 4
      %s178 = int_to_ptr.vmem [resolvable:$true] %s177
      %183 = dma.hbm_to_vmem [thread:$0]  %s14, 2048, %s178, [#allocation21], 128, 128, 8
    $region61: #{_lambda_.1} parent=1 // pred_fallthru
      _
    // Predicated region
    $region62: #{_lambda_.1} parent=1 // pred_check
      _
    $region63: #{_lambda_.1} parent=1 // pred_check_branch
      %185 = sbr.rel (0) target = $region65
    $region64: #{_lambda_.1} parent=1 // pred_region
      _
    $region65: #{_lambda_.1} parent=1 // pred_fallthru
      _
    // Predicated region
    $region66: #{_lambda_.1} parent=1 // pred_check
      _
    $region67: #{_lambda_.1} parent=1 // pred_check_branch
      %187 = sbr.rel (0) target = $region69
    $region68: #{_lambda_.1} parent=1 // pred_region
      %s189 = ssub.s32 768, 768
      %190 = vsyncadd [#allocation24], %s189
      %s191 = sshll.u32 [#allocation23], 4
      %s192 = int_to_ptr.vmem [resolvable:$true] %s191
      %197 = dma.hbm_to_vmem [thread:$0]  %s16, 768, %s192, [#allocation24], 128, 128, 8
    $region69: #{_lambda_.1} parent=1 // pred_fallthru
      _
    // Predicated region
    $region70: #{_lambda_.1} parent=1 // pred_check
      _
    $region71: #{_lambda_.1} parent=1 // pred_check_branch
      %199 = sbr.rel (0) target = $region73
    $region72: #{_lambda_.1} parent=1 // pred_region
      _
    $region73: #{_lambda_.1} parent=1 // pred_fallthru
      _
    // Predicated region
    $region74: #{_lambda_.1} parent=1 // pred_check
      _
    $region75: #{_lambda_.1} parent=1 // pred_check_branch
      %201 = sbr.rel (0) target = $region77
    $region76: #{_lambda_.1} parent=1 // pred_region
      %202 = dma.done [#allocation3], 128
    $region77: #{_lambda_.1} parent=1 // pred_fallthru
      _
    // Predicated region
    $region78: #{_lambda_.1} parent=1 // pred_check
      _
    $region79: #{_lambda_.1} parent=1 // pred_check_branch
      %204 = sbr.rel (0) target = $region81
    $region80: #{_lambda_.1} parent=1 // pred_region
      %205 = dma.done [#allocation6], 384
    $region81: #{_lambda_.1} parent=1 // pred_fallthru
      _
    // Predicated region
    $region82: #{_lambda_.1} parent=1 // pred_check
      _
    $region83: #{_lambda_.1} parent=1 // pred_check_branch
      %207 = sbr.rel (0) target = $region85
    $region84: #{_lambda_.1} parent=1 // pred_region
      %208 = dma.done [#allocation6], 16
    $region85: #{_lambda_.1} parent=1 // pred_fallthru
      _
    // Predicated region
    $region86: #{_lambda_.1} parent=1 // pred_check
      _
    $region87: #{_lambda_.1} parent=1 // pred_check_branch
      %210 = sbr.rel (0) target = $region89
    $region88: #{_lambda_.1} parent=1 // pred_region
      %211 = dma.done [#allocation9], 16
    $region89: #{_lambda_.1} parent=1 // pred_fallthru
      _
    // Predicated region
    $region90: #{_lambda_.1} parent=1 // pred_check
      _
    $region91: #{_lambda_.1} parent=1 // pred_check_branch
      %213 = sbr.rel (0) target = $region93
    $region92: #{_lambda_.1} parent=1 // pred_region
      %214 = dma.done [#allocation9], 384
    $region93: #{_lambda_.1} parent=1 // pred_fallthru
      _
    // Predicated region
    $region94: #{_lambda_.1} parent=1 // pred_check
      _
    $region95: #{_lambda_.1} parent=1 // pred_check_branch
      %216 = sbr.rel (0) target = $region97
    $region96: #{_lambda_.1} parent=1 // pred_region
      %217 = dma.done [#allocation12], 16
    $region97: #{_lambda_.1} parent=1 // pred_fallthru
      _
    // Predicated region
    $region98: #{_lambda_.1} parent=1 // pred_check
      _
    $region99: #{_lambda_.1} parent=1 // pred_check_branch
      %219 = sbr.rel (0) target = $region101
    $region100: #{_lambda_.1} parent=1 // pred_region
      %220 = dma.done [#allocation12], 6144
    $region101: #{_lambda_.1} parent=1 // pred_fallthru
      _
    // Predicated region
    $region102: #{_lambda_.1} parent=1 // pred_check
      _
    $region103: #{_lambda_.1} parent=1 // pred_check_branch
      %222 = sbr.rel (0) target = $region105
    $region104: #{_lambda_.1} parent=1 // pred_region
      %223 = dma.done [#allocation15], 6144
    $region105: #{_lambda_.1} parent=1 // pred_fallthru
      _
    // Predicated region
    $region106: #{_lambda_.1} parent=1 // pred_check
      _
    $region107: #{_lambda_.1} parent=1 // pred_check_branch
      %225 = sbr.rel (0) target = $region109
    $region108: #{_lambda_.1} parent=1 // pred_region
      %226 = dma.done [#allocation15], 55296
    $region109: #{_lambda_.1} parent=1 // pred_fallthru
      _
    // Predicated region
    $region110: #{_lambda_.1} parent=1 // pred_check
      _
    $region111: #{_lambda_.1} parent=1 // pred_check_branch
      %228 = sbr.rel (0) target = $region113
    $region112: #{_lambda_.1} parent=1 // pred_region
      %229 = dma.done [#allocation18], 32768
    $region113: #{_lambda_.1} parent=1 // pred_fallthru
      _
    // Predicated region
    $region114: #{_lambda_.1} parent=1 // pred_check
      _
    $region115: #{_lambda_.1} parent=1 // pred_check_branch
      %231 = sbr.rel (0) target = $region117
    $region116: #{_lambda_.1} parent=1 // pred_region
      %232 = dma.done [#allocation18], 512
    $region117: #{_lambda_.1} parent=1 // pred_fallthru
      _
    // Predicated region
    $region118: #{_lambda_.1} parent=1 // pred_check
      _
    $region119: #{_lambda_.1} parent=1 // pred_check_branch
      %234 = sbr.rel (0) target = $region121
    $region120: #{_lambda_.1} parent=1 // pred_region
      %235 = dma.done [#allocation21], 12288
    $region121: #{_lambda_.1} parent=1 // pred_fallthru
      _
    // Predicated region
    $region122: #{_lambda_.1} parent=1 // pred_check
      _
    $region123: #{_lambda_.1} parent=1 // pred_check_branch
      %237 = sbr.rel (0) target = $region125
    $region124: #{_lambda_.1} parent=1 // pred_region
      %238 = dma.done [#allocation21], 2048
    $region125: #{_lambda_.1} parent=1 // pred_fallthru
      _
    // Predicated region
    $region126: #{_lambda_.1} parent=1 // pred_check
      _
    $region127: #{_lambda_.1} parent=1 // pred_check_branch
      %240 = sbr.rel (0) target = $region129
    $region128: #{_lambda_.1} parent=1 // pred_region
      %241 = dma.done [#allocation24], 768
    $region129: #{_lambda_.1} parent=1 // pred_fallthru
      _
    %v242 = vld [vmem:[#allocation2] sm:$0xff]
    %v243 = vld [vmem:[#allocation5] sm:$0xff]
    %v244 = vld [vmem:[#allocation5 + $0x8] sm:$0xff]
    %v245 = vld [vmem:[#allocation5 + $0x10] sm:$0xff]
    %v246 = vld [vmem:[#allocation7] sm:$0x1]
    %v248 = vlaneseq
    %v249 = vshrl.u32 %v248, 7
    %v250 = vsub.s32 0, %v249
    %v251 = vrot.slane %v246, %v250
    %vm253 = vcmask 195584
    %v255 = vsel %vm253, %v242, 0
    %257 = vmatprep.subr.mxu0 0.0
    %258 = vmatpush1.msra.mxu0 %v243
    %259 = vmatprep.subr.mxu0 0.0
    %260 = vmatpush1.msra.mxu0 %v244
    %261 = vmatprep.subr.mxu0 0.0
    %262 = vmatpush1.msra.mxu0 %v245
    %263 = vmatprep.subr.mxu0 0.0
    %264 = vmatpush1.msra.mxu0 0.0
    %265 = vmatprep.subr.mxu0 0.0
    %266 = vmatpush1.msra.mxu0 0.0
    %267 = vmatprep.subr.mxu0 0.0
    %268 = vmatpush1.msra.mxu0 0.0
    %269 = vmatprep.subr.mxu0 0.0
    %270 = vmatpush1.msra.mxu0 0.0
    %271 = vmatprep.subr.mxu0 0.0
    %272 = vmatpush1.msra.mxu0 0.0
    %273 = vmatprep.subr.mxu0 0.0
    %274 = vmatpush1.msra.mxu0 0.0
    %275 = vmatprep.subr.mxu0 0.0
    %276 = vmatpush1.msra.mxu0 0.0
    %277 = vmatprep.subr.mxu0 0.0
    %278 = vmatpush1.msra.mxu0 0.0
    %279 = vmatprep.subr.mxu0 0.0
    %280 = vmatpush1.msra.mxu0 0.0
    %281 = vmatprep.subr.mxu0 0.0
    %282 = vmatpush1.msra.mxu0 0.0
    %283 = vmatprep.subr.mxu0 0.0
    %284 = vmatpush1.msra.mxu0 0.0
    %285 = vmatprep.subr.mxu0 0.0
    %286 = vmatpush1.msra.mxu0 0.0
    %287 = vmatprep.subr.mxu0 0.0
    %288 = vmatpush1.msra.mxu0 0.0
    %289 = vmatprep.subr.mxu0 0.0
    %290 = vmatpush1.msra.mxu0 0.0
    %291 = vmatprep.subr.mxu0 0.0
    %292 = vmatpush1.msra.mxu0 0.0
    %293 = vmatprep.subr.mxu0 0.0
    %294 = vmatpush1.msra.mxu0 0.0
    %295 = vmatprep.subr.mxu0 0.0
    %296 = vmatpush1.msra.mxu0 0.0
    %297 = vmatprep.subr.mxu0 0.0
    %298 = vmatpush1.msra.mxu0 0.0
    %299 = vmatprep.subr.mxu0 0.0
    %300 = vmatpush1.msra.mxu0 0.0
    %301 = vmatprep.subr.mxu0 0.0
    %302 = vmatpush1.msra.mxu0 0.0
    %303 = vmatprep.subr.mxu0 0.0
    %304 = vmatpush1.msra.mxu0 0.0
    %305 = vmatprep.subr.mxu0 0.0
    %306 = vmatpush1.msra.mxu0 0.0
    %307 = vmatprep.subr.mxu0 0.0
    %308 = vmatpush1.msra.mxu0 0.0
    %309 = vmatprep.subr.mxu0 0.0
    %310 = vmatpush1.msra.mxu0 0.0
    %311 = vmatprep.subr.mxu0 0.0
    %312 = vmatpush1.msra.mxu0 0.0
    %313 = vmatprep.subr.mxu0 0.0
    %314 = vmatpush1.msra.mxu0 0.0
    %315 = vmatprep.subr.mxu0 0.0
    %316 = vmatpush1.msra.mxu0 0.0
    %317 = vmatprep.subr.mxu0 0.0
    %318 = vmatpush1.msra.mxu0 0.0
    %319 = vmatprep.subr.mxu0 0.0
    %320 = vmatpush1.msra.mxu0 0.0
    %321 = vmatprep.mubr.f32.mxu0 0.0
    %322 = vmatmul.mubr.f32.gmra.mrb[0].mxu0 %v255
    %v323 = vpop.f32.mrb[0].mxu0
    %v324 = vadd.f32 %v251, %v323
    %v325 = vpop.f32.mrb[0].mxu0
    %326 = vdwg.mxu0
    %vm327 = vcmp.gt.f32.partialorder %v324, 0.0
    %v328 = vmul.f32 %v324, 0.01
    %v329 = vsel %vm327, %v324, %v328
    %v330 = vld [vmem:[%s3] sm:$0xff]
    %v331 = vld [vmem:[%s3 + $0x8] sm:$0xff]
    %v332 = vld [vmem:[%s3 + $0x10] sm:$0xff]
    %v333 = vld [vmem:[%s3 + $0x18] sm:$0xff]
    %v334 = vld [vmem:[%s3 + $0x20] sm:$0xff]
    %v335 = vld [vmem:[%s3 + $0x28] sm:$0xff]
    %v336 = vld [vmem:[#allocation8] sm:$0x1]
    %v338 = vlaneseq
    %v339 = vshrl.u32 %v338, 7
    %v340 = vsub.s32 0, %v339
    %v341 = vrot.slane %v336, %v340
    %vm343 = vcmask 392192
    %v345 = vsel %vm343, %v329, 0
    %347 = vmatprep.subr.mxu0 0.0
    %348 = vmatpush1.msra.mxu0 %v330
    %349 = vmatprep.subr.mxu0 0.0
    %350 = vmatpush1.msra.mxu0 %v331
    %351 = vmatprep.subr.mxu0 0.0
    %352 = vmatpush1.msra.mxu0 %v332
    %353 = vmatprep.subr.mxu0 0.0
    %354 = vmatpush1.msra.mxu0 %v333
    %355 = vmatprep.subr.mxu0 0.0
    %356 = vmatpush1.msra.mxu0 %v334
    %357 = vmatprep.subr.mxu0 0.0
    %358 = vmatpush1.msra.mxu0 %v335
    %359 = vmatprep.subr.mxu0 0.0
    %360 = vmatpush1.msra.mxu0 0.0
    %361 = vmatprep.subr.mxu0 0.0
    %362 = vmatpush1.msra.mxu0 0.0
    %363 = vmatprep.subr.mxu0 0.0
    %364 = vmatpush1.msra.mxu0 0.0
    %365 = vmatprep.subr.mxu0 0.0
    %366 = vmatpush1.msra.mxu0 0.0
    %367 = vmatprep.subr.mxu0 0.0
    %368 = vmatpush1.msra.mxu0 0.0
    %369 = vmatprep.subr.mxu0 0.0
    %370 = vmatpush1.msra.mxu0 0.0
    %371 = vmatprep.subr.mxu0 0.0
    %372 = vmatpush1.msra.mxu0 0.0
    %373 = vmatprep.subr.mxu0 0.0
    %374 = vmatpush1.msra.mxu0 0.0
    %375 = vmatprep.subr.mxu0 0.0
    %376 = vmatpush1.msra.mxu0 0.0
    %377 = vmatprep.subr.mxu0 0.0
    %378 = vmatpush1.msra.mxu0 0.0
    %379 = vmatprep.subr.mxu0 0.0
    %380 = vmatpush1.msra.mxu0 0.0
    %381 = vmatprep.subr.mxu0 0.0
    %382 = vmatpush1.msra.mxu0 0.0
    %383 = vmatprep.subr.mxu0 0.0
    %384 = vmatpush1.msra.mxu0 0.0
    %385 = vmatprep.subr.mxu0 0.0
    %386 = vmatpush1.msra.mxu0 0.0
    %387 = vmatprep.subr.mxu0 0.0
    %388 = vmatpush1.msra.mxu0 0.0
    %389 = vmatprep.subr.mxu0 0.0
    %390 = vmatpush1.msra.mxu0 0.0
    %391 = vmatprep.subr.mxu0 0.0
    %392 = vmatpush1.msra.mxu0 0.0
    %393 = vmatprep.subr.mxu0 0.0
    %394 = vmatpush1.msra.mxu0 0.0
    %395 = vmatprep.subr.mxu0 0.0
    %396 = vmatpush1.msra.mxu0 0.0
    %397 = vmatprep.subr.mxu0 0.0
    %398 = vmatpush1.msra.mxu0 0.0
    %399 = vmatprep.subr.mxu0 0.0
    %400 = vmatpush1.msra.mxu0 0.0
    %401 = vmatprep.subr.mxu0 0.0
    %402 = vmatpush1.msra.mxu0 0.0
    %403 = vmatprep.subr.mxu0 0.0
    %404 = vmatpush1.msra.mxu0 0.0
    %405 = vmatprep.subr.mxu0 0.0
    %406 = vmatpush1.msra.mxu0 0.0
    %407 = vmatprep.subr.mxu0 0.0
    %408 = vmatpush1.msra.mxu0 0.0
    %409 = vmatprep.subr.mxu0 0.0
    %410 = vmatpush1.msra.mxu0 0.0
    %411 = vmatprep.mubr.f32.mxu0 0.0
    %412 = vmatmul.mubr.f32.gmra.mrb[0].mxu0 %v345
    %v413 = vpop.f32.mrb[0].mxu0
    %v414 = vadd.f32 %v341, %v413
    %v415 = vpop.f32.mrb[0].mxu0
    %416 = vdwg.mxu0
    %v417 = vld [vmem:[#allocation10] sm:$0xff]
    %v418 = vld [vmem:[#allocation10 + $0x8] sm:$0xff]
    %v419 = vld [vmem:[#allocation10 + $0x10] sm:$0xff]
    %v420 = vld [vmem:[#allocation11] sm:$0x1]
    %v422 = vlaneseq
    %v423 = vshrl.u32 %v422, 7
    %v424 = vsub.s32 0, %v423
    %v425 = vrot.slane %v420, %v424
    %v428 = vsel %vm253, %v414, 0
    %430 = vmatprep.subr.mxu0 0.0
    %431 = vmatpush1.msra.mxu0 %v417
    %432 = vmatprep.subr.mxu0 0.0
    %433 = vmatpush1.msra.mxu0 %v418
    %434 = vmatprep.subr.mxu0 0.0
    %435 = vmatpush1.msra.mxu0 %v419
    %436 = vmatprep.subr.mxu0 0.0
    %437 = vmatpush1.msra.mxu0 0.0
    %438 = vmatprep.subr.mxu0 0.0
    %439 = vmatpush1.msra.mxu0 0.0
    %440 = vmatprep.subr.mxu0 0.0
    %441 = vmatpush1.msra.mxu0 0.0
    %442 = vmatprep.subr.mxu0 0.0
    %443 = vmatpush1.msra.mxu0 0.0
    %444 = vmatprep.subr.mxu0 0.0
    %445 = vmatpush1.msra.mxu0 0.0
    %446 = vmatprep.subr.mxu0 0.0
    %447 = vmatpush1.msra.mxu0 0.0
    %448 = vmatprep.subr.mxu0 0.0
    %449 = vmatpush1.msra.mxu0 0.0
    %450 = vmatprep.subr.mxu0 0.0
    %451 = vmatpush1.msra.mxu0 0.0
    %452 = vmatprep.subr.mxu0 0.0
    %453 = vmatpush1.msra.mxu0 0.0
    %454 = vmatprep.subr.mxu0 0.0
    %455 = vmatpush1.msra.mxu0 0.0
    %456 = vmatprep.subr.mxu0 0.0
    %457 = vmatpush1.msra.mxu0 0.0
    %458 = vmatprep.subr.mxu0 0.0
    %459 = vmatpush1.msra.mxu0 0.0
    %460 = vmatprep.subr.mxu0 0.0
    %461 = vmatpush1.msra.mxu0 0.0
    %462 = vmatprep.subr.mxu0 0.0
    %463 = vmatpush1.msra.mxu0 0.0
    %464 = vmatprep.subr.mxu0 0.0
    %465 = vmatpush1.msra.mxu0 0.0
    %466 = vmatprep.subr.mxu0 0.0
    %467 = vmatpush1.msra.mxu0 0.0
    %468 = vmatprep.subr.mxu0 0.0
    %469 = vmatpush1.msra.mxu0 0.0
    %470 = vmatprep.subr.mxu0 0.0
    %471 = vmatpush1.msra.mxu0 0.0
    %472 = vmatprep.subr.mxu0 0.0
    %473 = vmatpush1.msra.mxu0 0.0
    %474 = vmatprep.subr.mxu0 0.0
    %475 = vmatpush1.msra.mxu0 0.0
    %476 = vmatprep.subr.mxu0 0.0
    %477 = vmatpush1.msra.mxu0 0.0
    %478 = vmatprep.subr.mxu0 0.0
    %479 = vmatpush1.msra.mxu0 0.0
    %480 = vmatprep.subr.mxu0 0.0
    %481 = vmatpush1.msra.mxu0 0.0
    %482 = vmatprep.subr.mxu0 0.0
    %483 = vmatpush1.msra.mxu0 0.0
    %484 = vmatprep.subr.mxu0 0.0
    %485 = vmatpush1.msra.mxu0 0.0
    %486 = vmatprep.subr.mxu0 0.0
    %487 = vmatpush1.msra.mxu0 0.0
    %488 = vmatprep.subr.mxu0 0.0
    %489 = vmatpush1.msra.mxu0 0.0
    %490 = vmatprep.subr.mxu0 0.0
    %491 = vmatpush1.msra.mxu0 0.0
    %492 = vmatprep.subr.mxu0 0.0
    %493 = vmatpush1.msra.mxu0 0.0
    %494 = vmatprep.mubr.f32.mxu0 0.0
    %495 = vmatmul.mubr.f32.gmra.mrb[0].mxu0 %v428
    %v496 = vpop.f32.mrb[0].mxu0
    %v497 = vadd.f32 %v425, %v496
    %v498 = vpop.f32.mrb[0].mxu0
    %499 = vdwg.mxu0
    %vm500 = vcmp.gt.f32.partialorder %v497, 0.0
    %v501 = vmul.f32 %v497, 0.01
    %v502 = vsel %vm500, %v497, %v501
    %v503 = vld [vmem:[#allocation17] sm:$0xff]
    %v504 = vld [vmem:[#allocation17 + $0x8] sm:$0xff]
    %v505 = vld [vmem:[#allocation17 + $0x10] sm:$0xff]
    %v506 = vld [vmem:[#allocation17 + $0x18] sm:$0xff]
    %v507 = vld [vmem:[#allocation17 + $0x20] sm:$0xff]
    %v508 = vld [vmem:[#allocation17 + $0x28] sm:$0xff]
    %v509 = vld [vmem:[#allocation17 + $0x30] sm:$0xff]
    %v510 = vld [vmem:[#allocation17 + $0x38] sm:$0xff]
    %v511 = vld [vmem:[#allocation17 + $0x40] sm:$0xff]
    %v512 = vld [vmem:[#allocation17 + $0x48] sm:$0xff]
    %v513 = vld [vmem:[#allocation17 + $0x50] sm:$0xff]
    %v514 = vld [vmem:[#allocation17 + $0x58] sm:$0xff]
    %v515 = vld [vmem:[#allocation17 + $0x60] sm:$0xff]
    %v516 = vld [vmem:[#allocation17 + $0x68] sm:$0xff]
    %v517 = vld [vmem:[#allocation17 + $0x70] sm:$0xff]
    %v518 = vld [vmem:[#allocation17 + $0x78] sm:$0xff]
    %v519 = vld [vmem:[#allocation17 + $0x80] sm:$0xff]
    %v520 = vld [vmem:[#allocation17 + $0x88] sm:$0xff]
    %v521 = vld [vmem:[#allocation17 + $0x90] sm:$0xff]
    %v522 = vld [vmem:[#allocation17 + $0x98] sm:$0xff]
    %v523 = vld [vmem:[#allocation17 + $0xa0] sm:$0xff]
    %v524 = vld [vmem:[#allocation17 + $0xa8] sm:$0xff]
    %v525 = vld [vmem:[#allocation17 + $0xb0] sm:$0xff]
    %v526 = vld [vmem:[#allocation17 + $0xb8] sm:$0xff]
    %v527 = vld [vmem:[#allocation17 + $0xc0] sm:$0xff]
    %v528 = vld [vmem:[#allocation17 + $0xc8] sm:$0xff]
    %v529 = vld [vmem:[#allocation17 + $0xd0] sm:$0xff]
    %v530 = vld [vmem:[#allocation17 + $0xd8] sm:$0xff]
    %v531 = vld [vmem:[#allocation17 + $0xe0] sm:$0xff]
    %v532 = vld [vmem:[#allocation17 + $0xe8] sm:$0xff]
    %v533 = vld [vmem:[#allocation17 + $0xf0] sm:$0xff]
    %v534 = vld [vmem:[#allocation17 + $0xf8] sm:$0xff]
    %v535 = vld [vmem:[#allocation17 + $0x100] sm:$0xff]
    %v536 = vld [vmem:[#allocation17 + $0x108] sm:$0xff]
    %v537 = vld [vmem:[#allocation17 + $0x110] sm:$0xff]
    %v538 = vld [vmem:[#allocation17 + $0x118] sm:$0xff]
    %v539 = vld [vmem:[#allocation17 + $0x120] sm:$0xff]
    %v540 = vld [vmem:[#allocation17 + $0x128] sm:$0xff]
    %v541 = vld [vmem:[#allocation17 + $0x130] sm:$0xff]
    %v542 = vld [vmem:[#allocation17 + $0x138] sm:$0xff]
    %v543 = vld [vmem:[#allocation17 + $0x140] sm:$0xff]
    %v544 = vld [vmem:[#allocation17 + $0x148] sm:$0xff]
    %v545 = vld [vmem:[#allocation17 + $0x150] sm:$0xff]
    %v546 = vld [vmem:[#allocation17 + $0x158] sm:$0xff]
    %v547 = vld [vmem:[#allocation17 + $0x160] sm:$0xff]
    %v548 = vld [vmem:[#allocation17 + $0x168] sm:$0xff]
    %v549 = vld [vmem:[#allocation17 + $0x170] sm:$0xff]
    %v550 = vld [vmem:[#allocation17 + $0x178] sm:$0xff]
    %v551 = vld [vmem:[#allocation17 + $0x180] sm:$0xff]
    %v552 = vld [vmem:[#allocation17 + $0x188] sm:$0xff]
    %v553 = vld [vmem:[#allocation17 + $0x190] sm:$0xff]
    %v554 = vld [vmem:[#allocation17 + $0x198] sm:$0xff]
    %v555 = vld [vmem:[#allocation17 + $0x1a0] sm:$0xff]
    %v556 = vld [vmem:[#allocation17 + $0x1a8] sm:$0xff]
    %v557 = vld [vmem:[#allocation17 + $0x1b0] sm:$0xff]
    %v558 = vld [vmem:[#allocation17 + $0x1b8] sm:$0xff]
    %v559 = vld [vmem:[#allocation17 + $0x1c0] sm:$0xff]
    %v560 = vld [vmem:[#allocation17 + $0x1c8] sm:$0xff]
    %v561 = vld [vmem:[#allocation17 + $0x1d0] sm:$0xff]
    %v562 = vld [vmem:[#allocation17 + $0x1d8] sm:$0xff]
    %v563 = vld [vmem:[#allocation17 + $0x1e0] sm:$0xff]
    %v564 = vld [vmem:[#allocation17 + $0x1e8] sm:$0xff]
    %v565 = vld [vmem:[#allocation17 + $0x1f0] sm:$0xff]
    %v566 = vld [vmem:[#allocation17 + $0x1f8] sm:$0xff]
    %v567 = vld [vmem:[#allocation17 + $0x200] sm:$0xff]
    %v568 = vld [vmem:[#allocation17 + $0x208] sm:$0xff]
    %v569 = vld [vmem:[#allocation17 + $0x210] sm:$0xff]
    %v570 = vld [vmem:[#allocation17 + $0x218] sm:$0xff]
    %v571 = vld [vmem:[#allocation17 + $0x220] sm:$0xff]
    %v572 = vld [vmem:[#allocation17 + $0x228] sm:$0xff]
    %v573 = vld [vmem:[#allocation17 + $0x230] sm:$0xff]
    %v574 = vld [vmem:[#allocation17 + $0x238] sm:$0xff]
    %v575 = vld [vmem:[#allocation17 + $0x240] sm:$0xff]
    %v576 = vld [vmem:[#allocation17 + $0x248] sm:$0xff]
    %v577 = vld [vmem:[#allocation17 + $0x250] sm:$0xff]
    %v578 = vld [vmem:[#allocation17 + $0x258] sm:$0xff]
    %v579 = vld [vmem:[#allocation17 + $0x260] sm:$0xff]
    %v580 = vld [vmem:[#allocation17 + $0x268] sm:$0xff]
    %v581 = vld [vmem:[#allocation17 + $0x270] sm:$0xff]
    %v582 = vld [vmem:[#allocation17 + $0x278] sm:$0xff]
    %v583 = vld [vmem:[#allocation17 + $0x280] sm:$0xff]
    %v584 = vld [vmem:[#allocation17 + $0x288] sm:$0xff]
    %v585 = vld [vmem:[#allocation17 + $0x290] sm:$0xff]
    %v586 = vld [vmem:[#allocation17 + $0x298] sm:$0xff]
    %v587 = vld [vmem:[#allocation17 + $0x2a0] sm:$0xff]
    %v588 = vld [vmem:[#allocation17 + $0x2a8] sm:$0xff]
    %v589 = vld [vmem:[#allocation17 + $0x2b0] sm:$0xff]
    %v590 = vld [vmem:[#allocation17 + $0x2b8] sm:$0xff]
    %v591 = vld [vmem:[#allocation17 + $0x2c0] sm:$0xff]
    %v592 = vld [vmem:[#allocation17 + $0x2c8] sm:$0xff]
    %v593 = vld [vmem:[#allocation17 + $0x2d0] sm:$0xff]
    %v594 = vld [vmem:[#allocation17 + $0x2d8] sm:$0xff]
    %v595 = vld [vmem:[#allocation17 + $0x2e0] sm:$0xff]
    %v596 = vld [vmem:[#allocation17 + $0x2e8] sm:$0xff]
    %v597 = vld [vmem:[#allocation17 + $0x2f0] sm:$0xff]
    %v598 = vld [vmem:[#allocation17 + $0x2f8] sm:$0xff]
    %v599 = vld [vmem:[#allocation17 + $0x300] sm:$0xff]
    %v600 = vld [vmem:[#allocation17 + $0x308] sm:$0xff]
    %v601 = vld [vmem:[#allocation17 + $0x310] sm:$0xff]
    %v602 = vld [vmem:[#allocation17 + $0x318] sm:$0xff]
    %v603 = vld [vmem:[#allocation17 + $0x320] sm:$0xff]
    %v604 = vld [vmem:[#allocation17 + $0x328] sm:$0xff]
    %v605 = vld [vmem:[#allocation17 + $0x330] sm:$0xff]
    %v606 = vld [vmem:[#allocation17 + $0x338] sm:$0xff]
    %v607 = vld [vmem:[#allocation17 + $0x340] sm:$0xff]
    %v608 = vld [vmem:[#allocation17 + $0x348] sm:$0xff]
    %v609 = vld [vmem:[#allocation17 + $0x350] sm:$0xff]
    %v610 = vld [vmem:[#allocation17 + $0x358] sm:$0xff]
    %v611 = vld [vmem:[#allocation17 + $0x360] sm:$0xff]
    %v612 = vld [vmem:[#allocation17 + $0x368] sm:$0xff]
    %v613 = vld [vmem:[#allocation17 + $0x370] sm:$0xff]
    %v614 = vld [vmem:[#allocation17 + $0x378] sm:$0xff]
    %v615 = vld [vmem:[#allocation17 + $0x380] sm:$0xff]
    %v616 = vld [vmem:[#allocation17 + $0x388] sm:$0xff]
    %v617 = vld [vmem:[#allocation17 + $0x390] sm:$0xff]
    %v618 = vld [vmem:[#allocation17 + $0x398] sm:$0xff]
    %v619 = vld [vmem:[#allocation17 + $0x3a0] sm:$0xff]
    %v620 = vld [vmem:[#allocation17 + $0x3a8] sm:$0xff]
    %v621 = vld [vmem:[#allocation17 + $0x3b0] sm:$0xff]
    %v622 = vld [vmem:[#allocation17 + $0x3b8] sm:$0xff]
    %v623 = vld [vmem:[#allocation17 + $0x3c0] sm:$0xff]
    %v624 = vld [vmem:[#allocation17 + $0x3c8] sm:$0xff]
    %v625 = vld [vmem:[#allocation17 + $0x3d0] sm:$0xff]
    %v626 = vld [vmem:[#allocation17 + $0x3d8] sm:$0xff]
    %v627 = vld [vmem:[#allocation17 + $0x3e0] sm:$0xff]
    %v628 = vld [vmem:[#allocation17 + $0x3e8] sm:$0xff]
    %v629 = vld [vmem:[#allocation17 + $0x3f0] sm:$0xff]
    %v630 = vld [vmem:[#allocation17 + $0x3f8] sm:$0xff]
    %v631 = vld [vmem:[#allocation19] sm:$0xff]
    %v632 = vld [vmem:[#allocation19 + $0x8] sm:$0xff]
    %v635 = vlaneseq
    %v636 = vshrl.u32 %v635, 7
    %v637 = vsub.s32 0, %v636
    %v638 = vrot.slane %v631, %v637
    %v639 = vlaneseq
    %v640 = vshrl.u32 %v639, 7
    %v641 = vsub.s32 1, %v640
    %v642 = vrot.slane %v631, %v641
    %v643 = vlaneseq
    %v644 = vshrl.u32 %v643, 7
    %v645 = vsub.s32 2, %v644
    %v646 = vrot.slane %v631, %v645
    %v647 = vlaneseq
    %v648 = vshrl.u32 %v647, 7
    %v649 = vsub.s32 3, %v648
    %v650 = vrot.slane %v631, %v649
    %v651 = vlaneseq
    %v652 = vshrl.u32 %v651, 7
    %v653 = vsub.s32 4, %v652
    %v654 = vrot.slane %v631, %v653
    %v655 = vlaneseq
    %v656 = vshrl.u32 %v655, 7
    %v657 = vsub.s32 5, %v656
    %v658 = vrot.slane %v631, %v657
    %v659 = vlaneseq
    %v660 = vshrl.u32 %v659, 7
    %v661 = vsub.s32 6, %v660
    %v662 = vrot.slane %v631, %v661
    %v663 = vlaneseq
    %v664 = vshrl.u32 %v663, 7
    %v665 = vsub.s32 7, %v664
    %v666 = vrot.slane %v631, %v665
    %v667 = vlaneseq
    %v668 = vshrl.u32 %v667, 7
    %v669 = vsub.s32 0, %v668
    %v670 = vrot.slane %v632, %v669
    %v671 = vlaneseq
    %v672 = vshrl.u32 %v671, 7
    %v673 = vsub.s32 1, %v672
    %v674 = vrot.slane %v632, %v673
    %v675 = vlaneseq
    %v676 = vshrl.u32 %v675, 7
    %v677 = vsub.s32 2, %v676
    %v678 = vrot.slane %v632, %v677
    %v679 = vlaneseq
    %v680 = vshrl.u32 %v679, 7
    %v681 = vsub.s32 3, %v680
    %v682 = vrot.slane %v632, %v681
    %v683 = vlaneseq
    %v684 = vshrl.u32 %v683, 7
    %v685 = vsub.s32 4, %v684
    %v686 = vrot.slane %v632, %v685
    %v687 = vlaneseq
    %v688 = vshrl.u32 %v687, 7
    %v689 = vsub.s32 5, %v688
    %v690 = vrot.slane %v632, %v689
    %v691 = vlaneseq
    %v692 = vshrl.u32 %v691, 7
    %v693 = vsub.s32 6, %v692
    %v694 = vrot.slane %v632, %v693
    %v695 = vlaneseq
    %v696 = vshrl.u32 %v695, 7
    %v697 = vsub.s32 7, %v696
    %v698 = vrot.slane %v632, %v697
    %vm715 = vcmask 523264
    %v717 = vsel %vm715, %v502, 0
    %719 = vmatprep.subr.mxu0 %v504
    %720 = vmatpush1.msra.mxu0 %v503
    %721 = vmatprep.subr.mxu0 %v520
    %722 = vmatpush1.msra.mxu0 %v519
    %723 = vmatprep.subr.mxu0 %v536
    %724 = vmatpush1.msra.mxu0 %v535
    %725 = vmatprep.subr.mxu0 %v552
    %726 = vmatpush1.msra.mxu0 %v551
    %727 = vmatprep.subr.mxu0 %v568
    %728 = vmatpush1.msra.mxu0 %v567
    %729 = vmatprep.subr.mxu0 %v584
    %730 = vmatpush1.msra.mxu0 %v583
    %731 = vmatprep.subr.mxu0 %v600
    %732 = vmatpush1.msra.mxu0 %v599
    %733 = vmatprep.subr.mxu0 %v616
    %734 = vmatpush1.msra.mxu0 %v615
    %735 = vmatprep.subr.mxu0 0.0
    %736 = vmatpush1.msra.mxu0 0.0
    %737 = vmatprep.subr.mxu0 0.0
    %738 = vmatpush1.msra.mxu0 0.0
    %739 = vmatprep.subr.mxu0 0.0
    %740 = vmatpush1.msra.mxu0 0.0
    %741 = vmatprep.subr.mxu0 0.0
    %742 = vmatpush1.msra.mxu0 0.0
    %743 = vmatprep.subr.mxu0 0.0
    %744 = vmatpush1.msra.mxu0 0.0
    %745 = vmatprep.subr.mxu0 0.0
    %746 = vmatpush1.msra.mxu0 0.0
    %747 = vmatprep.subr.mxu0 0.0
    %748 = vmatpush1.msra.mxu0 0.0
    %749 = vmatprep.subr.mxu0 0.0
    %750 = vmatpush1.msra.mxu0 0.0
    %751 = vmatprep.subr.mxu0 0.0
    %752 = vmatpush1.msra.mxu0 0.0
    %753 = vmatprep.subr.mxu0 0.0
    %754 = vmatpush1.msra.mxu0 0.0
    %755 = vmatprep.subr.mxu0 0.0
    %756 = vmatpush1.msra.mxu0 0.0
    %757 = vmatprep.subr.mxu0 0.0
    %758 = vmatpush1.msra.mxu0 0.0
    %759 = vmatprep.subr.mxu0 0.0
    %760 = vmatpush1.msra.mxu0 0.0
    %761 = vmatprep.subr.mxu0 0.0
    %762 = vmatpush1.msra.mxu0 0.0
    %763 = vmatprep.subr.mxu0 0.0
    %764 = vmatpush1.msra.mxu0 0.0
    %765 = vmatprep.subr.mxu0 0.0
    %766 = vmatpush1.msra.mxu0 0.0
    %767 = vmatprep.subr.mxu0 0.0
    %768 = vmatpush1.msra.mxu0 0.0
    %769 = vmatprep.subr.mxu0 0.0
    %770 = vmatpush1.msra.mxu0 0.0
    %771 = vmatprep.subr.mxu0 0.0
    %772 = vmatpush1.msra.mxu0 0.0
    %773 = vmatprep.subr.mxu0 0.0
    %774 = vmatpush1.msra.mxu0 0.0
    %775 = vmatprep.subr.mxu0 0.0
    %776 = vmatpush1.msra.mxu0 0.0
    %777 = vmatprep.subr.mxu0 0.0
    %778 = vmatpush1.msra.mxu0 0.0
    %779 = vmatprep.subr.mxu0 0.0
    %780 = vmatpush1.msra.mxu0 0.0
    %781 = vmatprep.subr.mxu0 0.0
    %782 = vmatpush1.msra.mxu0 0.0
    %783 = vmatprep.mubr.f32.mxu0 0.0
    %784 = vmatmul.mubr.f32.gmra.mrb[0].mxu0 %v717
    %v785 = vpop.f32.mrb[0].mxu0
    %v786 = vadd.f32 %v638, %v785
    %v787 = vpop.f32.mrb[0].mxu0
    %v788 = vadd.f32 %v642, %v787
    %789 = vdwg.mxu0
    %790 = vmatprep.subr.mxu0 %v506
    %791 = vmatpush1.msra.mxu0 %v505
    %792 = vmatprep.subr.mxu0 %v522
    %793 = vmatpush1.msra.mxu0 %v521
    %794 = vmatprep.subr.mxu0 %v538
    %795 = vmatpush1.msra.mxu0 %v537
    %796 = vmatprep.subr.mxu0 %v554
    %797 = vmatpush1.msra.mxu0 %v553
    %798 = vmatprep.subr.mxu0 %v570
    %799 = vmatpush1.msra.mxu0 %v569
    %800 = vmatprep.subr.mxu0 %v586
    %801 = vmatpush1.msra.mxu0 %v585
    %802 = vmatprep.subr.mxu0 %v602
    %803 = vmatpush1.msra.mxu0 %v601
    %804 = vmatprep.subr.mxu0 %v618
    %805 = vmatpush1.msra.mxu0 %v617
    %806 = vmatprep.subr.mxu0 0.0
    %807 = vmatpush1.msra.mxu0 0.0
    %808 = vmatprep.subr.mxu0 0.0
    %809 = vmatpush1.msra.mxu0 0.0
    %810 = vmatprep.subr.mxu0 0.0
    %811 = vmatpush1.msra.mxu0 0.0
    %812 = vmatprep.subr.mxu0 0.0
    %813 = vmatpush1.msra.mxu0 0.0
    %814 = vmatprep.subr.mxu0 0.0
    %815 = vmatpush1.msra.mxu0 0.0
    %816 = vmatprep.subr.mxu0 0.0
    %817 = vmatpush1.msra.mxu0 0.0
    %818 = vmatprep.subr.mxu0 0.0
    %819 = vmatpush1.msra.mxu0 0.0
    %820 = vmatprep.subr.mxu0 0.0
    %821 = vmatpush1.msra.mxu0 0.0
    %822 = vmatprep.subr.mxu0 0.0
    %823 = vmatpush1.msra.mxu0 0.0
    %824 = vmatprep.subr.mxu0 0.0
    %825 = vmatpush1.msra.mxu0 0.0
    %826 = vmatprep.subr.mxu0 0.0
    %827 = vmatpush1.msra.mxu0 0.0
    %828 = vmatprep.subr.mxu0 0.0
    %829 = vmatpush1.msra.mxu0 0.0
    %830 = vmatprep.subr.mxu0 0.0
    %831 = vmatpush1.msra.mxu0 0.0
    %832 = vmatprep.subr.mxu0 0.0
    %833 = vmatpush1.msra.mxu0 0.0
    %834 = vmatprep.subr.mxu0 0.0
    %835 = vmatpush1.msra.mxu0 0.0
    %836 = vmatprep.subr.mxu0 0.0
    %837 = vmatpush1.msra.mxu0 0.0
    %838 = vmatprep.subr.mxu0 0.0
    %839 = vmatpush1.msra.mxu0 0.0
    %840 = vmatprep.subr.mxu0 0.0
    %841 = vmatpush1.msra.mxu0 0.0
    %842 = vmatprep.subr.mxu0 0.0
    %843 = vmatpush1.msra.mxu0 0.0
    %844 = vmatprep.subr.mxu0 0.0
    %845 = vmatpush1.msra.mxu0 0.0
    %846 = vmatprep.subr.mxu0 0.0
    %847 = vmatpush1.msra.mxu0 0.0
    %848 = vmatprep.subr.mxu0 0.0
    %849 = vmatpush1.msra.mxu0 0.0
    %850 = vmatprep.subr.mxu0 0.0
    %851 = vmatpush1.msra.mxu0 0.0
    %852 = vmatprep.subr.mxu0 0.0
    %853 = vmatpush1.msra.mxu0 0.0
    %854 = vmatprep.mubr.f32.mxu0 0.0
    %855 = vmatmul.mubr.f32.gmra.mrb[0].mxu0 %v717
    %v856 = vpop.f32.mrb[0].mxu0
    %v857 = vadd.f32 %v646, %v856
    %v858 = vpop.f32.mrb[0].mxu0
    %v859 = vadd.f32 %v650, %v858
    %860 = vdwg.mxu0
    %861 = vmatprep.subr.mxu0 %v508
    %862 = vmatpush1.msra.mxu0 %v507
    %863 = vmatprep.subr.mxu0 %v524
    %864 = vmatpush1.msra.mxu0 %v523
    %865 = vmatprep.subr.mxu0 %v540
    %866 = vmatpush1.msra.mxu0 %v539
    %867 = vmatprep.subr.mxu0 %v556
    %868 = vmatpush1.msra.mxu0 %v555
    %869 = vmatprep.subr.mxu0 %v572
    %870 = vmatpush1.msra.mxu0 %v571
    %871 = vmatprep.subr.mxu0 %v588
    %872 = vmatpush1.msra.mxu0 %v587
    %873 = vmatprep.subr.mxu0 %v604
    %874 = vmatpush1.msra.mxu0 %v603
    %875 = vmatprep.subr.mxu0 %v620
    %876 = vmatpush1.msra.mxu0 %v619
    %877 = vmatprep.subr.mxu0 0.0
    %878 = vmatpush1.msra.mxu0 0.0
    %879 = vmatprep.subr.mxu0 0.0
    %880 = vmatpush1.msra.mxu0 0.0
    %881 = vmatprep.subr.mxu0 0.0
    %882 = vmatpush1.msra.mxu0 0.0
    %883 = vmatprep.subr.mxu0 0.0
    %884 = vmatpush1.msra.mxu0 0.0
    %885 = vmatprep.subr.mxu0 0.0
    %886 = vmatpush1.msra.mxu0 0.0
    %887 = vmatprep.subr.mxu0 0.0
    %888 = vmatpush1.msra.mxu0 0.0
    %889 = vmatprep.subr.mxu0 0.0
    %890 = vmatpush1.msra.mxu0 0.0
    %891 = vmatprep.subr.mxu0 0.0
    %892 = vmatpush1.msra.mxu0 0.0
    %893 = vmatprep.subr.mxu0 0.0
    %894 = vmatpush1.msra.mxu0 0.0
    %895 = vmatprep.subr.mxu0 0.0
    %896 = vmatpush1.msra.mxu0 0.0
    %897 = vmatprep.subr.mxu0 0.0
    %898 = vmatpush1.msra.mxu0 0.0
    %899 = vmatprep.subr.mxu0 0.0
    %900 = vmatpush1.msra.mxu0 0.0
    %901 = vmatprep.subr.mxu0 0.0
    %902 = vmatpush1.msra.mxu0 0.0
    %903 = vmatprep.subr.mxu0 0.0
    %904 = vmatpush1.msra.mxu0 0.0
    %905 = vmatprep.subr.mxu0 0.0
    %906 = vmatpush1.msra.mxu0 0.0
    %907 = vmatprep.subr.mxu0 0.0
    %908 = vmatpush1.msra.mxu0 0.0
    %909 = vmatprep.subr.mxu0 0.0
    %910 = vmatpush1.msra.mxu0 0.0
    %911 = vmatprep.subr.mxu0 0.0
    %912 = vmatpush1.msra.mxu0 0.0
    %913 = vmatprep.subr.mxu0 0.0
    %914 = vmatpush1.msra.mxu0 0.0
    %915 = vmatprep.subr.mxu0 0.0
    %916 = vmatpush1.msra.mxu0 0.0
    %917 = vmatprep.subr.mxu0 0.0
    %918 = vmatpush1.msra.mxu0 0.0
    %919 = vmatprep.subr.mxu0 0.0
    %920 = vmatpush1.msra.mxu0 0.0
    %921 = vmatprep.subr.mxu0 0.0
    %922 = vmatpush1.msra.mxu0 0.0
    %923 = vmatprep.subr.mxu0 0.0
    %924 = vmatpush1.msra.mxu0 0.0
    %925 = vmatprep.mubr.f32.mxu0 0.0
    %926 = vmatmul.mubr.f32.gmra.mrb[0].mxu0 %v717
    %v927 = vpop.f32.mrb[0].mxu0
    %v928 = vadd.f32 %v654, %v927
    %v929 = vpop.f32.mrb[0].mxu0
    %v930 = vadd.f32 %v658, %v929
    %931 = vdwg.mxu0
    %932 = vmatprep.subr.mxu0 %v510
    %933 = vmatpush1.msra.mxu0 %v509
    %934 = vmatprep.subr.mxu0 %v526
    %935 = vmatpush1.msra.mxu0 %v525
    %936 = vmatprep.subr.mxu0 %v542
    %937 = vmatpush1.msra.mxu0 %v541
    %938 = vmatprep.subr.mxu0 %v558
    %939 = vmatpush1.msra.mxu0 %v557
    %940 = vmatprep.subr.mxu0 %v574
    %941 = vmatpush1.msra.mxu0 %v573
    %942 = vmatprep.subr.mxu0 %v590
    %943 = vmatpush1.msra.mxu0 %v589
    %944 = vmatprep.subr.mxu0 %v606
    %945 = vmatpush1.msra.mxu0 %v605
    %946 = vmatprep.subr.mxu0 %v622
    %947 = vmatpush1.msra.mxu0 %v621
    %948 = vmatprep.subr.mxu0 0.0
    %949 = vmatpush1.msra.mxu0 0.0
    %950 = vmatprep.subr.mxu0 0.0
    %951 = vmatpush1.msra.mxu0 0.0
    %952 = vmatprep.subr.mxu0 0.0
    %953 = vmatpush1.msra.mxu0 0.0
    %954 = vmatprep.subr.mxu0 0.0
    %955 = vmatpush1.msra.mxu0 0.0
    %956 = vmatprep.subr.mxu0 0.0
    %957 = vmatpush1.msra.mxu0 0.0
    %958 = vmatprep.subr.mxu0 0.0
    %959 = vmatpush1.msra.mxu0 0.0
    %960 = vmatprep.subr.mxu0 0.0
    %961 = vmatpush1.msra.mxu0 0.0
    %962 = vmatprep.subr.mxu0 0.0
    %963 = vmatpush1.msra.mxu0 0.0
    %964 = vmatprep.subr.mxu0 0.0
    %965 = vmatpush1.msra.mxu0 0.0
    %966 = vmatprep.subr.mxu0 0.0
    %967 = vmatpush1.msra.mxu0 0.0
    %968 = vmatprep.subr.mxu0 0.0
    %969 = vmatpush1.msra.mxu0 0.0
    %970 = vmatprep.subr.mxu0 0.0
    %971 = vmatpush1.msra.mxu0 0.0
    %972 = vmatprep.subr.mxu0 0.0
    %973 = vmatpush1.msra.mxu0 0.0
    %974 = vmatprep.subr.mxu0 0.0
    %975 = vmatpush1.msra.mxu0 0.0
    %976 = vmatprep.subr.mxu0 0.0
    %977 = vmatpush1.msra.mxu0 0.0
    %978 = vmatprep.subr.mxu0 0.0
    %979 = vmatpush1.msra.mxu0 0.0
    %980 = vmatprep.subr.mxu0 0.0
    %981 = vmatpush1.msra.mxu0 0.0
    %982 = vmatprep.subr.mxu0 0.0
    %983 = vmatpush1.msra.mxu0 0.0
    %984 = vmatprep.subr.mxu0 0.0
    %985 = vmatpush1.msra.mxu0 0.0
    %986 = vmatprep.subr.mxu0 0.0
    %987 = vmatpush1.msra.mxu0 0.0
    %988 = vmatprep.subr.mxu0 0.0
    %989 = vmatpush1.msra.mxu0 0.0
    %990 = vmatprep.subr.mxu0 0.0
    %991 = vmatpush1.msra.mxu0 0.0
    %992 = vmatprep.subr.mxu0 0.0
    %993 = vmatpush1.msra.mxu0 0.0
    %994 = vmatprep.subr.mxu0 0.0
    %995 = vmatpush1.msra.mxu0 0.0
    %996 = vmatprep.mubr.f32.mxu0 0.0
    %997 = vmatmul.mubr.f32.gmra.mrb[0].mxu0 %v717
    %v998 = vpop.f32.mrb[0].mxu0
    %v999 = vadd.f32 %v662, %v998
    %v1000 = vpop.f32.mrb[0].mxu0
    %v1001 = vadd.f32 %v666, %v1000
    %1002 = vdwg.mxu0
    %1003 = vmatprep.subr.mxu0 %v512
    %1004 = vmatpush1.msra.mxu0 %v511
    %1005 = vmatprep.subr.mxu0 %v528
    %1006 = vmatpush1.msra.mxu0 %v527
    %1007 = vmatprep.subr.mxu0 %v544
    %1008 = vmatpush1.msra.mxu0 %v543
    %1009 = vmatprep.subr.mxu0 %v560
    %1010 = vmatpush1.msra.mxu0 %v559
    %1011 = vmatprep.subr.mxu0 %v576
    %1012 = vmatpush1.msra.mxu0 %v575
    %1013 = vmatprep.subr.mxu0 %v592
    %1014 = vmatpush1.msra.mxu0 %v591
    %1015 = vmatprep.subr.mxu0 %v608
    %1016 = vmatpush1.msra.mxu0 %v607
    %1017 = vmatprep.subr.mxu0 %v624
    %1018 = vmatpush1.msra.mxu0 %v623
    %1019 = vmatprep.subr.mxu0 0.0
    %1020 = vmatpush1.msra.mxu0 0.0
    %1021 = vmatprep.subr.mxu0 0.0
    %1022 = vmatpush1.msra.mxu0 0.0
    %1023 = vmatprep.subr.mxu0 0.0
    %1024 = vmatpush1.msra.mxu0 0.0
    %1025 = vmatprep.subr.mxu0 0.0
    %1026 = vmatpush1.msra.mxu0 0.0
    %1027 = vmatprep.subr.mxu0 0.0
    %1028 = vmatpush1.msra.mxu0 0.0
    %1029 = vmatprep.subr.mxu0 0.0
    %1030 = vmatpush1.msra.mxu0 0.0
    %1031 = vmatprep.subr.mxu0 0.0
    %1032 = vmatpush1.msra.mxu0 0.0
    %1033 = vmatprep.subr.mxu0 0.0
    %1034 = vmatpush1.msra.mxu0 0.0
    %1035 = vmatprep.subr.mxu0 0.0
    %1036 = vmatpush1.msra.mxu0 0.0
    %1037 = vmatprep.subr.mxu0 0.0
    %1038 = vmatpush1.msra.mxu0 0.0
    %1039 = vmatprep.subr.mxu0 0.0
    %1040 = vmatpush1.msra.mxu0 0.0
    %1041 = vmatprep.subr.mxu0 0.0
    %1042 = vmatpush1.msra.mxu0 0.0
    %1043 = vmatprep.subr.mxu0 0.0
    %1044 = vmatpush1.msra.mxu0 0.0
    %1045 = vmatprep.subr.mxu0 0.0
    %1046 = vmatpush1.msra.mxu0 0.0
    %1047 = vmatprep.subr.mxu0 0.0
    %1048 = vmatpush1.msra.mxu0 0.0
    %1049 = vmatprep.subr.mxu0 0.0
    %1050 = vmatpush1.msra.mxu0 0.0
    %1051 = vmatprep.subr.mxu0 0.0
    %1052 = vmatpush1.msra.mxu0 0.0
    %1053 = vmatprep.subr.mxu0 0.0
    %1054 = vmatpush1.msra.mxu0 0.0
    %1055 = vmatprep.subr.mxu0 0.0
    %1056 = vmatpush1.msra.mxu0 0.0
    %1057 = vmatprep.subr.mxu0 0.0
    %1058 = vmatpush1.msra.mxu0 0.0
    %1059 = vmatprep.subr.mxu0 0.0
    %1060 = vmatpush1.msra.mxu0 0.0
    %1061 = vmatprep.subr.mxu0 0.0
    %1062 = vmatpush1.msra.mxu0 0.0
    %1063 = vmatprep.subr.mxu0 0.0
    %1064 = vmatpush1.msra.mxu0 0.0
    %1065 = vmatprep.subr.mxu0 0.0
    %1066 = vmatpush1.msra.mxu0 0.0
    %1067 = vmatprep.mubr.f32.mxu0 0.0
    %1068 = vmatmul.mubr.f32.gmra.mrb[0].mxu0 %v717
    %v1069 = vpop.f32.mrb[0].mxu0
    %v1070 = vadd.f32 %v670, %v1069
    %v1071 = vpop.f32.mrb[0].mxu0
    %v1072 = vadd.f32 %v674, %v1071
    %1073 = vdwg.mxu0
    %1074 = vmatprep.subr.mxu0 %v514
    %1075 = vmatpush1.msra.mxu0 %v513
    %1076 = vmatprep.subr.mxu0 %v530
    %1077 = vmatpush1.msra.mxu0 %v529
    %1078 = vmatprep.subr.mxu0 %v546
    %1079 = vmatpush1.msra.mxu0 %v545
    %1080 = vmatprep.subr.mxu0 %v562
    %1081 = vmatpush1.msra.mxu0 %v561
    %1082 = vmatprep.subr.mxu0 %v578
    %1083 = vmatpush1.msra.mxu0 %v577
    %1084 = vmatprep.subr.mxu0 %v594
    %1085 = vmatpush1.msra.mxu0 %v593
    %1086 = vmatprep.subr.mxu0 %v610
    %1087 = vmatpush1.msra.mxu0 %v609
    %1088 = vmatprep.subr.mxu0 %v626
    %1089 = vmatpush1.msra.mxu0 %v625
    %1090 = vmatprep.subr.mxu0 0.0
    %1091 = vmatpush1.msra.mxu0 0.0
    %1092 = vmatprep.subr.mxu0 0.0
    %1093 = vmatpush1.msra.mxu0 0.0
    %1094 = vmatprep.subr.mxu0 0.0
    %1095 = vmatpush1.msra.mxu0 0.0
    %1096 = vmatprep.subr.mxu0 0.0
    %1097 = vmatpush1.msra.mxu0 0.0
    %1098 = vmatprep.subr.mxu0 0.0
    %1099 = vmatpush1.msra.mxu0 0.0
    %1100 = vmatprep.subr.mxu0 0.0
    %1101 = vmatpush1.msra.mxu0 0.0
    %1102 = vmatprep.subr.mxu0 0.0
    %1103 = vmatpush1.msra.mxu0 0.0
    %1104 = vmatprep.subr.mxu0 0.0
    %1105 = vmatpush1.msra.mxu0 0.0
    %1106 = vmatprep.subr.mxu0 0.0
    %1107 = vmatpush1.msra.mxu0 0.0
    %1108 = vmatprep.subr.mxu0 0.0
    %1109 = vmatpush1.msra.mxu0 0.0
    %1110 = vmatprep.subr.mxu0 0.0
    %1111 = vmatpush1.msra.mxu0 0.0
    %1112 = vmatprep.subr.mxu0 0.0
    %1113 = vmatpush1.msra.mxu0 0.0
    %1114 = vmatprep.subr.mxu0 0.0
    %1115 = vmatpush1.msra.mxu0 0.0
    %1116 = vmatprep.subr.mxu0 0.0
    %1117 = vmatpush1.msra.mxu0 0.0
    %1118 = vmatprep.subr.mxu0 0.0
    %1119 = vmatpush1.msra.mxu0 0.0
    %1120 = vmatprep.subr.mxu0 0.0
    %1121 = vmatpush1.msra.mxu0 0.0
    %1122 = vmatprep.subr.mxu0 0.0
    %1123 = vmatpush1.msra.mxu0 0.0
    %1124 = vmatprep.subr.mxu0 0.0
    %1125 = vmatpush1.msra.mxu0 0.0
    %1126 = vmatprep.subr.mxu0 0.0
    %1127 = vmatpush1.msra.mxu0 0.0
    %1128 = vmatprep.subr.mxu0 0.0
    %1129 = vmatpush1.msra.mxu0 0.0
    %1130 = vmatprep.subr.mxu0 0.0
    %1131 = vmatpush1.msra.mxu0 0.0
    %1132 = vmatprep.subr.mxu0 0.0
    %1133 = vmatpush1.msra.mxu0 0.0
    %1134 = vmatprep.subr.mxu0 0.0
    %1135 = vmatpush1.msra.mxu0 0.0
    %1136 = vmatprep.subr.mxu0 0.0
    %1137 = vmatpush1.msra.mxu0 0.0
    %1138 = vmatprep.mubr.f32.mxu0 0.0
    %1139 = vmatmul.mubr.f32.gmra.mrb[0].mxu0 %v717
    %v1140 = vpop.f32.mrb[0].mxu0
    %v1141 = vadd.f32 %v678, %v1140
    %v1142 = vpop.f32.mrb[0].mxu0
    %v1143 = vadd.f32 %v682, %v1142
    %1144 = vdwg.mxu0
    %1145 = vmatprep.subr.mxu0 %v516
    %1146 = vmatpush1.msra.mxu0 %v515
    %1147 = vmatprep.subr.mxu0 %v532
    %1148 = vmatpush1.msra.mxu0 %v531
    %1149 = vmatprep.subr.mxu0 %v548
    %1150 = vmatpush1.msra.mxu0 %v547
    %1151 = vmatprep.subr.mxu0 %v564
    %1152 = vmatpush1.msra.mxu0 %v563
    %1153 = vmatprep.subr.mxu0 %v580
    %1154 = vmatpush1.msra.mxu0 %v579
    %1155 = vmatprep.subr.mxu0 %v596
    %1156 = vmatpush1.msra.mxu0 %v595
    %1157 = vmatprep.subr.mxu0 %v612
    %1158 = vmatpush1.msra.mxu0 %v611
    %1159 = vmatprep.subr.mxu0 %v628
    %1160 = vmatpush1.msra.mxu0 %v627
    %1161 = vmatprep.subr.mxu0 0.0
    %1162 = vmatpush1.msra.mxu0 0.0
    %1163 = vmatprep.subr.mxu0 0.0
    %1164 = vmatpush1.msra.mxu0 0.0
    %1165 = vmatprep.subr.mxu0 0.0
    %1166 = vmatpush1.msra.mxu0 0.0
    %1167 = vmatprep.subr.mxu0 0.0
    %1168 = vmatpush1.msra.mxu0 0.0
    %1169 = vmatprep.subr.mxu0 0.0
    %1170 = vmatpush1.msra.mxu0 0.0
    %1171 = vmatprep.subr.mxu0 0.0
    %1172 = vmatpush1.msra.mxu0 0.0
    %1173 = vmatprep.subr.mxu0 0.0
    %1174 = vmatpush1.msra.mxu0 0.0
    %1175 = vmatprep.subr.mxu0 0.0
    %1176 = vmatpush1.msra.mxu0 0.0
    %1177 = vmatprep.subr.mxu0 0.0
    %1178 = vmatpush1.msra.mxu0 0.0
    %1179 = vmatprep.subr.mxu0 0.0
    %1180 = vmatpush1.msra.mxu0 0.0
    %1181 = vmatprep.subr.mxu0 0.0
    %1182 = vmatpush1.msra.mxu0 0.0
    %1183 = vmatprep.subr.mxu0 0.0
    %1184 = vmatpush1.msra.mxu0 0.0
    %1185 = vmatprep.subr.mxu0 0.0
    %1186 = vmatpush1.msra.mxu0 0.0
    %1187 = vmatprep.subr.mxu0 0.0
    %1188 = vmatpush1.msra.mxu0 0.0
    %1189 = vmatprep.subr.mxu0 0.0
    %1190 = vmatpush1.msra.mxu0 0.0
    %1191 = vmatprep.subr.mxu0 0.0
    %1192 = vmatpush1.msra.mxu0 0.0
    %1193 = vmatprep.subr.mxu0 0.0
    %1194 = vmatpush1.msra.mxu0 0.0
    %1195 = vmatprep.subr.mxu0 0.0
    %1196 = vmatpush1.msra.mxu0 0.0
    %1197 = vmatprep.subr.mxu0 0.0
    %1198 = vmatpush1.msra.mxu0 0.0
    %1199 = vmatprep.subr.mxu0 0.0
    %1200 = vmatpush1.msra.mxu0 0.0
    %1201 = vmatprep.subr.mxu0 0.0
    %1202 = vmatpush1.msra.mxu0 0.0
    %1203 = vmatprep.subr.mxu0 0.0
    %1204 = vmatpush1.msra.mxu0 0.0
    %1205 = vmatprep.subr.mxu0 0.0
    %1206 = vmatpush1.msra.mxu0 0.0
    %1207 = vmatprep.subr.mxu0 0.0
    %1208 = vmatpush1.msra.mxu0 0.0
    %1209 = vmatprep.mubr.f32.mxu0 0.0
    %1210 = vmatmul.mubr.f32.gmra.mrb[0].mxu0 %v717
    %v1211 = vpop.f32.mrb[0].mxu0
    %v1212 = vadd.f32 %v686, %v1211
    %v1213 = vpop.f32.mrb[0].mxu0
    %v1214 = vadd.f32 %v690, %v1213
    %1215 = vdwg.mxu0
    %1216 = vmatprep.subr.mxu0 %v518
    %1217 = vmatpush1.msra.mxu0 %v517
    %1218 = vmatprep.subr.mxu0 %v534
    %1219 = vmatpush1.msra.mxu0 %v533
    %1220 = vmatprep.subr.mxu0 %v550
    %1221 = vmatpush1.msra.mxu0 %v549
    %1222 = vmatprep.subr.mxu0 %v566
    %1223 = vmatpush1.msra.mxu0 %v565
    %1224 = vmatprep.subr.mxu0 %v582
    %1225 = vmatpush1.msra.mxu0 %v581
    %1226 = vmatprep.subr.mxu0 %v598
    %1227 = vmatpush1.msra.mxu0 %v597
    %1228 = vmatprep.subr.mxu0 %v614
    %1229 = vmatpush1.msra.mxu0 %v613
    %1230 = vmatprep.subr.mxu0 %v630
    %1231 = vmatpush1.msra.mxu0 %v629
    %1232 = vmatprep.subr.mxu0 0.0
    %1233 = vmatpush1.msra.mxu0 0.0
    %1234 = vmatprep.subr.mxu0 0.0
    %1235 = vmatpush1.msra.mxu0 0.0
    %1236 = vmatprep.subr.mxu0 0.0
    %1237 = vmatpush1.msra.mxu0 0.0
    %1238 = vmatprep.subr.mxu0 0.0
    %1239 = vmatpush1.msra.mxu0 0.0
    %1240 = vmatprep.subr.mxu0 0.0
    %1241 = vmatpush1.msra.mxu0 0.0
    %1242 = vmatprep.subr.mxu0 0.0
    %1243 = vmatpush1.msra.mxu0 0.0
    %1244 = vmatprep.subr.mxu0 0.0
    %1245 = vmatpush1.msra.mxu0 0.0
    %1246 = vmatprep.subr.mxu0 0.0
    %1247 = vmatpush1.msra.mxu0 0.0
    %1248 = vmatprep.subr.mxu0 0.0
    %1249 = vmatpush1.msra.mxu0 0.0
    %1250 = vmatprep.subr.mxu0 0.0
    %1251 = vmatpush1.msra.mxu0 0.0
    %1252 = vmatprep.subr.mxu0 0.0
    %1253 = vmatpush1.msra.mxu0 0.0
    %1254 = vmatprep.subr.mxu0 0.0
    %1255 = vmatpush1.msra.mxu0 0.0
    %1256 = vmatprep.subr.mxu0 0.0
    %1257 = vmatpush1.msra.mxu0 0.0
    %1258 = vmatprep.subr.mxu0 0.0
    %1259 = vmatpush1.msra.mxu0 0.0
    %1260 = vmatprep.subr.mxu0 0.0
    %1261 = vmatpush1.msra.mxu0 0.0
    %1262 = vmatprep.subr.mxu0 0.0
    %1263 = vmatpush1.msra.mxu0 0.0
    %1264 = vmatprep.subr.mxu0 0.0
    %1265 = vmatpush1.msra.mxu0 0.0
    %1266 = vmatprep.subr.mxu0 0.0
    %1267 = vmatpush1.msra.mxu0 0.0
    %1268 = vmatprep.subr.mxu0 0.0
    %1269 = vmatpush1.msra.mxu0 0.0
    %1270 = vmatprep.subr.mxu0 0.0
    %1271 = vmatpush1.msra.mxu0 0.0
    %1272 = vmatprep.subr.mxu0 0.0
    %1273 = vmatpush1.msra.mxu0 0.0
    %1274 = vmatprep.subr.mxu0 0.0
    %1275 = vmatpush1.msra.mxu0 0.0
    %1276 = vmatprep.subr.mxu0 0.0
    %1277 = vmatpush1.msra.mxu0 0.0
    %1278 = vmatprep.subr.mxu0 0.0
    %1279 = vmatpush1.msra.mxu0 0.0
    %1280 = vmatprep.mubr.f32.mxu0 0.0
    %1281 = vmatmul.mubr.f32.gmra.mrb[0].mxu0 %v717
    %v1282 = vpop.f32.mrb[0].mxu0
    %v1283 = vadd.f32 %v694, %v1282
    %v1284 = vpop.f32.mrb[0].mxu0
    %v1285 = vadd.f32 %v698, %v1284
    %1286 = vdwg.mxu0
    %vm1287 = vcmp.gt.f32.partialorder %v786, 0.0
    %vm1288 = vcmp.gt.f32.partialorder %v788, 0.0
    %vm1289 = vcmp.gt.f32.partialorder %v857, 0.0
    %vm1290 = vcmp.gt.f32.partialorder %v859, 0.0
    %vm1291 = vcmp.gt.f32.partialorder %v928, 0.0
    %vm1292 = vcmp.gt.f32.partialorder %v930, 0.0
    %vm1293 = vcmp.gt.f32.partialorder %v999, 0.0
    %vm1294 = vcmp.gt.f32.partialorder %v1001, 0.0
    %vm1295 = vcmp.gt.f32.partialorder %v1070, 0.0
    %vm1296 = vcmp.gt.f32.partialorder %v1072, 0.0
    %vm1297 = vcmp.gt.f32.partialorder %v1141, 0.0
    %vm1298 = vcmp.gt.f32.partialorder %v1143, 0.0
    %vm1299 = vcmp.gt.f32.partialorder %v1212, 0.0
    %vm1300 = vcmp.gt.f32.partialorder %v1214, 0.0
    %vm1301 = vcmp.gt.f32.partialorder %v1283, 0.0
    %vm1302 = vcmp.gt.f32.partialorder %v1285, 0.0
    %v1303 = vmul.f32 %v786, 0.01
    %v1304 = vmul.f32 %v788, 0.01
    %v1305 = vmul.f32 %v857, 0.01
    %v1306 = vmul.f32 %v859, 0.01
    %v1307 = vmul.f32 %v928, 0.01
    %v1308 = vmul.f32 %v930, 0.01
    %v1309 = vmul.f32 %v999, 0.01
    %v1310 = vmul.f32 %v1001, 0.01
    %v1311 = vmul.f32 %v1070, 0.01
    %v1312 = vmul.f32 %v1072, 0.01
    %v1313 = vmul.f32 %v1141, 0.01
    %v1314 = vmul.f32 %v1143, 0.01
    %v1315 = vmul.f32 %v1212, 0.01
    %v1316 = vmul.f32 %v1214, 0.01
    %v1317 = vmul.f32 %v1283, 0.01
    %v1318 = vmul.f32 %v1285, 0.01
    %v1319 = vsel %vm1287, %v786, %v1303
    %v1320 = vsel %vm1288, %v788, %v1304
    %v1321 = vsel %vm1289, %v857, %v1305
    %v1322 = vsel %vm1290, %v859, %v1306
    %v1323 = vsel %vm1291, %v928, %v1307
    %v1324 = vsel %vm1292, %v930, %v1308
    %v1325 = vsel %vm1293, %v999, %v1309
    %v1326 = vsel %vm1294, %v1001, %v1310
    %v1327 = vsel %vm1295, %v1070, %v1311
    %v1328 = vsel %vm1296, %v1072, %v1312
    %v1329 = vsel %vm1297, %v1141, %v1313
    %v1330 = vsel %vm1298, %v1143, %v1314
    %v1331 = vsel %vm1299, %v1212, %v1315
    %v1332 = vsel %vm1300, %v1214, %v1316
    %v1333 = vsel %vm1301, %v1283, %v1317
    %v1334 = vsel %vm1302, %v1285, %v1318
    %v1335 = vld [vmem:[#allocation13] sm:$0xff]
    %v1336 = vld [vmem:[#allocation13 + $0x8] sm:$0xff]
    %v1337 = vld [vmem:[#allocation13 + $0x10] sm:$0xff]
    %v1338 = vld [vmem:[#allocation13 + $0x18] sm:$0xff]
    %v1339 = vld [vmem:[#allocation13 + $0x20] sm:$0xff]
    %v1340 = vld [vmem:[#allocation13 + $0x28] sm:$0xff]
    %v1341 = vld [vmem:[#allocation13 + $0x30] sm:$0xff]
    %v1342 = vld [vmem:[#allocation13 + $0x38] sm:$0xff]
    %v1343 = vld [vmem:[#allocation13 + $0x40] sm:$0xff]
    %v1344 = vld [vmem:[#allocation13 + $0x48] sm:$0xff]
    %v1345 = vld [vmem:[#allocation13 + $0x50] sm:$0xff]
    %v1346 = vld [vmem:[#allocation13 + $0x58] sm:$0xff]
    %v1347 = vld [vmem:[#allocation13 + $0x60] sm:$0xff]
    %v1348 = vld [vmem:[#allocation13 + $0x68] sm:$0xff]
    %v1349 = vld [vmem:[#allocation13 + $0x70] sm:$0xff]
    %v1350 = vld [vmem:[#allocation13 + $0x78] sm:$0xff]
    %v1351 = vld [vmem:[#allocation13 + $0x80] sm:$0xff]
    %v1352 = vld [vmem:[#allocation13 + $0x88] sm:$0xff]
    %v1353 = vld [vmem:[#allocation13 + $0x90] sm:$0xff]
    %v1354 = vld [vmem:[#allocation13 + $0x98] sm:$0xff]
    %v1355 = vld [vmem:[#allocation13 + $0xa0] sm:$0xff]
    %v1356 = vld [vmem:[#allocation13 + $0xa8] sm:$0xff]
    %v1357 = vld [vmem:[#allocation13 + $0xb0] sm:$0xff]
    %v1358 = vld [vmem:[#allocation13 + $0xb8] sm:$0xff]
    %v1359 = vld [vmem:[#allocation13 + $0xc0] sm:$0xff]
    %v1360 = vld [vmem:[#allocation13 + $0xc8] sm:$0xff]
    %v1361 = vld [vmem:[#allocation13 + $0xd0] sm:$0xff]
    %v1362 = vld [vmem:[#allocation13 + $0xd8] sm:$0xff]
    %v1363 = vld [vmem:[#allocation13 + $0xe0] sm:$0xff]
    %v1364 = vld [vmem:[#allocation13 + $0xe8] sm:$0xff]
    %v1365 = vld [vmem:[#allocation13 + $0xf0] sm:$0xff]
    %v1366 = vld [vmem:[#allocation13 + $0xf8] sm:$0xff]
    %v1367 = vld [vmem:[#allocation13 + $0x100] sm:$0xff]
    %v1368 = vld [vmem:[#allocation13 + $0x108] sm:$0xff]
    %v1369 = vld [vmem:[#allocation13 + $0x110] sm:$0xff]
    %v1370 = vld [vmem:[#allocation13 + $0x118] sm:$0xff]
    %v1371 = vld [vmem:[#allocation13 + $0x120] sm:$0xff]
    %v1372 = vld [vmem:[#allocation13 + $0x128] sm:$0xff]
    %v1373 = vld [vmem:[#allocation13 + $0x130] sm:$0xff]
    %v1374 = vld [vmem:[#allocation13 + $0x138] sm:$0xff]
    %v1375 = vld [vmem:[#allocation13 + $0x140] sm:$0xff]
    %v1376 = vld [vmem:[#allocation13 + $0x148] sm:$0xff]
    %v1377 = vld [vmem:[#allocation13 + $0x150] sm:$0xff]
    %v1378 = vld [vmem:[#allocation13 + $0x158] sm:$0xff]
    %v1379 = vld [vmem:[#allocation13 + $0x160] sm:$0xff]
    %v1380 = vld [vmem:[#allocation13 + $0x168] sm:$0xff]
    %v1381 = vld [vmem:[#allocation13 + $0x170] sm:$0xff]
    %v1382 = vld [vmem:[#allocation13 + $0x178] sm:$0xff]
    %1383 = vmatprep.subr.mxu0 %v1336
    %1384 = vmatpush1.msra.mxu0 %v1335
    %1385 = vmatprep.subr.mxu0 %v1339
    %1386 = vmatpush1.msra.mxu0 %v1338
    %1387 = vmatprep.subr.mxu0 %v1342
    %1388 = vmatpush1.msra.mxu0 %v1341
    %1389 = vmatprep.subr.mxu0 %v1345
    %1390 = vmatpush1.msra.mxu0 %v1344
    %1391 = vmatprep.subr.mxu0 %v1348
    %1392 = vmatpush1.msra.mxu0 %v1347
    %1393 = vmatprep.subr.mxu0 %v1351
    %1394 = vmatpush1.msra.mxu0 %v1350
    %1395 = vmatprep.subr.mxu0 %v1354
    %1396 = vmatpush1.msra.mxu0 %v1353
    %1397 = vmatprep.subr.mxu0 %v1357
    %1398 = vmatpush1.msra.mxu0 %v1356
    %1399 = vmatprep.subr.mxu0 %v1360
    %1400 = vmatpush1.msra.mxu0 %v1359
    %1401 = vmatprep.subr.mxu0 %v1363
    %1402 = vmatpush1.msra.mxu0 %v1362
    %1403 = vmatprep.subr.mxu0 %v1366
    %1404 = vmatpush1.msra.mxu0 %v1365
    %1405 = vmatprep.subr.mxu0 %v1369
    %1406 = vmatpush1.msra.mxu0 %v1368
    %1407 = vmatprep.subr.mxu0 %v1372
    %1408 = vmatpush1.msra.mxu0 %v1371
    %1409 = vmatprep.subr.mxu0 %v1375
    %1410 = vmatpush1.msra.mxu0 %v1374
    %1411 = vmatprep.subr.mxu0 %v1378
    %1412 = vmatpush1.msra.mxu0 %v1377
    %1413 = vmatprep.subr.mxu0 %v1381
    %1414 = vmatpush1.msra.mxu0 %v1380
    %1415 = vmatprep.subr.mxu0 0.0
    %1416 = vmatpush1.msra.mxu0 0.0
    %1417 = vmatprep.subr.mxu0 0.0
    %1418 = vmatpush1.msra.mxu0 0.0
    %1419 = vmatprep.subr.mxu0 0.0
    %1420 = vmatpush1.msra.mxu0 0.0
    %1421 = vmatprep.subr.mxu0 0.0
    %1422 = vmatpush1.msra.mxu0 0.0
    %1423 = vmatprep.subr.mxu0 0.0
    %1424 = vmatpush1.msra.mxu0 0.0
    %1425 = vmatprep.subr.mxu0 0.0
    %1426 = vmatpush1.msra.mxu0 0.0
    %1427 = vmatprep.subr.mxu0 0.0
    %1428 = vmatpush1.msra.mxu0 0.0
    %1429 = vmatprep.subr.mxu0 0.0
    %1430 = vmatpush1.msra.mxu0 0.0
    %1431 = vmatprep.subr.mxu0 0.0
    %1432 = vmatpush1.msra.mxu0 0.0
    %1433 = vmatprep.subr.mxu0 0.0
    %1434 = vmatpush1.msra.mxu0 0.0
    %1435 = vmatprep.subr.mxu0 0.0
    %1436 = vmatpush1.msra.mxu0 0.0
    %1437 = vmatprep.subr.mxu0 0.0
    %1438 = vmatpush1.msra.mxu0 0.0
    %1439 = vmatprep.subr.mxu0 0.0
    %1440 = vmatpush1.msra.mxu0 0.0
    %1441 = vmatprep.subr.mxu0 0.0
    %1442 = vmatpush1.msra.mxu0 0.0
    %1443 = vmatprep.subr.mxu0 0.0
    %1444 = vmatpush1.msra.mxu0 0.0
    %1445 = vmatprep.subr.mxu0 0.0
    %1446 = vmatpush1.msra.mxu0 0.0
    %1447 = vmatprep.mubr.f32.mxu0 0.0
    %1448 = vmatmul.mubr.f32.gmra.mrb[0].mxu0 %v1319
    %v1449 = vpop.f32.mrb[0].mxu0
    %v1450 = vadd.f32 0.0, %v1449
    %v1451 = vpop.f32.mrb[0].mxu0
    %v1452 = vadd.f32 0.0, %v1451
    %1453 = vmatprep.mubr.f32.mxu0 0.0
    %1454 = vmatmul.mubr.f32.gmra.mrb[0].mxu0 %v1320
    %v1455 = vpop.f32.mrb[0].mxu0
    %v1456 = vadd.f32 0.0, %v1455
    %v1457 = vpop.f32.mrb[0].mxu0
    %v1458 = vadd.f32 0.0, %v1457
    %1459 = vmatprep.mubr.f32.mxu0 0.0
    %1460 = vmatmul.mubr.f32.gmra.mrb[0].mxu0 %v1321
    %v1461 = vpop.f32.mrb[0].mxu0
    %v1462 = vadd.f32 0.0, %v1461
    %v1463 = vpop.f32.mrb[0].mxu0
    %v1464 = vadd.f32 0.0, %v1463
    %1465 = vmatprep.mubr.f32.mxu0 0.0
    %1466 = vmatmul.mubr.f32.gmra.mrb[0].mxu0 %v1322
    %v1467 = vpop.f32.mrb[0].mxu0
    %v1468 = vadd.f32 0.0, %v1467
    %v1469 = vpop.f32.mrb[0].mxu0
    %v1470 = vadd.f32 0.0, %v1469
    %1471 = vmatprep.mubr.f32.mxu0 0.0
    %1472 = vmatmul.mubr.f32.gmra.mrb[0].mxu0 %v1323
    %v1473 = vpop.f32.mrb[0].mxu0
    %v1474 = vadd.f32 0.0, %v1473
    %v1475 = vpop.f32.mrb[0].mxu0
    %v1476 = vadd.f32 0.0, %v1475
    %1477 = vmatprep.mubr.f32.mxu0 0.0
    %1478 = vmatmul.mubr.f32.gmra.mrb[0].mxu0 %v1324
    %v1479 = vpop.f32.mrb[0].mxu0
    %v1480 = vadd.f32 0.0, %v1479
    %v1481 = vpop.f32.mrb[0].mxu0
    %v1482 = vadd.f32 0.0, %v1481
    %1483 = vmatprep.mubr.f32.mxu0 0.0
    %1484 = vmatmul.mubr.f32.gmra.mrb[0].mxu0 %v1325
    %v1485 = vpop.f32.mrb[0].mxu0
    %v1486 = vadd.f32 0.0, %v1485
    %v1487 = vpop.f32.mrb[0].mxu0
    %v1488 = vadd.f32 0.0, %v1487
    %1489 = vmatprep.mubr.f32.mxu0 0.0
    %1490 = vmatmul.mubr.f32.gmra.mrb[0].mxu0 %v1326
    %v1491 = vpop.f32.mrb[0].mxu0
    %v1492 = vadd.f32 0.0, %v1491
    %v1493 = vpop.f32.mrb[0].mxu0
    %v1494 = vadd.f32 0.0, %v1493
    %1495 = vmatprep.mubr.f32.mxu0 0.0
    %1496 = vmatmul.mubr.f32.gmra.mrb[0].mxu0 %v1327
    %v1497 = vpop.f32.mrb[0].mxu0
    %v1498 = vadd.f32 0.0, %v1497
    %v1499 = vpop.f32.mrb[0].mxu0
    %v1500 = vadd.f32 0.0, %v1499
    %1501 = vmatprep.mubr.f32.mxu0 0.0
    %1502 = vmatmul.mubr.f32.gmra.mrb[0].mxu0 %v1328
    %v1503 = vpop.f32.mrb[0].mxu0
    %v1504 = vadd.f32 0.0, %v1503
    %v1505 = vpop.f32.mrb[0].mxu0
    %v1506 = vadd.f32 0.0, %v1505
    %1507 = vmatprep.mubr.f32.mxu0 0.0
    %1508 = vmatmul.mubr.f32.gmra.mrb[0].mxu0 %v1329
    %v1509 = vpop.f32.mrb[0].mxu0
    %v1510 = vadd.f32 0.0, %v1509
    %v1511 = vpop.f32.mrb[0].mxu0
    %v1512 = vadd.f32 0.0, %v1511
    %1513 = vmatprep.mubr.f32.mxu0 0.0
    %1514 = vmatmul.mubr.f32.gmra.mrb[0].mxu0 %v1330
    %v1515 = vpop.f32.mrb[0].mxu0
    %v1516 = vadd.f32 0.0, %v1515
    %v1517 = vpop.f32.mrb[0].mxu0
    %v1518 = vadd.f32 0.0, %v1517
    %1519 = vmatprep.mubr.f32.mxu0 0.0
    %1520 = vmatmul.mubr.f32.gmra.mrb[0].mxu0 %v1331
    %v1521 = vpop.f32.mrb[0].mxu0
    %v1522 = vadd.f32 0.0, %v1521
    %v1523 = vpop.f32.mrb[0].mxu0
    %v1524 = vadd.f32 0.0, %v1523
    %1525 = vmatprep.mubr.f32.mxu0 0.0
    %1526 = vmatmul.mubr.f32.gmra.mrb[0].mxu0 %v1332
    %v1527 = vpop.f32.mrb[0].mxu0
    %v1528 = vadd.f32 0.0, %v1527
    %v1529 = vpop.f32.mrb[0].mxu0
    %v1530 = vadd.f32 0.0, %v1529
    %1531 = vmatprep.mubr.f32.mxu0 0.0
    %1532 = vmatmul.mubr.f32.gmra.mrb[0].mxu0 %v1333
    %v1533 = vpop.f32.mrb[0].mxu0
    %v1534 = vadd.f32 0.0, %v1533
    %v1535 = vpop.f32.mrb[0].mxu0
    %v1536 = vadd.f32 0.0, %v1535
    %1537 = vmatprep.mubr.f32.mxu0 0.0
    %1538 = vmatmul.mubr.f32.gmra.mrb[0].mxu0 %v1334
    %v1539 = vpop.f32.mrb[0].mxu0
    %v1540 = vadd.f32 0.0, %v1539
    %v1541 = vpop.f32.mrb[0].mxu0
    %v1542 = vadd.f32 0.0, %v1541
    %1543 = vdwg.mxu0
    %1544 = vmatprep.subr.mxu0 0.0
    %1545 = vmatpush1.msra.mxu0 %v1337
    %1546 = vmatprep.subr.mxu0 0.0
    %1547 = vmatpush1.msra.mxu0 %v1340
    %1548 = vmatprep.subr.mxu0 0.0
    %1549 = vmatpush1.msra.mxu0 %v1343
    %1550 = vmatprep.subr.mxu0 0.0
    %1551 = vmatpush1.msra.mxu0 %v1346
    %1552 = vmatprep.subr.mxu0 0.0
    %1553 = vmatpush1.msra.mxu0 %v1349
    %1554 = vmatprep.subr.mxu0 0.0
    %1555 = vmatpush1.msra.mxu0 %v1352
    %1556 = vmatprep.subr.mxu0 0.0
    %1557 = vmatpush1.msra.mxu0 %v1355
    %1558 = vmatprep.subr.mxu0 0.0
    %1559 = vmatpush1.msra.mxu0 %v1358
    %1560 = vmatprep.subr.mxu0 0.0
    %1561 = vmatpush1.msra.mxu0 %v1361
    %1562 = vmatprep.subr.mxu0 0.0
    %1563 = vmatpush1.msra.mxu0 %v1364
    %1564 = vmatprep.subr.mxu0 0.0
    %1565 = vmatpush1.msra.mxu0 %v1367
    %1566 = vmatprep.subr.mxu0 0.0
    %1567 = vmatpush1.msra.mxu0 %v1370
    %1568 = vmatprep.subr.mxu0 0.0
    %1569 = vmatpush1.msra.mxu0 %v1373
    %1570 = vmatprep.subr.mxu0 0.0
    %1571 = vmatpush1.msra.mxu0 %v1376
    %1572 = vmatprep.subr.mxu0 0.0
    %1573 = vmatpush1.msra.mxu0 %v1379
    %1574 = vmatprep.subr.mxu0 0.0
    %1575 = vmatpush1.msra.mxu0 %v1382
    %1576 = vmatprep.subr.mxu0 0.0
    %1577 = vmatpush1.msra.mxu0 0.0
    %1578 = vmatprep.subr.mxu0 0.0
    %1579 = vmatpush1.msra.mxu0 0.0
    %1580 = vmatprep.subr.mxu0 0.0
    %1581 = vmatpush1.msra.mxu0 0.0
    %1582 = vmatprep.subr.mxu0 0.0
    %1583 = vmatpush1.msra.mxu0 0.0
    %1584 = vmatprep.subr.mxu0 0.0
    %1585 = vmatpush1.msra.mxu0 0.0
    %1586 = vmatprep.subr.mxu0 0.0
    %1587 = vmatpush1.msra.mxu0 0.0
    %1588 = vmatprep.subr.mxu0 0.0
    %1589 = vmatpush1.msra.mxu0 0.0
    %1590 = vmatprep.subr.mxu0 0.0
    %1591 = vmatpush1.msra.mxu0 0.0
    %1592 = vmatprep.subr.mxu0 0.0
    %1593 = vmatpush1.msra.mxu0 0.0
    %1594 = vmatprep.subr.mxu0 0.0
    %1595 = vmatpush1.msra.mxu0 0.0
    %1596 = vmatprep.subr.mxu0 0.0
    %1597 = vmatpush1.msra.mxu0 0.0
    %1598 = vmatprep.subr.mxu0 0.0
    %1599 = vmatpush1.msra.mxu0 0.0
    %1600 = vmatprep.subr.mxu0 0.0
    %1601 = vmatpush1.msra.mxu0 0.0
    %1602 = vmatprep.subr.mxu0 0.0
    %1603 = vmatpush1.msra.mxu0 0.0
    %1604 = vmatprep.subr.mxu0 0.0
    %1605 = vmatpush1.msra.mxu0 0.0
    %1606 = vmatprep.subr.mxu0 0.0
    %1607 = vmatpush1.msra.mxu0 0.0
    %1608 = vmatprep.mubr.f32.mxu0 0.0
    %1609 = vmatmul.mubr.f32.gmra.mrb[0].mxu0 %v1319
    %v1610 = vpop.f32.mrb[0].mxu0
    %v1611 = vadd.f32 0.0, %v1610
    %v1612 = vpop.f32.mrb[0].mxu0
    %1613 = vmatprep.mubr.f32.mxu0 0.0
    %1614 = vmatmul.mubr.f32.gmra.mrb[0].mxu0 %v1320
    %v1615 = vpop.f32.mrb[0].mxu0
    %v1616 = vadd.f32 0.0, %v1615
    %v1617 = vpop.f32.mrb[0].mxu0
    %1618 = vmatprep.mubr.f32.mxu0 0.0
    %1619 = vmatmul.mubr.f32.gmra.mrb[0].mxu0 %v1321
    %v1620 = vpop.f32.mrb[0].mxu0
    %v1621 = vadd.f32 0.0, %v1620
    %v1622 = vpop.f32.mrb[0].mxu0
    %1623 = vmatprep.mubr.f32.mxu0 0.0
    %1624 = vmatmul.mubr.f32.gmra.mrb[0].mxu0 %v1322
    %v1625 = vpop.f32.mrb[0].mxu0
    %v1626 = vadd.f32 0.0, %v1625
    %v1627 = vpop.f32.mrb[0].mxu0
    %1628 = vmatprep.mubr.f32.mxu0 0.0
    %1629 = vmatmul.mubr.f32.gmra.mrb[0].mxu0 %v1323
    %v1630 = vpop.f32.mrb[0].mxu0
    %v1631 = vadd.f32 0.0, %v1630
    %v1632 = vpop.f32.mrb[0].mxu0
    %1633 = vmatprep.mubr.f32.mxu0 0.0
    %1634 = vmatmul.mubr.f32.gmra.mrb[0].mxu0 %v1324
    %v1635 = vpop.f32.mrb[0].mxu0
    %v1636 = vadd.f32 0.0, %v1635
    %v1637 = vpop.f32.mrb[0].mxu0
    %1638 = vmatprep.mubr.f32.mxu0 0.0
    %1639 = vmatmul.mubr.f32.gmra.mrb[0].mxu0 %v1325
    %v1640 = vpop.f32.mrb[0].mxu0
    %v1641 = vadd.f32 0.0, %v1640
    %v1642 = vpop.f32.mrb[0].mxu0
    %1643 = vmatprep.mubr.f32.mxu0 0.0
    %1644 = vmatmul.mubr.f32.gmra.mrb[0].mxu0 %v1326
    %v1645 = vpop.f32.mrb[0].mxu0
    %v1646 = vadd.f32 0.0, %v1645
    %v1647 = vpop.f32.mrb[0].mxu0
    %1648 = vmatprep.mubr.f32.mxu0 0.0
    %1649 = vmatmul.mubr.f32.gmra.mrb[0].mxu0 %v1327
    %v1650 = vpop.f32.mrb[0].mxu0
    %v1651 = vadd.f32 0.0, %v1650
    %v1652 = vpop.f32.mrb[0].mxu0
    %1653 = vmatprep.mubr.f32.mxu0 0.0
    %1654 = vmatmul.mubr.f32.gmra.mrb[0].mxu0 %v1328
    %v1655 = vpop.f32.mrb[0].mxu0
    %v1656 = vadd.f32 0.0, %v1655
    %v1657 = vpop.f32.mrb[0].mxu0
    %1658 = vmatprep.mubr.f32.mxu0 0.0
    %1659 = vmatmul.mubr.f32.gmra.mrb[0].mxu0 %v1329
    %v1660 = vpop.f32.mrb[0].mxu0
    %v1661 = vadd.f32 0.0, %v1660
    %v1662 = vpop.f32.mrb[0].mxu0
    %1663 = vmatprep.mubr.f32.mxu0 0.0
    %1664 = vmatmul.mubr.f32.gmra.mrb[0].mxu0 %v1330
    %v1665 = vpop.f32.mrb[0].mxu0
    %v1666 = vadd.f32 0.0, %v1665
    %v1667 = vpop.f32.mrb[0].mxu0
    %1668 = vmatprep.mubr.f32.mxu0 0.0
    %1669 = vmatmul.mubr.f32.gmra.mrb[0].mxu0 %v1331
    %v1670 = vpop.f32.mrb[0].mxu0
    %v1671 = vadd.f32 0.0, %v1670
    %v1672 = vpop.f32.mrb[0].mxu0
    %1673 = vmatprep.mubr.f32.mxu0 0.0
    %1674 = vmatmul.mubr.f32.gmra.mrb[0].mxu0 %v1332
    %v1675 = vpop.f32.mrb[0].mxu0
    %v1676 = vadd.f32 0.0, %v1675
    %v1677 = vpop.f32.mrb[0].mxu0
    %1678 = vmatprep.mubr.f32.mxu0 0.0
    %1679 = vmatmul.mubr.f32.gmra.mrb[0].mxu0 %v1333
    %v1680 = vpop.f32.mrb[0].mxu0
    %v1681 = vadd.f32 0.0, %v1680
    %v1682 = vpop.f32.mrb[0].mxu0
    %1683 = vmatprep.mubr.f32.mxu0 0.0
    %1684 = vmatmul.mubr.f32.gmra.mrb[0].mxu0 %v1334
    %v1685 = vpop.f32.mrb[0].mxu0
    %v1686 = vadd.f32 0.0, %v1685
    %v1687 = vpop.f32.mrb[0].mxu0
    %1688 = vdwg.mxu0
    %v1689 = vld [vmem:[#allocation20] sm:$0xff]
    %v1690 = vld [vmem:[#allocation20 + $0x8] sm:$0xff]
    %v1691 = vld [vmem:[#allocation20 + $0x10] sm:$0xff]
    %v1692 = vld [vmem:[#allocation20 + $0x18] sm:$0xff]
    %v1693 = vld [vmem:[#allocation20 + $0x20] sm:$0xff]
    %v1694 = vld [vmem:[#allocation20 + $0x28] sm:$0xff]
    %v1695 = vld [vmem:[#allocation20 + $0x30] sm:$0xff]
    %v1696 = vld [vmem:[#allocation20 + $0x38] sm:$0xff]
    %v1697 = vld [vmem:[#allocation20 + $0x40] sm:$0xff]
    %v1698 = vld [vmem:[#allocation20 + $0x48] sm:$0xff]
    %v1699 = vld [vmem:[#allocation20 + $0x50] sm:$0xff]
    %v1700 = vld [vmem:[#allocation20 + $0x58] sm:$0xff]
    %v1701 = vld [vmem:[#allocation20 + $0x60] sm:$0xff]
    %v1702 = vld [vmem:[#allocation20 + $0x68] sm:$0xff]
    %v1703 = vld [vmem:[#allocation20 + $0x70] sm:$0xff]
    %v1704 = vld [vmem:[#allocation20 + $0x78] sm:$0xff]
    %s1705 = scalar_lea.vmem [#allocation20], 128
    %v1706 = vld [vmem:[%s1705] sm:$0xff]
    %v1707 = vld [vmem:[%s1705 + $0x8] sm:$0xff]
    %v1708 = vld [vmem:[%s1705 + $0x10] sm:$0xff]
    %v1709 = vld [vmem:[%s1705 + $0x18] sm:$0xff]
    %v1710 = vld [vmem:[%s1705 + $0x20] sm:$0xff]
    %v1711 = vld [vmem:[%s1705 + $0x28] sm:$0xff]
    %v1712 = vld [vmem:[%s1705 + $0x30] sm:$0xff]
    %v1713 = vld [vmem:[%s1705 + $0x38] sm:$0xff]
    %v1714 = vld [vmem:[%s1705 + $0x40] sm:$0xff]
    %v1715 = vld [vmem:[%s1705 + $0x48] sm:$0xff]
    %v1716 = vld [vmem:[%s1705 + $0x50] sm:$0xff]
    %v1717 = vld [vmem:[%s1705 + $0x58] sm:$0xff]
    %v1718 = vld [vmem:[%s1705 + $0x60] sm:$0xff]
    %v1719 = vld [vmem:[%s1705 + $0x68] sm:$0xff]
    %v1720 = vld [vmem:[%s1705 + $0x70] sm:$0xff]
    %v1721 = vld [vmem:[%s1705 + $0x78] sm:$0xff]
    %1722 = vmatprep.subr.mxu0 0.0
    %1723 = vmatpush1.msra.mxu0 %v1452
    %1724 = vmatprep.subr.mxu0 0.0
    %1725 = vmatpush1.msra.mxu0 %v1458
    %1726 = vmatprep.subr.mxu0 0.0
    %1727 = vmatpush1.msra.mxu0 %v1464
    %1728 = vmatprep.subr.mxu0 0.0
    %1729 = vmatpush1.msra.mxu0 %v1470
    %1730 = vmatprep.subr.mxu0 0.0
    %1731 = vmatpush1.msra.mxu0 %v1476
    %1732 = vmatprep.subr.mxu0 0.0
    %1733 = vmatpush1.msra.mxu0 %v1482
    %1734 = vmatprep.subr.mxu0 0.0
    %1735 = vmatpush1.msra.mxu0 %v1488
    %1736 = vmatprep.subr.mxu0 0.0
    %1737 = vmatpush1.msra.mxu0 %v1494
    %1738 = vmatprep.subr.mxu0 0.0
    %1739 = vmatpush1.msra.mxu0 %v1500
    %1740 = vmatprep.subr.mxu0 0.0
    %1741 = vmatpush1.msra.mxu0 %v1506
    %1742 = vmatprep.subr.mxu0 0.0
    %1743 = vmatpush1.msra.mxu0 %v1512
    %1744 = vmatprep.subr.mxu0 0.0
    %1745 = vmatpush1.msra.mxu0 %v1518
    %1746 = vmatprep.subr.mxu0 0.0
    %1747 = vmatpush1.msra.mxu0 %v1524
    %1748 = vmatprep.subr.mxu0 0.0
    %1749 = vmatpush1.msra.mxu0 %v1530
    %1750 = vmatprep.subr.mxu0 0.0
    %1751 = vmatpush1.msra.mxu0 %v1536
    %1752 = vmatprep.subr.mxu0 0.0
    %1753 = vmatpush1.msra.mxu0 %v1542
    %1754 = vmatprep.subr.mxu0 0.0
    %1755 = vmatpush1.msra.mxu0 0.0
    %1756 = vmatprep.subr.mxu0 0.0
    %1757 = vmatpush1.msra.mxu0 0.0
    %1758 = vmatprep.subr.mxu0 0.0
    %1759 = vmatpush1.msra.mxu0 0.0
    %1760 = vmatprep.subr.mxu0 0.0
    %1761 = vmatpush1.msra.mxu0 0.0
    %1762 = vmatprep.subr.mxu0 0.0
    %1763 = vmatpush1.msra.mxu0 0.0
    %1764 = vmatprep.subr.mxu0 0.0
    %1765 = vmatpush1.msra.mxu0 0.0
    %1766 = vmatprep.subr.mxu0 0.0
    %1767 = vmatpush1.msra.mxu0 0.0
    %1768 = vmatprep.subr.mxu0 0.0
    %1769 = vmatpush1.msra.mxu0 0.0
    %1770 = vmatprep.subr.mxu0 0.0
    %1771 = vmatpush1.msra.mxu0 0.0
    %1772 = vmatprep.subr.mxu0 0.0
    %1773 = vmatpush1.msra.mxu0 0.0
    %1774 = vmatprep.subr.mxu0 0.0
    %1775 = vmatpush1.msra.mxu0 0.0
    %1776 = vmatprep.subr.mxu0 0.0
    %1777 = vmatpush1.msra.mxu0 0.0
    %1778 = vmatprep.subr.mxu0 0.0
    %1779 = vmatpush1.msra.mxu0 0.0
    %1780 = vmatprep.subr.mxu0 0.0
    %1781 = vmatpush1.msra.mxu0 0.0
    %1782 = vmatprep.subr.mxu0 0.0
    %1783 = vmatpush1.msra.mxu0 0.0
    %1784 = vmatprep.subr.mxu0 0.0
    %1785 = vmatpush1.msra.mxu0 0.0
    %1786 = vmatprep.mubr.f32.mxu0 0.0
    %1787 = vmatmul.mubr.f32.gmra.mrb[0].mxu0 %v1706
    %v1788 = vpop.f32.mrb[0].mxu0
    %v1789 = vadd.f32 0.0, %v1788
    %v1790 = vpop.f32.mrb[0].mxu0
    %1791 = vmatprep.mubr.f32.mxu0 0.0
    %1792 = vmatmul.mubr.f32.gmra.mrb[0].mxu0 %v1707
    %v1793 = vpop.f32.mrb[0].mxu0
    %v1794 = vadd.f32 0.0, %v1793
    %v1795 = vpop.f32.mrb[0].mxu0
    %1796 = vmatprep.mubr.f32.mxu0 0.0
    %1797 = vmatmul.mubr.f32.gmra.mrb[0].mxu0 %v1708
    %v1798 = vpop.f32.mrb[0].mxu0
    %v1799 = vadd.f32 0.0, %v1798
    %v1800 = vpop.f32.mrb[0].mxu0
    %1801 = vmatprep.mubr.f32.mxu0 0.0
    %1802 = vmatmul.mubr.f32.gmra.mrb[0].mxu0 %v1709
    %v1803 = vpop.f32.mrb[0].mxu0
    %v1804 = vadd.f32 0.0, %v1803
    %v1805 = vpop.f32.mrb[0].mxu0
    %1806 = vmatprep.mubr.f32.mxu0 0.0
    %1807 = vmatmul.mubr.f32.gmra.mrb[0].mxu0 %v1710
    %v1808 = vpop.f32.mrb[0].mxu0
    %v1809 = vadd.f32 0.0, %v1808
    %v1810 = vpop.f32.mrb[0].mxu0
    %1811 = vmatprep.mubr.f32.mxu0 0.0
    %1812 = vmatmul.mubr.f32.gmra.mrb[0].mxu0 %v1711
    %v1813 = vpop.f32.mrb[0].mxu0
    %v1814 = vadd.f32 0.0, %v1813
    %v1815 = vpop.f32.mrb[0].mxu0
    %1816 = vmatprep.mubr.f32.mxu0 0.0
    %1817 = vmatmul.mubr.f32.gmra.mrb[0].mxu0 %v1712
    %v1818 = vpop.f32.mrb[0].mxu0
    %v1819 = vadd.f32 0.0, %v1818
    %v1820 = vpop.f32.mrb[0].mxu0
    %1821 = vmatprep.mubr.f32.mxu0 0.0
    %1822 = vmatmul.mubr.f32.gmra.mrb[0].mxu0 %v1713
    %v1823 = vpop.f32.mrb[0].mxu0
    %v1824 = vadd.f32 0.0, %v1823
    %v1825 = vpop.f32.mrb[0].mxu0
    %1826 = vmatprep.mubr.f32.mxu0 0.0
    %1827 = vmatmul.mubr.f32.gmra.mrb[0].mxu0 %v1714
    %v1828 = vpop.f32.mrb[0].mxu0
    %v1829 = vadd.f32 0.0, %v1828
    %v1830 = vpop.f32.mrb[0].mxu0
    %1831 = vmatprep.mubr.f32.mxu0 0.0
    %1832 = vmatmul.mubr.f32.gmra.mrb[0].mxu0 %v1715
    %v1833 = vpop.f32.mrb[0].mxu0
    %v1834 = vadd.f32 0.0, %v1833
    %v1835 = vpop.f32.mrb[0].mxu0
    %1836 = vmatprep.mubr.f32.mxu0 0.0
    %1837 = vmatmul.mubr.f32.gmra.mrb[0].mxu0 %v1716
    %v1838 = vpop.f32.mrb[0].mxu0
    %v1839 = vadd.f32 0.0, %v1838
    %v1840 = vpop.f32.mrb[0].mxu0
    %1841 = vmatprep.mubr.f32.mxu0 0.0
    %1842 = vmatmul.mubr.f32.gmra.mrb[0].mxu0 %v1717
    %v1843 = vpop.f32.mrb[0].mxu0
    %v1844 = vadd.f32 0.0, %v1843
    %v1845 = vpop.f32.mrb[0].mxu0
    %1846 = vmatprep.mubr.f32.mxu0 0.0
    %1847 = vmatmul.mubr.f32.gmra.mrb[0].mxu0 %v1718
    %v1848 = vpop.f32.mrb[0].mxu0
    %v1849 = vadd.f32 0.0, %v1848
    %v1850 = vpop.f32.mrb[0].mxu0
    %1851 = vmatprep.mubr.f32.mxu0 0.0
    %1852 = vmatmul.mubr.f32.gmra.mrb[0].mxu0 %v1719
    %v1853 = vpop.f32.mrb[0].mxu0
    %v1854 = vadd.f32 0.0, %v1853
    %v1855 = vpop.f32.mrb[0].mxu0
    %1856 = vmatprep.mubr.f32.mxu0 0.0
    %1857 = vmatmul.mubr.f32.gmra.mrb[0].mxu0 %v1720
    %v1858 = vpop.f32.mrb[0].mxu0
    %v1859 = vadd.f32 0.0, %v1858
    %v1860 = vpop.f32.mrb[0].mxu0
    %1861 = vmatprep.mubr.f32.mxu0 0.0
    %1862 = vmatmul.mubr.f32.gmra.mrb[0].mxu0 %v1721
    %v1863 = vpop.f32.mrb[0].mxu0
    %v1864 = vadd.f32 0.0, %v1863
    %v1865 = vpop.f32.mrb[0].mxu0
    %1866 = vdwg.mxu0
    %1867 = vmatprep.subr.mxu0 0.0
    %1868 = vmatpush1.msra.mxu0 %v1450
    %1869 = vmatprep.subr.mxu0 0.0
    %1870 = vmatpush1.msra.mxu0 %v1456
    %1871 = vmatprep.subr.mxu0 0.0
    %1872 = vmatpush1.msra.mxu0 %v1462
    %1873 = vmatprep.subr.mxu0 0.0
    %1874 = vmatpush1.msra.mxu0 %v1468
    %1875 = vmatprep.subr.mxu0 0.0
    %1876 = vmatpush1.msra.mxu0 %v1474
    %1877 = vmatprep.subr.mxu0 0.0
    %1878 = vmatpush1.msra.mxu0 %v1480
    %1879 = vmatprep.subr.mxu0 0.0
    %1880 = vmatpush1.msra.mxu0 %v1486
    %1881 = vmatprep.subr.mxu0 0.0
    %1882 = vmatpush1.msra.mxu0 %v1492
    %1883 = vmatprep.subr.mxu0 0.0
    %1884 = vmatpush1.msra.mxu0 %v1498
    %1885 = vmatprep.subr.mxu0 0.0
    %1886 = vmatpush1.msra.mxu0 %v1504
    %1887 = vmatprep.subr.mxu0 0.0
    %1888 = vmatpush1.msra.mxu0 %v1510
    %1889 = vmatprep.subr.mxu0 0.0
    %1890 = vmatpush1.msra.mxu0 %v1516
    %1891 = vmatprep.subr.mxu0 0.0
    %1892 = vmatpush1.msra.mxu0 %v1522
    %1893 = vmatprep.subr.mxu0 0.0
    %1894 = vmatpush1.msra.mxu0 %v1528
    %1895 = vmatprep.subr.mxu0 0.0
    %1896 = vmatpush1.msra.mxu0 %v1534
    %1897 = vmatprep.subr.mxu0 0.0
    %1898 = vmatpush1.msra.mxu0 %v1540
    %1899 = vmatprep.subr.mxu0 0.0
    %1900 = vmatpush1.msra.mxu0 0.0
    %1901 = vmatprep.subr.mxu0 0.0
    %1902 = vmatpush1.msra.mxu0 0.0
    %1903 = vmatprep.subr.mxu0 0.0
    %1904 = vmatpush1.msra.mxu0 0.0
    %1905 = vmatprep.subr.mxu0 0.0
    %1906 = vmatpush1.msra.mxu0 0.0
    %1907 = vmatprep.subr.mxu0 0.0
    %1908 = vmatpush1.msra.mxu0 0.0
    %1909 = vmatprep.subr.mxu0 0.0
    %1910 = vmatpush1.msra.mxu0 0.0
    %1911 = vmatprep.subr.mxu0 0.0
    %1912 = vmatpush1.msra.mxu0 0.0
    %1913 = vmatprep.subr.mxu0 0.0
    %1914 = vmatpush1.msra.mxu0 0.0
    %1915 = vmatprep.subr.mxu0 0.0
    %1916 = vmatpush1.msra.mxu0 0.0
    %1917 = vmatprep.subr.mxu0 0.0
    %1918 = vmatpush1.msra.mxu0 0.0
    %1919 = vmatprep.subr.mxu0 0.0
    %1920 = vmatpush1.msra.mxu0 0.0
    %1921 = vmatprep.subr.mxu0 0.0
    %1922 = vmatpush1.msra.mxu0 0.0
    %1923 = vmatprep.subr.mxu0 0.0
    %1924 = vmatpush1.msra.mxu0 0.0
    %1925 = vmatprep.subr.mxu0 0.0
    %1926 = vmatpush1.msra.mxu0 0.0
    %1927 = vmatprep.subr.mxu0 0.0
    %1928 = vmatpush1.msra.mxu0 0.0
    %1929 = vmatprep.subr.mxu0 0.0
    %1930 = vmatpush1.msra.mxu0 0.0
    %1931 = vmatprep.mubr.f32.mxu0 0.0
    %1932 = vmatmul.mubr.f32.gmra.mrb[0].mxu0 %v1689
    %v1933 = vpop.f32.mrb[0].mxu0
    %v1934 = vadd.f32 %v1789, %v1933
    %v1935 = vpop.f32.mrb[0].mxu0
    %1936 = vmatprep.mubr.f32.mxu0 0.0
    %1937 = vmatmul.mubr.f32.gmra.mrb[0].mxu0 %v1690
    %v1938 = vpop.f32.mrb[0].mxu0
    %v1939 = vadd.f32 %v1794, %v1938
    %v1940 = vpop.f32.mrb[0].mxu0
    %1941 = vmatprep.mubr.f32.mxu0 0.0
    %1942 = vmatmul.mubr.f32.gmra.mrb[0].mxu0 %v1691
    %v1943 = vpop.f32.mrb[0].mxu0
    %v1944 = vadd.f32 %v1799, %v1943
    %v1945 = vpop.f32.mrb[0].mxu0
    %1946 = vmatprep.mubr.f32.mxu0 0.0
    %1947 = vmatmul.mubr.f32.gmra.mrb[0].mxu0 %v1692
    %v1948 = vpop.f32.mrb[0].mxu0
    %v1949 = vadd.f32 %v1804, %v1948
    %v1950 = vpop.f32.mrb[0].mxu0
    %1951 = vmatprep.mubr.f32.mxu0 0.0
    %1952 = vmatmul.mubr.f32.gmra.mrb[0].mxu0 %v1693
    %v1953 = vpop.f32.mrb[0].mxu0
    %v1954 = vadd.f32 %v1809, %v1953
    %v1955 = vpop.f32.mrb[0].mxu0
    %1956 = vmatprep.mubr.f32.mxu0 0.0
    %1957 = vmatmul.mubr.f32.gmra.mrb[0].mxu0 %v1694
    %v1958 = vpop.f32.mrb[0].mxu0
    %v1959 = vadd.f32 %v1814, %v1958
    %v1960 = vpop.f32.mrb[0].mxu0
    %1961 = vmatprep.mubr.f32.mxu0 0.0
    %1962 = vmatmul.mubr.f32.gmra.mrb[0].mxu0 %v1695
    %v1963 = vpop.f32.mrb[0].mxu0
    %v1964 = vadd.f32 %v1819, %v1963
    %v1965 = vpop.f32.mrb[0].mxu0
    %1966 = vmatprep.mubr.f32.mxu0 0.0
    %1967 = vmatmul.mubr.f32.gmra.mrb[0].mxu0 %v1696
    %v1968 = vpop.f32.mrb[0].mxu0
    %v1969 = vadd.f32 %v1824, %v1968
    %v1970 = vpop.f32.mrb[0].mxu0
    %1971 = vmatprep.mubr.f32.mxu0 0.0
    %1972 = vmatmul.mubr.f32.gmra.mrb[0].mxu0 %v1697
    %v1973 = vpop.f32.mrb[0].mxu0
    %v1974 = vadd.f32 %v1829, %v1973
    %v1975 = vpop.f32.mrb[0].mxu0
    %1976 = vmatprep.mubr.f32.mxu0 0.0
    %1977 = vmatmul.mubr.f32.gmra.mrb[0].mxu0 %v1698
    %v1978 = vpop.f32.mrb[0].mxu0
    %v1979 = vadd.f32 %v1834, %v1978
    %v1980 = vpop.f32.mrb[0].mxu0
    %1981 = vmatprep.mubr.f32.mxu0 0.0
    %1982 = vmatmul.mubr.f32.gmra.mrb[0].mxu0 %v1699
    %v1983 = vpop.f32.mrb[0].mxu0
    %v1984 = vadd.f32 %v1839, %v1983
    %v1985 = vpop.f32.mrb[0].mxu0
    %1986 = vmatprep.mubr.f32.mxu0 0.0
    %1987 = vmatmul.mubr.f32.gmra.mrb[0].mxu0 %v1700
    %v1988 = vpop.f32.mrb[0].mxu0
    %v1989 = vadd.f32 %v1844, %v1988
    %v1990 = vpop.f32.mrb[0].mxu0
    %1991 = vmatprep.mubr.f32.mxu0 0.0
    %1992 = vmatmul.mubr.f32.gmra.mrb[0].mxu0 %v1701
    %v1993 = vpop.f32.mrb[0].mxu0
    %v1994 = vadd.f32 %v1849, %v1993
    %v1995 = vpop.f32.mrb[0].mxu0
    %1996 = vmatprep.mubr.f32.mxu0 0.0
    %1997 = vmatmul.mubr.f32.gmra.mrb[0].mxu0 %v1702
    %v1998 = vpop.f32.mrb[0].mxu0
    %v1999 = vadd.f32 %v1854, %v1998
    %v2000 = vpop.f32.mrb[0].mxu0
    %2001 = vmatprep.mubr.f32.mxu0 0.0
    %2002 = vmatmul.mubr.f32.gmra.mrb[0].mxu0 %v1703
    %v2003 = vpop.f32.mrb[0].mxu0
    %v2004 = vadd.f32 %v1859, %v2003
    %v2005 = vpop.f32.mrb[0].mxu0
    %2006 = vmatprep.mubr.f32.mxu0 0.0
    %2007 = vmatmul.mubr.f32.gmra.mrb[0].mxu0 %v1704
    %v2008 = vpop.f32.mrb[0].mxu0
    %v2009 = vadd.f32 %v1864, %v2008
    %v2010 = vpop.f32.mrb[0].mxu0
    %2011 = vdwg.mxu0
    %s2012 = scalar_lea.vmem [#allocation20], 256
    %v2013 = vld [vmem:[%s2012] sm:$0xff]
    %v2014 = vld [vmem:[%s2012 + $0x8] sm:$0xff]
    %v2015 = vld [vmem:[%s2012 + $0x10] sm:$0xff]
    %v2016 = vld [vmem:[%s2012 + $0x18] sm:$0xff]
    %v2017 = vld [vmem:[%s2012 + $0x20] sm:$0xff]
    %v2018 = vld [vmem:[%s2012 + $0x28] sm:$0xff]
    %v2019 = vld [vmem:[%s2012 + $0x30] sm:$0xff]
    %v2020 = vld [vmem:[%s2012 + $0x38] sm:$0xff]
    %v2021 = vld [vmem:[%s2012 + $0x40] sm:$0xff]
    %v2022 = vld [vmem:[%s2012 + $0x48] sm:$0xff]
    %v2023 = vld [vmem:[%s2012 + $0x50] sm:$0xff]
    %v2024 = vld [vmem:[%s2012 + $0x58] sm:$0xff]
    %v2025 = vld [vmem:[%s2012 + $0x60] sm:$0xff]
    %v2026 = vld [vmem:[%s2012 + $0x68] sm:$0xff]
    %v2027 = vld [vmem:[%s2012 + $0x70] sm:$0xff]
    %v2028 = vld [vmem:[%s2012 + $0x78] sm:$0xff]
    %2029 = vmatprep.subr.mxu0 0.0
    %2030 = vmatpush1.msra.mxu0 %v1611
    %2031 = vmatprep.subr.mxu0 0.0
    %2032 = vmatpush1.msra.mxu0 %v1616
    %2033 = vmatprep.subr.mxu0 0.0
    %2034 = vmatpush1.msra.mxu0 %v1621
    %2035 = vmatprep.subr.mxu0 0.0
    %2036 = vmatpush1.msra.mxu0 %v1626
    %2037 = vmatprep.subr.mxu0 0.0
    %2038 = vmatpush1.msra.mxu0 %v1631
    %2039 = vmatprep.subr.mxu0 0.0
    %2040 = vmatpush1.msra.mxu0 %v1636
    %2041 = vmatprep.subr.mxu0 0.0
    %2042 = vmatpush1.msra.mxu0 %v1641
    %2043 = vmatprep.subr.mxu0 0.0
    %2044 = vmatpush1.msra.mxu0 %v1646
    %2045 = vmatprep.subr.mxu0 0.0
    %2046 = vmatpush1.msra.mxu0 %v1651
    %2047 = vmatprep.subr.mxu0 0.0
    %2048 = vmatpush1.msra.mxu0 %v1656
    %2049 = vmatprep.subr.mxu0 0.0
    %2050 = vmatpush1.msra.mxu0 %v1661
    %2051 = vmatprep.subr.mxu0 0.0
    %2052 = vmatpush1.msra.mxu0 %v1666
    %2053 = vmatprep.subr.mxu0 0.0
    %2054 = vmatpush1.msra.mxu0 %v1671
    %2055 = vmatprep.subr.mxu0 0.0
    %2056 = vmatpush1.msra.mxu0 %v1676
    %2057 = vmatprep.subr.mxu0 0.0
    %2058 = vmatpush1.msra.mxu0 %v1681
    %2059 = vmatprep.subr.mxu0 0.0
    %2060 = vmatpush1.msra.mxu0 %v1686
    %2061 = vmatprep.subr.mxu0 0.0
    %2062 = vmatpush1.msra.mxu0 0.0
    %2063 = vmatprep.subr.mxu0 0.0
    %2064 = vmatpush1.msra.mxu0 0.0
    %2065 = vmatprep.subr.mxu0 0.0
    %2066 = vmatpush1.msra.mxu0 0.0
    %2067 = vmatprep.subr.mxu0 0.0
    %2068 = vmatpush1.msra.mxu0 0.0
    %2069 = vmatprep.subr.mxu0 0.0
    %2070 = vmatpush1.msra.mxu0 0.0
    %2071 = vmatprep.subr.mxu0 0.0
    %2072 = vmatpush1.msra.mxu0 0.0
    %2073 = vmatprep.subr.mxu0 0.0
    %2074 = vmatpush1.msra.mxu0 0.0
    %2075 = vmatprep.subr.mxu0 0.0
    %2076 = vmatpush1.msra.mxu0 0.0
    %2077 = vmatprep.subr.mxu0 0.0
    %2078 = vmatpush1.msra.mxu0 0.0
    %2079 = vmatprep.subr.mxu0 0.0
    %2080 = vmatpush1.msra.mxu0 0.0
    %2081 = vmatprep.subr.mxu0 0.0
    %2082 = vmatpush1.msra.mxu0 0.0
    %2083 = vmatprep.subr.mxu0 0.0
    %2084 = vmatpush1.msra.mxu0 0.0
    %2085 = vmatprep.subr.mxu0 0.0
    %2086 = vmatpush1.msra.mxu0 0.0
    %2087 = vmatprep.subr.mxu0 0.0
    %2088 = vmatpush1.msra.mxu0 0.0
    %2089 = vmatprep.subr.mxu0 0.0
    %2090 = vmatpush1.msra.mxu0 0.0
    %2091 = vmatprep.subr.mxu0 0.0
    %2092 = vmatpush1.msra.mxu0 0.0
    %2093 = vmatprep.mubr.f32.mxu0 0.0
    %2094 = vmatmul.mubr.f32.gmra.mrb[0].mxu0 %v2013
    %v2095 = vpop.f32.mrb[0].mxu0
    %v2096 = vadd.f32 0.0, %v2095
    %v2097 = vpop.f32.mrb[0].mxu0
    %2098 = vmatprep.mubr.f32.mxu0 0.0
    %2099 = vmatmul.mubr.f32.gmra.mrb[0].mxu0 %v2014
    %v2100 = vpop.f32.mrb[0].mxu0
    %v2101 = vadd.f32 0.0, %v2100
    %v2102 = vpop.f32.mrb[0].mxu0
    %2103 = vmatprep.mubr.f32.mxu0 0.0
    %2104 = vmatmul.mubr.f32.gmra.mrb[0].mxu0 %v2015
    %v2105 = vpop.f32.mrb[0].mxu0
    %v2106 = vadd.f32 0.0, %v2105
    %v2107 = vpop.f32.mrb[0].mxu0
    %2108 = vmatprep.mubr.f32.mxu0 0.0
    %2109 = vmatmul.mubr.f32.gmra.mrb[0].mxu0 %v2016
    %v2110 = vpop.f32.mrb[0].mxu0
    %v2111 = vadd.f32 0.0, %v2110
    %v2112 = vpop.f32.mrb[0].mxu0
    %2113 = vmatprep.mubr.f32.mxu0 0.0
    %2114 = vmatmul.mubr.f32.gmra.mrb[0].mxu0 %v2017
    %v2115 = vpop.f32.mrb[0].mxu0
    %v2116 = vadd.f32 0.0, %v2115
    %v2117 = vpop.f32.mrb[0].mxu0
    %2118 = vmatprep.mubr.f32.mxu0 0.0
    %2119 = vmatmul.mubr.f32.gmra.mrb[0].mxu0 %v2018
    %v2120 = vpop.f32.mrb[0].mxu0
    %v2121 = vadd.f32 0.0, %v2120
    %v2122 = vpop.f32.mrb[0].mxu0
    %2123 = vmatprep.mubr.f32.mxu0 0.0
    %2124 = vmatmul.mubr.f32.gmra.mrb[0].mxu0 %v2019
    %v2125 = vpop.f32.mrb[0].mxu0
    %v2126 = vadd.f32 0.0, %v2125
    %v2127 = vpop.f32.mrb[0].mxu0
    %2128 = vmatprep.mubr.f32.mxu0 0.0
    %2129 = vmatmul.mubr.f32.gmra.mrb[0].mxu0 %v2020
    %v2130 = vpop.f32.mrb[0].mxu0
    %v2131 = vadd.f32 0.0, %v2130
    %v2132 = vpop.f32.mrb[0].mxu0
    %2133 = vmatprep.mubr.f32.mxu0 0.0
    %2134 = vmatmul.mubr.f32.gmra.mrb[0].mxu0 %v2021
    %v2135 = vpop.f32.mrb[0].mxu0
    %v2136 = vadd.f32 0.0, %v2135
    %v2137 = vpop.f32.mrb[0].mxu0
    %2138 = vmatprep.mubr.f32.mxu0 0.0
    %2139 = vmatmul.mubr.f32.gmra.mrb[0].mxu0 %v2022
    %v2140 = vpop.f32.mrb[0].mxu0
    %v2141 = vadd.f32 0.0, %v2140
    %v2142 = vpop.f32.mrb[0].mxu0
    %2143 = vmatprep.mubr.f32.mxu0 0.0
    %2144 = vmatmul.mubr.f32.gmra.mrb[0].mxu0 %v2023
    %v2145 = vpop.f32.mrb[0].mxu0
    %v2146 = vadd.f32 0.0, %v2145
    %v2147 = vpop.f32.mrb[0].mxu0
    %2148 = vmatprep.mubr.f32.mxu0 0.0
    %2149 = vmatmul.mubr.f32.gmra.mrb[0].mxu0 %v2024
    %v2150 = vpop.f32.mrb[0].mxu0
    %v2151 = vadd.f32 0.0, %v2150
    %v2152 = vpop.f32.mrb[0].mxu0
    %2153 = vmatprep.mubr.f32.mxu0 0.0
    %2154 = vmatmul.mubr.f32.gmra.mrb[0].mxu0 %v2025
    %v2155 = vpop.f32.mrb[0].mxu0
    %v2156 = vadd.f32 0.0, %v2155
    %v2157 = vpop.f32.mrb[0].mxu0
    %2158 = vmatprep.mubr.f32.mxu0 0.0
    %2159 = vmatmul.mubr.f32.gmra.mrb[0].mxu0 %v2026
    %v2160 = vpop.f32.mrb[0].mxu0
    %v2161 = vadd.f32 0.0, %v2160
    %v2162 = vpop.f32.mrb[0].mxu0
    %2163 = vmatprep.mubr.f32.mxu0 0.0
    %2164 = vmatmul.mubr.f32.gmra.mrb[0].mxu0 %v2027
    %v2165 = vpop.f32.mrb[0].mxu0
    %v2166 = vadd.f32 0.0, %v2165
    %v2167 = vpop.f32.mrb[0].mxu0
    %2168 = vmatprep.mubr.f32.mxu0 0.0
    %2169 = vmatmul.mubr.f32.gmra.mrb[0].mxu0 %v2028
    %v2170 = vpop.f32.mrb[0].mxu0
    %v2171 = vadd.f32 0.0, %v2170
    %v2172 = vpop.f32.mrb[0].mxu0
    %2173 = vdwg.mxu0
    %v2174 = vadd.f32 %v1934, %v2096
    %v2175 = vadd.f32 %v1939, %v2101
    %v2176 = vadd.f32 %v1944, %v2106
    %v2177 = vadd.f32 %v1949, %v2111
    %v2178 = vadd.f32 %v1954, %v2116
    %v2179 = vadd.f32 %v1959, %v2121
    %v2180 = vadd.f32 %v1964, %v2126
    %v2181 = vadd.f32 %v1969, %v2131
    %v2182 = vadd.f32 %v1974, %v2136
    %v2183 = vadd.f32 %v1979, %v2141
    %v2184 = vadd.f32 %v1984, %v2146
    %v2185 = vadd.f32 %v1989, %v2151
    %v2186 = vadd.f32 %v1994, %v2156
    %v2187 = vadd.f32 %v1999, %v2161
    %v2188 = vadd.f32 %v2004, %v2166
    %v2189 = vadd.f32 %v2009, %v2171
    %v2190 = vld [vmem:[%s13] sm:$0xff]
    %v2191 = vld [vmem:[%s13 + $0x8] sm:$0xff]
    %v2192 = vld [vmem:[%s13 + $0x10] sm:$0xff]
    %v2193 = vld [vmem:[%s13 + $0x18] sm:$0xff]
    %v2194 = vld [vmem:[%s13 + $0x20] sm:$0xff]
    %v2195 = vld [vmem:[%s13 + $0x28] sm:$0xff]
    %v2196 = vld [vmem:[%s13 + $0x30] sm:$0xff]
    %v2197 = vld [vmem:[%s13 + $0x38] sm:$0xff]
    %v2198 = vld [vmem:[%s13 + $0x40] sm:$0xff]
    %v2199 = vld [vmem:[%s13 + $0x48] sm:$0xff]
    %v2200 = vld [vmem:[%s13 + $0x50] sm:$0xff]
    %v2201 = vld [vmem:[%s13 + $0x58] sm:$0xff]
    %v2202 = vld [vmem:[%s13 + $0x60] sm:$0xff]
    %v2203 = vld [vmem:[%s13 + $0x68] sm:$0xff]
    %v2204 = vld [vmem:[%s13 + $0x70] sm:$0xff]
    %v2205 = vld [vmem:[%s13 + $0x78] sm:$0xff]
    %2207 = vset.pattern.permute.xlu0 0
    %2208 = vperm.xlu0 %2207, %v2190
    %v2209 = vpop.permute.xlu0 %2208
    %2212 = vset.pattern.permute.xlu0 0
    %2213 = vperm.xlu0 %2212, %v2191
    %v2214 = vpop.permute.xlu0 %2213
    %2217 = vset.pattern.permute.xlu0 0
    %2218 = vperm.xlu0 %2217, %v2192
    %v2219 = vpop.permute.xlu0 %2218
    %2222 = vset.pattern.permute.xlu0 0
    %2223 = vperm.xlu0 %2222, %v2193
    %v2224 = vpop.permute.xlu0 %2223
    %2227 = vset.pattern.permute.xlu0 0
    %2228 = vperm.xlu0 %2227, %v2194
    %v2229 = vpop.permute.xlu0 %2228
    %2232 = vset.pattern.permute.xlu0 0
    %2233 = vperm.xlu0 %2232, %v2195
    %v2234 = vpop.permute.xlu0 %2233
    %2237 = vset.pattern.permute.xlu0 0
    %2238 = vperm.xlu0 %2237, %v2196
    %v2239 = vpop.permute.xlu0 %2238
    %2242 = vset.pattern.permute.xlu0 0
    %2243 = vperm.xlu0 %2242, %v2197
    %v2244 = vpop.permute.xlu0 %2243
    %2247 = vset.pattern.permute.xlu0 0
    %2248 = vperm.xlu0 %2247, %v2198
    %v2249 = vpop.permute.xlu0 %2248
    %2252 = vset.pattern.permute.xlu0 0
    %2253 = vperm.xlu0 %2252, %v2199
    %v2254 = vpop.permute.xlu0 %2253
    %2257 = vset.pattern.permute.xlu0 0
    %2258 = vperm.xlu0 %2257, %v2200
    %v2259 = vpop.permute.xlu0 %2258
    %2262 = vset.pattern.permute.xlu0 0
    %2263 = vperm.xlu0 %2262, %v2201
    %v2264 = vpop.permute.xlu0 %2263
    %2267 = vset.pattern.permute.xlu0 0
    %2268 = vperm.xlu0 %2267, %v2202
    %v2269 = vpop.permute.xlu0 %2268
    %2272 = vset.pattern.permute.xlu0 0
    %2273 = vperm.xlu0 %2272, %v2203
    %v2274 = vpop.permute.xlu0 %2273
    %2277 = vset.pattern.permute.xlu0 0
    %2278 = vperm.xlu0 %2277, %v2204
    %v2279 = vpop.permute.xlu0 %2278
    %2282 = vset.pattern.permute.xlu0 0
    %2283 = vperm.xlu0 %2282, %v2205
    %v2284 = vpop.permute.xlu0 %2283
    %v2286 = vadd.f32 %v2174, %v2209
    %v2287 = vadd.f32 %v2175, %v2214
    %v2288 = vadd.f32 %v2176, %v2219
    %v2289 = vadd.f32 %v2177, %v2224
    %v2290 = vadd.f32 %v2178, %v2229
    %v2291 = vadd.f32 %v2179, %v2234
    %v2292 = vadd.f32 %v2180, %v2239
    %v2293 = vadd.f32 %v2181, %v2244
    %v2294 = vadd.f32 %v2182, %v2249
    %v2295 = vadd.f32 %v2183, %v2254
    %v2296 = vadd.f32 %v2184, %v2259
    %v2297 = vadd.f32 %v2185, %v2264
    %v2298 = vadd.f32 %v2186, %v2269
    %v2299 = vadd.f32 %v2187, %v2274
    %v2300 = vadd.f32 %v2188, %v2279
    %v2301 = vadd.f32 %v2189, %v2284
    %vm2302 = vcmp.gt.f32.partialorder %v2286, 0.0
    %vm2303 = vcmp.gt.f32.partialorder %v2287, 0.0
    %vm2304 = vcmp.gt.f32.partialorder %v2288, 0.0
    %vm2305 = vcmp.gt.f32.partialorder %v2289, 0.0
    %vm2306 = vcmp.gt.f32.partialorder %v2290, 0.0
    %vm2307 = vcmp.gt.f32.partialorder %v2291, 0.0
    %vm2308 = vcmp.gt.f32.partialorder %v2292, 0.0
    %vm2309 = vcmp.gt.f32.partialorder %v2293, 0.0
    %vm2310 = vcmp.gt.f32.partialorder %v2294, 0.0
    %vm2311 = vcmp.gt.f32.partialorder %v2295, 0.0
    %vm2312 = vcmp.gt.f32.partialorder %v2296, 0.0
    %vm2313 = vcmp.gt.f32.partialorder %v2297, 0.0
    %vm2314 = vcmp.gt.f32.partialorder %v2298, 0.0
    %vm2315 = vcmp.gt.f32.partialorder %v2299, 0.0
    %vm2316 = vcmp.gt.f32.partialorder %v2300, 0.0
    %vm2317 = vcmp.gt.f32.partialorder %v2301, 0.0
    %v2318 = vmul.f32 %v2286, 0.01
    %v2319 = vmul.f32 %v2287, 0.01
    %v2320 = vmul.f32 %v2288, 0.01
    %v2321 = vmul.f32 %v2289, 0.01
    %v2322 = vmul.f32 %v2290, 0.01
    %v2323 = vmul.f32 %v2291, 0.01
    %v2324 = vmul.f32 %v2292, 0.01
    %v2325 = vmul.f32 %v2293, 0.01
    %v2326 = vmul.f32 %v2294, 0.01
    %v2327 = vmul.f32 %v2295, 0.01
    %v2328 = vmul.f32 %v2296, 0.01
    %v2329 = vmul.f32 %v2297, 0.01
    %v2330 = vmul.f32 %v2298, 0.01
    %v2331 = vmul.f32 %v2299, 0.01
    %v2332 = vmul.f32 %v2300, 0.01
    %v2333 = vmul.f32 %v2301, 0.01
    %v2334 = vsel %vm2302, %v2286, %v2318
    %v2335 = vsel %vm2303, %v2287, %v2319
    %v2336 = vsel %vm2304, %v2288, %v2320
    %v2337 = vsel %vm2305, %v2289, %v2321
    %v2338 = vsel %vm2306, %v2290, %v2322
    %v2339 = vsel %vm2307, %v2291, %v2323
    %v2340 = vsel %vm2308, %v2292, %v2324
    %v2341 = vsel %vm2309, %v2293, %v2325
    %v2342 = vsel %vm2310, %v2294, %v2326
    %v2343 = vsel %vm2311, %v2295, %v2327
    %v2344 = vsel %vm2312, %v2296, %v2328
    %v2345 = vsel %vm2313, %v2297, %v2329
    %v2346 = vsel %vm2314, %v2298, %v2330
    %v2347 = vsel %vm2315, %v2299, %v2331
    %v2348 = vsel %vm2316, %v2300, %v2332
    %v2349 = vsel %vm2317, %v2301, %v2333
    %v2350 = vld [vmem:[#allocation14] sm:$0xff]
    %v2351 = vld [vmem:[#allocation14 + $0x8] sm:$0xff]
    %v2352 = vld [vmem:[#allocation14 + $0x10] sm:$0xff]
    %v2353 = vld [vmem:[#allocation14 + $0x18] sm:$0xff]
    %v2354 = vld [vmem:[#allocation14 + $0x20] sm:$0xff]
    %v2355 = vld [vmem:[#allocation14 + $0x28] sm:$0xff]
    %v2356 = vld [vmem:[#allocation14 + $0x30] sm:$0xff]
    %v2357 = vld [vmem:[#allocation14 + $0x38] sm:$0xff]
    %v2358 = vld [vmem:[#allocation14 + $0x40] sm:$0xff]
    %v2359 = vld [vmem:[#allocation14 + $0x48] sm:$0xff]
    %v2360 = vld [vmem:[#allocation14 + $0x50] sm:$0xff]
    %v2361 = vld [vmem:[#allocation14 + $0x58] sm:$0xff]
    %v2362 = vld [vmem:[#allocation14 + $0x60] sm:$0xff]
    %v2363 = vld [vmem:[#allocation14 + $0x68] sm:$0xff]
    %v2364 = vld [vmem:[#allocation14 + $0x70] sm:$0xff]
    %v2365 = vld [vmem:[#allocation14 + $0x78] sm:$0xff]
    %v2366 = vld [vmem:[#allocation14 + $0x80] sm:$0xff]
    %v2367 = vld [vmem:[#allocation14 + $0x88] sm:$0xff]
    %v2368 = vld [vmem:[#allocation14 + $0x90] sm:$0xff]
    %v2369 = vld [vmem:[#allocation14 + $0x98] sm:$0xff]
    %v2370 = vld [vmem:[#allocation14 + $0xa0] sm:$0xff]
    %v2371 = vld [vmem:[#allocation14 + $0xa8] sm:$0xff]
    %v2372 = vld [vmem:[#allocation14 + $0xb0] sm:$0xff]
    %v2373 = vld [vmem:[#allocation14 + $0xb8] sm:$0xff]
    %v2374 = vld [vmem:[#allocation14 + $0xc0] sm:$0xff]
    %v2375 = vld [vmem:[#allocation14 + $0xc8] sm:$0xff]
    %v2376 = vld [vmem:[#allocation14 + $0xd0] sm:$0xff]
    %v2377 = vld [vmem:[#allocation14 + $0xd8] sm:$0xff]
    %v2378 = vld [vmem:[#allocation14 + $0xe0] sm:$0xff]
    %v2379 = vld [vmem:[#allocation14 + $0xe8] sm:$0xff]
    %v2380 = vld [vmem:[#allocation14 + $0xf0] sm:$0xff]
    %v2381 = vld [vmem:[#allocation14 + $0xf8] sm:$0xff]
    %v2382 = vld [vmem:[#allocation14 + $0x100] sm:$0xff]
    %v2383 = vld [vmem:[#allocation14 + $0x108] sm:$0xff]
    %v2384 = vld [vmem:[#allocation14 + $0x110] sm:$0xff]
    %v2385 = vld [vmem:[#allocation14 + $0x118] sm:$0xff]
    %v2386 = vld [vmem:[#allocation14 + $0x120] sm:$0xff]
    %v2387 = vld [vmem:[#allocation14 + $0x128] sm:$0xff]
    %v2388 = vld [vmem:[#allocation14 + $0x130] sm:$0xff]
    %v2389 = vld [vmem:[#allocation14 + $0x138] sm:$0xff]
    %v2390 = vld [vmem:[#allocation14 + $0x140] sm:$0xff]
    %v2391 = vld [vmem:[#allocation14 + $0x148] sm:$0xff]
    %v2392 = vld [vmem:[#allocation14 + $0x150] sm:$0xff]
    %v2393 = vld [vmem:[#allocation14 + $0x158] sm:$0xff]
    %v2394 = vld [vmem:[#allocation14 + $0x160] sm:$0xff]
    %v2395 = vld [vmem:[#allocation14 + $0x168] sm:$0xff]
    %v2396 = vld [vmem:[#allocation14 + $0x170] sm:$0xff]
    %v2397 = vld [vmem:[#allocation14 + $0x178] sm:$0xff]
    %2398 = vmatprep.subr.mxu0 %v2351
    %2399 = vmatpush1.msra.mxu0 %v2350
    %2400 = vmatprep.subr.mxu0 %v2354
    %2401 = vmatpush1.msra.mxu0 %v2353
    %2402 = vmatprep.subr.mxu0 %v2357
    %2403 = vmatpush1.msra.mxu0 %v2356
    %2404 = vmatprep.subr.mxu0 %v2360
    %2405 = vmatpush1.msra.mxu0 %v2359
    %2406 = vmatprep.subr.mxu0 %v2363
    %2407 = vmatpush1.msra.mxu0 %v2362
    %2408 = vmatprep.subr.mxu0 %v2366
    %2409 = vmatpush1.msra.mxu0 %v2365
    %2410 = vmatprep.subr.mxu0 %v2369
    %2411 = vmatpush1.msra.mxu0 %v2368
    %2412 = vmatprep.subr.mxu0 %v2372
    %2413 = vmatpush1.msra.mxu0 %v2371
    %2414 = vmatprep.subr.mxu0 %v2375
    %2415 = vmatpush1.msra.mxu0 %v2374
    %2416 = vmatprep.subr.mxu0 %v2378
    %2417 = vmatpush1.msra.mxu0 %v2377
    %2418 = vmatprep.subr.mxu0 %v2381
    %2419 = vmatpush1.msra.mxu0 %v2380
    %2420 = vmatprep.subr.mxu0 %v2384
    %2421 = vmatpush1.msra.mxu0 %v2383
    %2422 = vmatprep.subr.mxu0 %v2387
    %2423 = vmatpush1.msra.mxu0 %v2386
    %2424 = vmatprep.subr.mxu0 %v2390
    %2425 = vmatpush1.msra.mxu0 %v2389
    %2426 = vmatprep.subr.mxu0 %v2393
    %2427 = vmatpush1.msra.mxu0 %v2392
    %2428 = vmatprep.subr.mxu0 %v2396
    %2429 = vmatpush1.msra.mxu0 %v2395
    %2430 = vmatprep.subr.mxu0 0.0
    %2431 = vmatpush1.msra.mxu0 0.0
    %2432 = vmatprep.subr.mxu0 0.0
    %2433 = vmatpush1.msra.mxu0 0.0
    %2434 = vmatprep.subr.mxu0 0.0
    %2435 = vmatpush1.msra.mxu0 0.0
    %2436 = vmatprep.subr.mxu0 0.0
    %2437 = vmatpush1.msra.mxu0 0.0
    %2438 = vmatprep.subr.mxu0 0.0
    %2439 = vmatpush1.msra.mxu0 0.0
    %2440 = vmatprep.subr.mxu0 0.0
    %2441 = vmatpush1.msra.mxu0 0.0
    %2442 = vmatprep.subr.mxu0 0.0
    %2443 = vmatpush1.msra.mxu0 0.0
    %2444 = vmatprep.subr.mxu0 0.0
    %2445 = vmatpush1.msra.mxu0 0.0
    %2446 = vmatprep.subr.mxu0 0.0
    %2447 = vmatpush1.msra.mxu0 0.0
    %2448 = vmatprep.subr.mxu0 0.0
    %2449 = vmatpush1.msra.mxu0 0.0
    %2450 = vmatprep.subr.mxu0 0.0
    %2451 = vmatpush1.msra.mxu0 0.0
    %2452 = vmatprep.subr.mxu0 0.0
    %2453 = vmatpush1.msra.mxu0 0.0
    %2454 = vmatprep.subr.mxu0 0.0
    %2455 = vmatpush1.msra.mxu0 0.0
    %2456 = vmatprep.subr.mxu0 0.0
    %2457 = vmatpush1.msra.mxu0 0.0
    %2458 = vmatprep.subr.mxu0 0.0
    %2459 = vmatpush1.msra.mxu0 0.0
    %2460 = vmatprep.subr.mxu0 0.0
    %2461 = vmatpush1.msra.mxu0 0.0
    %2462 = vmatprep.mubr.f32.mxu0 0.0
    %2463 = vmatmul.mubr.f32.gmra.mrb[0].mxu0 %v2334
    %v2464 = vpop.f32.mrb[0].mxu0
    %v2465 = vadd.f32 0.0, %v2464
    %v2466 = vpop.f32.mrb[0].mxu0
    %v2467 = vadd.f32 0.0, %v2466
    %2468 = vmatprep.mubr.f32.mxu0 0.0
    %2469 = vmatmul.mubr.f32.gmra.mrb[0].mxu0 %v2335
    %v2470 = vpop.f32.mrb[0].mxu0
    %v2471 = vadd.f32 0.0, %v2470
    %v2472 = vpop.f32.mrb[0].mxu0
    %v2473 = vadd.f32 0.0, %v2472
    %2474 = vmatprep.mubr.f32.mxu0 0.0
    %2475 = vmatmul.mubr.f32.gmra.mrb[0].mxu0 %v2336
    %v2476 = vpop.f32.mrb[0].mxu0
    %v2477 = vadd.f32 0.0, %v2476
    %v2478 = vpop.f32.mrb[0].mxu0
    %v2479 = vadd.f32 0.0, %v2478
    %2480 = vmatprep.mubr.f32.mxu0 0.0
    %2481 = vmatmul.mubr.f32.gmra.mrb[0].mxu0 %v2337
    %v2482 = vpop.f32.mrb[0].mxu0
    %v2483 = vadd.f32 0.0, %v2482
    %v2484 = vpop.f32.mrb[0].mxu0
    %v2485 = vadd.f32 0.0, %v2484
    %2486 = vmatprep.mubr.f32.mxu0 0.0
    %2487 = vmatmul.mubr.f32.gmra.mrb[0].mxu0 %v2338
    %v2488 = vpop.f32.mrb[0].mxu0
    %v2489 = vadd.f32 0.0, %v2488
    %v2490 = vpop.f32.mrb[0].mxu0
    %v2491 = vadd.f32 0.0, %v2490
    %2492 = vmatprep.mubr.f32.mxu0 0.0
    %2493 = vmatmul.mubr.f32.gmra.mrb[0].mxu0 %v2339
    %v2494 = vpop.f32.mrb[0].mxu0
    %v2495 = vadd.f32 0.0, %v2494
    %v2496 = vpop.f32.mrb[0].mxu0
    %v2497 = vadd.f32 0.0, %v2496
    %2498 = vmatprep.mubr.f32.mxu0 0.0
    %2499 = vmatmul.mubr.f32.gmra.mrb[0].mxu0 %v2340
    %v2500 = vpop.f32.mrb[0].mxu0
    %v2501 = vadd.f32 0.0, %v2500
    %v2502 = vpop.f32.mrb[0].mxu0
    %v2503 = vadd.f32 0.0, %v2502
    %2504 = vmatprep.mubr.f32.mxu0 0.0
    %2505 = vmatmul.mubr.f32.gmra.mrb[0].mxu0 %v2341
    %v2506 = vpop.f32.mrb[0].mxu0
    %v2507 = vadd.f32 0.0, %v2506
    %v2508 = vpop.f32.mrb[0].mxu0
    %v2509 = vadd.f32 0.0, %v2508
    %2510 = vmatprep.mubr.f32.mxu0 0.0
    %2511 = vmatmul.mubr.f32.gmra.mrb[0].mxu0 %v2342
    %v2512 = vpop.f32.mrb[0].mxu0
    %v2513 = vadd.f32 0.0, %v2512
    %v2514 = vpop.f32.mrb[0].mxu0
    %v2515 = vadd.f32 0.0, %v2514
    %2516 = vmatprep.mubr.f32.mxu0 0.0
    %2517 = vmatmul.mubr.f32.gmra.mrb[0].mxu0 %v2343
    %v2518 = vpop.f32.mrb[0].mxu0
    %v2519 = vadd.f32 0.0, %v2518
    %v2520 = vpop.f32.mrb[0].mxu0
    %v2521 = vadd.f32 0.0, %v2520
    %2522 = vmatprep.mubr.f32.mxu0 0.0
    %2523 = vmatmul.mubr.f32.gmra.mrb[0].mxu0 %v2344
    %v2524 = vpop.f32.mrb[0].mxu0
    %v2525 = vadd.f32 0.0, %v2524
    %v2526 = vpop.f32.mrb[0].mxu0
    %v2527 = vadd.f32 0.0, %v2526
    %2528 = vmatprep.mubr.f32.mxu0 0.0
    %2529 = vmatmul.mubr.f32.gmra.mrb[0].mxu0 %v2345
    %v2530 = vpop.f32.mrb[0].mxu0
    %v2531 = vadd.f32 0.0, %v2530
    %v2532 = vpop.f32.mrb[0].mxu0
    %v2533 = vadd.f32 0.0, %v2532
    %2534 = vmatprep.mubr.f32.mxu0 0.0
    %2535 = vmatmul.mubr.f32.gmra.mrb[0].mxu0 %v2346
    %v2536 = vpop.f32.mrb[0].mxu0
    %v2537 = vadd.f32 0.0, %v2536
    %v2538 = vpop.f32.mrb[0].mxu0
    %v2539 = vadd.f32 0.0, %v2538
    %2540 = vmatprep.mubr.f32.mxu0 0.0
    %2541 = vmatmul.mubr.f32.gmra.mrb[0].mxu0 %v2347
    %v2542 = vpop.f32.mrb[0].mxu0
    %v2543 = vadd.f32 0.0, %v2542
    %v2544 = vpop.f32.mrb[0].mxu0
    %v2545 = vadd.f32 0.0, %v2544
    %2546 = vmatprep.mubr.f32.mxu0 0.0
    %2547 = vmatmul.mubr.f32.gmra.mrb[0].mxu0 %v2348
    %v2548 = vpop.f32.mrb[0].mxu0
    %v2549 = vadd.f32 0.0, %v2548
    %v2550 = vpop.f32.mrb[0].mxu0
    %v2551 = vadd.f32 0.0, %v2550
    %2552 = vmatprep.mubr.f32.mxu0 0.0
    %2553 = vmatmul.mubr.f32.gmra.mrb[0].mxu0 %v2349
    %v2554 = vpop.f32.mrb[0].mxu0
    %v2555 = vadd.f32 0.0, %v2554
    %v2556 = vpop.f32.mrb[0].mxu0
    %v2557 = vadd.f32 0.0, %v2556
    %2558 = vdwg.mxu0
    %2559 = vmatprep.subr.mxu0 0.0
    %2560 = vmatpush1.msra.mxu0 %v2352
    %2561 = vmatprep.subr.mxu0 0.0
    %2562 = vmatpush1.msra.mxu0 %v2355
    %2563 = vmatprep.subr.mxu0 0.0
    %2564 = vmatpush1.msra.mxu0 %v2358
    %2565 = vmatprep.subr.mxu0 0.0
    %2566 = vmatpush1.msra.mxu0 %v2361
    %2567 = vmatprep.subr.mxu0 0.0
    %2568 = vmatpush1.msra.mxu0 %v2364
    %2569 = vmatprep.subr.mxu0 0.0
    %2570 = vmatpush1.msra.mxu0 %v2367
    %2571 = vmatprep.subr.mxu0 0.0
    %2572 = vmatpush1.msra.mxu0 %v2370
    %2573 = vmatprep.subr.mxu0 0.0
    %2574 = vmatpush1.msra.mxu0 %v2373
    %2575 = vmatprep.subr.mxu0 0.0
    %2576 = vmatpush1.msra.mxu0 %v2376
    %2577 = vmatprep.subr.mxu0 0.0
    %2578 = vmatpush1.msra.mxu0 %v2379
    %2579 = vmatprep.subr.mxu0 0.0
    %2580 = vmatpush1.msra.mxu0 %v2382
    %2581 = vmatprep.subr.mxu0 0.0
    %2582 = vmatpush1.msra.mxu0 %v2385
    %2583 = vmatprep.subr.mxu0 0.0
    %2584 = vmatpush1.msra.mxu0 %v2388
    %2585 = vmatprep.subr.mxu0 0.0
    %2586 = vmatpush1.msra.mxu0 %v2391
    %2587 = vmatprep.subr.mxu0 0.0
    %2588 = vmatpush1.msra.mxu0 %v2394
    %2589 = vmatprep.subr.mxu0 0.0
    %2590 = vmatpush1.msra.mxu0 %v2397
    %2591 = vmatprep.subr.mxu0 0.0
    %2592 = vmatpush1.msra.mxu0 0.0
    %2593 = vmatprep.subr.mxu0 0.0
    %2594 = vmatpush1.msra.mxu0 0.0
    %2595 = vmatprep.subr.mxu0 0.0
    %2596 = vmatpush1.msra.mxu0 0.0
    %2597 = vmatprep.subr.mxu0 0.0
    %2598 = vmatpush1.msra.mxu0 0.0
    %2599 = vmatprep.subr.mxu0 0.0
    %2600 = vmatpush1.msra.mxu0 0.0
    %2601 = vmatprep.subr.mxu0 0.0
    %2602 = vmatpush1.msra.mxu0 0.0
    %2603 = vmatprep.subr.mxu0 0.0
    %2604 = vmatpush1.msra.mxu0 0.0
    %2605 = vmatprep.subr.mxu0 0.0
    %2606 = vmatpush1.msra.mxu0 0.0
    %2607 = vmatprep.subr.mxu0 0.0
    %2608 = vmatpush1.msra.mxu0 0.0
    %2609 = vmatprep.subr.mxu0 0.0
    %2610 = vmatpush1.msra.mxu0 0.0
    %2611 = vmatprep.subr.mxu0 0.0
    %2612 = vmatpush1.msra.mxu0 0.0
    %2613 = vmatprep.subr.mxu0 0.0
    %2614 = vmatpush1.msra.mxu0 0.0
    %2615 = vmatprep.subr.mxu0 0.0
    %2616 = vmatpush1.msra.mxu0 0.0
    %2617 = vmatprep.subr.mxu0 0.0
    %2618 = vmatpush1.msra.mxu0 0.0
    %2619 = vmatprep.subr.mxu0 0.0
    %2620 = vmatpush1.msra.mxu0 0.0
    %2621 = vmatprep.subr.mxu0 0.0
    %2622 = vmatpush1.msra.mxu0 0.0
    %2623 = vmatprep.mubr.f32.mxu0 0.0
    %2624 = vmatmul.mubr.f32.gmra.mrb[0].mxu0 %v2334
    %v2625 = vpop.f32.mrb[0].mxu0
    %v2626 = vadd.f32 0.0, %v2625
    %v2627 = vpop.f32.mrb[0].mxu0
    %2628 = vmatprep.mubr.f32.mxu0 0.0
    %2629 = vmatmul.mubr.f32.gmra.mrb[0].mxu0 %v2335
    %v2630 = vpop.f32.mrb[0].mxu0
    %v2631 = vadd.f32 0.0, %v2630
    %v2632 = vpop.f32.mrb[0].mxu0
    %2633 = vmatprep.mubr.f32.mxu0 0.0
    %2634 = vmatmul.mubr.f32.gmra.mrb[0].mxu0 %v2336
    %v2635 = vpop.f32.mrb[0].mxu0
    %v2636 = vadd.f32 0.0, %v2635
    %v2637 = vpop.f32.mrb[0].mxu0
    %2638 = vmatprep.mubr.f32.mxu0 0.0
    %2639 = vmatmul.mubr.f32.gmra.mrb[0].mxu0 %v2337
    %v2640 = vpop.f32.mrb[0].mxu0
    %v2641 = vadd.f32 0.0, %v2640
    %v2642 = vpop.f32.mrb[0].mxu0
    %2643 = vmatprep.mubr.f32.mxu0 0.0
    %2644 = vmatmul.mubr.f32.gmra.mrb[0].mxu0 %v2338
    %v2645 = vpop.f32.mrb[0].mxu0
    %v2646 = vadd.f32 0.0, %v2645
    %v2647 = vpop.f32.mrb[0].mxu0
    %2648 = vmatprep.mubr.f32.mxu0 0.0
    %2649 = vmatmul.mubr.f32.gmra.mrb[0].mxu0 %v2339
    %v2650 = vpop.f32.mrb[0].mxu0
    %v2651 = vadd.f32 0.0, %v2650
    %v2652 = vpop.f32.mrb[0].mxu0
    %2653 = vmatprep.mubr.f32.mxu0 0.0
    %2654 = vmatmul.mubr.f32.gmra.mrb[0].mxu0 %v2340
    %v2655 = vpop.f32.mrb[0].mxu0
    %v2656 = vadd.f32 0.0, %v2655
    %v2657 = vpop.f32.mrb[0].mxu0
    %2658 = vmatprep.mubr.f32.mxu0 0.0
    %2659 = vmatmul.mubr.f32.gmra.mrb[0].mxu0 %v2341
    %v2660 = vpop.f32.mrb[0].mxu0
    %v2661 = vadd.f32 0.0, %v2660
    %v2662 = vpop.f32.mrb[0].mxu0
    %2663 = vmatprep.mubr.f32.mxu0 0.0
    %2664 = vmatmul.mubr.f32.gmra.mrb[0].mxu0 %v2342
    %v2665 = vpop.f32.mrb[0].mxu0
    %v2666 = vadd.f32 0.0, %v2665
    %v2667 = vpop.f32.mrb[0].mxu0
    %2668 = vmatprep.mubr.f32.mxu0 0.0
    %2669 = vmatmul.mubr.f32.gmra.mrb[0].mxu0 %v2343
    %v2670 = vpop.f32.mrb[0].mxu0
    %v2671 = vadd.f32 0.0, %v2670
    %v2672 = vpop.f32.mrb[0].mxu0
    %2673 = vmatprep.mubr.f32.mxu0 0.0
    %2674 = vmatmul.mubr.f32.gmra.mrb[0].mxu0 %v2344
    %v2675 = vpop.f32.mrb[0].mxu0
    %v2676 = vadd.f32 0.0, %v2675
    %v2677 = vpop.f32.mrb[0].mxu0
    %2678 = vmatprep.mubr.f32.mxu0 0.0
    %2679 = vmatmul.mubr.f32.gmra.mrb[0].mxu0 %v2345
    %v2680 = vpop.f32.mrb[0].mxu0
    %v2681 = vadd.f32 0.0, %v2680
    %v2682 = vpop.f32.mrb[0].mxu0
    %2683 = vmatprep.mubr.f32.mxu0 0.0
    %2684 = vmatmul.mubr.f32.gmra.mrb[0].mxu0 %v2346
    %v2685 = vpop.f32.mrb[0].mxu0
    %v2686 = vadd.f32 0.0, %v2685
    %v2687 = vpop.f32.mrb[0].mxu0
    %2688 = vmatprep.mubr.f32.mxu0 0.0
    %2689 = vmatmul.mubr.f32.gmra.mrb[0].mxu0 %v2347
    %v2690 = vpop.f32.mrb[0].mxu0
    %v2691 = vadd.f32 0.0, %v2690
    %v2692 = vpop.f32.mrb[0].mxu0
    %2693 = vmatprep.mubr.f32.mxu0 0.0
    %2694 = vmatmul.mubr.f32.gmra.mrb[0].mxu0 %v2348
    %v2695 = vpop.f32.mrb[0].mxu0
    %v2696 = vadd.f32 0.0, %v2695
    %v2697 = vpop.f32.mrb[0].mxu0
    %2698 = vmatprep.mubr.f32.mxu0 0.0
    %2699 = vmatmul.mubr.f32.gmra.mrb[0].mxu0 %v2349
    %v2700 = vpop.f32.mrb[0].mxu0
    %v2701 = vadd.f32 0.0, %v2700
    %v2702 = vpop.f32.mrb[0].mxu0
    %2703 = vdwg.mxu0
    %v2704 = vld [vmem:[#allocation22] sm:$0xff]
    %v2705 = vld [vmem:[#allocation22 + $0x8] sm:$0xff]
    %v2706 = vld [vmem:[#allocation22 + $0x10] sm:$0xff]
    %v2707 = vld [vmem:[#allocation22 + $0x18] sm:$0xff]
    %v2708 = vld [vmem:[#allocation22 + $0x20] sm:$0xff]
    %v2709 = vld [vmem:[#allocation22 + $0x28] sm:$0xff]
    %v2710 = vld [vmem:[#allocation22 + $0x30] sm:$0xff]
    %v2711 = vld [vmem:[#allocation22 + $0x38] sm:$0xff]
    %v2712 = vld [vmem:[%s15] sm:$0xff]
    %v2713 = vld [vmem:[%s15 + $0x8] sm:$0xff]
    %v2714 = vld [vmem:[%s15 + $0x10] sm:$0xff]
    %v2715 = vld [vmem:[%s15 + $0x18] sm:$0xff]
    %v2716 = vld [vmem:[%s15 + $0x20] sm:$0xff]
    %v2717 = vld [vmem:[%s15 + $0x28] sm:$0xff]
    %v2718 = vld [vmem:[%s15 + $0x30] sm:$0xff]
    %v2719 = vld [vmem:[%s15 + $0x38] sm:$0xff]
    %2721 = vset.pattern.permute.xlu0 0
    %2722 = vperm.xlu0 %2721, %v2712
    %v2723 = vpop.permute.xlu0 %2722
    %2726 = vset.pattern.permute.xlu0 0
    %2727 = vperm.xlu0 %2726, %v2713
    %v2728 = vpop.permute.xlu0 %2727
    %2731 = vset.pattern.permute.xlu0 0
    %2732 = vperm.xlu0 %2731, %v2714
    %v2733 = vpop.permute.xlu0 %2732
    %2736 = vset.pattern.permute.xlu0 0
    %2737 = vperm.xlu0 %2736, %v2715
    %v2738 = vpop.permute.xlu0 %2737
    %2741 = vset.pattern.permute.xlu0 0
    %2742 = vperm.xlu0 %2741, %v2716
    %v2743 = vpop.permute.xlu0 %2742
    %2746 = vset.pattern.permute.xlu0 0
    %2747 = vperm.xlu0 %2746, %v2717
    %v2748 = vpop.permute.xlu0 %2747
    %2751 = vset.pattern.permute.xlu0 0
    %2752 = vperm.xlu0 %2751, %v2718
    %v2753 = vpop.permute.xlu0 %2752
    %2756 = vset.pattern.permute.xlu0 0
    %2757 = vperm.xlu0 %2756, %v2719
    %v2758 = vpop.permute.xlu0 %2757
    %2760 = vmatprep.subr.mxu0 %v2467
    %2761 = vmatpush1.msra.mxu0 %v2465
    %2762 = vmatprep.subr.mxu0 %v2473
    %2763 = vmatpush1.msra.mxu0 %v2471
    %2764 = vmatprep.subr.mxu0 %v2479
    %2765 = vmatpush1.msra.mxu0 %v2477
    %2766 = vmatprep.subr.mxu0 %v2485
    %2767 = vmatpush1.msra.mxu0 %v2483
    %2768 = vmatprep.subr.mxu0 %v2491
    %2769 = vmatpush1.msra.mxu0 %v2489
    %2770 = vmatprep.subr.mxu0 %v2497
    %2771 = vmatpush1.msra.mxu0 %v2495
    %2772 = vmatprep.subr.mxu0 %v2503
    %2773 = vmatpush1.msra.mxu0 %v2501
    %2774 = vmatprep.subr.mxu0 %v2509
    %2775 = vmatpush1.msra.mxu0 %v2507
    %2776 = vmatprep.subr.mxu0 %v2515
    %2777 = vmatpush1.msra.mxu0 %v2513
    %2778 = vmatprep.subr.mxu0 %v2521
    %2779 = vmatpush1.msra.mxu0 %v2519
    %2780 = vmatprep.subr.mxu0 %v2527
    %2781 = vmatpush1.msra.mxu0 %v2525
    %2782 = vmatprep.subr.mxu0 %v2533
    %2783 = vmatpush1.msra.mxu0 %v2531
    %2784 = vmatprep.subr.mxu0 %v2539
    %2785 = vmatpush1.msra.mxu0 %v2537
    %2786 = vmatprep.subr.mxu0 %v2545
    %2787 = vmatpush1.msra.mxu0 %v2543
    %2788 = vmatprep.subr.mxu0 %v2551
    %2789 = vmatpush1.msra.mxu0 %v2549
    %2790 = vmatprep.subr.mxu0 %v2557
    %2791 = vmatpush1.msra.mxu0 %v2555
    %2792 = vmatprep.subr.mxu0 0.0
    %2793 = vmatpush1.msra.mxu0 0.0
    %2794 = vmatprep.subr.mxu0 0.0
    %2795 = vmatpush1.msra.mxu0 0.0
    %2796 = vmatprep.subr.mxu0 0.0
    %2797 = vmatpush1.msra.mxu0 0.0
    %2798 = vmatprep.subr.mxu0 0.0
    %2799 = vmatpush1.msra.mxu0 0.0
    %2800 = vmatprep.subr.mxu0 0.0
    %2801 = vmatpush1.msra.mxu0 0.0
    %2802 = vmatprep.subr.mxu0 0.0
    %2803 = vmatpush1.msra.mxu0 0.0
    %2804 = vmatprep.subr.mxu0 0.0
    %2805 = vmatpush1.msra.mxu0 0.0
    %2806 = vmatprep.subr.mxu0 0.0
    %2807 = vmatpush1.msra.mxu0 0.0
    %2808 = vmatprep.subr.mxu0 0.0
    %2809 = vmatpush1.msra.mxu0 0.0
    %2810 = vmatprep.subr.mxu0 0.0
    %2811 = vmatpush1.msra.mxu0 0.0
    %2812 = vmatprep.subr.mxu0 0.0
    %2813 = vmatpush1.msra.mxu0 0.0
    %2814 = vmatprep.subr.mxu0 0.0
    %2815 = vmatpush1.msra.mxu0 0.0
    %2816 = vmatprep.subr.mxu0 0.0
    %2817 = vmatpush1.msra.mxu0 0.0
    %2818 = vmatprep.subr.mxu0 0.0
    %2819 = vmatpush1.msra.mxu0 0.0
    %2820 = vmatprep.subr.mxu0 0.0
    %2821 = vmatpush1.msra.mxu0 0.0
    %2822 = vmatprep.subr.mxu0 0.0
    %2823 = vmatpush1.msra.mxu0 0.0
    %2824 = vmatprep.mubr.f32.mxu0 0.0
    %2825 = vmatmul.mubr.f32.gmra.mrb[0].mxu0 %v2704
    %v2826 = vpop.f32.mrb[0].mxu0
    %v2827 = vadd.f32 %v2723, %v2826
    %v2828 = vpop.f32.mrb[0].mxu0
    %v2829 = vadd.f32 %v2723, %v2828
    %2830 = vmatprep.mubr.f32.mxu0 0.0
    %2831 = vmatmul.mubr.f32.gmra.mrb[0].mxu0 %v2705
    %v2832 = vpop.f32.mrb[0].mxu0
    %v2833 = vadd.f32 %v2728, %v2832
    %v2834 = vpop.f32.mrb[0].mxu0
    %v2835 = vadd.f32 %v2728, %v2834
    %2836 = vmatprep.mubr.f32.mxu0 0.0
    %2837 = vmatmul.mubr.f32.gmra.mrb[0].mxu0 %v2706
    %v2838 = vpop.f32.mrb[0].mxu0
    %v2839 = vadd.f32 %v2733, %v2838
    %v2840 = vpop.f32.mrb[0].mxu0
    %v2841 = vadd.f32 %v2733, %v2840
    %2842 = vmatprep.mubr.f32.mxu0 0.0
    %2843 = vmatmul.mubr.f32.gmra.mrb[0].mxu0 %v2707
    %v2844 = vpop.f32.mrb[0].mxu0
    %v2845 = vadd.f32 %v2738, %v2844
    %v2846 = vpop.f32.mrb[0].mxu0
    %v2847 = vadd.f32 %v2738, %v2846
    %2848 = vmatprep.mubr.f32.mxu0 0.0
    %2849 = vmatmul.mubr.f32.gmra.mrb[0].mxu0 %v2708
    %v2850 = vpop.f32.mrb[0].mxu0
    %v2851 = vadd.f32 %v2743, %v2850
    %v2852 = vpop.f32.mrb[0].mxu0
    %v2853 = vadd.f32 %v2743, %v2852
    %2854 = vmatprep.mubr.f32.mxu0 0.0
    %2855 = vmatmul.mubr.f32.gmra.mrb[0].mxu0 %v2709
    %v2856 = vpop.f32.mrb[0].mxu0
    %v2857 = vadd.f32 %v2748, %v2856
    %v2858 = vpop.f32.mrb[0].mxu0
    %v2859 = vadd.f32 %v2748, %v2858
    %2860 = vmatprep.mubr.f32.mxu0 0.0
    %2861 = vmatmul.mubr.f32.gmra.mrb[0].mxu0 %v2710
    %v2862 = vpop.f32.mrb[0].mxu0
    %v2863 = vadd.f32 %v2753, %v2862
    %v2864 = vpop.f32.mrb[0].mxu0
    %v2865 = vadd.f32 %v2753, %v2864
    %2866 = vmatprep.mubr.f32.mxu0 0.0
    %2867 = vmatmul.mubr.f32.gmra.mrb[0].mxu0 %v2711
    %v2868 = vpop.f32.mrb[0].mxu0
    %v2869 = vadd.f32 %v2758, %v2868
    %v2870 = vpop.f32.mrb[0].mxu0
    %v2871 = vadd.f32 %v2758, %v2870
    %2872 = vdwg.mxu0
    %2873 = vmatprep.subr.mxu0 0.0
    %2874 = vmatpush1.msra.mxu0 %v2626
    %2875 = vmatprep.subr.mxu0 0.0
    %2876 = vmatpush1.msra.mxu0 %v2631
    %2877 = vmatprep.subr.mxu0 0.0
    %2878 = vmatpush1.msra.mxu0 %v2636
    %2879 = vmatprep.subr.mxu0 0.0
    %2880 = vmatpush1.msra.mxu0 %v2641
    %2881 = vmatprep.subr.mxu0 0.0
    %2882 = vmatpush1.msra.mxu0 %v2646
    %2883 = vmatprep.subr.mxu0 0.0
    %2884 = vmatpush1.msra.mxu0 %v2651
    %2885 = vmatprep.subr.mxu0 0.0
    %2886 = vmatpush1.msra.mxu0 %v2656
    %2887 = vmatprep.subr.mxu0 0.0
    %2888 = vmatpush1.msra.mxu0 %v2661
    %2889 = vmatprep.subr.mxu0 0.0
    %2890 = vmatpush1.msra.mxu0 %v2666
    %2891 = vmatprep.subr.mxu0 0.0
    %2892 = vmatpush1.msra.mxu0 %v2671
    %2893 = vmatprep.subr.mxu0 0.0
    %2894 = vmatpush1.msra.mxu0 %v2676
    %2895 = vmatprep.subr.mxu0 0.0
    %2896 = vmatpush1.msra.mxu0 %v2681
    %2897 = vmatprep.subr.mxu0 0.0
    %2898 = vmatpush1.msra.mxu0 %v2686
    %2899 = vmatprep.subr.mxu0 0.0
    %2900 = vmatpush1.msra.mxu0 %v2691
    %2901 = vmatprep.subr.mxu0 0.0
    %2902 = vmatpush1.msra.mxu0 %v2696
    %2903 = vmatprep.subr.mxu0 0.0
    %2904 = vmatpush1.msra.mxu0 %v2701
    %2905 = vmatprep.subr.mxu0 0.0
    %2906 = vmatpush1.msra.mxu0 0.0
    %2907 = vmatprep.subr.mxu0 0.0
    %2908 = vmatpush1.msra.mxu0 0.0
    %2909 = vmatprep.subr.mxu0 0.0
    %2910 = vmatpush1.msra.mxu0 0.0
    %2911 = vmatprep.subr.mxu0 0.0
    %2912 = vmatpush1.msra.mxu0 0.0
    %2913 = vmatprep.subr.mxu0 0.0
    %2914 = vmatpush1.msra.mxu0 0.0
    %2915 = vmatprep.subr.mxu0 0.0
    %2916 = vmatpush1.msra.mxu0 0.0
    %2917 = vmatprep.subr.mxu0 0.0
    %2918 = vmatpush1.msra.mxu0 0.0
    %2919 = vmatprep.subr.mxu0 0.0
    %2920 = vmatpush1.msra.mxu0 0.0
    %2921 = vmatprep.subr.mxu0 0.0
    %2922 = vmatpush1.msra.mxu0 0.0
    %2923 = vmatprep.subr.mxu0 0.0
    %2924 = vmatpush1.msra.mxu0 0.0
    %2925 = vmatprep.subr.mxu0 0.0
    %2926 = vmatpush1.msra.mxu0 0.0
    %2927 = vmatprep.subr.mxu0 0.0
    %2928 = vmatpush1.msra.mxu0 0.0
    %2929 = vmatprep.subr.mxu0 0.0
    %2930 = vmatpush1.msra.mxu0 0.0
    %2931 = vmatprep.subr.mxu0 0.0
    %2932 = vmatpush1.msra.mxu0 0.0
    %2933 = vmatprep.subr.mxu0 0.0
    %2934 = vmatpush1.msra.mxu0 0.0
    %2935 = vmatprep.subr.mxu0 0.0
    %2936 = vmatpush1.msra.mxu0 0.0
    %2937 = vmatprep.mubr.f32.mxu0 0.0
    %2938 = vmatmul.mubr.f32.gmra.mrb[0].mxu0 %v2704
    %v2939 = vpop.f32.mrb[0].mxu0
    %v2940 = vadd.f32 %v2723, %v2939
    %v2941 = vpop.f32.mrb[0].mxu0
    %2942 = vmatprep.mubr.f32.mxu0 0.0
    %2943 = vmatmul.mubr.f32.gmra.mrb[0].mxu0 %v2705
    %v2944 = vpop.f32.mrb[0].mxu0
    %v2945 = vadd.f32 %v2728, %v2944
    %v2946 = vpop.f32.mrb[0].mxu0
    %2947 = vmatprep.mubr.f32.mxu0 0.0
    %2948 = vmatmul.mubr.f32.gmra.mrb[0].mxu0 %v2706
    %v2949 = vpop.f32.mrb[0].mxu0
    %v2950 = vadd.f32 %v2733, %v2949
    %v2951 = vpop.f32.mrb[0].mxu0
    %2952 = vmatprep.mubr.f32.mxu0 0.0
    %2953 = vmatmul.mubr.f32.gmra.mrb[0].mxu0 %v2707
    %v2954 = vpop.f32.mrb[0].mxu0
    %v2955 = vadd.f32 %v2738, %v2954
    %v2956 = vpop.f32.mrb[0].mxu0
    %2957 = vmatprep.mubr.f32.mxu0 0.0
    %2958 = vmatmul.mubr.f32.gmra.mrb[0].mxu0 %v2708
    %v2959 = vpop.f32.mrb[0].mxu0
    %v2960 = vadd.f32 %v2743, %v2959
    %v2961 = vpop.f32.mrb[0].mxu0
    %2962 = vmatprep.mubr.f32.mxu0 0.0
    %2963 = vmatmul.mubr.f32.gmra.mrb[0].mxu0 %v2709
    %v2964 = vpop.f32.mrb[0].mxu0
    %v2965 = vadd.f32 %v2748, %v2964
    %v2966 = vpop.f32.mrb[0].mxu0
    %2967 = vmatprep.mubr.f32.mxu0 0.0
    %2968 = vmatmul.mubr.f32.gmra.mrb[0].mxu0 %v2710
    %v2969 = vpop.f32.mrb[0].mxu0
    %v2970 = vadd.f32 %v2753, %v2969
    %v2971 = vpop.f32.mrb[0].mxu0
    %2972 = vmatprep.mubr.f32.mxu0 0.0
    %2973 = vmatmul.mubr.f32.gmra.mrb[0].mxu0 %v2711
    %v2974 = vpop.f32.mrb[0].mxu0
    %v2975 = vadd.f32 %v2758, %v2974
    %v2976 = vpop.f32.mrb[0].mxu0
    %2977 = vdwg.mxu0
    %vm2978 = vcmp.gt.f32.partialorder %v2827, 0.0
    %vm2979 = vcmp.gt.f32.partialorder %v2829, 0.0
    %vm2980 = vcmp.gt.f32.partialorder %v2940, 0.0
    %vm2981 = vcmp.gt.f32.partialorder %v2833, 0.0
    %vm2982 = vcmp.gt.f32.partialorder %v2835, 0.0
    %vm2983 = vcmp.gt.f32.partialorder %v2945, 0.0
    %vm2984 = vcmp.gt.f32.partialorder %v2839, 0.0
    %vm2985 = vcmp.gt.f32.partialorder %v2841, 0.0
    %vm2986 = vcmp.gt.f32.partialorder %v2950, 0.0
    %vm2987 = vcmp.gt.f32.partialorder %v2845, 0.0
    %vm2988 = vcmp.gt.f32.partialorder %v2847, 0.0
    %vm2989 = vcmp.gt.f32.partialorder %v2955, 0.0
    %vm2990 = vcmp.gt.f32.partialorder %v2851, 0.0
    %vm2991 = vcmp.gt.f32.partialorder %v2853, 0.0
    %vm2992 = vcmp.gt.f32.partialorder %v2960, 0.0
    %vm2993 = vcmp.gt.f32.partialorder %v2857, 0.0
    %vm2994 = vcmp.gt.f32.partialorder %v2859, 0.0
    %vm2995 = vcmp.gt.f32.partialorder %v2965, 0.0
    %vm2996 = vcmp.gt.f32.partialorder %v2863, 0.0
    %vm2997 = vcmp.gt.f32.partialorder %v2865, 0.0
    %vm2998 = vcmp.gt.f32.partialorder %v2970, 0.0
    %vm2999 = vcmp.gt.f32.partialorder %v2869, 0.0
    %vm3000 = vcmp.gt.f32.partialorder %v2871, 0.0
    %vm3001 = vcmp.gt.f32.partialorder %v2975, 0.0
    %v3002 = vmul.f32 %v2827, 0.01
    %v3003 = vmul.f32 %v2829, 0.01
    %v3004 = vmul.f32 %v2940, 0.01
    %v3005 = vmul.f32 %v2833, 0.01
    %v3006 = vmul.f32 %v2835, 0.01
    %v3007 = vmul.f32 %v2945, 0.01
    %v3008 = vmul.f32 %v2839, 0.01
    %v3009 = vmul.f32 %v2841, 0.01
    %v3010 = vmul.f32 %v2950, 0.01
    %v3011 = vmul.f32 %v2845, 0.01
    %v3012 = vmul.f32 %v2847, 0.01
    %v3013 = vmul.f32 %v2955, 0.01
    %v3014 = vmul.f32 %v2851, 0.01
    %v3015 = vmul.f32 %v2853, 0.01
    %v3016 = vmul.f32 %v2960, 0.01
    %v3017 = vmul.f32 %v2857, 0.01
    %v3018 = vmul.f32 %v2859, 0.01
    %v3019 = vmul.f32 %v2965, 0.01
    %v3020 = vmul.f32 %v2863, 0.01
    %v3021 = vmul.f32 %v2865, 0.01
    %v3022 = vmul.f32 %v2970, 0.01
    %v3023 = vmul.f32 %v2869, 0.01
    %v3024 = vmul.f32 %v2871, 0.01
    %v3025 = vmul.f32 %v2975, 0.01
    %v3026 = vsel %vm2978, %v2827, %v3002
    %v3027 = vsel %vm2979, %v2829, %v3003
    %v3028 = vsel %vm2980, %v2940, %v3004
    %v3029 = vsel %vm2981, %v2833, %v3005
    %v3030 = vsel %vm2982, %v2835, %v3006
    %v3031 = vsel %vm2983, %v2945, %v3007
    %v3032 = vsel %vm2984, %v2839, %v3008
    %v3033 = vsel %vm2985, %v2841, %v3009
    %v3034 = vsel %vm2986, %v2950, %v3010
    %v3035 = vsel %vm2987, %v2845, %v3011
    %v3036 = vsel %vm2988, %v2847, %v3012
    %v3037 = vsel %vm2989, %v2955, %v3013
    %v3038 = vsel %vm2990, %v2851, %v3014
    %v3039 = vsel %vm2991, %v2853, %v3015
    %v3040 = vsel %vm2992, %v2960, %v3016
    %v3041 = vsel %vm2993, %v2857, %v3017
    %v3042 = vsel %vm2994, %v2859, %v3018
    %v3043 = vsel %vm2995, %v2965, %v3019
    %v3044 = vsel %vm2996, %v2863, %v3020
    %v3045 = vsel %vm2997, %v2865, %v3021
    %v3046 = vsel %vm2998, %v2970, %v3022
    %v3047 = vsel %vm2999, %v2869, %v3023
    %v3048 = vsel %vm3000, %v2871, %v3024
    %v3049 = vsel %vm3001, %v2975, %v3025
    %v3050 = vld [vmem:[#allocation16] sm:$0xff]
    %v3051 = vld [vmem:[#allocation16 + $0x8] sm:$0xff]
    %v3052 = vld [vmem:[#allocation16 + $0x10] sm:$0xff]
    %v3053 = vld [vmem:[#allocation16 + $0x18] sm:$0xff]
    %v3054 = vld [vmem:[#allocation16 + $0x20] sm:$0xff]
    %v3055 = vld [vmem:[#allocation16 + $0x28] sm:$0xff]
    %v3056 = vld [vmem:[#allocation16 + $0x30] sm:$0xff]
    %v3057 = vld [vmem:[#allocation16 + $0x38] sm:$0xff]
    %v3058 = vld [vmem:[#allocation16 + $0x40] sm:$0xff]
    %v3059 = vld [vmem:[#allocation16 + $0x48] sm:$0xff]
    %v3060 = vld [vmem:[#allocation16 + $0x50] sm:$0xff]
    %v3061 = vld [vmem:[#allocation16 + $0x58] sm:$0xff]
    %v3062 = vld [vmem:[#allocation16 + $0x60] sm:$0xff]
    %v3063 = vld [vmem:[#allocation16 + $0x68] sm:$0xff]
    %v3064 = vld [vmem:[#allocation16 + $0x70] sm:$0xff]
    %v3065 = vld [vmem:[#allocation16 + $0x78] sm:$0xff]
    %v3066 = vld [vmem:[#allocation16 + $0x80] sm:$0xff]
    %v3067 = vld [vmem:[#allocation16 + $0x88] sm:$0xff]
    %v3068 = vld [vmem:[#allocation16 + $0x90] sm:$0xff]
    %v3069 = vld [vmem:[#allocation16 + $0x98] sm:$0xff]
    %v3070 = vld [vmem:[#allocation16 + $0xa0] sm:$0xff]
    %v3071 = vld [vmem:[#allocation16 + $0xa8] sm:$0xff]
    %v3072 = vld [vmem:[#allocation16 + $0xb0] sm:$0xff]
    %v3073 = vld [vmem:[#allocation16 + $0xb8] sm:$0xff]
    %v3074 = vld [vmem:[#allocation16 + $0xc0] sm:$0xff]
    %v3075 = vld [vmem:[#allocation16 + $0xc8] sm:$0xff]
    %v3076 = vld [vmem:[#allocation16 + $0xd0] sm:$0xff]
    %v3077 = vld [vmem:[#allocation16 + $0xd8] sm:$0xff]
    %v3078 = vld [vmem:[#allocation16 + $0xe0] sm:$0xff]
    %v3079 = vld [vmem:[#allocation16 + $0xe8] sm:$0xff]
    %v3080 = vld [vmem:[#allocation16 + $0xf0] sm:$0xff]
    %v3081 = vld [vmem:[#allocation16 + $0xf8] sm:$0xff]
    %v3082 = vld [vmem:[#allocation16 + $0x100] sm:$0xff]
    %v3083 = vld [vmem:[#allocation16 + $0x108] sm:$0xff]
    %v3084 = vld [vmem:[#allocation16 + $0x110] sm:$0xff]
    %v3085 = vld [vmem:[#allocation16 + $0x118] sm:$0xff]
    %v3086 = vld [vmem:[#allocation16 + $0x120] sm:$0xff]
    %v3087 = vld [vmem:[#allocation16 + $0x128] sm:$0xff]
    %v3088 = vld [vmem:[#allocation16 + $0x130] sm:$0xff]
    %v3089 = vld [vmem:[#allocation16 + $0x138] sm:$0xff]
    %v3090 = vld [vmem:[#allocation16 + $0x140] sm:$0xff]
    %v3091 = vld [vmem:[#allocation16 + $0x148] sm:$0xff]
    %v3092 = vld [vmem:[#allocation16 + $0x150] sm:$0xff]
    %v3093 = vld [vmem:[#allocation16 + $0x158] sm:$0xff]
    %v3094 = vld [vmem:[#allocation16 + $0x160] sm:$0xff]
    %v3095 = vld [vmem:[#allocation16 + $0x168] sm:$0xff]
    %v3096 = vld [vmem:[#allocation16 + $0x170] sm:$0xff]
    %v3097 = vld [vmem:[#allocation16 + $0x178] sm:$0xff]
    %v3098 = vld [vmem:[#allocation16 + $0x180] sm:$0xff]
    %v3099 = vld [vmem:[#allocation16 + $0x188] sm:$0xff]
    %v3100 = vld [vmem:[#allocation16 + $0x190] sm:$0xff]
    %v3101 = vld [vmem:[#allocation16 + $0x198] sm:$0xff]
    %v3102 = vld [vmem:[#allocation16 + $0x1a0] sm:$0xff]
    %v3103 = vld [vmem:[#allocation16 + $0x1a8] sm:$0xff]
    %v3104 = vld [vmem:[#allocation16 + $0x1b0] sm:$0xff]
    %v3105 = vld [vmem:[#allocation16 + $0x1b8] sm:$0xff]
    %v3106 = vld [vmem:[#allocation16 + $0x1c0] sm:$0xff]
    %v3107 = vld [vmem:[#allocation16 + $0x1c8] sm:$0xff]
    %v3108 = vld [vmem:[#allocation16 + $0x1d0] sm:$0xff]
    %v3109 = vld [vmem:[#allocation16 + $0x1d8] sm:$0xff]
    %v3110 = vld [vmem:[#allocation16 + $0x1e0] sm:$0xff]
    %v3111 = vld [vmem:[#allocation16 + $0x1e8] sm:$0xff]
    %v3112 = vld [vmem:[#allocation16 + $0x1f0] sm:$0xff]
    %v3113 = vld [vmem:[#allocation16 + $0x1f8] sm:$0xff]
    %v3114 = vld [vmem:[#allocation16 + $0x200] sm:$0xff]
    %v3115 = vld [vmem:[#allocation16 + $0x208] sm:$0xff]
    %v3116 = vld [vmem:[#allocation16 + $0x210] sm:$0xff]
    %v3117 = vld [vmem:[#allocation16 + $0x218] sm:$0xff]
    %v3118 = vld [vmem:[#allocation16 + $0x220] sm:$0xff]
    %v3119 = vld [vmem:[#allocation16 + $0x228] sm:$0xff]
    %v3120 = vld [vmem:[#allocation16 + $0x230] sm:$0xff]
    %v3121 = vld [vmem:[#allocation16 + $0x238] sm:$0xff]
    %v3122 = vld [vmem:[#allocation16 + $0x240] sm:$0xff]
    %v3123 = vld [vmem:[#allocation16 + $0x248] sm:$0xff]
    %v3124 = vld [vmem:[#allocation16 + $0x250] sm:$0xff]
    %v3125 = vld [vmem:[#allocation16 + $0x258] sm:$0xff]
    %v3126 = vld [vmem:[#allocation16 + $0x260] sm:$0xff]
    %v3127 = vld [vmem:[#allocation16 + $0x268] sm:$0xff]
    %v3128 = vld [vmem:[#allocation16 + $0x270] sm:$0xff]
    %v3129 = vld [vmem:[#allocation16 + $0x278] sm:$0xff]
    %v3130 = vld [vmem:[#allocation16 + $0x280] sm:$0xff]
    %v3131 = vld [vmem:[#allocation16 + $0x288] sm:$0xff]
    %v3132 = vld [vmem:[#allocation16 + $0x290] sm:$0xff]
    %v3133 = vld [vmem:[#allocation16 + $0x298] sm:$0xff]
    %v3134 = vld [vmem:[#allocation16 + $0x2a0] sm:$0xff]
    %v3135 = vld [vmem:[#allocation16 + $0x2a8] sm:$0xff]
    %v3136 = vld [vmem:[#allocation16 + $0x2b0] sm:$0xff]
    %v3137 = vld [vmem:[#allocation16 + $0x2b8] sm:$0xff]
    %v3138 = vld [vmem:[#allocation16 + $0x2c0] sm:$0xff]
    %v3139 = vld [vmem:[#allocation16 + $0x2c8] sm:$0xff]
    %v3140 = vld [vmem:[#allocation16 + $0x2d0] sm:$0xff]
    %v3141 = vld [vmem:[#allocation16 + $0x2d8] sm:$0xff]
    %v3142 = vld [vmem:[#allocation16 + $0x2e0] sm:$0xff]
    %v3143 = vld [vmem:[#allocation16 + $0x2e8] sm:$0xff]
    %v3144 = vld [vmem:[#allocation16 + $0x2f0] sm:$0xff]
    %v3145 = vld [vmem:[#allocation16 + $0x2f8] sm:$0xff]
    %v3146 = vld [vmem:[#allocation16 + $0x300] sm:$0xff]
    %v3147 = vld [vmem:[#allocation16 + $0x308] sm:$0xff]
    %v3148 = vld [vmem:[#allocation16 + $0x310] sm:$0xff]
    %v3149 = vld [vmem:[#allocation16 + $0x318] sm:$0xff]
    %v3150 = vld [vmem:[#allocation16 + $0x320] sm:$0xff]
    %v3151 = vld [vmem:[#allocation16 + $0x328] sm:$0xff]
    %v3152 = vld [vmem:[#allocation16 + $0x330] sm:$0xff]
    %v3153 = vld [vmem:[#allocation16 + $0x338] sm:$0xff]
    %v3154 = vld [vmem:[#allocation16 + $0x340] sm:$0xff]
    %v3155 = vld [vmem:[#allocation16 + $0x348] sm:$0xff]
    %v3156 = vld [vmem:[#allocation16 + $0x350] sm:$0xff]
    %v3157 = vld [vmem:[#allocation16 + $0x358] sm:$0xff]
    %v3158 = vld [vmem:[#allocation16 + $0x360] sm:$0xff]
    %v3159 = vld [vmem:[#allocation16 + $0x368] sm:$0xff]
    %v3160 = vld [vmem:[#allocation16 + $0x370] sm:$0xff]
    %v3161 = vld [vmem:[#allocation16 + $0x378] sm:$0xff]
    %v3162 = vld [vmem:[#allocation16 + $0x380] sm:$0xff]
    %v3163 = vld [vmem:[#allocation16 + $0x388] sm:$0xff]
    %v3164 = vld [vmem:[#allocation16 + $0x390] sm:$0xff]
    %v3165 = vld [vmem:[#allocation16 + $0x398] sm:$0xff]
    %v3166 = vld [vmem:[#allocation16 + $0x3a0] sm:$0xff]
    %v3167 = vld [vmem:[#allocation16 + $0x3a8] sm:$0xff]
    %v3168 = vld [vmem:[#allocation16 + $0x3b0] sm:$0xff]
    %v3169 = vld [vmem:[#allocation16 + $0x3b8] sm:$0xff]
    %v3170 = vld [vmem:[#allocation16 + $0x3c0] sm:$0xff]
    %v3171 = vld [vmem:[#allocation16 + $0x3c8] sm:$0xff]
    %v3172 = vld [vmem:[#allocation16 + $0x3d0] sm:$0xff]
    %v3173 = vld [vmem:[#allocation16 + $0x3d8] sm:$0xff]
    %v3174 = vld [vmem:[#allocation16 + $0x3e0] sm:$0xff]
    %v3175 = vld [vmem:[#allocation16 + $0x3e8] sm:$0xff]
    %v3176 = vld [vmem:[#allocation16 + $0x3f0] sm:$0xff]
    %v3177 = vld [vmem:[#allocation16 + $0x3f8] sm:$0xff]
    %v3178 = vld [vmem:[#allocation16 + $0x400] sm:$0xff]
    %v3179 = vld [vmem:[#allocation16 + $0x408] sm:$0xff]
    %v3180 = vld [vmem:[#allocation16 + $0x410] sm:$0xff]
    %v3181 = vld [vmem:[#allocation16 + $0x418] sm:$0xff]
    %v3182 = vld [vmem:[#allocation16 + $0x420] sm:$0xff]
    %v3183 = vld [vmem:[#allocation16 + $0x428] sm:$0xff]
    %v3184 = vld [vmem:[#allocation16 + $0x430] sm:$0xff]
    %v3185 = vld [vmem:[#allocation16 + $0x438] sm:$0xff]
    %v3186 = vld [vmem:[#allocation16 + $0x440] sm:$0xff]
    %v3187 = vld [vmem:[#allocation16 + $0x448] sm:$0xff]
    %v3188 = vld [vmem:[#allocation16 + $0x450] sm:$0xff]
    %v3189 = vld [vmem:[#allocation16 + $0x458] sm:$0xff]
    %v3190 = vld [vmem:[#allocation16 + $0x460] sm:$0xff]
    %v3191 = vld [vmem:[#allocation16 + $0x468] sm:$0xff]
    %v3192 = vld [vmem:[#allocation16 + $0x470] sm:$0xff]
    %v3193 = vld [vmem:[#allocation16 + $0x478] sm:$0xff]
    %v3194 = vld [vmem:[#allocation16 + $0x480] sm:$0xff]
    %v3195 = vld [vmem:[#allocation16 + $0x488] sm:$0xff]
    %v3196 = vld [vmem:[#allocation16 + $0x490] sm:$0xff]
    %v3197 = vld [vmem:[#allocation16 + $0x498] sm:$0xff]
    %v3198 = vld [vmem:[#allocation16 + $0x4a0] sm:$0xff]
    %v3199 = vld [vmem:[#allocation16 + $0x4a8] sm:$0xff]
    %v3200 = vld [vmem:[#allocation16 + $0x4b0] sm:$0xff]
    %v3201 = vld [vmem:[#allocation16 + $0x4b8] sm:$0xff]
    %v3202 = vld [vmem:[#allocation16 + $0x4c0] sm:$0xff]
    %v3203 = vld [vmem:[#allocation16 + $0x4c8] sm:$0xff]
    %v3204 = vld [vmem:[#allocation16 + $0x4d0] sm:$0xff]
    %v3205 = vld [vmem:[#allocation16 + $0x4d8] sm:$0xff]
    %v3206 = vld [vmem:[#allocation16 + $0x4e0] sm:$0xff]
    %v3207 = vld [vmem:[#allocation16 + $0x4e8] sm:$0xff]
    %v3208 = vld [vmem:[#allocation16 + $0x4f0] sm:$0xff]
    %v3209 = vld [vmem:[#allocation16 + $0x4f8] sm:$0xff]
    %v3210 = vld [vmem:[#allocation16 + $0x500] sm:$0xff]
    %v3211 = vld [vmem:[#allocation16 + $0x508] sm:$0xff]
    %v3212 = vld [vmem:[#allocation16 + $0x510] sm:$0xff]
    %v3213 = vld [vmem:[#allocation16 + $0x518] sm:$0xff]
    %v3214 = vld [vmem:[#allocation16 + $0x520] sm:$0xff]
    %v3215 = vld [vmem:[#allocation16 + $0x528] sm:$0xff]
    %v3216 = vld [vmem:[#allocation16 + $0x530] sm:$0xff]
    %v3217 = vld [vmem:[#allocation16 + $0x538] sm:$0xff]
    %v3218 = vld [vmem:[#allocation16 + $0x540] sm:$0xff]
    %v3219 = vld [vmem:[#allocation16 + $0x548] sm:$0xff]
    %v3220 = vld [vmem:[#allocation16 + $0x550] sm:$0xff]
    %v3221 = vld [vmem:[#allocation16 + $0x558] sm:$0xff]
    %v3222 = vld [vmem:[#allocation16 + $0x560] sm:$0xff]
    %v3223 = vld [vmem:[#allocation16 + $0x568] sm:$0xff]
    %v3224 = vld [vmem:[#allocation16 + $0x570] sm:$0xff]
    %v3225 = vld [vmem:[#allocation16 + $0x578] sm:$0xff]
    %v3226 = vld [vmem:[#allocation16 + $0x580] sm:$0xff]
    %v3227 = vld [vmem:[#allocation16 + $0x588] sm:$0xff]
    %v3228 = vld [vmem:[#allocation16 + $0x590] sm:$0xff]
    %v3229 = vld [vmem:[#allocation16 + $0x598] sm:$0xff]
    %v3230 = vld [vmem:[#allocation16 + $0x5a0] sm:$0xff]
    %v3231 = vld [vmem:[#allocation16 + $0x5a8] sm:$0xff]
    %v3232 = vld [vmem:[#allocation16 + $0x5b0] sm:$0xff]
    %v3233 = vld [vmem:[#allocation16 + $0x5b8] sm:$0xff]
    %v3234 = vld [vmem:[#allocation16 + $0x5c0] sm:$0xff]
    %v3235 = vld [vmem:[#allocation16 + $0x5c8] sm:$0xff]
    %v3236 = vld [vmem:[#allocation16 + $0x5d0] sm:$0xff]
    %v3237 = vld [vmem:[#allocation16 + $0x5d8] sm:$0xff]
    %v3238 = vld [vmem:[#allocation16 + $0x5e0] sm:$0xff]
    %v3239 = vld [vmem:[#allocation16 + $0x5e8] sm:$0xff]
    %v3240 = vld [vmem:[#allocation16 + $0x5f0] sm:$0xff]
    %v3241 = vld [vmem:[#allocation16 + $0x5f8] sm:$0xff]
    %v3242 = vld [vmem:[#allocation16 + $0x600] sm:$0xff]
    %v3243 = vld [vmem:[#allocation16 + $0x608] sm:$0xff]
    %v3244 = vld [vmem:[#allocation16 + $0x610] sm:$0xff]
    %v3245 = vld [vmem:[#allocation16 + $0x618] sm:$0xff]
    %v3246 = vld [vmem:[#allocation16 + $0x620] sm:$0xff]
    %v3247 = vld [vmem:[#allocation16 + $0x628] sm:$0xff]
    %v3248 = vld [vmem:[#allocation16 + $0x630] sm:$0xff]
    %v3249 = vld [vmem:[#allocation16 + $0x638] sm:$0xff]
    %v3250 = vld [vmem:[#allocation16 + $0x640] sm:$0xff]
    %v3251 = vld [vmem:[#allocation16 + $0x648] sm:$0xff]
    %v3252 = vld [vmem:[#allocation16 + $0x650] sm:$0xff]
    %v3253 = vld [vmem:[#allocation16 + $0x658] sm:$0xff]
    %v3254 = vld [vmem:[#allocation16 + $0x660] sm:$0xff]
    %v3255 = vld [vmem:[#allocation16 + $0x668] sm:$0xff]
    %v3256 = vld [vmem:[#allocation16 + $0x670] sm:$0xff]
    %v3257 = vld [vmem:[#allocation16 + $0x678] sm:$0xff]
    %v3258 = vld [vmem:[#allocation16 + $0x680] sm:$0xff]
    %v3259 = vld [vmem:[#allocation16 + $0x688] sm:$0xff]
    %v3260 = vld [vmem:[#allocation16 + $0x690] sm:$0xff]
    %v3261 = vld [vmem:[#allocation16 + $0x698] sm:$0xff]
    %v3262 = vld [vmem:[#allocation16 + $0x6a0] sm:$0xff]
    %v3263 = vld [vmem:[#allocation16 + $0x6a8] sm:$0xff]
    %v3264 = vld [vmem:[#allocation16 + $0x6b0] sm:$0xff]
    %v3265 = vld [vmem:[#allocation16 + $0x6b8] sm:$0xff]
    %v3266 = vld [vmem:[#allocation16 + $0x6c0] sm:$0xff]
    %v3267 = vld [vmem:[#allocation16 + $0x6c8] sm:$0xff]
    %v3268 = vld [vmem:[#allocation16 + $0x6d0] sm:$0xff]
    %v3269 = vld [vmem:[#allocation16 + $0x6d8] sm:$0xff]
    %v3270 = vld [vmem:[#allocation16 + $0x6e0] sm:$0xff]
    %v3271 = vld [vmem:[#allocation16 + $0x6e8] sm:$0xff]
    %v3272 = vld [vmem:[#allocation16 + $0x6f0] sm:$0xff]
    %v3273 = vld [vmem:[#allocation16 + $0x6f8] sm:$0xff]
    %v3274 = vld [vmem:[#allocation16 + $0x700] sm:$0xff]
    %v3275 = vld [vmem:[#allocation16 + $0x708] sm:$0xff]
    %v3276 = vld [vmem:[#allocation16 + $0x710] sm:$0xff]
    %v3277 = vld [vmem:[#allocation16 + $0x718] sm:$0xff]
    %v3278 = vld [vmem:[#allocation16 + $0x720] sm:$0xff]
    %v3279 = vld [vmem:[#allocation16 + $0x728] sm:$0xff]
    %v3280 = vld [vmem:[#allocation16 + $0x730] sm:$0xff]
    %v3281 = vld [vmem:[#allocation16 + $0x738] sm:$0xff]
    %v3282 = vld [vmem:[#allocation16 + $0x740] sm:$0xff]
    %v3283 = vld [vmem:[#allocation16 + $0x748] sm:$0xff]
    %v3284 = vld [vmem:[#allocation16 + $0x750] sm:$0xff]
    %v3285 = vld [vmem:[#allocation16 + $0x758] sm:$0xff]
    %v3286 = vld [vmem:[#allocation16 + $0x760] sm:$0xff]
    %v3287 = vld [vmem:[#allocation16 + $0x768] sm:$0xff]
    %v3288 = vld [vmem:[#allocation16 + $0x770] sm:$0xff]
    %v3289 = vld [vmem:[#allocation16 + $0x778] sm:$0xff]
    %v3290 = vld [vmem:[#allocation16 + $0x780] sm:$0xff]
    %v3291 = vld [vmem:[#allocation16 + $0x788] sm:$0xff]
    %v3292 = vld [vmem:[#allocation16 + $0x790] sm:$0xff]
    %v3293 = vld [vmem:[#allocation16 + $0x798] sm:$0xff]
    %v3294 = vld [vmem:[#allocation16 + $0x7a0] sm:$0xff]
    %v3295 = vld [vmem:[#allocation16 + $0x7a8] sm:$0xff]
    %v3296 = vld [vmem:[#allocation16 + $0x7b0] sm:$0xff]
    %v3297 = vld [vmem:[#allocation16 + $0x7b8] sm:$0xff]
    %v3298 = vld [vmem:[#allocation16 + $0x7c0] sm:$0xff]
    %v3299 = vld [vmem:[#allocation16 + $0x7c8] sm:$0xff]
    %v3300 = vld [vmem:[#allocation16 + $0x7d0] sm:$0xff]
    %v3301 = vld [vmem:[#allocation16 + $0x7d8] sm:$0xff]
    %v3302 = vld [vmem:[#allocation16 + $0x7e0] sm:$0xff]
    %v3303 = vld [vmem:[#allocation16 + $0x7e8] sm:$0xff]
    %v3304 = vld [vmem:[#allocation16 + $0x7f0] sm:$0xff]
    %v3305 = vld [vmem:[#allocation16 + $0x7f8] sm:$0xff]
    %v3306 = vld [vmem:[#allocation16 + $0x800] sm:$0xff]
    %v3307 = vld [vmem:[#allocation16 + $0x808] sm:$0xff]
    %v3308 = vld [vmem:[#allocation16 + $0x810] sm:$0xff]
    %v3309 = vld [vmem:[#allocation16 + $0x818] sm:$0xff]
    %v3310 = vld [vmem:[#allocation16 + $0x820] sm:$0xff]
    %v3311 = vld [vmem:[#allocation16 + $0x828] sm:$0xff]
    %v3312 = vld [vmem:[#allocation16 + $0x830] sm:$0xff]
    %v3313 = vld [vmem:[#allocation16 + $0x838] sm:$0xff]
    %v3314 = vld [vmem:[#allocation16 + $0x840] sm:$0xff]
    %v3315 = vld [vmem:[#allocation16 + $0x848] sm:$0xff]
    %v3316 = vld [vmem:[#allocation16 + $0x850] sm:$0xff]
    %v3317 = vld [vmem:[#allocation16 + $0x858] sm:$0xff]
    %v3318 = vld [vmem:[#allocation16 + $0x860] sm:$0xff]
    %v3319 = vld [vmem:[#allocation16 + $0x868] sm:$0xff]
    %v3320 = vld [vmem:[#allocation16 + $0x870] sm:$0xff]
    %v3321 = vld [vmem:[#allocation16 + $0x878] sm:$0xff]
    %v3322 = vld [vmem:[#allocation16 + $0x880] sm:$0xff]
    %v3323 = vld [vmem:[#allocation16 + $0x888] sm:$0xff]
    %v3324 = vld [vmem:[#allocation16 + $0x890] sm:$0xff]
    %v3325 = vld [vmem:[#allocation16 + $0x898] sm:$0xff]
    %v3326 = vld [vmem:[#allocation16 + $0x8a0] sm:$0xff]
    %v3327 = vld [vmem:[#allocation16 + $0x8a8] sm:$0xff]
    %v3328 = vld [vmem:[#allocation16 + $0x8b0] sm:$0xff]
    %v3329 = vld [vmem:[#allocation16 + $0x8b8] sm:$0xff]
    %v3330 = vld [vmem:[#allocation16 + $0x8c0] sm:$0xff]
    %v3331 = vld [vmem:[#allocation16 + $0x8c8] sm:$0xff]
    %v3332 = vld [vmem:[#allocation16 + $0x8d0] sm:$0xff]
    %v3333 = vld [vmem:[#allocation16 + $0x8d8] sm:$0xff]
    %v3334 = vld [vmem:[#allocation16 + $0x8e0] sm:$0xff]
    %v3335 = vld [vmem:[#allocation16 + $0x8e8] sm:$0xff]
    %v3336 = vld [vmem:[#allocation16 + $0x8f0] sm:$0xff]
    %v3337 = vld [vmem:[#allocation16 + $0x8f8] sm:$0xff]
    %v3338 = vld [vmem:[#allocation16 + $0x900] sm:$0xff]
    %v3339 = vld [vmem:[#allocation16 + $0x908] sm:$0xff]
    %v3340 = vld [vmem:[#allocation16 + $0x910] sm:$0xff]
    %v3341 = vld [vmem:[#allocation16 + $0x918] sm:$0xff]
    %v3342 = vld [vmem:[#allocation16 + $0x920] sm:$0xff]
    %v3343 = vld [vmem:[#allocation16 + $0x928] sm:$0xff]
    %v3344 = vld [vmem:[#allocation16 + $0x930] sm:$0xff]
    %v3345 = vld [vmem:[#allocation16 + $0x938] sm:$0xff]
    %v3346 = vld [vmem:[#allocation16 + $0x940] sm:$0xff]
    %v3347 = vld [vmem:[#allocation16 + $0x948] sm:$0xff]
    %v3348 = vld [vmem:[#allocation16 + $0x950] sm:$0xff]
    %v3349 = vld [vmem:[#allocation16 + $0x958] sm:$0xff]
    %v3350 = vld [vmem:[#allocation16 + $0x960] sm:$0xff]
    %v3351 = vld [vmem:[#allocation16 + $0x968] sm:$0xff]
    %v3352 = vld [vmem:[#allocation16 + $0x970] sm:$0xff]
    %v3353 = vld [vmem:[#allocation16 + $0x978] sm:$0xff]
    %v3354 = vld [vmem:[#allocation16 + $0x980] sm:$0xff]
    %v3355 = vld [vmem:[#allocation16 + $0x988] sm:$0xff]
    %v3356 = vld [vmem:[#allocation16 + $0x990] sm:$0xff]
    %v3357 = vld [vmem:[#allocation16 + $0x998] sm:$0xff]
    %v3358 = vld [vmem:[#allocation16 + $0x9a0] sm:$0xff]
    %v3359 = vld [vmem:[#allocation16 + $0x9a8] sm:$0xff]
    %v3360 = vld [vmem:[#allocation16 + $0x9b0] sm:$0xff]
    %v3361 = vld [vmem:[#allocation16 + $0x9b8] sm:$0xff]
    %v3362 = vld [vmem:[#allocation16 + $0x9c0] sm:$0xff]
    %v3363 = vld [vmem:[#allocation16 + $0x9c8] sm:$0xff]
    %v3364 = vld [vmem:[#allocation16 + $0x9d0] sm:$0xff]
    %v3365 = vld [vmem:[#allocation16 + $0x9d8] sm:$0xff]
    %v3366 = vld [vmem:[#allocation16 + $0x9e0] sm:$0xff]
    %v3367 = vld [vmem:[#allocation16 + $0x9e8] sm:$0xff]
    %v3368 = vld [vmem:[#allocation16 + $0x9f0] sm:$0xff]
    %v3369 = vld [vmem:[#allocation16 + $0x9f8] sm:$0xff]
    %v3370 = vld [vmem:[#allocation16 + $0xa00] sm:$0xff]
    %v3371 = vld [vmem:[#allocation16 + $0xa08] sm:$0xff]
    %v3372 = vld [vmem:[#allocation16 + $0xa10] sm:$0xff]
    %v3373 = vld [vmem:[#allocation16 + $0xa18] sm:$0xff]
    %v3374 = vld [vmem:[#allocation16 + $0xa20] sm:$0xff]
    %v3375 = vld [vmem:[#allocation16 + $0xa28] sm:$0xff]
    %v3376 = vld [vmem:[#allocation16 + $0xa30] sm:$0xff]
    %v3377 = vld [vmem:[#allocation16 + $0xa38] sm:$0xff]
    %v3378 = vld [vmem:[#allocation16 + $0xa40] sm:$0xff]
    %v3379 = vld [vmem:[#allocation16 + $0xa48] sm:$0xff]
    %v3380 = vld [vmem:[#allocation16 + $0xa50] sm:$0xff]
    %v3381 = vld [vmem:[#allocation16 + $0xa58] sm:$0xff]
    %v3382 = vld [vmem:[#allocation16 + $0xa60] sm:$0xff]
    %v3383 = vld [vmem:[#allocation16 + $0xa68] sm:$0xff]
    %v3384 = vld [vmem:[#allocation16 + $0xa70] sm:$0xff]
    %v3385 = vld [vmem:[#allocation16 + $0xa78] sm:$0xff]
    %v3386 = vld [vmem:[#allocation16 + $0xa80] sm:$0xff]
    %v3387 = vld [vmem:[#allocation16 + $0xa88] sm:$0xff]
    %v3388 = vld [vmem:[#allocation16 + $0xa90] sm:$0xff]
    %v3389 = vld [vmem:[#allocation16 + $0xa98] sm:$0xff]
    %v3390 = vld [vmem:[#allocation16 + $0xaa0] sm:$0xff]
    %v3391 = vld [vmem:[#allocation16 + $0xaa8] sm:$0xff]
    %v3392 = vld [vmem:[#allocation16 + $0xab0] sm:$0xff]
    %v3393 = vld [vmem:[#allocation16 + $0xab8] sm:$0xff]
    %v3394 = vld [vmem:[#allocation16 + $0xac0] sm:$0xff]
    %v3395 = vld [vmem:[#allocation16 + $0xac8] sm:$0xff]
    %v3396 = vld [vmem:[#allocation16 + $0xad0] sm:$0xff]
    %v3397 = vld [vmem:[#allocation16 + $0xad8] sm:$0xff]
    %v3398 = vld [vmem:[#allocation16 + $0xae0] sm:$0xff]
    %v3399 = vld [vmem:[#allocation16 + $0xae8] sm:$0xff]
    %v3400 = vld [vmem:[#allocation16 + $0xaf0] sm:$0xff]
    %v3401 = vld [vmem:[#allocation16 + $0xaf8] sm:$0xff]
    %v3402 = vld [vmem:[#allocation16 + $0xb00] sm:$0xff]
    %v3403 = vld [vmem:[#allocation16 + $0xb08] sm:$0xff]
    %v3404 = vld [vmem:[#allocation16 + $0xb10] sm:$0xff]
    %v3405 = vld [vmem:[#allocation16 + $0xb18] sm:$0xff]
    %v3406 = vld [vmem:[#allocation16 + $0xb20] sm:$0xff]
    %v3407 = vld [vmem:[#allocation16 + $0xb28] sm:$0xff]
    %v3408 = vld [vmem:[#allocation16 + $0xb30] sm:$0xff]
    %v3409 = vld [vmem:[#allocation16 + $0xb38] sm:$0xff]
    %v3410 = vld [vmem:[#allocation16 + $0xb40] sm:$0xff]
    %v3411 = vld [vmem:[#allocation16 + $0xb48] sm:$0xff]
    %v3412 = vld [vmem:[#allocation16 + $0xb50] sm:$0xff]
    %v3413 = vld [vmem:[#allocation16 + $0xb58] sm:$0xff]
    %v3414 = vld [vmem:[#allocation16 + $0xb60] sm:$0xff]
    %v3415 = vld [vmem:[#allocation16 + $0xb68] sm:$0xff]
    %v3416 = vld [vmem:[#allocation16 + $0xb70] sm:$0xff]
    %v3417 = vld [vmem:[#allocation16 + $0xb78] sm:$0xff]
    %v3418 = vld [vmem:[#allocation16 + $0xb80] sm:$0xff]
    %v3419 = vld [vmem:[#allocation16 + $0xb88] sm:$0xff]
    %v3420 = vld [vmem:[#allocation16 + $0xb90] sm:$0xff]
    %v3421 = vld [vmem:[#allocation16 + $0xb98] sm:$0xff]
    %v3422 = vld [vmem:[#allocation16 + $0xba0] sm:$0xff]
    %v3423 = vld [vmem:[#allocation16 + $0xba8] sm:$0xff]
    %v3424 = vld [vmem:[#allocation16 + $0xbb0] sm:$0xff]
    %v3425 = vld [vmem:[#allocation16 + $0xbb8] sm:$0xff]
    %v3426 = vld [vmem:[#allocation16 + $0xbc0] sm:$0xff]
    %v3427 = vld [vmem:[#allocation16 + $0xbc8] sm:$0xff]
    %v3428 = vld [vmem:[#allocation16 + $0xbd0] sm:$0xff]
    %v3429 = vld [vmem:[#allocation16 + $0xbd8] sm:$0xff]
    %v3430 = vld [vmem:[#allocation16 + $0xbe0] sm:$0xff]
    %v3431 = vld [vmem:[#allocation16 + $0xbe8] sm:$0xff]
    %v3432 = vld [vmem:[#allocation16 + $0xbf0] sm:$0xff]
    %v3433 = vld [vmem:[#allocation16 + $0xbf8] sm:$0xff]
    %v3434 = vld [vmem:[#allocation16 + $0xc00] sm:$0xff]
    %v3435 = vld [vmem:[#allocation16 + $0xc08] sm:$0xff]
    %v3436 = vld [vmem:[#allocation16 + $0xc10] sm:$0xff]
    %v3437 = vld [vmem:[#allocation16 + $0xc18] sm:$0xff]
    %v3438 = vld [vmem:[#allocation16 + $0xc20] sm:$0xff]
    %v3439 = vld [vmem:[#allocation16 + $0xc28] sm:$0xff]
    %v3440 = vld [vmem:[#allocation16 + $0xc30] sm:$0xff]
    %v3441 = vld [vmem:[#allocation16 + $0xc38] sm:$0xff]
    %v3442 = vld [vmem:[#allocation16 + $0xc40] sm:$0xff]
    %v3443 = vld [vmem:[#allocation16 + $0xc48] sm:$0xff]
    %v3444 = vld [vmem:[#allocation16 + $0xc50] sm:$0xff]
    %v3445 = vld [vmem:[#allocation16 + $0xc58] sm:$0xff]
    %v3446 = vld [vmem:[#allocation16 + $0xc60] sm:$0xff]
    %v3447 = vld [vmem:[#allocation16 + $0xc68] sm:$0xff]
    %v3448 = vld [vmem:[#allocation16 + $0xc70] sm:$0xff]
    %v3449 = vld [vmem:[#allocation16 + $0xc78] sm:$0xff]
    %v3450 = vld [vmem:[#allocation16 + $0xc80] sm:$0xff]
    %v3451 = vld [vmem:[#allocation16 + $0xc88] sm:$0xff]
    %v3452 = vld [vmem:[#allocation16 + $0xc90] sm:$0xff]
    %v3453 = vld [vmem:[#allocation16 + $0xc98] sm:$0xff]
    %v3454 = vld [vmem:[#allocation16 + $0xca0] sm:$0xff]
    %v3455 = vld [vmem:[#allocation16 + $0xca8] sm:$0xff]
    %v3456 = vld [vmem:[#allocation16 + $0xcb0] sm:$0xff]
    %v3457 = vld [vmem:[#allocation16 + $0xcb8] sm:$0xff]
    %v3458 = vld [vmem:[#allocation16 + $0xcc0] sm:$0xff]
    %v3459 = vld [vmem:[#allocation16 + $0xcc8] sm:$0xff]
    %v3460 = vld [vmem:[#allocation16 + $0xcd0] sm:$0xff]
    %v3461 = vld [vmem:[#allocation16 + $0xcd8] sm:$0xff]
    %v3462 = vld [vmem:[#allocation16 + $0xce0] sm:$0xff]
    %v3463 = vld [vmem:[#allocation16 + $0xce8] sm:$0xff]
    %v3464 = vld [vmem:[#allocation16 + $0xcf0] sm:$0xff]
    %v3465 = vld [vmem:[#allocation16 + $0xcf8] sm:$0xff]
    %v3466 = vld [vmem:[#allocation16 + $0xd00] sm:$0xff]
    %v3467 = vld [vmem:[#allocation16 + $0xd08] sm:$0xff]
    %v3468 = vld [vmem:[#allocation16 + $0xd10] sm:$0xff]
    %v3469 = vld [vmem:[#allocation16 + $0xd18] sm:$0xff]
    %v3470 = vld [vmem:[#allocation16 + $0xd20] sm:$0xff]
    %v3471 = vld [vmem:[#allocation16 + $0xd28] sm:$0xff]
    %v3472 = vld [vmem:[#allocation16 + $0xd30] sm:$0xff]
    %v3473 = vld [vmem:[#allocation16 + $0xd38] sm:$0xff]
    %v3474 = vld [vmem:[#allocation16 + $0xd40] sm:$0xff]
    %v3475 = vld [vmem:[#allocation16 + $0xd48] sm:$0xff]
    %v3476 = vld [vmem:[#allocation16 + $0xd50] sm:$0xff]
    %v3477 = vld [vmem:[#allocation16 + $0xd58] sm:$0xff]
    %v3478 = vld [vmem:[#allocation16 + $0xd60] sm:$0xff]
    %v3479 = vld [vmem:[#allocation16 + $0xd68] sm:$0xff]
    %v3480 = vld [vmem:[#allocation16 + $0xd70] sm:$0xff]
    %v3481 = vld [vmem:[#allocation16 + $0xd78] sm:$0xff]
    %3482 = vmatprep.subr.mxu0 %v3051
    %3483 = vmatpush1.msra.mxu0 %v3050
    %3484 = vmatprep.subr.mxu0 %v3060
    %3485 = vmatpush1.msra.mxu0 %v3059
    %3486 = vmatprep.subr.mxu0 %v3069
    %3487 = vmatpush1.msra.mxu0 %v3068
    %3488 = vmatprep.subr.mxu0 %v3078
    %3489 = vmatpush1.msra.mxu0 %v3077
    %3490 = vmatprep.subr.mxu0 %v3087
    %3491 = vmatpush1.msra.mxu0 %v3086
    %3492 = vmatprep.subr.mxu0 %v3096
    %3493 = vmatpush1.msra.mxu0 %v3095
    %3494 = vmatprep.subr.mxu0 %v3105
    %3495 = vmatpush1.msra.mxu0 %v3104
    %3496 = vmatprep.subr.mxu0 %v3114
    %3497 = vmatpush1.msra.mxu0 %v3113
    %3498 = vmatprep.subr.mxu0 %v3123
    %3499 = vmatpush1.msra.mxu0 %v3122
    %3500 = vmatprep.subr.mxu0 %v3132
    %3501 = vmatpush1.msra.mxu0 %v3131
    %3502 = vmatprep.subr.mxu0 %v3141
    %3503 = vmatpush1.msra.mxu0 %v3140
    %3504 = vmatprep.subr.mxu0 %v3150
    %3505 = vmatpush1.msra.mxu0 %v3149
    %3506 = vmatprep.subr.mxu0 %v3159
    %3507 = vmatpush1.msra.mxu0 %v3158
    %3508 = vmatprep.subr.mxu0 %v3168
    %3509 = vmatpush1.msra.mxu0 %v3167
    %3510 = vmatprep.subr.mxu0 %v3177
    %3511 = vmatpush1.msra.mxu0 %v3176
    %3512 = vmatprep.subr.mxu0 %v3186
    %3513 = vmatpush1.msra.mxu0 %v3185
    %3514 = vmatprep.subr.mxu0 %v3195
    %3515 = vmatpush1.msra.mxu0 %v3194
    %3516 = vmatprep.subr.mxu0 %v3204
    %3517 = vmatpush1.msra.mxu0 %v3203
    %3518 = vmatprep.subr.mxu0 %v3213
    %3519 = vmatpush1.msra.mxu0 %v3212
    %3520 = vmatprep.subr.mxu0 %v3222
    %3521 = vmatpush1.msra.mxu0 %v3221
    %3522 = vmatprep.subr.mxu0 %v3231
    %3523 = vmatpush1.msra.mxu0 %v3230
    %3524 = vmatprep.subr.mxu0 %v3240
    %3525 = vmatpush1.msra.mxu0 %v3239
    %3526 = vmatprep.subr.mxu0 %v3249
    %3527 = vmatpush1.msra.mxu0 %v3248
    %3528 = vmatprep.subr.mxu0 %v3258
    %3529 = vmatpush1.msra.mxu0 %v3257
    %3530 = vmatprep.subr.mxu0 %v3267
    %3531 = vmatpush1.msra.mxu0 %v3266
    %3532 = vmatprep.subr.mxu0 %v3276
    %3533 = vmatpush1.msra.mxu0 %v3275
    %3534 = vmatprep.subr.mxu0 %v3285
    %3535 = vmatpush1.msra.mxu0 %v3284
    %3536 = vmatprep.subr.mxu0 %v3294
    %3537 = vmatpush1.msra.mxu0 %v3293
    %3538 = vmatprep.subr.mxu0 %v3303
    %3539 = vmatpush1.msra.mxu0 %v3302
    %3540 = vmatprep.subr.mxu0 %v3312
    %3541 = vmatpush1.msra.mxu0 %v3311
    %3542 = vmatprep.subr.mxu0 %v3321
    %3543 = vmatpush1.msra.mxu0 %v3320
    %3544 = vmatprep.subr.mxu0 %v3330
    %3545 = vmatpush1.msra.mxu0 %v3329
    %3546 = vmatprep.mubr.f32.mxu0 %v3027
    %3547 = vmatmul.mubr.f32.gmra.mrb[0].mxu0 %v3026
    %v3548 = vpop.f32.mrb[0].mxu0
    %v3549 = vadd.f32 0.0, %v3548
    %v3550 = vpop.f32.mrb[0].mxu0
    %v3551 = vadd.f32 0.0, %v3550
    %3552 = vmatprep.mubr.f32.mxu0 %v3030
    %3553 = vmatmul.mubr.f32.gmra.mrb[0].mxu0 %v3029
    %v3554 = vpop.f32.mrb[0].mxu0
    %v3555 = vadd.f32 0.0, %v3554
    %v3556 = vpop.f32.mrb[0].mxu0
    %v3557 = vadd.f32 0.0, %v3556
    %3558 = vmatprep.mubr.f32.mxu0 %v3033
    %3559 = vmatmul.mubr.f32.gmra.mrb[0].mxu0 %v3032
    %v3560 = vpop.f32.mrb[0].mxu0
    %v3561 = vadd.f32 0.0, %v3560
    %v3562 = vpop.f32.mrb[0].mxu0
    %v3563 = vadd.f32 0.0, %v3562
    %3564 = vmatprep.mubr.f32.mxu0 %v3036
    %3565 = vmatmul.mubr.f32.gmra.mrb[0].mxu0 %v3035
    %v3566 = vpop.f32.mrb[0].mxu0
    %v3567 = vadd.f32 0.0, %v3566
    %v3568 = vpop.f32.mrb[0].mxu0
    %v3569 = vadd.f32 0.0, %v3568
    %3570 = vmatprep.mubr.f32.mxu0 %v3039
    %3571 = vmatmul.mubr.f32.gmra.mrb[0].mxu0 %v3038
    %v3572 = vpop.f32.mrb[0].mxu0
    %v3573 = vadd.f32 0.0, %v3572
    %v3574 = vpop.f32.mrb[0].mxu0
    %v3575 = vadd.f32 0.0, %v3574
    %3576 = vmatprep.mubr.f32.mxu0 %v3042
    %3577 = vmatmul.mubr.f32.gmra.mrb[0].mxu0 %v3041
    %v3578 = vpop.f32.mrb[0].mxu0
    %v3579 = vadd.f32 0.0, %v3578
    %v3580 = vpop.f32.mrb[0].mxu0
    %v3581 = vadd.f32 0.0, %v3580
    %3582 = vmatprep.mubr.f32.mxu0 %v3045
    %3583 = vmatmul.mubr.f32.gmra.mrb[0].mxu0 %v3044
    %v3584 = vpop.f32.mrb[0].mxu0
    %v3585 = vadd.f32 0.0, %v3584
    %v3586 = vpop.f32.mrb[0].mxu0
    %v3587 = vadd.f32 0.0, %v3586
    %3588 = vmatprep.mubr.f32.mxu0 %v3048
    %3589 = vmatmul.mubr.f32.gmra.mrb[0].mxu0 %v3047
    %v3590 = vpop.f32.mrb[0].mxu0
    %v3591 = vadd.f32 0.0, %v3590
    %v3592 = vpop.f32.mrb[0].mxu0
    %v3593 = vadd.f32 0.0, %v3592
    %3594 = vdwg.mxu0
    %3595 = vmatprep.subr.mxu0 %v3339
    %3596 = vmatpush1.msra.mxu0 %v3338
    %3597 = vmatprep.subr.mxu0 %v3348
    %3598 = vmatpush1.msra.mxu0 %v3347
    %3599 = vmatprep.subr.mxu0 %v3357
    %3600 = vmatpush1.msra.mxu0 %v3356
    %3601 = vmatprep.subr.mxu0 %v3366
    %3602 = vmatpush1.msra.mxu0 %v3365
    %3603 = vmatprep.subr.mxu0 %v3375
    %3604 = vmatpush1.msra.mxu0 %v3374
    %3605 = vmatprep.subr.mxu0 %v3384
    %3606 = vmatpush1.msra.mxu0 %v3383
    %3607 = vmatprep.subr.mxu0 %v3393
    %3608 = vmatpush1.msra.mxu0 %v3392
    %3609 = vmatprep.subr.mxu0 %v3402
    %3610 = vmatpush1.msra.mxu0 %v3401
    %3611 = vmatprep.subr.mxu0 %v3411
    %3612 = vmatpush1.msra.mxu0 %v3410
    %3613 = vmatprep.subr.mxu0 %v3420
    %3614 = vmatpush1.msra.mxu0 %v3419
    %3615 = vmatprep.subr.mxu0 %v3429
    %3616 = vmatpush1.msra.mxu0 %v3428
    %3617 = vmatprep.subr.mxu0 %v3438
    %3618 = vmatpush1.msra.mxu0 %v3437
    %3619 = vmatprep.subr.mxu0 %v3447
    %3620 = vmatpush1.msra.mxu0 %v3446
    %3621 = vmatprep.subr.mxu0 %v3456
    %3622 = vmatpush1.msra.mxu0 %v3455
    %3623 = vmatprep.subr.mxu0 %v3465
    %3624 = vmatpush1.msra.mxu0 %v3464
    %3625 = vmatprep.subr.mxu0 %v3474
    %3626 = vmatpush1.msra.mxu0 %v3473
    %3627 = vmatprep.subr.mxu0 0.0
    %3628 = vmatpush1.msra.mxu0 0.0
    %3629 = vmatprep.subr.mxu0 0.0
    %3630 = vmatpush1.msra.mxu0 0.0
    %3631 = vmatprep.subr.mxu0 0.0
    %3632 = vmatpush1.msra.mxu0 0.0
    %3633 = vmatprep.subr.mxu0 0.0
    %3634 = vmatpush1.msra.mxu0 0.0
    %3635 = vmatprep.subr.mxu0 0.0
    %3636 = vmatpush1.msra.mxu0 0.0
    %3637 = vmatprep.subr.mxu0 0.0
    %3638 = vmatpush1.msra.mxu0 0.0
    %3639 = vmatprep.subr.mxu0 0.0
    %3640 = vmatpush1.msra.mxu0 0.0
    %3641 = vmatprep.subr.mxu0 0.0
    %3642 = vmatpush1.msra.mxu0 0.0
    %3643 = vmatprep.subr.mxu0 0.0
    %3644 = vmatpush1.msra.mxu0 0.0
    %3645 = vmatprep.subr.mxu0 0.0
    %3646 = vmatpush1.msra.mxu0 0.0
    %3647 = vmatprep.subr.mxu0 0.0
    %3648 = vmatpush1.msra.mxu0 0.0
    %3649 = vmatprep.subr.mxu0 0.0
    %3650 = vmatpush1.msra.mxu0 0.0
    %3651 = vmatprep.subr.mxu0 0.0
    %3652 = vmatpush1.msra.mxu0 0.0
    %3653 = vmatprep.subr.mxu0 0.0
    %3654 = vmatpush1.msra.mxu0 0.0
    %3655 = vmatprep.subr.mxu0 0.0
    %3656 = vmatpush1.msra.mxu0 0.0
    %3657 = vmatprep.subr.mxu0 0.0
    %3658 = vmatpush1.msra.mxu0 0.0
    %3659 = vmatprep.mubr.f32.mxu0 0.0
    %3660 = vmatmul.mubr.f32.gmra.mrb[0].mxu0 %v3028
    %v3661 = vpop.f32.mrb[0].mxu0
    %v3662 = vadd.f32 %v3549, %v3661
    %v3663 = vpop.f32.mrb[0].mxu0
    %v3664 = vadd.f32 %v3551, %v3663
    %3665 = vmatprep.mubr.f32.mxu0 0.0
    %3666 = vmatmul.mubr.f32.gmra.mrb[0].mxu0 %v3031
    %v3667 = vpop.f32.mrb[0].mxu0
    %v3668 = vadd.f32 %v3555, %v3667
    %v3669 = vpop.f32.mrb[0].mxu0
    %v3670 = vadd.f32 %v3557, %v3669
    %3671 = vmatprep.mubr.f32.mxu0 0.0
    %3672 = vmatmul.mubr.f32.gmra.mrb[0].mxu0 %v3034
    %v3673 = vpop.f32.mrb[0].mxu0
    %v3674 = vadd.f32 %v3561, %v3673
    %v3675 = vpop.f32.mrb[0].mxu0
    %v3676 = vadd.f32 %v3563, %v3675
    %3677 = vmatprep.mubr.f32.mxu0 0.0
    %3678 = vmatmul.mubr.f32.gmra.mrb[0].mxu0 %v3037
    %v3679 = vpop.f32.mrb[0].mxu0
    %v3680 = vadd.f32 %v3567, %v3679
    %v3681 = vpop.f32.mrb[0].mxu0
    %v3682 = vadd.f32 %v3569, %v3681
    %3683 = vmatprep.mubr.f32.mxu0 0.0
    %3684 = vmatmul.mubr.f32.gmra.mrb[0].mxu0 %v3040
    %v3685 = vpop.f32.mrb[0].mxu0
    %v3686 = vadd.f32 %v3573, %v3685
    %v3687 = vpop.f32.mrb[0].mxu0
    %v3688 = vadd.f32 %v3575, %v3687
    %3689 = vmatprep.mubr.f32.mxu0 0.0
    %3690 = vmatmul.mubr.f32.gmra.mrb[0].mxu0 %v3043
    %v3691 = vpop.f32.mrb[0].mxu0
    %v3692 = vadd.f32 %v3579, %v3691
    %v3693 = vpop.f32.mrb[0].mxu0
    %v3694 = vadd.f32 %v3581, %v3693
    %3695 = vmatprep.mubr.f32.mxu0 0.0
    %3696 = vmatmul.mubr.f32.gmra.mrb[0].mxu0 %v3046
    %v3697 = vpop.f32.mrb[0].mxu0
    %v3698 = vadd.f32 %v3585, %v3697
    %v3699 = vpop.f32.mrb[0].mxu0
    %v3700 = vadd.f32 %v3587, %v3699
    %3701 = vmatprep.mubr.f32.mxu0 0.0
    %3702 = vmatmul.mubr.f32.gmra.mrb[0].mxu0 %v3049
    %v3703 = vpop.f32.mrb[0].mxu0
    %v3704 = vadd.f32 %v3591, %v3703
    %v3705 = vpop.f32.mrb[0].mxu0
    %v3706 = vadd.f32 %v3593, %v3705
    %3707 = vdwg.mxu0
    %3708 = vmatprep.subr.mxu0 %v3053
    %3709 = vmatpush1.msra.mxu0 %v3052
    %3710 = vmatprep.subr.mxu0 %v3062
    %3711 = vmatpush1.msra.mxu0 %v3061
    %3712 = vmatprep.subr.mxu0 %v3071
    %3713 = vmatpush1.msra.mxu0 %v3070
    %3714 = vmatprep.subr.mxu0 %v3080
    %3715 = vmatpush1.msra.mxu0 %v3079
    %3716 = vmatprep.subr.mxu0 %v3089
    %3717 = vmatpush1.msra.mxu0 %v3088
    %3718 = vmatprep.subr.mxu0 %v3098
    %3719 = vmatpush1.msra.mxu0 %v3097
    %3720 = vmatprep.subr.mxu0 %v3107
    %3721 = vmatpush1.msra.mxu0 %v3106
    %3722 = vmatprep.subr.mxu0 %v3116
    %3723 = vmatpush1.msra.mxu0 %v3115
    %3724 = vmatprep.subr.mxu0 %v3125
    %3725 = vmatpush1.msra.mxu0 %v3124
    %3726 = vmatprep.subr.mxu0 %v3134
    %3727 = vmatpush1.msra.mxu0 %v3133
    %3728 = vmatprep.subr.mxu0 %v3143
    %3729 = vmatpush1.msra.mxu0 %v3142
    %3730 = vmatprep.subr.mxu0 %v3152
    %3731 = vmatpush1.msra.mxu0 %v3151
    %3732 = vmatprep.subr.mxu0 %v3161
    %3733 = vmatpush1.msra.mxu0 %v3160
    %3734 = vmatprep.subr.mxu0 %v3170
    %3735 = vmatpush1.msra.mxu0 %v3169
    %3736 = vmatprep.subr.mxu0 %v3179
    %3737 = vmatpush1.msra.mxu0 %v3178
    %3738 = vmatprep.subr.mxu0 %v3188
    %3739 = vmatpush1.msra.mxu0 %v3187
    %3740 = vmatprep.subr.mxu0 %v3197
    %3741 = vmatpush1.msra.mxu0 %v3196
    %3742 = vmatprep.subr.mxu0 %v3206
    %3743 = vmatpush1.msra.mxu0 %v3205
    %3744 = vmatprep.subr.mxu0 %v3215
    %3745 = vmatpush1.msra.mxu0 %v3214
    %3746 = vmatprep.subr.mxu0 %v3224
    %3747 = vmatpush1.msra.mxu0 %v3223
    %3748 = vmatprep.subr.mxu0 %v3233
    %3749 = vmatpush1.msra.mxu0 %v3232
    %3750 = vmatprep.subr.mxu0 %v3242
    %3751 = vmatpush1.msra.mxu0 %v3241
    %3752 = vmatprep.subr.mxu0 %v3251
    %3753 = vmatpush1.msra.mxu0 %v3250
    %3754 = vmatprep.subr.mxu0 %v3260
    %3755 = vmatpush1.msra.mxu0 %v3259
    %3756 = vmatprep.subr.mxu0 %v3269
    %3757 = vmatpush1.msra.mxu0 %v3268
    %3758 = vmatprep.subr.mxu0 %v3278
    %3759 = vmatpush1.msra.mxu0 %v3277
    %3760 = vmatprep.subr.mxu0 %v3287
    %3761 = vmatpush1.msra.mxu0 %v3286
    %3762 = vmatprep.subr.mxu0 %v3296
    %3763 = vmatpush1.msra.mxu0 %v3295
    %3764 = vmatprep.subr.mxu0 %v3305
    %3765 = vmatpush1.msra.mxu0 %v3304
    %3766 = vmatprep.subr.mxu0 %v3314
    %3767 = vmatpush1.msra.mxu0 %v3313
    %3768 = vmatprep.subr.mxu0 %v3323
    %3769 = vmatpush1.msra.mxu0 %v3322
    %3770 = vmatprep.subr.mxu0 %v3332
    %3771 = vmatpush1.msra.mxu0 %v3331
    %3772 = vmatprep.mubr.f32.mxu0 %v3027
    %3773 = vmatmul.mubr.f32.gmra.mrb[0].mxu0 %v3026
    %v3774 = vpop.f32.mrb[0].mxu0
    %v3775 = vadd.f32 0.0, %v3774
    %v3776 = vpop.f32.mrb[0].mxu0
    %v3777 = vadd.f32 0.0, %v3776
    %3778 = vmatprep.mubr.f32.mxu0 %v3030
    %3779 = vmatmul.mubr.f32.gmra.mrb[0].mxu0 %v3029
    %v3780 = vpop.f32.mrb[0].mxu0
    %v3781 = vadd.f32 0.0, %v3780
    %v3782 = vpop.f32.mrb[0].mxu0
    %v3783 = vadd.f32 0.0, %v3782
    %3784 = vmatprep.mubr.f32.mxu0 %v3033
    %3785 = vmatmul.mubr.f32.gmra.mrb[0].mxu0 %v3032
    %v3786 = vpop.f32.mrb[0].mxu0
    %v3787 = vadd.f32 0.0, %v3786
    %v3788 = vpop.f32.mrb[0].mxu0
    %v3789 = vadd.f32 0.0, %v3788
    %3790 = vmatprep.mubr.f32.mxu0 %v3036
    %3791 = vmatmul.mubr.f32.gmra.mrb[0].mxu0 %v3035
    %v3792 = vpop.f32.mrb[0].mxu0
    %v3793 = vadd.f32 0.0, %v3792
    %v3794 = vpop.f32.mrb[0].mxu0
    %v3795 = vadd.f32 0.0, %v3794
    %3796 = vmatprep.mubr.f32.mxu0 %v3039
    %3797 = vmatmul.mubr.f32.gmra.mrb[0].mxu0 %v3038
    %v3798 = vpop.f32.mrb[0].mxu0
    %v3799 = vadd.f32 0.0, %v3798
    %v3800 = vpop.f32.mrb[0].mxu0
    %v3801 = vadd.f32 0.0, %v3800
    %3802 = vmatprep.mubr.f32.mxu0 %v3042
    %3803 = vmatmul.mubr.f32.gmra.mrb[0].mxu0 %v3041
    %v3804 = vpop.f32.mrb[0].mxu0
    %v3805 = vadd.f32 0.0, %v3804
    %v3806 = vpop.f32.mrb[0].mxu0
    %v3807 = vadd.f32 0.0, %v3806
    %3808 = vmatprep.mubr.f32.mxu0 %v3045
    %3809 = vmatmul.mubr.f32.gmra.mrb[0].mxu0 %v3044
    %v3810 = vpop.f32.mrb[0].mxu0
    %v3811 = vadd.f32 0.0, %v3810
    %v3812 = vpop.f32.mrb[0].mxu0
    %v3813 = vadd.f32 0.0, %v3812
    %3814 = vmatprep.mubr.f32.mxu0 %v3048
    %3815 = vmatmul.mubr.f32.gmra.mrb[0].mxu0 %v3047
    %v3816 = vpop.f32.mrb[0].mxu0
    %v3817 = vadd.f32 0.0, %v3816
    %v3818 = vpop.f32.mrb[0].mxu0
    %v3819 = vadd.f32 0.0, %v3818
    %3820 = vdwg.mxu0
    %3821 = vmatprep.subr.mxu0 %v3341
    %3822 = vmatpush1.msra.mxu0 %v3340
    %3823 = vmatprep.subr.mxu0 %v3350
    %3824 = vmatpush1.msra.mxu0 %v3349
    %3825 = vmatprep.subr.mxu0 %v3359
    %3826 = vmatpush1.msra.mxu0 %v3358
    %3827 = vmatprep.subr.mxu0 %v3368
    %3828 = vmatpush1.msra.mxu0 %v3367
    %3829 = vmatprep.subr.mxu0 %v3377
    %3830 = vmatpush1.msra.mxu0 %v3376
    %3831 = vmatprep.subr.mxu0 %v3386
    %3832 = vmatpush1.msra.mxu0 %v3385
    %3833 = vmatprep.subr.mxu0 %v3395
    %3834 = vmatpush1.msra.mxu0 %v3394
    %3835 = vmatprep.subr.mxu0 %v3404
    %3836 = vmatpush1.msra.mxu0 %v3403
    %3837 = vmatprep.subr.mxu0 %v3413
    %3838 = vmatpush1.msra.mxu0 %v3412
    %3839 = vmatprep.subr.mxu0 %v3422
    %3840 = vmatpush1.msra.mxu0 %v3421
    %3841 = vmatprep.subr.mxu0 %v3431
    %3842 = vmatpush1.msra.mxu0 %v3430
    %3843 = vmatprep.subr.mxu0 %v3440
    %3844 = vmatpush1.msra.mxu0 %v3439
    %3845 = vmatprep.subr.mxu0 %v3449
    %3846 = vmatpush1.msra.mxu0 %v3448
    %3847 = vmatprep.subr.mxu0 %v3458
    %3848 = vmatpush1.msra.mxu0 %v3457
    %3849 = vmatprep.subr.mxu0 %v3467
    %3850 = vmatpush1.msra.mxu0 %v3466
    %3851 = vmatprep.subr.mxu0 %v3476
    %3852 = vmatpush1.msra.mxu0 %v3475
    %3853 = vmatprep.subr.mxu0 0.0
    %3854 = vmatpush1.msra.mxu0 0.0
    %3855 = vmatprep.subr.mxu0 0.0
    %3856 = vmatpush1.msra.mxu0 0.0
    %3857 = vmatprep.subr.mxu0 0.0
    %3858 = vmatpush1.msra.mxu0 0.0
    %3859 = vmatprep.subr.mxu0 0.0
    %3860 = vmatpush1.msra.mxu0 0.0
    %3861 = vmatprep.subr.mxu0 0.0
    %3862 = vmatpush1.msra.mxu0 0.0
    %3863 = vmatprep.subr.mxu0 0.0
    %3864 = vmatpush1.msra.mxu0 0.0
    %3865 = vmatprep.subr.mxu0 0.0
    %3866 = vmatpush1.msra.mxu0 0.0
    %3867 = vmatprep.subr.mxu0 0.0
    %3868 = vmatpush1.msra.mxu0 0.0
    %3869 = vmatprep.subr.mxu0 0.0
    %3870 = vmatpush1.msra.mxu0 0.0
    %3871 = vmatprep.subr.mxu0 0.0
    %3872 = vmatpush1.msra.mxu0 0.0
    %3873 = vmatprep.subr.mxu0 0.0
    %3874 = vmatpush1.msra.mxu0 0.0
    %3875 = vmatprep.subr.mxu0 0.0
    %3876 = vmatpush1.msra.mxu0 0.0
    %3877 = vmatprep.subr.mxu0 0.0
    %3878 = vmatpush1.msra.mxu0 0.0
    %3879 = vmatprep.subr.mxu0 0.0
    %3880 = vmatpush1.msra.mxu0 0.0
    %3881 = vmatprep.subr.mxu0 0.0
    %3882 = vmatpush1.msra.mxu0 0.0
    %3883 = vmatprep.subr.mxu0 0.0
    %3884 = vmatpush1.msra.mxu0 0.0
    %3885 = vmatprep.mubr.f32.mxu0 0.0
    %3886 = vmatmul.mubr.f32.gmra.mrb[0].mxu0 %v3028
    %v3887 = vpop.f32.mrb[0].mxu0
    %v3888 = vadd.f32 %v3775, %v3887
    %v3889 = vpop.f32.mrb[0].mxu0
    %v3890 = vadd.f32 %v3777, %v3889
    %3891 = vmatprep.mubr.f32.mxu0 0.0
    %3892 = vmatmul.mubr.f32.gmra.mrb[0].mxu0 %v3031
    %v3893 = vpop.f32.mrb[0].mxu0
    %v3894 = vadd.f32 %v3781, %v3893
    %v3895 = vpop.f32.mrb[0].mxu0
    %v3896 = vadd.f32 %v3783, %v3895
    %3897 = vmatprep.mubr.f32.mxu0 0.0
    %3898 = vmatmul.mubr.f32.gmra.mrb[0].mxu0 %v3034
    %v3899 = vpop.f32.mrb[0].mxu0
    %v3900 = vadd.f32 %v3787, %v3899
    %v3901 = vpop.f32.mrb[0].mxu0
    %v3902 = vadd.f32 %v3789, %v3901
    %3903 = vmatprep.mubr.f32.mxu0 0.0
    %3904 = vmatmul.mubr.f32.gmra.mrb[0].mxu0 %v3037
    %v3905 = vpop.f32.mrb[0].mxu0
    %v3906 = vadd.f32 %v3793, %v3905
    %v3907 = vpop.f32.mrb[0].mxu0
    %v3908 = vadd.f32 %v3795, %v3907
    %3909 = vmatprep.mubr.f32.mxu0 0.0
    %3910 = vmatmul.mubr.f32.gmra.mrb[0].mxu0 %v3040
    %v3911 = vpop.f32.mrb[0].mxu0
    %v3912 = vadd.f32 %v3799, %v3911
    %v3913 = vpop.f32.mrb[0].mxu0
    %v3914 = vadd.f32 %v3801, %v3913
    %3915 = vmatprep.mubr.f32.mxu0 0.0
    %3916 = vmatmul.mubr.f32.gmra.mrb[0].mxu0 %v3043
    %v3917 = vpop.f32.mrb[0].mxu0
    %v3918 = vadd.f32 %v3805, %v3917
    %v3919 = vpop.f32.mrb[0].mxu0
    %v3920 = vadd.f32 %v3807, %v3919
    %3921 = vmatprep.mubr.f32.mxu0 0.0
    %3922 = vmatmul.mubr.f32.gmra.mrb[0].mxu0 %v3046
    %v3923 = vpop.f32.mrb[0].mxu0
    %v3924 = vadd.f32 %v3811, %v3923
    %v3925 = vpop.f32.mrb[0].mxu0
    %v3926 = vadd.f32 %v3813, %v3925
    %3927 = vmatprep.mubr.f32.mxu0 0.0
    %3928 = vmatmul.mubr.f32.gmra.mrb[0].mxu0 %v3049
    %v3929 = vpop.f32.mrb[0].mxu0
    %v3930 = vadd.f32 %v3817, %v3929
    %v3931 = vpop.f32.mrb[0].mxu0
    %v3932 = vadd.f32 %v3819, %v3931
    %3933 = vdwg.mxu0
    %3934 = vmatprep.subr.mxu0 %v3055
    %3935 = vmatpush1.msra.mxu0 %v3054
    %3936 = vmatprep.subr.mxu0 %v3064
    %3937 = vmatpush1.msra.mxu0 %v3063
    %3938 = vmatprep.subr.mxu0 %v3073
    %3939 = vmatpush1.msra.mxu0 %v3072
    %3940 = vmatprep.subr.mxu0 %v3082
    %3941 = vmatpush1.msra.mxu0 %v3081
    %3942 = vmatprep.subr.mxu0 %v3091
    %3943 = vmatpush1.msra.mxu0 %v3090
    %3944 = vmatprep.subr.mxu0 %v3100
    %3945 = vmatpush1.msra.mxu0 %v3099
    %3946 = vmatprep.subr.mxu0 %v3109
    %3947 = vmatpush1.msra.mxu0 %v3108
    %3948 = vmatprep.subr.mxu0 %v3118
    %3949 = vmatpush1.msra.mxu0 %v3117
    %3950 = vmatprep.subr.mxu0 %v3127
    %3951 = vmatpush1.msra.mxu0 %v3126
    %3952 = vmatprep.subr.mxu0 %v3136
    %3953 = vmatpush1.msra.mxu0 %v3135
    %3954 = vmatprep.subr.mxu0 %v3145
    %3955 = vmatpush1.msra.mxu0 %v3144
    %3956 = vmatprep.subr.mxu0 %v3154
    %3957 = vmatpush1.msra.mxu0 %v3153
    %3958 = vmatprep.subr.mxu0 %v3163
    %3959 = vmatpush1.msra.mxu0 %v3162
    %3960 = vmatprep.subr.mxu0 %v3172
    %3961 = vmatpush1.msra.mxu0 %v3171
    %3962 = vmatprep.subr.mxu0 %v3181
    %3963 = vmatpush1.msra.mxu0 %v3180
    %3964 = vmatprep.subr.mxu0 %v3190
    %3965 = vmatpush1.msra.mxu0 %v3189
    %3966 = vmatprep.subr.mxu0 %v3199
    %3967 = vmatpush1.msra.mxu0 %v3198
    %3968 = vmatprep.subr.mxu0 %v3208
    %3969 = vmatpush1.msra.mxu0 %v3207
    %3970 = vmatprep.subr.mxu0 %v3217
    %3971 = vmatpush1.msra.mxu0 %v3216
    %3972 = vmatprep.subr.mxu0 %v3226
    %3973 = vmatpush1.msra.mxu0 %v3225
    %3974 = vmatprep.subr.mxu0 %v3235
    %3975 = vmatpush1.msra.mxu0 %v3234
    %3976 = vmatprep.subr.mxu0 %v3244
    %3977 = vmatpush1.msra.mxu0 %v3243
    %3978 = vmatprep.subr.mxu0 %v3253
    %3979 = vmatpush1.msra.mxu0 %v3252
    %3980 = vmatprep.subr.mxu0 %v3262
    %3981 = vmatpush1.msra.mxu0 %v3261
    %3982 = vmatprep.subr.mxu0 %v3271
    %3983 = vmatpush1.msra.mxu0 %v3270
    %3984 = vmatprep.subr.mxu0 %v3280
    %3985 = vmatpush1.msra.mxu0 %v3279
    %3986 = vmatprep.subr.mxu0 %v3289
    %3987 = vmatpush1.msra.mxu0 %v3288
    %3988 = vmatprep.subr.mxu0 %v3298
    %3989 = vmatpush1.msra.mxu0 %v3297
    %3990 = vmatprep.subr.mxu0 %v3307
    %3991 = vmatpush1.msra.mxu0 %v3306
    %3992 = vmatprep.subr.mxu0 %v3316
    %3993 = vmatpush1.msra.mxu0 %v3315
    %3994 = vmatprep.subr.mxu0 %v3325
    %3995 = vmatpush1.msra.mxu0 %v3324
    %3996 = vmatprep.subr.mxu0 %v3334
    %3997 = vmatpush1.msra.mxu0 %v3333
    %3998 = vmatprep.mubr.f32.mxu0 %v3027
    %3999 = vmatmul.mubr.f32.gmra.mrb[0].mxu0 %v3026
    %v4000 = vpop.f32.mrb[0].mxu0
    %v4001 = vadd.f32 0.0, %v4000
    %v4002 = vpop.f32.mrb[0].mxu0
    %v4003 = vadd.f32 0.0, %v4002
    %4004 = vmatprep.mubr.f32.mxu0 %v3030
    %4005 = vmatmul.mubr.f32.gmra.mrb[0].mxu0 %v3029
    %v4006 = vpop.f32.mrb[0].mxu0
    %v4007 = vadd.f32 0.0, %v4006
    %v4008 = vpop.f32.mrb[0].mxu0
    %v4009 = vadd.f32 0.0, %v4008
    %4010 = vmatprep.mubr.f32.mxu0 %v3033
    %4011 = vmatmul.mubr.f32.gmra.mrb[0].mxu0 %v3032
    %v4012 = vpop.f32.mrb[0].mxu0
    %v4013 = vadd.f32 0.0, %v4012
    %v4014 = vpop.f32.mrb[0].mxu0
    %v4015 = vadd.f32 0.0, %v4014
    %4016 = vmatprep.mubr.f32.mxu0 %v3036
    %4017 = vmatmul.mubr.f32.gmra.mrb[0].mxu0 %v3035
    %v4018 = vpop.f32.mrb[0].mxu0
    %v4019 = vadd.f32 0.0, %v4018
    %v4020 = vpop.f32.mrb[0].mxu0
    %v4021 = vadd.f32 0.0, %v4020
    %4022 = vmatprep.mubr.f32.mxu0 %v3039
    %4023 = vmatmul.mubr.f32.gmra.mrb[0].mxu0 %v3038
    %v4024 = vpop.f32.mrb[0].mxu0
    %v4025 = vadd.f32 0.0, %v4024
    %v4026 = vpop.f32.mrb[0].mxu0
    %v4027 = vadd.f32 0.0, %v4026
    %4028 = vmatprep.mubr.f32.mxu0 %v3042
    %4029 = vmatmul.mubr.f32.gmra.mrb[0].mxu0 %v3041
    %v4030 = vpop.f32.mrb[0].mxu0
    %v4031 = vadd.f32 0.0, %v4030
    %v4032 = vpop.f32.mrb[0].mxu0
    %v4033 = vadd.f32 0.0, %v4032
    %4034 = vmatprep.mubr.f32.mxu0 %v3045
    %4035 = vmatmul.mubr.f32.gmra.mrb[0].mxu0 %v3044
    %v4036 = vpop.f32.mrb[0].mxu0
    %v4037 = vadd.f32 0.0, %v4036
    %v4038 = vpop.f32.mrb[0].mxu0
    %v4039 = vadd.f32 0.0, %v4038
    %4040 = vmatprep.mubr.f32.mxu0 %v3048
    %4041 = vmatmul.mubr.f32.gmra.mrb[0].mxu0 %v3047
    %v4042 = vpop.f32.mrb[0].mxu0
    %v4043 = vadd.f32 0.0, %v4042
    %v4044 = vpop.f32.mrb[0].mxu0
    %v4045 = vadd.f32 0.0, %v4044
    %4046 = vdwg.mxu0
    %4047 = vmatprep.subr.mxu0 %v3343
    %4048 = vmatpush1.msra.mxu0 %v3342
    %4049 = vmatprep.subr.mxu0 %v3352
    %4050 = vmatpush1.msra.mxu0 %v3351
    %4051 = vmatprep.subr.mxu0 %v3361
    %4052 = vmatpush1.msra.mxu0 %v3360
    %4053 = vmatprep.subr.mxu0 %v3370
    %4054 = vmatpush1.msra.mxu0 %v3369
    %4055 = vmatprep.subr.mxu0 %v3379
    %4056 = vmatpush1.msra.mxu0 %v3378
    %4057 = vmatprep.subr.mxu0 %v3388
    %4058 = vmatpush1.msra.mxu0 %v3387
    %4059 = vmatprep.subr.mxu0 %v3397
    %4060 = vmatpush1.msra.mxu0 %v3396
    %4061 = vmatprep.subr.mxu0 %v3406
    %4062 = vmatpush1.msra.mxu0 %v3405
    %4063 = vmatprep.subr.mxu0 %v3415
    %4064 = vmatpush1.msra.mxu0 %v3414
    %4065 = vmatprep.subr.mxu0 %v3424
    %4066 = vmatpush1.msra.mxu0 %v3423
    %4067 = vmatprep.subr.mxu0 %v3433
    %4068 = vmatpush1.msra.mxu0 %v3432
    %4069 = vmatprep.subr.mxu0 %v3442
    %4070 = vmatpush1.msra.mxu0 %v3441
    %4071 = vmatprep.subr.mxu0 %v3451
    %4072 = vmatpush1.msra.mxu0 %v3450
    %4073 = vmatprep.subr.mxu0 %v3460
    %4074 = vmatpush1.msra.mxu0 %v3459
    %4075 = vmatprep.subr.mxu0 %v3469
    %4076 = vmatpush1.msra.mxu0 %v3468
    %4077 = vmatprep.subr.mxu0 %v3478
    %4078 = vmatpush1.msra.mxu0 %v3477
    %4079 = vmatprep.subr.mxu0 0.0
    %4080 = vmatpush1.msra.mxu0 0.0
    %4081 = vmatprep.subr.mxu0 0.0
    %4082 = vmatpush1.msra.mxu0 0.0
    %4083 = vmatprep.subr.mxu0 0.0
    %4084 = vmatpush1.msra.mxu0 0.0
    %4085 = vmatprep.subr.mxu0 0.0
    %4086 = vmatpush1.msra.mxu0 0.0
    %4087 = vmatprep.subr.mxu0 0.0
    %4088 = vmatpush1.msra.mxu0 0.0
    %4089 = vmatprep.subr.mxu0 0.0
    %4090 = vmatpush1.msra.mxu0 0.0
    %4091 = vmatprep.subr.mxu0 0.0
    %4092 = vmatpush1.msra.mxu0 0.0
    %4093 = vmatprep.subr.mxu0 0.0
    %4094 = vmatpush1.msra.mxu0 0.0
    %4095 = vmatprep.subr.mxu0 0.0
    %4096 = vmatpush1.msra.mxu0 0.0
    %4097 = vmatprep.subr.mxu0 0.0
    %4098 = vmatpush1.msra.mxu0 0.0
    %4099 = vmatprep.subr.mxu0 0.0
    %4100 = vmatpush1.msra.mxu0 0.0
    %4101 = vmatprep.subr.mxu0 0.0
    %4102 = vmatpush1.msra.mxu0 0.0
    %4103 = vmatprep.subr.mxu0 0.0
    %4104 = vmatpush1.msra.mxu0 0.0
    %4105 = vmatprep.subr.mxu0 0.0
    %4106 = vmatpush1.msra.mxu0 0.0
    %4107 = vmatprep.subr.mxu0 0.0
    %4108 = vmatpush1.msra.mxu0 0.0
    %4109 = vmatprep.subr.mxu0 0.0
    %4110 = vmatpush1.msra.mxu0 0.0
    %4111 = vmatprep.mubr.f32.mxu0 0.0
    %4112 = vmatmul.mubr.f32.gmra.mrb[0].mxu0 %v3028
    %v4113 = vpop.f32.mrb[0].mxu0
    %v4114 = vadd.f32 %v4001, %v4113
    %v4115 = vpop.f32.mrb[0].mxu0
    %v4116 = vadd.f32 %v4003, %v4115
    %4117 = vmatprep.mubr.f32.mxu0 0.0
    %4118 = vmatmul.mubr.f32.gmra.mrb[0].mxu0 %v3031
    %v4119 = vpop.f32.mrb[0].mxu0
    %v4120 = vadd.f32 %v4007, %v4119
    %v4121 = vpop.f32.mrb[0].mxu0
    %v4122 = vadd.f32 %v4009, %v4121
    %4123 = vmatprep.mubr.f32.mxu0 0.0
    %4124 = vmatmul.mubr.f32.gmra.mrb[0].mxu0 %v3034
    %v4125 = vpop.f32.mrb[0].mxu0
    %v4126 = vadd.f32 %v4013, %v4125
    %v4127 = vpop.f32.mrb[0].mxu0
    %v4128 = vadd.f32 %v4015, %v4127
    %4129 = vmatprep.mubr.f32.mxu0 0.0
    %4130 = vmatmul.mubr.f32.gmra.mrb[0].mxu0 %v3037
    %v4131 = vpop.f32.mrb[0].mxu0
    %v4132 = vadd.f32 %v4019, %v4131
    %v4133 = vpop.f32.mrb[0].mxu0
    %v4134 = vadd.f32 %v4021, %v4133
    %4135 = vmatprep.mubr.f32.mxu0 0.0
    %4136 = vmatmul.mubr.f32.gmra.mrb[0].mxu0 %v3040
    %v4137 = vpop.f32.mrb[0].mxu0
    %v4138 = vadd.f32 %v4025, %v4137
    %v4139 = vpop.f32.mrb[0].mxu0
    %v4140 = vadd.f32 %v4027, %v4139
    %4141 = vmatprep.mubr.f32.mxu0 0.0
    %4142 = vmatmul.mubr.f32.gmra.mrb[0].mxu0 %v3043
    %v4143 = vpop.f32.mrb[0].mxu0
    %v4144 = vadd.f32 %v4031, %v4143
    %v4145 = vpop.f32.mrb[0].mxu0
    %v4146 = vadd.f32 %v4033, %v4145
    %4147 = vmatprep.mubr.f32.mxu0 0.0
    %4148 = vmatmul.mubr.f32.gmra.mrb[0].mxu0 %v3046
    %v4149 = vpop.f32.mrb[0].mxu0
    %v4150 = vadd.f32 %v4037, %v4149
    %v4151 = vpop.f32.mrb[0].mxu0
    %v4152 = vadd.f32 %v4039, %v4151
    %4153 = vmatprep.mubr.f32.mxu0 0.0
    %4154 = vmatmul.mubr.f32.gmra.mrb[0].mxu0 %v3049
    %v4155 = vpop.f32.mrb[0].mxu0
    %v4156 = vadd.f32 %v4043, %v4155
    %v4157 = vpop.f32.mrb[0].mxu0
    %v4158 = vadd.f32 %v4045, %v4157
    %4159 = vdwg.mxu0
    %4160 = vmatprep.subr.mxu0 %v3057
    %4161 = vmatpush1.msra.mxu0 %v3056
    %4162 = vmatprep.subr.mxu0 %v3066
    %4163 = vmatpush1.msra.mxu0 %v3065
    %4164 = vmatprep.subr.mxu0 %v3075
    %4165 = vmatpush1.msra.mxu0 %v3074
    %4166 = vmatprep.subr.mxu0 %v3084
    %4167 = vmatpush1.msra.mxu0 %v3083
    %4168 = vmatprep.subr.mxu0 %v3093
    %4169 = vmatpush1.msra.mxu0 %v3092
    %4170 = vmatprep.subr.mxu0 %v3102
    %4171 = vmatpush1.msra.mxu0 %v3101
    %4172 = vmatprep.subr.mxu0 %v3111
    %4173 = vmatpush1.msra.mxu0 %v3110
    %4174 = vmatprep.subr.mxu0 %v3120
    %4175 = vmatpush1.msra.mxu0 %v3119
    %4176 = vmatprep.subr.mxu0 %v3129
    %4177 = vmatpush1.msra.mxu0 %v3128
    %4178 = vmatprep.subr.mxu0 %v3138
    %4179 = vmatpush1.msra.mxu0 %v3137
    %4180 = vmatprep.subr.mxu0 %v3147
    %4181 = vmatpush1.msra.mxu0 %v3146
    %4182 = vmatprep.subr.mxu0 %v3156
    %4183 = vmatpush1.msra.mxu0 %v3155
    %4184 = vmatprep.subr.mxu0 %v3165
    %4185 = vmatpush1.msra.mxu0 %v3164
    %4186 = vmatprep.subr.mxu0 %v3174
    %4187 = vmatpush1.msra.mxu0 %v3173
    %4188 = vmatprep.subr.mxu0 %v3183
    %4189 = vmatpush1.msra.mxu0 %v3182
    %4190 = vmatprep.subr.mxu0 %v3192
    %4191 = vmatpush1.msra.mxu0 %v3191
    %4192 = vmatprep.subr.mxu0 %v3201
    %4193 = vmatpush1.msra.mxu0 %v3200
    %4194 = vmatprep.subr.mxu0 %v3210
    %4195 = vmatpush1.msra.mxu0 %v3209
    %4196 = vmatprep.subr.mxu0 %v3219
    %4197 = vmatpush1.msra.mxu0 %v3218
    %4198 = vmatprep.subr.mxu0 %v3228
    %4199 = vmatpush1.msra.mxu0 %v3227
    %4200 = vmatprep.subr.mxu0 %v3237
    %4201 = vmatpush1.msra.mxu0 %v3236
    %4202 = vmatprep.subr.mxu0 %v3246
    %4203 = vmatpush1.msra.mxu0 %v3245
    %4204 = vmatprep.subr.mxu0 %v3255
    %4205 = vmatpush1.msra.mxu0 %v3254
    %4206 = vmatprep.subr.mxu0 %v3264
    %4207 = vmatpush1.msra.mxu0 %v3263
    %4208 = vmatprep.subr.mxu0 %v3273
    %4209 = vmatpush1.msra.mxu0 %v3272
    %4210 = vmatprep.subr.mxu0 %v3282
    %4211 = vmatpush1.msra.mxu0 %v3281
    %4212 = vmatprep.subr.mxu0 %v3291
    %4213 = vmatpush1.msra.mxu0 %v3290
    %4214 = vmatprep.subr.mxu0 %v3300
    %4215 = vmatpush1.msra.mxu0 %v3299
    %4216 = vmatprep.subr.mxu0 %v3309
    %4217 = vmatpush1.msra.mxu0 %v3308
    %4218 = vmatprep.subr.mxu0 %v3318
    %4219 = vmatpush1.msra.mxu0 %v3317
    %4220 = vmatprep.subr.mxu0 %v3327
    %4221 = vmatpush1.msra.mxu0 %v3326
    %4222 = vmatprep.subr.mxu0 %v3336
    %4223 = vmatpush1.msra.mxu0 %v3335
    %4224 = vmatprep.mubr.f32.mxu0 %v3027
    %4225 = vmatmul.mubr.f32.gmra.mrb[0].mxu0 %v3026
    %v4226 = vpop.f32.mrb[0].mxu0
    %v4227 = vadd.f32 0.0, %v4226
    %v4228 = vpop.f32.mrb[0].mxu0
    %v4229 = vadd.f32 0.0, %v4228
    %4230 = vmatprep.mubr.f32.mxu0 %v3030
    %4231 = vmatmul.mubr.f32.gmra.mrb[0].mxu0 %v3029
    %v4232 = vpop.f32.mrb[0].mxu0
    %v4233 = vadd.f32 0.0, %v4232
    %v4234 = vpop.f32.mrb[0].mxu0
    %v4235 = vadd.f32 0.0, %v4234
    %4236 = vmatprep.mubr.f32.mxu0 %v3033
    %4237 = vmatmul.mubr.f32.gmra.mrb[0].mxu0 %v3032
    %v4238 = vpop.f32.mrb[0].mxu0
    %v4239 = vadd.f32 0.0, %v4238
    %v4240 = vpop.f32.mrb[0].mxu0
    %v4241 = vadd.f32 0.0, %v4240
    %4242 = vmatprep.mubr.f32.mxu0 %v3036
    %4243 = vmatmul.mubr.f32.gmra.mrb[0].mxu0 %v3035
    %v4244 = vpop.f32.mrb[0].mxu0
    %v4245 = vadd.f32 0.0, %v4244
    %v4246 = vpop.f32.mrb[0].mxu0
    %v4247 = vadd.f32 0.0, %v4246
    %4248 = vmatprep.mubr.f32.mxu0 %v3039
    %4249 = vmatmul.mubr.f32.gmra.mrb[0].mxu0 %v3038
    %v4250 = vpop.f32.mrb[0].mxu0
    %v4251 = vadd.f32 0.0, %v4250
    %v4252 = vpop.f32.mrb[0].mxu0
    %v4253 = vadd.f32 0.0, %v4252
    %4254 = vmatprep.mubr.f32.mxu0 %v3042
    %4255 = vmatmul.mubr.f32.gmra.mrb[0].mxu0 %v3041
    %v4256 = vpop.f32.mrb[0].mxu0
    %v4257 = vadd.f32 0.0, %v4256
    %v4258 = vpop.f32.mrb[0].mxu0
    %v4259 = vadd.f32 0.0, %v4258
    %4260 = vmatprep.mubr.f32.mxu0 %v3045
    %4261 = vmatmul.mubr.f32.gmra.mrb[0].mxu0 %v3044
    %v4262 = vpop.f32.mrb[0].mxu0
    %v4263 = vadd.f32 0.0, %v4262
    %v4264 = vpop.f32.mrb[0].mxu0
    %v4265 = vadd.f32 0.0, %v4264
    %4266 = vmatprep.mubr.f32.mxu0 %v3048
    %4267 = vmatmul.mubr.f32.gmra.mrb[0].mxu0 %v3047
    %v4268 = vpop.f32.mrb[0].mxu0
    %v4269 = vadd.f32 0.0, %v4268
    %v4270 = vpop.f32.mrb[0].mxu0
    %v4271 = vadd.f32 0.0, %v4270
    %4272 = vdwg.mxu0
    %4273 = vmatprep.subr.mxu0 %v3345
    %4274 = vmatpush1.msra.mxu0 %v3344
    %4275 = vmatprep.subr.mxu0 %v3354
    %4276 = vmatpush1.msra.mxu0 %v3353
    %4277 = vmatprep.subr.mxu0 %v3363
    %4278 = vmatpush1.msra.mxu0 %v3362
    %4279 = vmatprep.subr.mxu0 %v3372
    %4280 = vmatpush1.msra.mxu0 %v3371
    %4281 = vmatprep.subr.mxu0 %v3381
    %4282 = vmatpush1.msra.mxu0 %v3380
    %4283 = vmatprep.subr.mxu0 %v3390
    %4284 = vmatpush1.msra.mxu0 %v3389
    %4285 = vmatprep.subr.mxu0 %v3399
    %4286 = vmatpush1.msra.mxu0 %v3398
    %4287 = vmatprep.subr.mxu0 %v3408
    %4288 = vmatpush1.msra.mxu0 %v3407
    %4289 = vmatprep.subr.mxu0 %v3417
    %4290 = vmatpush1.msra.mxu0 %v3416
    %4291 = vmatprep.subr.mxu0 %v3426
    %4292 = vmatpush1.msra.mxu0 %v3425
    %4293 = vmatprep.subr.mxu0 %v3435
    %4294 = vmatpush1.msra.mxu0 %v3434
    %4295 = vmatprep.subr.mxu0 %v3444
    %4296 = vmatpush1.msra.mxu0 %v3443
    %4297 = vmatprep.subr.mxu0 %v3453
    %4298 = vmatpush1.msra.mxu0 %v3452
    %4299 = vmatprep.subr.mxu0 %v3462
    %4300 = vmatpush1.msra.mxu0 %v3461
    %4301 = vmatprep.subr.mxu0 %v3471
    %4302 = vmatpush1.msra.mxu0 %v3470
    %4303 = vmatprep.subr.mxu0 %v3480
    %4304 = vmatpush1.msra.mxu0 %v3479
    %4305 = vmatprep.subr.mxu0 0.0
    %4306 = vmatpush1.msra.mxu0 0.0
    %4307 = vmatprep.subr.mxu0 0.0
    %4308 = vmatpush1.msra.mxu0 0.0
    %4309 = vmatprep.subr.mxu0 0.0
    %4310 = vmatpush1.msra.mxu0 0.0
    %4311 = vmatprep.subr.mxu0 0.0
    %4312 = vmatpush1.msra.mxu0 0.0
    %4313 = vmatprep.subr.mxu0 0.0
    %4314 = vmatpush1.msra.mxu0 0.0
    %4315 = vmatprep.subr.mxu0 0.0
    %4316 = vmatpush1.msra.mxu0 0.0
    %4317 = vmatprep.subr.mxu0 0.0
    %4318 = vmatpush1.msra.mxu0 0.0
    %4319 = vmatprep.subr.mxu0 0.0
    %4320 = vmatpush1.msra.mxu0 0.0
    %4321 = vmatprep.subr.mxu0 0.0
    %4322 = vmatpush1.msra.mxu0 0.0
    %4323 = vmatprep.subr.mxu0 0.0
    %4324 = vmatpush1.msra.mxu0 0.0
    %4325 = vmatprep.subr.mxu0 0.0
    %4326 = vmatpush1.msra.mxu0 0.0
    %4327 = vmatprep.subr.mxu0 0.0
    %4328 = vmatpush1.msra.mxu0 0.0
    %4329 = vmatprep.subr.mxu0 0.0
    %4330 = vmatpush1.msra.mxu0 0.0
    %4331 = vmatprep.subr.mxu0 0.0
    %4332 = vmatpush1.msra.mxu0 0.0
    %4333 = vmatprep.subr.mxu0 0.0
    %4334 = vmatpush1.msra.mxu0 0.0
    %4335 = vmatprep.subr.mxu0 0.0
    %4336 = vmatpush1.msra.mxu0 0.0
    %4337 = vmatprep.mubr.f32.mxu0 0.0
    %4338 = vmatmul.mubr.f32.gmra.mrb[0].mxu0 %v3028
    %v4339 = vpop.f32.mrb[0].mxu0
    %v4340 = vadd.f32 %v4227, %v4339
    %v4341 = vpop.f32.mrb[0].mxu0
    %v4342 = vadd.f32 %v4229, %v4341
    %4343 = vmatprep.mubr.f32.mxu0 0.0
    %4344 = vmatmul.mubr.f32.gmra.mrb[0].mxu0 %v3031
    %v4345 = vpop.f32.mrb[0].mxu0
    %v4346 = vadd.f32 %v4233, %v4345
    %v4347 = vpop.f32.mrb[0].mxu0
    %v4348 = vadd.f32 %v4235, %v4347
    %4349 = vmatprep.mubr.f32.mxu0 0.0
    %4350 = vmatmul.mubr.f32.gmra.mrb[0].mxu0 %v3034
    %v4351 = vpop.f32.mrb[0].mxu0
    %v4352 = vadd.f32 %v4239, %v4351
    %v4353 = vpop.f32.mrb[0].mxu0
    %v4354 = vadd.f32 %v4241, %v4353
    %4355 = vmatprep.mubr.f32.mxu0 0.0
    %4356 = vmatmul.mubr.f32.gmra.mrb[0].mxu0 %v3037
    %v4357 = vpop.f32.mrb[0].mxu0
    %v4358 = vadd.f32 %v4245, %v4357
    %v4359 = vpop.f32.mrb[0].mxu0
    %v4360 = vadd.f32 %v4247, %v4359
    %4361 = vmatprep.mubr.f32.mxu0 0.0
    %4362 = vmatmul.mubr.f32.gmra.mrb[0].mxu0 %v3040
    %v4363 = vpop.f32.mrb[0].mxu0
    %v4364 = vadd.f32 %v4251, %v4363
    %v4365 = vpop.f32.mrb[0].mxu0
    %v4366 = vadd.f32 %v4253, %v4365
    %4367 = vmatprep.mubr.f32.mxu0 0.0
    %4368 = vmatmul.mubr.f32.gmra.mrb[0].mxu0 %v3043
    %v4369 = vpop.f32.mrb[0].mxu0
    %v4370 = vadd.f32 %v4257, %v4369
    %v4371 = vpop.f32.mrb[0].mxu0
    %v4372 = vadd.f32 %v4259, %v4371
    %4373 = vmatprep.mubr.f32.mxu0 0.0
    %4374 = vmatmul.mubr.f32.gmra.mrb[0].mxu0 %v3046
    %v4375 = vpop.f32.mrb[0].mxu0
    %v4376 = vadd.f32 %v4263, %v4375
    %v4377 = vpop.f32.mrb[0].mxu0
    %v4378 = vadd.f32 %v4265, %v4377
    %4379 = vmatprep.mubr.f32.mxu0 0.0
    %4380 = vmatmul.mubr.f32.gmra.mrb[0].mxu0 %v3049
    %v4381 = vpop.f32.mrb[0].mxu0
    %v4382 = vadd.f32 %v4269, %v4381
    %v4383 = vpop.f32.mrb[0].mxu0
    %v4384 = vadd.f32 %v4271, %v4383
    %4385 = vdwg.mxu0
    %4386 = vmatprep.subr.mxu0 0.0
    %4387 = vmatpush1.msra.mxu0 %v3058
    %4388 = vmatprep.subr.mxu0 0.0
    %4389 = vmatpush1.msra.mxu0 %v3067
    %4390 = vmatprep.subr.mxu0 0.0
    %4391 = vmatpush1.msra.mxu0 %v3076
    %4392 = vmatprep.subr.mxu0 0.0
    %4393 = vmatpush1.msra.mxu0 %v3085
    %4394 = vmatprep.subr.mxu0 0.0
    %4395 = vmatpush1.msra.mxu0 %v3094
    %4396 = vmatprep.subr.mxu0 0.0
    %4397 = vmatpush1.msra.mxu0 %v3103
    %4398 = vmatprep.subr.mxu0 0.0
    %4399 = vmatpush1.msra.mxu0 %v3112
    %4400 = vmatprep.subr.mxu0 0.0
    %4401 = vmatpush1.msra.mxu0 %v3121
    %4402 = vmatprep.subr.mxu0 0.0
    %4403 = vmatpush1.msra.mxu0 %v3130
    %4404 = vmatprep.subr.mxu0 0.0
    %4405 = vmatpush1.msra.mxu0 %v3139
    %4406 = vmatprep.subr.mxu0 0.0
    %4407 = vmatpush1.msra.mxu0 %v3148
    %4408 = vmatprep.subr.mxu0 0.0
    %4409 = vmatpush1.msra.mxu0 %v3157
    %4410 = vmatprep.subr.mxu0 0.0
    %4411 = vmatpush1.msra.mxu0 %v3166
    %4412 = vmatprep.subr.mxu0 0.0
    %4413 = vmatpush1.msra.mxu0 %v3175
    %4414 = vmatprep.subr.mxu0 0.0
    %4415 = vmatpush1.msra.mxu0 %v3184
    %4416 = vmatprep.subr.mxu0 0.0
    %4417 = vmatpush1.msra.mxu0 %v3193
    %4418 = vmatprep.subr.mxu0 0.0
    %4419 = vmatpush1.msra.mxu0 %v3202
    %4420 = vmatprep.subr.mxu0 0.0
    %4421 = vmatpush1.msra.mxu0 %v3211
    %4422 = vmatprep.subr.mxu0 0.0
    %4423 = vmatpush1.msra.mxu0 %v3220
    %4424 = vmatprep.subr.mxu0 0.0
    %4425 = vmatpush1.msra.mxu0 %v3229
    %4426 = vmatprep.subr.mxu0 0.0
    %4427 = vmatpush1.msra.mxu0 %v3238
    %4428 = vmatprep.subr.mxu0 0.0
    %4429 = vmatpush1.msra.mxu0 %v3247
    %4430 = vmatprep.subr.mxu0 0.0
    %4431 = vmatpush1.msra.mxu0 %v3256
    %4432 = vmatprep.subr.mxu0 0.0
    %4433 = vmatpush1.msra.mxu0 %v3265
    %4434 = vmatprep.subr.mxu0 0.0
    %4435 = vmatpush1.msra.mxu0 %v3274
    %4436 = vmatprep.subr.mxu0 0.0
    %4437 = vmatpush1.msra.mxu0 %v3283
    %4438 = vmatprep.subr.mxu0 0.0
    %4439 = vmatpush1.msra.mxu0 %v3292
    %4440 = vmatprep.subr.mxu0 0.0
    %4441 = vmatpush1.msra.mxu0 %v3301
    %4442 = vmatprep.subr.mxu0 0.0
    %4443 = vmatpush1.msra.mxu0 %v3310
    %4444 = vmatprep.subr.mxu0 0.0
    %4445 = vmatpush1.msra.mxu0 %v3319
    %4446 = vmatprep.subr.mxu0 0.0
    %4447 = vmatpush1.msra.mxu0 %v3328
    %4448 = vmatprep.subr.mxu0 0.0
    %4449 = vmatpush1.msra.mxu0 %v3337
    %4450 = vmatprep.mubr.f32.mxu0 %v3027
    %4451 = vmatmul.mubr.f32.gmra.mrb[0].mxu0 %v3026
    %v4452 = vpop.f32.mrb[0].mxu0
    %v4453 = vadd.f32 0.0, %v4452
    %v4454 = vpop.f32.mrb[0].mxu0
    %4455 = vmatprep.mubr.f32.mxu0 %v3030
    %4456 = vmatmul.mubr.f32.gmra.mrb[0].mxu0 %v3029
    %v4457 = vpop.f32.mrb[0].mxu0
    %v4458 = vadd.f32 0.0, %v4457
    %v4459 = vpop.f32.mrb[0].mxu0
    %4460 = vmatprep.mubr.f32.mxu0 %v3033
    %4461 = vmatmul.mubr.f32.gmra.mrb[0].mxu0 %v3032
    %v4462 = vpop.f32.mrb[0].mxu0
    %v4463 = vadd.f32 0.0, %v4462
    %v4464 = vpop.f32.mrb[0].mxu0
    %4465 = vmatprep.mubr.f32.mxu0 %v3036
    %4466 = vmatmul.mubr.f32.gmra.mrb[0].mxu0 %v3035
    %v4467 = vpop.f32.mrb[0].mxu0
    %v4468 = vadd.f32 0.0, %v4467
    %v4469 = vpop.f32.mrb[0].mxu0
    %4470 = vmatprep.mubr.f32.mxu0 %v3039
    %4471 = vmatmul.mubr.f32.gmra.mrb[0].mxu0 %v3038
    %v4472 = vpop.f32.mrb[0].mxu0
    %v4473 = vadd.f32 0.0, %v4472
    %v4474 = vpop.f32.mrb[0].mxu0
    %4475 = vmatprep.mubr.f32.mxu0 %v3042
    %4476 = vmatmul.mubr.f32.gmra.mrb[0].mxu0 %v3041
    %v4477 = vpop.f32.mrb[0].mxu0
    %v4478 = vadd.f32 0.0, %v4477
    %v4479 = vpop.f32.mrb[0].mxu0
    %4480 = vmatprep.mubr.f32.mxu0 %v3045
    %4481 = vmatmul.mubr.f32.gmra.mrb[0].mxu0 %v3044
    %v4482 = vpop.f32.mrb[0].mxu0
    %v4483 = vadd.f32 0.0, %v4482
    %v4484 = vpop.f32.mrb[0].mxu0
    %4485 = vmatprep.mubr.f32.mxu0 %v3048
    %4486 = vmatmul.mubr.f32.gmra.mrb[0].mxu0 %v3047
    %v4487 = vpop.f32.mrb[0].mxu0
    %v4488 = vadd.f32 0.0, %v4487
    %v4489 = vpop.f32.mrb[0].mxu0
    %4490 = vdwg.mxu0
    %4491 = vmatprep.subr.mxu0 0.0
    %4492 = vmatpush1.msra.mxu0 %v3346
    %4493 = vmatprep.subr.mxu0 0.0
    %4494 = vmatpush1.msra.mxu0 %v3355
    %4495 = vmatprep.subr.mxu0 0.0
    %4496 = vmatpush1.msra.mxu0 %v3364
    %4497 = vmatprep.subr.mxu0 0.0
    %4498 = vmatpush1.msra.mxu0 %v3373
    %4499 = vmatprep.subr.mxu0 0.0
    %4500 = vmatpush1.msra.mxu0 %v3382
    %4501 = vmatprep.subr.mxu0 0.0
    %4502 = vmatpush1.msra.mxu0 %v3391
    %4503 = vmatprep.subr.mxu0 0.0
    %4504 = vmatpush1.msra.mxu0 %v3400
    %4505 = vmatprep.subr.mxu0 0.0
    %4506 = vmatpush1.msra.mxu0 %v3409
    %4507 = vmatprep.subr.mxu0 0.0
    %4508 = vmatpush1.msra.mxu0 %v3418
    %4509 = vmatprep.subr.mxu0 0.0
    %4510 = vmatpush1.msra.mxu0 %v3427
    %4511 = vmatprep.subr.mxu0 0.0
    %4512 = vmatpush1.msra.mxu0 %v3436
    %4513 = vmatprep.subr.mxu0 0.0
    %4514 = vmatpush1.msra.mxu0 %v3445
    %4515 = vmatprep.subr.mxu0 0.0
    %4516 = vmatpush1.msra.mxu0 %v3454
    %4517 = vmatprep.subr.mxu0 0.0
    %4518 = vmatpush1.msra.mxu0 %v3463
    %4519 = vmatprep.subr.mxu0 0.0
    %4520 = vmatpush1.msra.mxu0 %v3472
    %4521 = vmatprep.subr.mxu0 0.0
    %4522 = vmatpush1.msra.mxu0 %v3481
    %4523 = vmatprep.subr.mxu0 0.0
    %4524 = vmatpush1.msra.mxu0 0.0
    %4525 = vmatprep.subr.mxu0 0.0
    %4526 = vmatpush1.msra.mxu0 0.0
    %4527 = vmatprep.subr.mxu0 0.0
    %4528 = vmatpush1.msra.mxu0 0.0
    %4529 = vmatprep.subr.mxu0 0.0
    %4530 = vmatpush1.msra.mxu0 0.0
    %4531 = vmatprep.subr.mxu0 0.0
    %4532 = vmatpush1.msra.mxu0 0.0
    %4533 = vmatprep.subr.mxu0 0.0
    %4534 = vmatpush1.msra.mxu0 0.0
    %4535 = vmatprep.subr.mxu0 0.0
    %4536 = vmatpush1.msra.mxu0 0.0
    %4537 = vmatprep.subr.mxu0 0.0
    %4538 = vmatpush1.msra.mxu0 0.0
    %4539 = vmatprep.subr.mxu0 0.0
    %4540 = vmatpush1.msra.mxu0 0.0
    %4541 = vmatprep.subr.mxu0 0.0
    %4542 = vmatpush1.msra.mxu0 0.0
    %4543 = vmatprep.subr.mxu0 0.0
    %4544 = vmatpush1.msra.mxu0 0.0
    %4545 = vmatprep.subr.mxu0 0.0
    %4546 = vmatpush1.msra.mxu0 0.0
    %4547 = vmatprep.subr.mxu0 0.0
    %4548 = vmatpush1.msra.mxu0 0.0
    %4549 = vmatprep.subr.mxu0 0.0
    %4550 = vmatpush1.msra.mxu0 0.0
    %4551 = vmatprep.subr.mxu0 0.0
    %4552 = vmatpush1.msra.mxu0 0.0
    %4553 = vmatprep.subr.mxu0 0.0
    %4554 = vmatpush1.msra.mxu0 0.0
    %4555 = vmatprep.mubr.f32.mxu0 0.0
    %4556 = vmatmul.mubr.f32.gmra.mrb[0].mxu0 %v3028
    %v4557 = vpop.f32.mrb[0].mxu0
    %v4558 = vadd.f32 %v4453, %v4557
    %v4559 = vpop.f32.mrb[0].mxu0
    %4560 = vmatprep.mubr.f32.mxu0 0.0
    %4561 = vmatmul.mubr.f32.gmra.mrb[0].mxu0 %v3031
    %v4562 = vpop.f32.mrb[0].mxu0
    %v4563 = vadd.f32 %v4458, %v4562
    %v4564 = vpop.f32.mrb[0].mxu0
    %4565 = vmatprep.mubr.f32.mxu0 0.0
    %4566 = vmatmul.mubr.f32.gmra.mrb[0].mxu0 %v3034
    %v4567 = vpop.f32.mrb[0].mxu0
    %v4568 = vadd.f32 %v4463, %v4567
    %v4569 = vpop.f32.mrb[0].mxu0
    %4570 = vmatprep.mubr.f32.mxu0 0.0
    %4571 = vmatmul.mubr.f32.gmra.mrb[0].mxu0 %v3037
    %v4572 = vpop.f32.mrb[0].mxu0
    %v4573 = vadd.f32 %v4468, %v4572
    %v4574 = vpop.f32.mrb[0].mxu0
    %4575 = vmatprep.mubr.f32.mxu0 0.0
    %4576 = vmatmul.mubr.f32.gmra.mrb[0].mxu0 %v3040
    %v4577 = vpop.f32.mrb[0].mxu0
    %v4578 = vadd.f32 %v4473, %v4577
    %v4579 = vpop.f32.mrb[0].mxu0
    %4580 = vmatprep.mubr.f32.mxu0 0.0
    %4581 = vmatmul.mubr.f32.gmra.mrb[0].mxu0 %v3043
    %v4582 = vpop.f32.mrb[0].mxu0
    %v4583 = vadd.f32 %v4478, %v4582
    %v4584 = vpop.f32.mrb[0].mxu0
    %4585 = vmatprep.mubr.f32.mxu0 0.0
    %4586 = vmatmul.mubr.f32.gmra.mrb[0].mxu0 %v3046
    %v4587 = vpop.f32.mrb[0].mxu0
    %v4588 = vadd.f32 %v4483, %v4587
    %v4589 = vpop.f32.mrb[0].mxu0
    %4590 = vmatprep.mubr.f32.mxu0 0.0
    %4591 = vmatmul.mubr.f32.gmra.mrb[0].mxu0 %v3049
    %v4592 = vpop.f32.mrb[0].mxu0
    %v4593 = vadd.f32 %v4488, %v4592
    %v4594 = vpop.f32.mrb[0].mxu0
    %4595 = vdwg.mxu0
    %v4596 = vld [vmem:[#allocation23] sm:$0xff]
    %s4597 = scalar_lea.vmem [#allocation23], 8
    %v4598 = vld [vmem:[%s4597] sm:$0xff]
    %v4600 = vsel %vm715, %v4598, 0
    %4602 = vmatprep.subr.mxu0 %v4114
    %4603 = vmatpush1.msra.mxu0 %v3890
    %4604 = vmatprep.subr.mxu0 %v4120
    %4605 = vmatpush1.msra.mxu0 %v3896
    %4606 = vmatprep.subr.mxu0 %v4126
    %4607 = vmatpush1.msra.mxu0 %v3902
    %4608 = vmatprep.subr.mxu0 %v4132
    %4609 = vmatpush1.msra.mxu0 %v3908
    %4610 = vmatprep.subr.mxu0 %v4138
    %4611 = vmatpush1.msra.mxu0 %v3914
    %4612 = vmatprep.subr.mxu0 %v4144
    %4613 = vmatpush1.msra.mxu0 %v3920
    %4614 = vmatprep.subr.mxu0 %v4150
    %4615 = vmatpush1.msra.mxu0 %v3926
    %4616 = vmatprep.subr.mxu0 %v4156
    %4617 = vmatpush1.msra.mxu0 %v3932
    %4618 = vmatprep.subr.mxu0 0.0
    %4619 = vmatpush1.msra.mxu0 0.0
    %4620 = vmatprep.subr.mxu0 0.0
    %4621 = vmatpush1.msra.mxu0 0.0
    %4622 = vmatprep.subr.mxu0 0.0
    %4623 = vmatpush1.msra.mxu0 0.0
    %4624 = vmatprep.subr.mxu0 0.0
    %4625 = vmatpush1.msra.mxu0 0.0
    %4626 = vmatprep.subr.mxu0 0.0
    %4627 = vmatpush1.msra.mxu0 0.0
    %4628 = vmatprep.subr.mxu0 0.0
    %4629 = vmatpush1.msra.mxu0 0.0
    %4630 = vmatprep.subr.mxu0 0.0
    %4631 = vmatpush1.msra.mxu0 0.0
    %4632 = vmatprep.subr.mxu0 0.0
    %4633 = vmatpush1.msra.mxu0 0.0
    %4634 = vmatprep.subr.mxu0 0.0
    %4635 = vmatpush1.msra.mxu0 0.0
    %4636 = vmatprep.subr.mxu0 0.0
    %4637 = vmatpush1.msra.mxu0 0.0
    %4638 = vmatprep.subr.mxu0 0.0
    %4639 = vmatpush1.msra.mxu0 0.0
    %4640 = vmatprep.subr.mxu0 0.0
    %4641 = vmatpush1.msra.mxu0 0.0
    %4642 = vmatprep.subr.mxu0 0.0
    %4643 = vmatpush1.msra.mxu0 0.0
    %4644 = vmatprep.subr.mxu0 0.0
    %4645 = vmatpush1.msra.mxu0 0.0
    %4646 = vmatprep.subr.mxu0 0.0
    %4647 = vmatpush1.msra.mxu0 0.0
    %4648 = vmatprep.subr.mxu0 0.0
    %4649 = vmatpush1.msra.mxu0 0.0
    %4650 = vmatprep.subr.mxu0 0.0
    %4651 = vmatpush1.msra.mxu0 0.0
    %4652 = vmatprep.subr.mxu0 0.0
    %4653 = vmatpush1.msra.mxu0 0.0
    %4654 = vmatprep.subr.mxu0 0.0
    %4655 = vmatpush1.msra.mxu0 0.0
    %4656 = vmatprep.subr.mxu0 0.0
    %4657 = vmatpush1.msra.mxu0 0.0
    %4658 = vmatprep.subr.mxu0 0.0
    %4659 = vmatpush1.msra.mxu0 0.0
    %4660 = vmatprep.subr.mxu0 0.0
    %4661 = vmatpush1.msra.mxu0 0.0
    %4662 = vmatprep.subr.mxu0 0.0
    %4663 = vmatpush1.msra.mxu0 0.0
    %4664 = vmatprep.subr.mxu0 0.0
    %4665 = vmatpush1.msra.mxu0 0.0
    %4666 = vmatprep.mubr.f32.mxu0 0.0
    %4667 = vmatmul.mubr.f32.gmra.mrb[0].mxu0 %v4600
    %v4668 = vpop.f32.mrb[0].mxu0
    %v4669 = vadd.f32 0.0, %v4668
    %v4670 = vpop.f32.mrb[0].mxu0
    %v4671 = vadd.f32 0.0, %v4670
    %4672 = vdwg.mxu0
    %4673 = vmatprep.subr.mxu0 0.0
    %4674 = vmatpush1.msra.mxu0 %v4116
    %4675 = vmatprep.subr.mxu0 0.0
    %4676 = vmatpush1.msra.mxu0 %v4122
    %4677 = vmatprep.subr.mxu0 0.0
    %4678 = vmatpush1.msra.mxu0 %v4128
    %4679 = vmatprep.subr.mxu0 0.0
    %4680 = vmatpush1.msra.mxu0 %v4134
    %4681 = vmatprep.subr.mxu0 0.0
    %4682 = vmatpush1.msra.mxu0 %v4140
    %4683 = vmatprep.subr.mxu0 0.0
    %4684 = vmatpush1.msra.mxu0 %v4146
    %4685 = vmatprep.subr.mxu0 0.0
    %4686 = vmatpush1.msra.mxu0 %v4152
    %4687 = vmatprep.subr.mxu0 0.0
    %4688 = vmatpush1.msra.mxu0 %v4158
    %4689 = vmatprep.subr.mxu0 0.0
    %4690 = vmatpush1.msra.mxu0 0.0
    %4691 = vmatprep.subr.mxu0 0.0
    %4692 = vmatpush1.msra.mxu0 0.0
    %4693 = vmatprep.subr.mxu0 0.0
    %4694 = vmatpush1.msra.mxu0 0.0
    %4695 = vmatprep.subr.mxu0 0.0
    %4696 = vmatpush1.msra.mxu0 0.0
    %4697 = vmatprep.subr.mxu0 0.0
    %4698 = vmatpush1.msra.mxu0 0.0
    %4699 = vmatprep.subr.mxu0 0.0
    %4700 = vmatpush1.msra.mxu0 0.0
    %4701 = vmatprep.subr.mxu0 0.0
    %4702 = vmatpush1.msra.mxu0 0.0
    %4703 = vmatprep.subr.mxu0 0.0
    %4704 = vmatpush1.msra.mxu0 0.0
    %4705 = vmatprep.subr.mxu0 0.0
    %4706 = vmatpush1.msra.mxu0 0.0
    %4707 = vmatprep.subr.mxu0 0.0
    %4708 = vmatpush1.msra.mxu0 0.0
    %4709 = vmatprep.subr.mxu0 0.0
    %4710 = vmatpush1.msra.mxu0 0.0
    %4711 = vmatprep.subr.mxu0 0.0
    %4712 = vmatpush1.msra.mxu0 0.0
    %4713 = vmatprep.subr.mxu0 0.0
    %4714 = vmatpush1.msra.mxu0 0.0
    %4715 = vmatprep.subr.mxu0 0.0
    %4716 = vmatpush1.msra.mxu0 0.0
    %4717 = vmatprep.subr.mxu0 0.0
    %4718 = vmatpush1.msra.mxu0 0.0
    %4719 = vmatprep.subr.mxu0 0.0
    %4720 = vmatpush1.msra.mxu0 0.0
    %4721 = vmatprep.subr.mxu0 0.0
    %4722 = vmatpush1.msra.mxu0 0.0
    %4723 = vmatprep.subr.mxu0 0.0
    %4724 = vmatpush1.msra.mxu0 0.0
    %4725 = vmatprep.subr.mxu0 0.0
    %4726 = vmatpush1.msra.mxu0 0.0
    %4727 = vmatprep.subr.mxu0 0.0
    %4728 = vmatpush1.msra.mxu0 0.0
    %4729 = vmatprep.subr.mxu0 0.0
    %4730 = vmatpush1.msra.mxu0 0.0
    %4731 = vmatprep.subr.mxu0 0.0
    %4732 = vmatpush1.msra.mxu0 0.0
    %4733 = vmatprep.subr.mxu0 0.0
    %4734 = vmatpush1.msra.mxu0 0.0
    %4735 = vmatprep.subr.mxu0 0.0
    %4736 = vmatpush1.msra.mxu0 0.0
    %4737 = vmatprep.mubr.f32.mxu0 0.0
    %4738 = vmatmul.mubr.f32.gmra.mrb[0].mxu0 %v4600
    %v4739 = vpop.f32.mrb[0].mxu0
    %v4740 = vadd.f32 0.0, %v4739
    %v4741 = vpop.f32.mrb[0].mxu0
    %4742 = vdwg.mxu0
    %v4744 = vsel %vm715, %v4596, 0
    %4746 = vmatprep.subr.mxu0 %v3664
    %4747 = vmatpush1.msra.mxu0 %v3662
    %4748 = vmatprep.subr.mxu0 %v3670
    %4749 = vmatpush1.msra.mxu0 %v3668
    %4750 = vmatprep.subr.mxu0 %v3676
    %4751 = vmatpush1.msra.mxu0 %v3674
    %4752 = vmatprep.subr.mxu0 %v3682
    %4753 = vmatpush1.msra.mxu0 %v3680
    %4754 = vmatprep.subr.mxu0 %v3688
    %4755 = vmatpush1.msra.mxu0 %v3686
    %4756 = vmatprep.subr.mxu0 %v3694
    %4757 = vmatpush1.msra.mxu0 %v3692
    %4758 = vmatprep.subr.mxu0 %v3700
    %4759 = vmatpush1.msra.mxu0 %v3698
    %4760 = vmatprep.subr.mxu0 %v3706
    %4761 = vmatpush1.msra.mxu0 %v3704
    %4762 = vmatprep.subr.mxu0 0.0
    %4763 = vmatpush1.msra.mxu0 0.0
    %4764 = vmatprep.subr.mxu0 0.0
    %4765 = vmatpush1.msra.mxu0 0.0
    %4766 = vmatprep.subr.mxu0 0.0
    %4767 = vmatpush1.msra.mxu0 0.0
    %4768 = vmatprep.subr.mxu0 0.0
    %4769 = vmatpush1.msra.mxu0 0.0
    %4770 = vmatprep.subr.mxu0 0.0
    %4771 = vmatpush1.msra.mxu0 0.0
    %4772 = vmatprep.subr.mxu0 0.0
    %4773 = vmatpush1.msra.mxu0 0.0
    %4774 = vmatprep.subr.mxu0 0.0
    %4775 = vmatpush1.msra.mxu0 0.0
    %4776 = vmatprep.subr.mxu0 0.0
    %4777 = vmatpush1.msra.mxu0 0.0
    %4778 = vmatprep.subr.mxu0 0.0
    %4779 = vmatpush1.msra.mxu0 0.0
    %4780 = vmatprep.subr.mxu0 0.0
    %4781 = vmatpush1.msra.mxu0 0.0
    %4782 = vmatprep.subr.mxu0 0.0
    %4783 = vmatpush1.msra.mxu0 0.0
    %4784 = vmatprep.subr.mxu0 0.0
    %4785 = vmatpush1.msra.mxu0 0.0
    %4786 = vmatprep.subr.mxu0 0.0
    %4787 = vmatpush1.msra.mxu0 0.0
    %4788 = vmatprep.subr.mxu0 0.0
    %4789 = vmatpush1.msra.mxu0 0.0
    %4790 = vmatprep.subr.mxu0 0.0
    %4791 = vmatpush1.msra.mxu0 0.0
    %4792 = vmatprep.subr.mxu0 0.0
    %4793 = vmatpush1.msra.mxu0 0.0
    %4794 = vmatprep.subr.mxu0 0.0
    %4795 = vmatpush1.msra.mxu0 0.0
    %4796 = vmatprep.subr.mxu0 0.0
    %4797 = vmatpush1.msra.mxu0 0.0
    %4798 = vmatprep.subr.mxu0 0.0
    %4799 = vmatpush1.msra.mxu0 0.0
    %4800 = vmatprep.subr.mxu0 0.0
    %4801 = vmatpush1.msra.mxu0 0.0
    %4802 = vmatprep.subr.mxu0 0.0
    %4803 = vmatpush1.msra.mxu0 0.0
    %4804 = vmatprep.subr.mxu0 0.0
    %4805 = vmatpush1.msra.mxu0 0.0
    %4806 = vmatprep.subr.mxu0 0.0
    %4807 = vmatpush1.msra.mxu0 0.0
    %4808 = vmatprep.subr.mxu0 0.0
    %4809 = vmatpush1.msra.mxu0 0.0
    %4810 = vmatprep.mubr.f32.mxu0 0.0
    %4811 = vmatmul.mubr.f32.gmra.mrb[0].mxu0 %v4744
    %v4812 = vpop.f32.mrb[0].mxu0
    %v4813 = vadd.f32 %v4669, %v4812
    %v4814 = vpop.f32.mrb[0].mxu0
    %v4815 = vadd.f32 %v4671, %v4814
    %4816 = vdwg.mxu0
    %4817 = vmatprep.subr.mxu0 0.0
    %4818 = vmatpush1.msra.mxu0 %v3888
    %4819 = vmatprep.subr.mxu0 0.0
    %4820 = vmatpush1.msra.mxu0 %v3894
    %4821 = vmatprep.subr.mxu0 0.0
    %4822 = vmatpush1.msra.mxu0 %v3900
    %4823 = vmatprep.subr.mxu0 0.0
    %4824 = vmatpush1.msra.mxu0 %v3906
    %4825 = vmatprep.subr.mxu0 0.0
    %4826 = vmatpush1.msra.mxu0 %v3912
    %4827 = vmatprep.subr.mxu0 0.0
    %4828 = vmatpush1.msra.mxu0 %v3918
    %4829 = vmatprep.subr.mxu0 0.0
    %4830 = vmatpush1.msra.mxu0 %v3924
    %4831 = vmatprep.subr.mxu0 0.0
    %4832 = vmatpush1.msra.mxu0 %v3930
    %4833 = vmatprep.subr.mxu0 0.0
    %4834 = vmatpush1.msra.mxu0 0.0
    %4835 = vmatprep.subr.mxu0 0.0
    %4836 = vmatpush1.msra.mxu0 0.0
    %4837 = vmatprep.subr.mxu0 0.0
    %4838 = vmatpush1.msra.mxu0 0.0
    %4839 = vmatprep.subr.mxu0 0.0
    %4840 = vmatpush1.msra.mxu0 0.0
    %4841 = vmatprep.subr.mxu0 0.0
    %4842 = vmatpush1.msra.mxu0 0.0
    %4843 = vmatprep.subr.mxu0 0.0
    %4844 = vmatpush1.msra.mxu0 0.0
    %4845 = vmatprep.subr.mxu0 0.0
    %4846 = vmatpush1.msra.mxu0 0.0
    %4847 = vmatprep.subr.mxu0 0.0
    %4848 = vmatpush1.msra.mxu0 0.0
    %4849 = vmatprep.subr.mxu0 0.0
    %4850 = vmatpush1.msra.mxu0 0.0
    %4851 = vmatprep.subr.mxu0 0.0
    %4852 = vmatpush1.msra.mxu0 0.0
    %4853 = vmatprep.subr.mxu0 0.0
    %4854 = vmatpush1.msra.mxu0 0.0
    %4855 = vmatprep.subr.mxu0 0.0
    %4856 = vmatpush1.msra.mxu0 0.0
    %4857 = vmatprep.subr.mxu0 0.0
    %4858 = vmatpush1.msra.mxu0 0.0
    %4859 = vmatprep.subr.mxu0 0.0
    %4860 = vmatpush1.msra.mxu0 0.0
    %4861 = vmatprep.subr.mxu0 0.0
    %4862 = vmatpush1.msra.mxu0 0.0
    %4863 = vmatprep.subr.mxu0 0.0
    %4864 = vmatpush1.msra.mxu0 0.0
    %4865 = vmatprep.subr.mxu0 0.0
    %4866 = vmatpush1.msra.mxu0 0.0
    %4867 = vmatprep.subr.mxu0 0.0
    %4868 = vmatpush1.msra.mxu0 0.0
    %4869 = vmatprep.subr.mxu0 0.0
    %4870 = vmatpush1.msra.mxu0 0.0
    %4871 = vmatprep.subr.mxu0 0.0
    %4872 = vmatpush1.msra.mxu0 0.0
    %4873 = vmatprep.subr.mxu0 0.0
    %4874 = vmatpush1.msra.mxu0 0.0
    %4875 = vmatprep.subr.mxu0 0.0
    %4876 = vmatpush1.msra.mxu0 0.0
    %4877 = vmatprep.subr.mxu0 0.0
    %4878 = vmatpush1.msra.mxu0 0.0
    %4879 = vmatprep.subr.mxu0 0.0
    %4880 = vmatpush1.msra.mxu0 0.0
    %4881 = vmatprep.mubr.f32.mxu0 0.0
    %4882 = vmatmul.mubr.f32.gmra.mrb[0].mxu0 %v4744
    %v4883 = vpop.f32.mrb[0].mxu0
    %v4884 = vadd.f32 %v4740, %v4883
    %v4885 = vpop.f32.mrb[0].mxu0
    %4886 = vdwg.mxu0
    %s4887 = scalar_lea.vmem [#allocation23], 16
    %v4888 = vld [vmem:[%s4887] sm:$0xff]
    %v4890 = vsel %vm715, %v4888, 0
    %4892 = vmatprep.subr.mxu0 %v4342
    %4893 = vmatpush1.msra.mxu0 %v4340
    %4894 = vmatprep.subr.mxu0 %v4348
    %4895 = vmatpush1.msra.mxu0 %v4346
    %4896 = vmatprep.subr.mxu0 %v4354
    %4897 = vmatpush1.msra.mxu0 %v4352
    %4898 = vmatprep.subr.mxu0 %v4360
    %4899 = vmatpush1.msra.mxu0 %v4358
    %4900 = vmatprep.subr.mxu0 %v4366
    %4901 = vmatpush1.msra.mxu0 %v4364
    %4902 = vmatprep.subr.mxu0 %v4372
    %4903 = vmatpush1.msra.mxu0 %v4370
    %4904 = vmatprep.subr.mxu0 %v4378
    %4905 = vmatpush1.msra.mxu0 %v4376
    %4906 = vmatprep.subr.mxu0 %v4384
    %4907 = vmatpush1.msra.mxu0 %v4382
    %4908 = vmatprep.subr.mxu0 0.0
    %4909 = vmatpush1.msra.mxu0 0.0
    %4910 = vmatprep.subr.mxu0 0.0
    %4911 = vmatpush1.msra.mxu0 0.0
    %4912 = vmatprep.subr.mxu0 0.0
    %4913 = vmatpush1.msra.mxu0 0.0
    %4914 = vmatprep.subr.mxu0 0.0
    %4915 = vmatpush1.msra.mxu0 0.0
    %4916 = vmatprep.subr.mxu0 0.0
    %4917 = vmatpush1.msra.mxu0 0.0
    %4918 = vmatprep.subr.mxu0 0.0
    %4919 = vmatpush1.msra.mxu0 0.0
    %4920 = vmatprep.subr.mxu0 0.0
    %4921 = vmatpush1.msra.mxu0 0.0
    %4922 = vmatprep.subr.mxu0 0.0
    %4923 = vmatpush1.msra.mxu0 0.0
    %4924 = vmatprep.subr.mxu0 0.0
    %4925 = vmatpush1.msra.mxu0 0.0
    %4926 = vmatprep.subr.mxu0 0.0
    %4927 = vmatpush1.msra.mxu0 0.0
    %4928 = vmatprep.subr.mxu0 0.0
    %4929 = vmatpush1.msra.mxu0 0.0
    %4930 = vmatprep.subr.mxu0 0.0
    %4931 = vmatpush1.msra.mxu0 0.0
    %4932 = vmatprep.subr.mxu0 0.0
    %4933 = vmatpush1.msra.mxu0 0.0
    %4934 = vmatprep.subr.mxu0 0.0
    %4935 = vmatpush1.msra.mxu0 0.0
    %4936 = vmatprep.subr.mxu0 0.0
    %4937 = vmatpush1.msra.mxu0 0.0
    %4938 = vmatprep.subr.mxu0 0.0
    %4939 = vmatpush1.msra.mxu0 0.0
    %4940 = vmatprep.subr.mxu0 0.0
    %4941 = vmatpush1.msra.mxu0 0.0
    %4942 = vmatprep.subr.mxu0 0.0
    %4943 = vmatpush1.msra.mxu0 0.0
    %4944 = vmatprep.subr.mxu0 0.0
    %4945 = vmatpush1.msra.mxu0 0.0
    %4946 = vmatprep.subr.mxu0 0.0
    %4947 = vmatpush1.msra.mxu0 0.0
    %4948 = vmatprep.subr.mxu0 0.0
    %4949 = vmatpush1.msra.mxu0 0.0
    %4950 = vmatprep.subr.mxu0 0.0
    %4951 = vmatpush1.msra.mxu0 0.0
    %4952 = vmatprep.subr.mxu0 0.0
    %4953 = vmatpush1.msra.mxu0 0.0
    %4954 = vmatprep.subr.mxu0 0.0
    %4955 = vmatpush1.msra.mxu0 0.0
    %4956 = vmatprep.mubr.f32.mxu0 0.0
    %4957 = vmatmul.mubr.f32.gmra.mrb[0].mxu0 %v4890
    %v4958 = vpop.f32.mrb[0].mxu0
    %v4959 = vadd.f32 0.0, %v4958
    %v4960 = vpop.f32.mrb[0].mxu0
    %v4961 = vadd.f32 0.0, %v4960
    %4962 = vdwg.mxu0
    %4963 = vmatprep.subr.mxu0 0.0
    %4964 = vmatpush1.msra.mxu0 %v4558
    %4965 = vmatprep.subr.mxu0 0.0
    %4966 = vmatpush1.msra.mxu0 %v4563
    %4967 = vmatprep.subr.mxu0 0.0
    %4968 = vmatpush1.msra.mxu0 %v4568
    %4969 = vmatprep.subr.mxu0 0.0
    %4970 = vmatpush1.msra.mxu0 %v4573
    %4971 = vmatprep.subr.mxu0 0.0
    %4972 = vmatpush1.msra.mxu0 %v4578
    %4973 = vmatprep.subr.mxu0 0.0
    %4974 = vmatpush1.msra.mxu0 %v4583
    %4975 = vmatprep.subr.mxu0 0.0
    %4976 = vmatpush1.msra.mxu0 %v4588
    %4977 = vmatprep.subr.mxu0 0.0
    %4978 = vmatpush1.msra.mxu0 %v4593
    %4979 = vmatprep.subr.mxu0 0.0
    %4980 = vmatpush1.msra.mxu0 0.0
    %4981 = vmatprep.subr.mxu0 0.0
    %4982 = vmatpush1.msra.mxu0 0.0
    %4983 = vmatprep.subr.mxu0 0.0
    %4984 = vmatpush1.msra.mxu0 0.0
    %4985 = vmatprep.subr.mxu0 0.0
    %4986 = vmatpush1.msra.mxu0 0.0
    %4987 = vmatprep.subr.mxu0 0.0
    %4988 = vmatpush1.msra.mxu0 0.0
    %4989 = vmatprep.subr.mxu0 0.0
    %4990 = vmatpush1.msra.mxu0 0.0
    %4991 = vmatprep.subr.mxu0 0.0
    %4992 = vmatpush1.msra.mxu0 0.0
    %4993 = vmatprep.subr.mxu0 0.0
    %4994 = vmatpush1.msra.mxu0 0.0
    %4995 = vmatprep.subr.mxu0 0.0
    %4996 = vmatpush1.msra.mxu0 0.0
    %4997 = vmatprep.subr.mxu0 0.0
    %4998 = vmatpush1.msra.mxu0 0.0
    %4999 = vmatprep.subr.mxu0 0.0
    %5000 = vmatpush1.msra.mxu0 0.0
    %5001 = vmatprep.subr.mxu0 0.0
    %5002 = vmatpush1.msra.mxu0 0.0
    %5003 = vmatprep.subr.mxu0 0.0
    %5004 = vmatpush1.msra.mxu0 0.0
    %5005 = vmatprep.subr.mxu0 0.0
    %5006 = vmatpush1.msra.mxu0 0.0
    %5007 = vmatprep.subr.mxu0 0.0
    %5008 = vmatpush1.msra.mxu0 0.0
    %5009 = vmatprep.subr.mxu0 0.0
    %5010 = vmatpush1.msra.mxu0 0.0
    %5011 = vmatprep.subr.mxu0 0.0
    %5012 = vmatpush1.msra.mxu0 0.0
    %5013 = vmatprep.subr.mxu0 0.0
    %5014 = vmatpush1.msra.mxu0 0.0
    %5015 = vmatprep.subr.mxu0 0.0
    %5016 = vmatpush1.msra.mxu0 0.0
    %5017 = vmatprep.subr.mxu0 0.0
    %5018 = vmatpush1.msra.mxu0 0.0
    %5019 = vmatprep.subr.mxu0 0.0
    %5020 = vmatpush1.msra.mxu0 0.0
    %5021 = vmatprep.subr.mxu0 0.0
    %5022 = vmatpush1.msra.mxu0 0.0
    %5023 = vmatprep.subr.mxu0 0.0
    %5024 = vmatpush1.msra.mxu0 0.0
    %5025 = vmatprep.subr.mxu0 0.0
    %5026 = vmatpush1.msra.mxu0 0.0
    %5027 = vmatprep.mubr.f32.mxu0 0.0
    %5028 = vmatmul.mubr.f32.gmra.mrb[0].mxu0 %v4890
    %v5029 = vpop.f32.mrb[0].mxu0
    %v5030 = vadd.f32 0.0, %v5029
    %v5031 = vpop.f32.mrb[0].mxu0
    %5032 = vdwg.mxu0
    %v5033 = vadd.f32 %v4813, %v4959
    %v5034 = vadd.f32 %v4815, %v4961
    %v5035 = vadd.f32 %v4884, %v5030
    %v5036 = vld [vmem:[%s17] sm:$0xff]
    %5038 = vset.pattern.permute.xlu0 0
    %5039 = vperm.xlu0 %5038, %v5036
    %v5040 = vpop.permute.xlu0 %5039
    %v5042 = vadd.f32 %v5033, %v5040
    %v5043 = vadd.f32 %v5034, %v5040
    %v5044 = vadd.f32 %v5035, %v5040
    %v5048 = vcombine.low %v5042, %v5043
    %v5049 = vcombine.high %v5042, %v5043
    %v5050 = vcombine.high %v5044, %v5044
    %v5052 = vunpack.c.l.s4 1966171168
    %v5053 = vunpack.c.0.s8 %v5052
    %v5054 = vlaneseq
    %v5055 = vshrl.u32 %v5054, 7
    %v5056 = vsub.s32 %v5053, %v5055
    %v5057 = vrot.slane %v5048, %v5056
    %v5059 = vunpack.c.l.s4 1966171168
    %v5060 = vunpack.c.0.s8 %v5059
    %v5061 = vlaneseq
    %v5062 = vshrl.u32 %v5061, 7
    %v5063 = vsub.s32 %v5060, %v5062
    %v5064 = vrot.slane %v5049, %v5063
    %v5066 = vunpack.c.l.s4 1966171168
    %v5067 = vunpack.c.0.s8 %v5066
    %v5068 = vlaneseq
    %v5069 = vshrl.u32 %v5068, 7
    %v5070 = vsub.s32 %v5067, %v5069
    %v5071 = vrot.slane %v5044, %v5070
    %v5073 = vunpack.c.l.s4 1966171168
    %v5074 = vunpack.c.0.s8 %v5073
    %v5075 = vlaneseq
    %v5076 = vshrl.u32 %v5075, 7
    %v5077 = vsub.s32 %v5074, %v5076
    %v5078 = vrot.slane %v5050, %v5077
    %v5079 = vcombine.low %v5057, %v5071
    %v5080 = vcombine.high %v5057, %v5071
    %v5081 = vcombine.low %v5064, %v5078
    %v5082 = vcombine.high %v5064, %v5078
    %v5084 = vunpack.c.l.s4 1966171168
    %v5085 = vunpack.c.0.s8 %v5084
    %v5086 = vlaneseq
    %v5087 = vshrl.u32 %v5086, 7
    %v5088 = vsub.s32 %v5085, %v5087
    %v5089 = vrot.slane %v5079, %v5088
    %v5091 = vunpack.c.l.s4 1966171168
    %v5092 = vunpack.c.0.s8 %v5091
    %v5093 = vlaneseq
    %v5094 = vshrl.u32 %v5093, 7
    %v5095 = vsub.s32 %v5092, %v5094
    %v5096 = vrot.slane %v5081, %v5095
    %v5098 = vunpack.c.l.s4 1966171168
    %v5099 = vunpack.c.0.s8 %v5098
    %v5100 = vlaneseq
    %v5101 = vshrl.u32 %v5100, 7
    %v5102 = vsub.s32 %v5099, %v5101
    %v5103 = vrot.slane %v5080, %v5102
    %v5105 = vunpack.c.l.s4 1966171168
    %v5106 = vunpack.c.0.s8 %v5105
    %v5107 = vlaneseq
    %v5108 = vshrl.u32 %v5107, 7
    %v5109 = vsub.s32 %v5106, %v5108
    %v5110 = vrot.slane %v5082, %v5109
    %v5111 = vcombine.high %v5089, %v5089
    %v5112 = vcombine.high %v5096, %v5096
    %v5113 = vcombine.high %v5103, %v5103
    %v5114 = vcombine.high %v5110, %v5110
    %v5123 = vlaneseq
    %vm5124 = vcmp.ge.s32.totalorder %v5123, 0
    %vm5125 = vcmp.lt.s32.totalorder %v5123, 321
    %vm5126 = vmand %vm5124, %vm5125
    %5127 = vst.msk [vmem:[#allocation25] ss:$2 sm:$0x7] %vm5126, %v5089
    %s5128 = scalar_lea.vmem [#allocation25], 6
    %5129 = vst.msk [vmem:[%s5128] ss:$2 sm:$0x7] %vm5126, %v5103
    %s5130 = scalar_lea.vmem [#allocation25], 12
    %5131 = vst.msk [vmem:[%s5130] ss:$2 sm:$0x7] %vm5126, %v5111
    %s5132 = scalar_lea.vmem [#allocation25], 18
    %5133 = vst.msk [vmem:[%s5132] ss:$2 sm:$0x7] %vm5126, %v5113
    %s5134 = scalar_lea.vmem [#allocation25], 24
    %5135 = vst.msk [vmem:[%s5134] ss:$2 sm:$0x7] %vm5126, %v5096
    %s5136 = scalar_lea.vmem [#allocation25], 30
    %5137 = vst.msk [vmem:[%s5136] ss:$2 sm:$0x7] %vm5126, %v5110
    %s5138 = scalar_lea.vmem [#allocation25], 36
    %5139 = vst.msk [vmem:[%s5138] ss:$2 sm:$0x7] %vm5126, %v5112
    %s5140 = scalar_lea.vmem [#allocation25], 42
    %5141 = vst.msk [vmem:[%s5140] ss:$2 sm:$0x7] %vm5126, %v5114
    %s5142 = scalar_lea.vmem [#allocation17], 1024
    %v5143 = vld [vmem:[%s5142] sm:$0xff]
    %v5144 = vld [vmem:[%s5142 + $0x8] sm:$0xff]
    %v5145 = vld [vmem:[%s5142 + $0x10] sm:$0xff]
    %v5146 = vld [vmem:[%s5142 + $0x18] sm:$0xff]
    %v5147 = vld [vmem:[%s5142 + $0x20] sm:$0xff]
    %v5148 = vld [vmem:[%s5142 + $0x28] sm:$0xff]
    %v5149 = vld [vmem:[%s5142 + $0x30] sm:$0xff]
    %v5150 = vld [vmem:[%s5142 + $0x38] sm:$0xff]
    %v5151 = vld [vmem:[%s5142 + $0x40] sm:$0xff]
    %v5152 = vld [vmem:[%s5142 + $0x48] sm:$0xff]
    %v5153 = vld [vmem:[%s5142 + $0x50] sm:$0xff]
    %v5154 = vld [vmem:[%s5142 + $0x58] sm:$0xff]
    %v5155 = vld [vmem:[%s5142 + $0x60] sm:$0xff]
    %v5156 = vld [vmem:[%s5142 + $0x68] sm:$0xff]
    %v5157 = vld [vmem:[%s5142 + $0x70] sm:$0xff]
    %v5158 = vld [vmem:[%s5142 + $0x78] sm:$0xff]
    %v5159 = vld [vmem:[%s5142 + $0x80] sm:$0xff]
    %v5160 = vld [vmem:[%s5142 + $0x88] sm:$0xff]
    %v5161 = vld [vmem:[%s5142 + $0x90] sm:$0xff]
    %v5162 = vld [vmem:[%s5142 + $0x98] sm:$0xff]
    %v5163 = vld [vmem:[%s5142 + $0xa0] sm:$0xff]
    %v5164 = vld [vmem:[%s5142 + $0xa8] sm:$0xff]
    %v5165 = vld [vmem:[%s5142 + $0xb0] sm:$0xff]
    %v5166 = vld [vmem:[%s5142 + $0xb8] sm:$0xff]
    %v5167 = vld [vmem:[%s5142 + $0xc0] sm:$0xff]
    %v5168 = vld [vmem:[%s5142 + $0xc8] sm:$0xff]
    %v5169 = vld [vmem:[%s5142 + $0xd0] sm:$0xff]
    %v5170 = vld [vmem:[%s5142 + $0xd8] sm:$0xff]
    %v5171 = vld [vmem:[%s5142 + $0xe0] sm:$0xff]
    %v5172 = vld [vmem:[%s5142 + $0xe8] sm:$0xff]
    %v5173 = vld [vmem:[%s5142 + $0xf0] sm:$0xff]
    %v5174 = vld [vmem:[%s5142 + $0xf8] sm:$0xff]
    %v5175 = vld [vmem:[%s5142 + $0x100] sm:$0xff]
    %v5176 = vld [vmem:[%s5142 + $0x108] sm:$0xff]
    %v5177 = vld [vmem:[%s5142 + $0x110] sm:$0xff]
    %v5178 = vld [vmem:[%s5142 + $0x118] sm:$0xff]
    %v5179 = vld [vmem:[%s5142 + $0x120] sm:$0xff]
    %v5180 = vld [vmem:[%s5142 + $0x128] sm:$0xff]
    %v5181 = vld [vmem:[%s5142 + $0x130] sm:$0xff]
    %v5182 = vld [vmem:[%s5142 + $0x138] sm:$0xff]
    %v5183 = vld [vmem:[%s5142 + $0x140] sm:$0xff]
    %v5184 = vld [vmem:[%s5142 + $0x148] sm:$0xff]
    %v5185 = vld [vmem:[%s5142 + $0x150] sm:$0xff]
    %v5186 = vld [vmem:[%s5142 + $0x158] sm:$0xff]
    %v5187 = vld [vmem:[%s5142 + $0x160] sm:$0xff]
    %v5188 = vld [vmem:[%s5142 + $0x168] sm:$0xff]
    %v5189 = vld [vmem:[%s5142 + $0x170] sm:$0xff]
    %v5190 = vld [vmem:[%s5142 + $0x178] sm:$0xff]
    %v5191 = vld [vmem:[%s5142 + $0x180] sm:$0xff]
    %v5192 = vld [vmem:[%s5142 + $0x188] sm:$0xff]
    %v5193 = vld [vmem:[%s5142 + $0x190] sm:$0xff]
    %v5194 = vld [vmem:[%s5142 + $0x198] sm:$0xff]
    %v5195 = vld [vmem:[%s5142 + $0x1a0] sm:$0xff]
    %v5196 = vld [vmem:[%s5142 + $0x1a8] sm:$0xff]
    %v5197 = vld [vmem:[%s5142 + $0x1b0] sm:$0xff]
    %v5198 = vld [vmem:[%s5142 + $0x1b8] sm:$0xff]
    %v5199 = vld [vmem:[%s5142 + $0x1c0] sm:$0xff]
    %v5200 = vld [vmem:[%s5142 + $0x1c8] sm:$0xff]
    %v5201 = vld [vmem:[%s5142 + $0x1d0] sm:$0xff]
    %v5202 = vld [vmem:[%s5142 + $0x1d8] sm:$0xff]
    %v5203 = vld [vmem:[%s5142 + $0x1e0] sm:$0xff]
    %v5204 = vld [vmem:[%s5142 + $0x1e8] sm:$0xff]
    %v5205 = vld [vmem:[%s5142 + $0x1f0] sm:$0xff]
    %v5206 = vld [vmem:[%s5142 + $0x1f8] sm:$0xff]
    %v5207 = vld [vmem:[%s5142 + $0x200] sm:$0xff]
    %v5208 = vld [vmem:[%s5142 + $0x208] sm:$0xff]
    %v5209 = vld [vmem:[%s5142 + $0x210] sm:$0xff]
    %v5210 = vld [vmem:[%s5142 + $0x218] sm:$0xff]
    %v5211 = vld [vmem:[%s5142 + $0x220] sm:$0xff]
    %v5212 = vld [vmem:[%s5142 + $0x228] sm:$0xff]
    %v5213 = vld [vmem:[%s5142 + $0x230] sm:$0xff]
    %v5214 = vld [vmem:[%s5142 + $0x238] sm:$0xff]
    %v5215 = vld [vmem:[%s5142 + $0x240] sm:$0xff]
    %v5216 = vld [vmem:[%s5142 + $0x248] sm:$0xff]
    %v5217 = vld [vmem:[%s5142 + $0x250] sm:$0xff]
    %v5218 = vld [vmem:[%s5142 + $0x258] sm:$0xff]
    %v5219 = vld [vmem:[%s5142 + $0x260] sm:$0xff]
    %v5220 = vld [vmem:[%s5142 + $0x268] sm:$0xff]
    %v5221 = vld [vmem:[%s5142 + $0x270] sm:$0xff]
    %v5222 = vld [vmem:[%s5142 + $0x278] sm:$0xff]
    %v5223 = vld [vmem:[%s5142 + $0x280] sm:$0xff]
    %v5224 = vld [vmem:[%s5142 + $0x288] sm:$0xff]
    %v5225 = vld [vmem:[%s5142 + $0x290] sm:$0xff]
    %v5226 = vld [vmem:[%s5142 + $0x298] sm:$0xff]
    %v5227 = vld [vmem:[%s5142 + $0x2a0] sm:$0xff]
    %v5228 = vld [vmem:[%s5142 + $0x2a8] sm:$0xff]
    %v5229 = vld [vmem:[%s5142 + $0x2b0] sm:$0xff]
    %v5230 = vld [vmem:[%s5142 + $0x2b8] sm:$0xff]
    %v5231 = vld [vmem:[%s5142 + $0x2c0] sm:$0xff]
    %v5232 = vld [vmem:[%s5142 + $0x2c8] sm:$0xff]
    %v5233 = vld [vmem:[%s5142 + $0x2d0] sm:$0xff]
    %v5234 = vld [vmem:[%s5142 + $0x2d8] sm:$0xff]
    %v5235 = vld [vmem:[%s5142 + $0x2e0] sm:$0xff]
    %v5236 = vld [vmem:[%s5142 + $0x2e8] sm:$0xff]
    %v5237 = vld [vmem:[%s5142 + $0x2f0] sm:$0xff]
    %v5238 = vld [vmem:[%s5142 + $0x2f8] sm:$0xff]
    %v5239 = vld [vmem:[%s5142 + $0x300] sm:$0xff]
    %v5240 = vld [vmem:[%s5142 + $0x308] sm:$0xff]
    %v5241 = vld [vmem:[%s5142 + $0x310] sm:$0xff]
    %v5242 = vld [vmem:[%s5142 + $0x318] sm:$0xff]
    %v5243 = vld [vmem:[%s5142 + $0x320] sm:$0xff]
    %v5244 = vld [vmem:[%s5142 + $0x328] sm:$0xff]
    %v5245 = vld [vmem:[%s5142 + $0x330] sm:$0xff]
    %v5246 = vld [vmem:[%s5142 + $0x338] sm:$0xff]
    %v5247 = vld [vmem:[%s5142 + $0x340] sm:$0xff]
    %v5248 = vld [vmem:[%s5142 + $0x348] sm:$0xff]
    %v5249 = vld [vmem:[%s5142 + $0x350] sm:$0xff]
    %v5250 = vld [vmem:[%s5142 + $0x358] sm:$0xff]
    %v5251 = vld [vmem:[%s5142 + $0x360] sm:$0xff]
    %v5252 = vld [vmem:[%s5142 + $0x368] sm:$0xff]
    %v5253 = vld [vmem:[%s5142 + $0x370] sm:$0xff]
    %v5254 = vld [vmem:[%s5142 + $0x378] sm:$0xff]
    %v5255 = vld [vmem:[%s5142 + $0x380] sm:$0xff]
    %v5256 = vld [vmem:[%s5142 + $0x388] sm:$0xff]
    %v5257 = vld [vmem:[%s5142 + $0x390] sm:$0xff]
    %v5258 = vld [vmem:[%s5142 + $0x398] sm:$0xff]
    %v5259 = vld [vmem:[%s5142 + $0x3a0] sm:$0xff]
    %v5260 = vld [vmem:[%s5142 + $0x3a8] sm:$0xff]
    %v5261 = vld [vmem:[%s5142 + $0x3b0] sm:$0xff]
    %v5262 = vld [vmem:[%s5142 + $0x3b8] sm:$0xff]
    %v5263 = vld [vmem:[%s5142 + $0x3c0] sm:$0xff]
    %v5264 = vld [vmem:[%s5142 + $0x3c8] sm:$0xff]
    %v5265 = vld [vmem:[%s5142 + $0x3d0] sm:$0xff]
    %v5266 = vld [vmem:[%s5142 + $0x3d8] sm:$0xff]
    %v5267 = vld [vmem:[%s5142 + $0x3e0] sm:$0xff]
    %v5268 = vld [vmem:[%s5142 + $0x3e8] sm:$0xff]
    %v5269 = vld [vmem:[%s5142 + $0x3f0] sm:$0xff]
    %v5270 = vld [vmem:[%s5142 + $0x3f8] sm:$0xff]
    %s5271 = scalar_lea.vmem [#allocation19], 16
    %v5272 = vld [vmem:[%s5271] sm:$0xff]
    %v5273 = vld [vmem:[%s5271 + $0x8] sm:$0xff]
    %v5276 = vlaneseq
    %v5277 = vshrl.u32 %v5276, 7
    %v5278 = vsub.s32 0, %v5277
    %v5279 = vrot.slane %v5272, %v5278
    %v5280 = vlaneseq
    %v5281 = vshrl.u32 %v5280, 7
    %v5282 = vsub.s32 1, %v5281
    %v5283 = vrot.slane %v5272, %v5282
    %v5284 = vlaneseq
    %v5285 = vshrl.u32 %v5284, 7
    %v5286 = vsub.s32 2, %v5285
    %v5287 = vrot.slane %v5272, %v5286
    %v5288 = vlaneseq
    %v5289 = vshrl.u32 %v5288, 7
    %v5290 = vsub.s32 3, %v5289
    %v5291 = vrot.slane %v5272, %v5290
    %v5292 = vlaneseq
    %v5293 = vshrl.u32 %v5292, 7
    %v5294 = vsub.s32 4, %v5293
    %v5295 = vrot.slane %v5272, %v5294
    %v5296 = vlaneseq
    %v5297 = vshrl.u32 %v5296, 7
    %v5298 = vsub.s32 5, %v5297
    %v5299 = vrot.slane %v5272, %v5298
    %v5300 = vlaneseq
    %v5301 = vshrl.u32 %v5300, 7
    %v5302 = vsub.s32 6, %v5301
    %v5303 = vrot.slane %v5272, %v5302
    %v5304 = vlaneseq
    %v5305 = vshrl.u32 %v5304, 7
    %v5306 = vsub.s32 7, %v5305
    %v5307 = vrot.slane %v5272, %v5306
    %v5308 = vlaneseq
    %v5309 = vshrl.u32 %v5308, 7
    %v5310 = vsub.s32 0, %v5309
    %v5311 = vrot.slane %v5273, %v5310
    %v5312 = vlaneseq
    %v5313 = vshrl.u32 %v5312, 7
    %v5314 = vsub.s32 1, %v5313
    %v5315 = vrot.slane %v5273, %v5314
    %v5316 = vlaneseq
    %v5317 = vshrl.u32 %v5316, 7
    %v5318 = vsub.s32 2, %v5317
    %v5319 = vrot.slane %v5273, %v5318
    %v5320 = vlaneseq
    %v5321 = vshrl.u32 %v5320, 7
    %v5322 = vsub.s32 3, %v5321
    %v5323 = vrot.slane %v5273, %v5322
    %v5324 = vlaneseq
    %v5325 = vshrl.u32 %v5324, 7
    %v5326 = vsub.s32 4, %v5325
    %v5327 = vrot.slane %v5273, %v5326
    %v5328 = vlaneseq
    %v5329 = vshrl.u32 %v5328, 7
    %v5330 = vsub.s32 5, %v5329
    %v5331 = vrot.slane %v5273, %v5330
    %v5332 = vlaneseq
    %v5333 = vshrl.u32 %v5332, 7
    %v5334 = vsub.s32 6, %v5333
    %v5335 = vrot.slane %v5273, %v5334
    %v5336 = vlaneseq
    %v5337 = vshrl.u32 %v5336, 7
    %v5338 = vsub.s32 7, %v5337
    %v5339 = vrot.slane %v5273, %v5338
    %5356 = vmatprep.subr.mxu0 %v5144
    %5357 = vmatpush1.msra.mxu0 %v5143
    %5358 = vmatprep.subr.mxu0 %v5160
    %5359 = vmatpush1.msra.mxu0 %v5159
    %5360 = vmatprep.subr.mxu0 %v5176
    %5361 = vmatpush1.msra.mxu0 %v5175
    %5362 = vmatprep.subr.mxu0 %v5192
    %5363 = vmatpush1.msra.mxu0 %v5191
    %5364 = vmatprep.subr.mxu0 %v5208
    %5365 = vmatpush1.msra.mxu0 %v5207
    %5366 = vmatprep.subr.mxu0 %v5224
    %5367 = vmatpush1.msra.mxu0 %v5223
    %5368 = vmatprep.subr.mxu0 %v5240
    %5369 = vmatpush1.msra.mxu0 %v5239
    %5370 = vmatprep.subr.mxu0 %v5256
    %5371 = vmatpush1.msra.mxu0 %v5255
    %5372 = vmatprep.subr.mxu0 0.0
    %5373 = vmatpush1.msra.mxu0 0.0
    %5374 = vmatprep.subr.mxu0 0.0
    %5375 = vmatpush1.msra.mxu0 0.0
    %5376 = vmatprep.subr.mxu0 0.0
    %5377 = vmatpush1.msra.mxu0 0.0
    %5378 = vmatprep.subr.mxu0 0.0
    %5379 = vmatpush1.msra.mxu0 0.0
    %5380 = vmatprep.subr.mxu0 0.0
    %5381 = vmatpush1.msra.mxu0 0.0
    %5382 = vmatprep.subr.mxu0 0.0
    %5383 = vmatpush1.msra.mxu0 0.0
    %5384 = vmatprep.subr.mxu0 0.0
    %5385 = vmatpush1.msra.mxu0 0.0
    %5386 = vmatprep.subr.mxu0 0.0
    %5387 = vmatpush1.msra.mxu0 0.0
    %5388 = vmatprep.subr.mxu0 0.0
    %5389 = vmatpush1.msra.mxu0 0.0
    %5390 = vmatprep.subr.mxu0 0.0
    %5391 = vmatpush1.msra.mxu0 0.0
    %5392 = vmatprep.subr.mxu0 0.0
    %5393 = vmatpush1.msra.mxu0 0.0
    %5394 = vmatprep.subr.mxu0 0.0
    %5395 = vmatpush1.msra.mxu0 0.0
    %5396 = vmatprep.subr.mxu0 0.0
    %5397 = vmatpush1.msra.mxu0 0.0
    %5398 = vmatprep.subr.mxu0 0.0
    %5399 = vmatpush1.msra.mxu0 0.0
    %5400 = vmatprep.subr.mxu0 0.0
    %5401 = vmatpush1.msra.mxu0 0.0
    %5402 = vmatprep.subr.mxu0 0.0
    %5403 = vmatpush1.msra.mxu0 0.0
    %5404 = vmatprep.subr.mxu0 0.0
    %5405 = vmatpush1.msra.mxu0 0.0
    %5406 = vmatprep.subr.mxu0 0.0
    %5407 = vmatpush1.msra.mxu0 0.0
    %5408 = vmatprep.subr.mxu0 0.0
    %5409 = vmatpush1.msra.mxu0 0.0
    %5410 = vmatprep.subr.mxu0 0.0
    %5411 = vmatpush1.msra.mxu0 0.0
    %5412 = vmatprep.subr.mxu0 0.0
    %5413 = vmatpush1.msra.mxu0 0.0
    %5414 = vmatprep.subr.mxu0 0.0
    %5415 = vmatpush1.msra.mxu0 0.0
    %5416 = vmatprep.subr.mxu0 0.0
    %5417 = vmatpush1.msra.mxu0 0.0
    %5418 = vmatprep.subr.mxu0 0.0
    %5419 = vmatpush1.msra.mxu0 0.0
    %5420 = vmatprep.mubr.f32.mxu0 0.0
    %5421 = vmatmul.mubr.f32.gmra.mrb[0].mxu0 %v717
    %v5422 = vpop.f32.mrb[0].mxu0
    %v5423 = vadd.f32 %v5279, %v5422
    %v5424 = vpop.f32.mrb[0].mxu0
    %v5425 = vadd.f32 %v5283, %v5424
    %5426 = vdwg.mxu0
    %5427 = vmatprep.subr.mxu0 %v5146
    %5428 = vmatpush1.msra.mxu0 %v5145
    %5429 = vmatprep.subr.mxu0 %v5162
    %5430 = vmatpush1.msra.mxu0 %v5161
    %5431 = vmatprep.subr.mxu0 %v5178
    %5432 = vmatpush1.msra.mxu0 %v5177
    %5433 = vmatprep.subr.mxu0 %v5194
    %5434 = vmatpush1.msra.mxu0 %v5193
    %5435 = vmatprep.subr.mxu0 %v5210
    %5436 = vmatpush1.msra.mxu0 %v5209
    %5437 = vmatprep.subr.mxu0 %v5226
    %5438 = vmatpush1.msra.mxu0 %v5225
    %5439 = vmatprep.subr.mxu0 %v5242
    %5440 = vmatpush1.msra.mxu0 %v5241
    %5441 = vmatprep.subr.mxu0 %v5258
    %5442 = vmatpush1.msra.mxu0 %v5257
    %5443 = vmatprep.subr.mxu0 0.0
    %5444 = vmatpush1.msra.mxu0 0.0
    %5445 = vmatprep.subr.mxu0 0.0
    %5446 = vmatpush1.msra.mxu0 0.0
    %5447 = vmatprep.subr.mxu0 0.0
    %5448 = vmatpush1.msra.mxu0 0.0
    %5449 = vmatprep.subr.mxu0 0.0
    %5450 = vmatpush1.msra.mxu0 0.0
    %5451 = vmatprep.subr.mxu0 0.0
    %5452 = vmatpush1.msra.mxu0 0.0
    %5453 = vmatprep.subr.mxu0 0.0
    %5454 = vmatpush1.msra.mxu0 0.0
    %5455 = vmatprep.subr.mxu0 0.0
    %5456 = vmatpush1.msra.mxu0 0.0
    %5457 = vmatprep.subr.mxu0 0.0
    %5458 = vmatpush1.msra.mxu0 0.0
    %5459 = vmatprep.subr.mxu0 0.0
    %5460 = vmatpush1.msra.mxu0 0.0
    %5461 = vmatprep.subr.mxu0 0.0
    %5462 = vmatpush1.msra.mxu0 0.0
    %5463 = vmatprep.subr.mxu0 0.0
    %5464 = vmatpush1.msra.mxu0 0.0
    %5465 = vmatprep.subr.mxu0 0.0
    %5466 = vmatpush1.msra.mxu0 0.0
    %5467 = vmatprep.subr.mxu0 0.0
    %5468 = vmatpush1.msra.mxu0 0.0
    %5469 = vmatprep.subr.mxu0 0.0
    %5470 = vmatpush1.msra.mxu0 0.0
    %5471 = vmatprep.subr.mxu0 0.0
    %5472 = vmatpush1.msra.mxu0 0.0
    %5473 = vmatprep.subr.mxu0 0.0
    %5474 = vmatpush1.msra.mxu0 0.0
    %5475 = vmatprep.subr.mxu0 0.0
    %5476 = vmatpush1.msra.mxu0 0.0
    %5477 = vmatprep.subr.mxu0 0.0
    %5478 = vmatpush1.msra.mxu0 0.0
    %5479 = vmatprep.subr.mxu0 0.0
    %5480 = vmatpush1.msra.mxu0 0.0
    %5481 = vmatprep.subr.mxu0 0.0
    %5482 = vmatpush1.msra.mxu0 0.0
    %5483 = vmatprep.subr.mxu0 0.0
    %5484 = vmatpush1.msra.mxu0 0.0
    %5485 = vmatprep.subr.mxu0 0.0
    %5486 = vmatpush1.msra.mxu0 0.0
    %5487 = vmatprep.subr.mxu0 0.0
    %5488 = vmatpush1.msra.mxu0 0.0
    %5489 = vmatprep.subr.mxu0 0.0
    %5490 = vmatpush1.msra.mxu0 0.0
    %5491 = vmatprep.mubr.f32.mxu0 0.0
    %5492 = vmatmul.mubr.f32.gmra.mrb[0].mxu0 %v717
    %v5493 = vpop.f32.mrb[0].mxu0
    %v5494 = vadd.f32 %v5287, %v5493
    %v5495 = vpop.f32.mrb[0].mxu0
    %v5496 = vadd.f32 %v5291, %v5495
    %5497 = vdwg.mxu0
    %5498 = vmatprep.subr.mxu0 %v5148
    %5499 = vmatpush1.msra.mxu0 %v5147
    %5500 = vmatprep.subr.mxu0 %v5164
    %5501 = vmatpush1.msra.mxu0 %v5163
    %5502 = vmatprep.subr.mxu0 %v5180
    %5503 = vmatpush1.msra.mxu0 %v5179
    %5504 = vmatprep.subr.mxu0 %v5196
    %5505 = vmatpush1.msra.mxu0 %v5195
    %5506 = vmatprep.subr.mxu0 %v5212
    %5507 = vmatpush1.msra.mxu0 %v5211
    %5508 = vmatprep.subr.mxu0 %v5228
    %5509 = vmatpush1.msra.mxu0 %v5227
    %5510 = vmatprep.subr.mxu0 %v5244
    %5511 = vmatpush1.msra.mxu0 %v5243
    %5512 = vmatprep.subr.mxu0 %v5260
    %5513 = vmatpush1.msra.mxu0 %v5259
    %5514 = vmatprep.subr.mxu0 0.0
    %5515 = vmatpush1.msra.mxu0 0.0
    %5516 = vmatprep.subr.mxu0 0.0
    %5517 = vmatpush1.msra.mxu0 0.0
    %5518 = vmatprep.subr.mxu0 0.0
    %5519 = vmatpush1.msra.mxu0 0.0
    %5520 = vmatprep.subr.mxu0 0.0
    %5521 = vmatpush1.msra.mxu0 0.0
    %5522 = vmatprep.subr.mxu0 0.0
    %5523 = vmatpush1.msra.mxu0 0.0
    %5524 = vmatprep.subr.mxu0 0.0
    %5525 = vmatpush1.msra.mxu0 0.0
    %5526 = vmatprep.subr.mxu0 0.0
    %5527 = vmatpush1.msra.mxu0 0.0
    %5528 = vmatprep.subr.mxu0 0.0
    %5529 = vmatpush1.msra.mxu0 0.0
    %5530 = vmatprep.subr.mxu0 0.0
    %5531 = vmatpush1.msra.mxu0 0.0
    %5532 = vmatprep.subr.mxu0 0.0
    %5533 = vmatpush1.msra.mxu0 0.0
    %5534 = vmatprep.subr.mxu0 0.0
    %5535 = vmatpush1.msra.mxu0 0.0
    %5536 = vmatprep.subr.mxu0 0.0
    %5537 = vmatpush1.msra.mxu0 0.0
    %5538 = vmatprep.subr.mxu0 0.0
    %5539 = vmatpush1.msra.mxu0 0.0
    %5540 = vmatprep.subr.mxu0 0.0
    %5541 = vmatpush1.msra.mxu0 0.0
    %5542 = vmatprep.subr.mxu0 0.0
    %5543 = vmatpush1.msra.mxu0 0.0
    %5544 = vmatprep.subr.mxu0 0.0
    %5545 = vmatpush1.msra.mxu0 0.0
    %5546 = vmatprep.subr.mxu0 0.0
    %5547 = vmatpush1.msra.mxu0 0.0
    %5548 = vmatprep.subr.mxu0 0.0
    %5549 = vmatpush1.msra.mxu0 0.0
    %5550 = vmatprep.subr.mxu0 0.0
    %5551 = vmatpush1.msra.mxu0 0.0
    %5552 = vmatprep.subr.mxu0 0.0
    %5553 = vmatpush1.msra.mxu0 0.0
    %5554 = vmatprep.subr.mxu0 0.0
    %5555 = vmatpush1.msra.mxu0 0.0
    %5556 = vmatprep.subr.mxu0 0.0
    %5557 = vmatpush1.msra.mxu0 0.0
    %5558 = vmatprep.subr.mxu0 0.0
    %5559 = vmatpush1.msra.mxu0 0.0
    %5560 = vmatprep.subr.mxu0 0.0
    %5561 = vmatpush1.msra.mxu0 0.0
    %5562 = vmatprep.mubr.f32.mxu0 0.0
    %5563 = vmatmul.mubr.f32.gmra.mrb[0].mxu0 %v717
    %v5564 = vpop.f32.mrb[0].mxu0
    %v5565 = vadd.f32 %v5295, %v5564
    %v5566 = vpop.f32.mrb[0].mxu0
    %v5567 = vadd.f32 %v5299, %v5566
    %5568 = vdwg.mxu0
    %5569 = vmatprep.subr.mxu0 %v5150
    %5570 = vmatpush1.msra.mxu0 %v5149
    %5571 = vmatprep.subr.mxu0 %v5166
    %5572 = vmatpush1.msra.mxu0 %v5165
    %5573 = vmatprep.subr.mxu0 %v5182
    %5574 = vmatpush1.msra.mxu0 %v5181
    %5575 = vmatprep.subr.mxu0 %v5198
    %5576 = vmatpush1.msra.mxu0 %v5197
    %5577 = vmatprep.subr.mxu0 %v5214
    %5578 = vmatpush1.msra.mxu0 %v5213
    %5579 = vmatprep.subr.mxu0 %v5230
    %5580 = vmatpush1.msra.mxu0 %v5229
    %5581 = vmatprep.subr.mxu0 %v5246
    %5582 = vmatpush1.msra.mxu0 %v5245
    %5583 = vmatprep.subr.mxu0 %v5262
    %5584 = vmatpush1.msra.mxu0 %v5261
    %5585 = vmatprep.subr.mxu0 0.0
    %5586 = vmatpush1.msra.mxu0 0.0
    %5587 = vmatprep.subr.mxu0 0.0
    %5588 = vmatpush1.msra.mxu0 0.0
    %5589 = vmatprep.subr.mxu0 0.0
    %5590 = vmatpush1.msra.mxu0 0.0
    %5591 = vmatprep.subr.mxu0 0.0
    %5592 = vmatpush1.msra.mxu0 0.0
    %5593 = vmatprep.subr.mxu0 0.0
    %5594 = vmatpush1.msra.mxu0 0.0
    %5595 = vmatprep.subr.mxu0 0.0
    %5596 = vmatpush1.msra.mxu0 0.0
    %5597 = vmatprep.subr.mxu0 0.0
    %5598 = vmatpush1.msra.mxu0 0.0
    %5599 = vmatprep.subr.mxu0 0.0
    %5600 = vmatpush1.msra.mxu0 0.0
    %5601 = vmatprep.subr.mxu0 0.0
    %5602 = vmatpush1.msra.mxu0 0.0
    %5603 = vmatprep.subr.mxu0 0.0
    %5604 = vmatpush1.msra.mxu0 0.0
    %5605 = vmatprep.subr.mxu0 0.0
    %5606 = vmatpush1.msra.mxu0 0.0
    %5607 = vmatprep.subr.mxu0 0.0
    %5608 = vmatpush1.msra.mxu0 0.0
    %5609 = vmatprep.subr.mxu0 0.0
    %5610 = vmatpush1.msra.mxu0 0.0
    %5611 = vmatprep.subr.mxu0 0.0
    %5612 = vmatpush1.msra.mxu0 0.0
    %5613 = vmatprep.subr.mxu0 0.0
    %5614 = vmatpush1.msra.mxu0 0.0
    %5615 = vmatprep.subr.mxu0 0.0
    %5616 = vmatpush1.msra.mxu0 0.0
    %5617 = vmatprep.subr.mxu0 0.0
    %5618 = vmatpush1.msra.mxu0 0.0
    %5619 = vmatprep.subr.mxu0 0.0
    %5620 = vmatpush1.msra.mxu0 0.0
    %5621 = vmatprep.subr.mxu0 0.0
    %5622 = vmatpush1.msra.mxu0 0.0
    %5623 = vmatprep.subr.mxu0 0.0
    %5624 = vmatpush1.msra.mxu0 0.0
    %5625 = vmatprep.subr.mxu0 0.0
    %5626 = vmatpush1.msra.mxu0 0.0
    %5627 = vmatprep.subr.mxu0 0.0
    %5628 = vmatpush1.msra.mxu0 0.0
    %5629 = vmatprep.subr.mxu0 0.0
    %5630 = vmatpush1.msra.mxu0 0.0
    %5631 = vmatprep.subr.mxu0 0.0
    %5632 = vmatpush1.msra.mxu0 0.0
    %5633 = vmatprep.mubr.f32.mxu0 0.0
    %5634 = vmatmul.mubr.f32.gmra.mrb[0].mxu0 %v717
    %v5635 = vpop.f32.mrb[0].mxu0
    %v5636 = vadd.f32 %v5303, %v5635
    %v5637 = vpop.f32.mrb[0].mxu0
    %v5638 = vadd.f32 %v5307, %v5637
    %5639 = vdwg.mxu0
    %5640 = vmatprep.subr.mxu0 %v5152
    %5641 = vmatpush1.msra.mxu0 %v5151
    %5642 = vmatprep.subr.mxu0 %v5168
    %5643 = vmatpush1.msra.mxu0 %v5167
    %5644 = vmatprep.subr.mxu0 %v5184
    %5645 = vmatpush1.msra.mxu0 %v5183
    %5646 = vmatprep.subr.mxu0 %v5200
    %5647 = vmatpush1.msra.mxu0 %v5199
    %5648 = vmatprep.subr.mxu0 %v5216
    %5649 = vmatpush1.msra.mxu0 %v5215
    %5650 = vmatprep.subr.mxu0 %v5232
    %5651 = vmatpush1.msra.mxu0 %v5231
    %5652 = vmatprep.subr.mxu0 %v5248
    %5653 = vmatpush1.msra.mxu0 %v5247
    %5654 = vmatprep.subr.mxu0 %v5264
    %5655 = vmatpush1.msra.mxu0 %v5263
    %5656 = vmatprep.subr.mxu0 0.0
    %5657 = vmatpush1.msra.mxu0 0.0
    %5658 = vmatprep.subr.mxu0 0.0
    %5659 = vmatpush1.msra.mxu0 0.0
    %5660 = vmatprep.subr.mxu0 0.0
    %5661 = vmatpush1.msra.mxu0 0.0
    %5662 = vmatprep.subr.mxu0 0.0
    %5663 = vmatpush1.msra.mxu0 0.0
    %5664 = vmatprep.subr.mxu0 0.0
    %5665 = vmatpush1.msra.mxu0 0.0
    %5666 = vmatprep.subr.mxu0 0.0
    %5667 = vmatpush1.msra.mxu0 0.0
    %5668 = vmatprep.subr.mxu0 0.0
    %5669 = vmatpush1.msra.mxu0 0.0
    %5670 = vmatprep.subr.mxu0 0.0
    %5671 = vmatpush1.msra.mxu0 0.0
    %5672 = vmatprep.subr.mxu0 0.0
    %5673 = vmatpush1.msra.mxu0 0.0
    %5674 = vmatprep.subr.mxu0 0.0
    %5675 = vmatpush1.msra.mxu0 0.0
    %5676 = vmatprep.subr.mxu0 0.0
    %5677 = vmatpush1.msra.mxu0 0.0
    %5678 = vmatprep.subr.mxu0 0.0
    %5679 = vmatpush1.msra.mxu0 0.0
    %5680 = vmatprep.subr.mxu0 0.0
    %5681 = vmatpush1.msra.mxu0 0.0
    %5682 = vmatprep.subr.mxu0 0.0
    %5683 = vmatpush1.msra.mxu0 0.0
    %5684 = vmatprep.subr.mxu0 0.0
    %5685 = vmatpush1.msra.mxu0 0.0
    %5686 = vmatprep.subr.mxu0 0.0
    %5687 = vmatpush1.msra.mxu0 0.0
    %5688 = vmatprep.subr.mxu0 0.0
    %5689 = vmatpush1.msra.mxu0 0.0
    %5690 = vmatprep.subr.mxu0 0.0
    %5691 = vmatpush1.msra.mxu0 0.0
    %5692 = vmatprep.subr.mxu0 0.0
    %5693 = vmatpush1.msra.mxu0 0.0
    %5694 = vmatprep.subr.mxu0 0.0
    %5695 = vmatpush1.msra.mxu0 0.0
    %5696 = vmatprep.subr.mxu0 0.0
    %5697 = vmatpush1.msra.mxu0 0.0
    %5698 = vmatprep.subr.mxu0 0.0
    %5699 = vmatpush1.msra.mxu0 0.0
    %5700 = vmatprep.subr.mxu0 0.0
    %5701 = vmatpush1.msra.mxu0 0.0
    %5702 = vmatprep.subr.mxu0 0.0
    %5703 = vmatpush1.msra.mxu0 0.0
    %5704 = vmatprep.mubr.f32.mxu0 0.0
    %5705 = vmatmul.mubr.f32.gmra.mrb[0].mxu0 %v717
    %v5706 = vpop.f32.mrb[0].mxu0
    %v5707 = vadd.f32 %v5311, %v5706
    %v5708 = vpop.f32.mrb[0].mxu0
    %v5709 = vadd.f32 %v5315, %v5708
    %5710 = vdwg.mxu0
    %5711 = vmatprep.subr.mxu0 %v5154
    %5712 = vmatpush1.msra.mxu0 %v5153
    %5713 = vmatprep.subr.mxu0 %v5170
    %5714 = vmatpush1.msra.mxu0 %v5169
    %5715 = vmatprep.subr.mxu0 %v5186
    %5716 = vmatpush1.msra.mxu0 %v5185
    %5717 = vmatprep.subr.mxu0 %v5202
    %5718 = vmatpush1.msra.mxu0 %v5201
    %5719 = vmatprep.subr.mxu0 %v5218
    %5720 = vmatpush1.msra.mxu0 %v5217
    %5721 = vmatprep.subr.mxu0 %v5234
    %5722 = vmatpush1.msra.mxu0 %v5233
    %5723 = vmatprep.subr.mxu0 %v5250
    %5724 = vmatpush1.msra.mxu0 %v5249
    %5725 = vmatprep.subr.mxu0 %v5266
    %5726 = vmatpush1.msra.mxu0 %v5265
    %5727 = vmatprep.subr.mxu0 0.0
    %5728 = vmatpush1.msra.mxu0 0.0
    %5729 = vmatprep.subr.mxu0 0.0
    %5730 = vmatpush1.msra.mxu0 0.0
    %5731 = vmatprep.subr.mxu0 0.0
    %5732 = vmatpush1.msra.mxu0 0.0
    %5733 = vmatprep.subr.mxu0 0.0
    %5734 = vmatpush1.msra.mxu0 0.0
    %5735 = vmatprep.subr.mxu0 0.0
    %5736 = vmatpush1.msra.mxu0 0.0
    %5737 = vmatprep.subr.mxu0 0.0
    %5738 = vmatpush1.msra.mxu0 0.0
    %5739 = vmatprep.subr.mxu0 0.0
    %5740 = vmatpush1.msra.mxu0 0.0
    %5741 = vmatprep.subr.mxu0 0.0
    %5742 = vmatpush1.msra.mxu0 0.0
    %5743 = vmatprep.subr.mxu0 0.0
    %5744 = vmatpush1.msra.mxu0 0.0
    %5745 = vmatprep.subr.mxu0 0.0
    %5746 = vmatpush1.msra.mxu0 0.0
    %5747 = vmatprep.subr.mxu0 0.0
    %5748 = vmatpush1.msra.mxu0 0.0
    %5749 = vmatprep.subr.mxu0 0.0
    %5750 = vmatpush1.msra.mxu0 0.0
    %5751 = vmatprep.subr.mxu0 0.0
    %5752 = vmatpush1.msra.mxu0 0.0
    %5753 = vmatprep.subr.mxu0 0.0
    %5754 = vmatpush1.msra.mxu0 0.0
    %5755 = vmatprep.subr.mxu0 0.0
    %5756 = vmatpush1.msra.mxu0 0.0
    %5757 = vmatprep.subr.mxu0 0.0
    %5758 = vmatpush1.msra.mxu0 0.0
    %5759 = vmatprep.subr.mxu0 0.0
    %5760 = vmatpush1.msra.mxu0 0.0
    %5761 = vmatprep.subr.mxu0 0.0
    %5762 = vmatpush1.msra.mxu0 0.0
    %5763 = vmatprep.subr.mxu0 0.0
    %5764 = vmatpush1.msra.mxu0 0.0
    %5765 = vmatprep.subr.mxu0 0.0
    %5766 = vmatpush1.msra.mxu0 0.0
    %5767 = vmatprep.subr.mxu0 0.0
    %5768 = vmatpush1.msra.mxu0 0.0
    %5769 = vmatprep.subr.mxu0 0.0
    %5770 = vmatpush1.msra.mxu0 0.0
    %5771 = vmatprep.subr.mxu0 0.0
    %5772 = vmatpush1.msra.mxu0 0.0
    %5773 = vmatprep.subr.mxu0 0.0
    %5774 = vmatpush1.msra.mxu0 0.0
    %5775 = vmatprep.mubr.f32.mxu0 0.0
    %5776 = vmatmul.mubr.f32.gmra.mrb[0].mxu0 %v717
    %v5777 = vpop.f32.mrb[0].mxu0
    %v5778 = vadd.f32 %v5319, %v5777
    %v5779 = vpop.f32.mrb[0].mxu0
    %v5780 = vadd.f32 %v5323, %v5779
    %5781 = vdwg.mxu0
    %5782 = vmatprep.subr.mxu0 %v5156
    %5783 = vmatpush1.msra.mxu0 %v5155
    %5784 = vmatprep.subr.mxu0 %v5172
    %5785 = vmatpush1.msra.mxu0 %v5171
    %5786 = vmatprep.subr.mxu0 %v5188
    %5787 = vmatpush1.msra.mxu0 %v5187
    %5788 = vmatprep.subr.mxu0 %v5204
    %5789 = vmatpush1.msra.mxu0 %v5203
    %5790 = vmatprep.subr.mxu0 %v5220
    %5791 = vmatpush1.msra.mxu0 %v5219
    %5792 = vmatprep.subr.mxu0 %v5236
    %5793 = vmatpush1.msra.mxu0 %v5235
    %5794 = vmatprep.subr.mxu0 %v5252
    %5795 = vmatpush1.msra.mxu0 %v5251
    %5796 = vmatprep.subr.mxu0 %v5268
    %5797 = vmatpush1.msra.mxu0 %v5267
    %5798 = vmatprep.subr.mxu0 0.0
    %5799 = vmatpush1.msra.mxu0 0.0
    %5800 = vmatprep.subr.mxu0 0.0
    %5801 = vmatpush1.msra.mxu0 0.0
    %5802 = vmatprep.subr.mxu0 0.0
    %5803 = vmatpush1.msra.mxu0 0.0
    %5804 = vmatprep.subr.mxu0 0.0
    %5805 = vmatpush1.msra.mxu0 0.0
    %5806 = vmatprep.subr.mxu0 0.0
    %5807 = vmatpush1.msra.mxu0 0.0
    %5808 = vmatprep.subr.mxu0 0.0
    %5809 = vmatpush1.msra.mxu0 0.0
    %5810 = vmatprep.subr.mxu0 0.0
    %5811 = vmatpush1.msra.mxu0 0.0
    %5812 = vmatprep.subr.mxu0 0.0
    %5813 = vmatpush1.msra.mxu0 0.0
    %5814 = vmatprep.subr.mxu0 0.0
    %5815 = vmatpush1.msra.mxu0 0.0
    %5816 = vmatprep.subr.mxu0 0.0
    %5817 = vmatpush1.msra.mxu0 0.0
    %5818 = vmatprep.subr.mxu0 0.0
    %5819 = vmatpush1.msra.mxu0 0.0
    %5820 = vmatprep.subr.mxu0 0.0
    %5821 = vmatpush1.msra.mxu0 0.0
    %5822 = vmatprep.subr.mxu0 0.0
    %5823 = vmatpush1.msra.mxu0 0.0
    %5824 = vmatprep.subr.mxu0 0.0
    %5825 = vmatpush1.msra.mxu0 0.0
    %5826 = vmatprep.subr.mxu0 0.0
    %5827 = vmatpush1.msra.mxu0 0.0
    %5828 = vmatprep.subr.mxu0 0.0
    %5829 = vmatpush1.msra.mxu0 0.0
    %5830 = vmatprep.subr.mxu0 0.0
    %5831 = vmatpush1.msra.mxu0 0.0
    %5832 = vmatprep.subr.mxu0 0.0
    %5833 = vmatpush1.msra.mxu0 0.0
    %5834 = vmatprep.subr.mxu0 0.0
    %5835 = vmatpush1.msra.mxu0 0.0
    %5836 = vmatprep.subr.mxu0 0.0
    %5837 = vmatpush1.msra.mxu0 0.0
    %5838 = vmatprep.subr.mxu0 0.0
    %5839 = vmatpush1.msra.mxu0 0.0
    %5840 = vmatprep.subr.mxu0 0.0
    %5841 = vmatpush1.msra.mxu0 0.0
    %5842 = vmatprep.subr.mxu0 0.0
    %5843 = vmatpush1.msra.mxu0 0.0
    %5844 = vmatprep.subr.mxu0 0.0
    %5845 = vmatpush1.msra.mxu0 0.0
    %5846 = vmatprep.mubr.f32.mxu0 0.0
    %5847 = vmatmul.mubr.f32.gmra.mrb[0].mxu0 %v717
    %v5848 = vpop.f32.mrb[0].mxu0
    %v5849 = vadd.f32 %v5327, %v5848
    %v5850 = vpop.f32.mrb[0].mxu0
    %v5851 = vadd.f32 %v5331, %v5850
    %5852 = vdwg.mxu0
    %5853 = vmatprep.subr.mxu0 %v5158
    %5854 = vmatpush1.msra.mxu0 %v5157
    %5855 = vmatprep.subr.mxu0 %v5174
    %5856 = vmatpush1.msra.mxu0 %v5173
    %5857 = vmatprep.subr.mxu0 %v5190
    %5858 = vmatpush1.msra.mxu0 %v5189
    %5859 = vmatprep.subr.mxu0 %v5206
    %5860 = vmatpush1.msra.mxu0 %v5205
    %5861 = vmatprep.subr.mxu0 %v5222
    %5862 = vmatpush1.msra.mxu0 %v5221
    %5863 = vmatprep.subr.mxu0 %v5238
    %5864 = vmatpush1.msra.mxu0 %v5237
    %5865 = vmatprep.subr.mxu0 %v5254
    %5866 = vmatpush1.msra.mxu0 %v5253
    %5867 = vmatprep.subr.mxu0 %v5270
    %5868 = vmatpush1.msra.mxu0 %v5269
    %5869 = vmatprep.subr.mxu0 0.0
    %5870 = vmatpush1.msra.mxu0 0.0
    %5871 = vmatprep.subr.mxu0 0.0
    %5872 = vmatpush1.msra.mxu0 0.0
    %5873 = vmatprep.subr.mxu0 0.0
    %5874 = vmatpush1.msra.mxu0 0.0
    %5875 = vmatprep.subr.mxu0 0.0
    %5876 = vmatpush1.msra.mxu0 0.0
    %5877 = vmatprep.subr.mxu0 0.0
    %5878 = vmatpush1.msra.mxu0 0.0
    %5879 = vmatprep.subr.mxu0 0.0
    %5880 = vmatpush1.msra.mxu0 0.0
    %5881 = vmatprep.subr.mxu0 0.0
    %5882 = vmatpush1.msra.mxu0 0.0
    %5883 = vmatprep.subr.mxu0 0.0
    %5884 = vmatpush1.msra.mxu0 0.0
    %5885 = vmatprep.subr.mxu0 0.0
    %5886 = vmatpush1.msra.mxu0 0.0
    %5887 = vmatprep.subr.mxu0 0.0
    %5888 = vmatpush1.msra.mxu0 0.0
    %5889 = vmatprep.subr.mxu0 0.0
    %5890 = vmatpush1.msra.mxu0 0.0
    %5891 = vmatprep.subr.mxu0 0.0
    %5892 = vmatpush1.msra.mxu0 0.0
    %5893 = vmatprep.subr.mxu0 0.0
    %5894 = vmatpush1.msra.mxu0 0.0
    %5895 = vmatprep.subr.mxu0 0.0
    %5896 = vmatpush1.msra.mxu0 0.0
    %5897 = vmatprep.subr.mxu0 0.0
    %5898 = vmatpush1.msra.mxu0 0.0
    %5899 = vmatprep.subr.mxu0 0.0
    %5900 = vmatpush1.msra.mxu0 0.0
    %5901 = vmatprep.subr.mxu0 0.0
    %5902 = vmatpush1.msra.mxu0 0.0
    %5903 = vmatprep.subr.mxu0 0.0
    %5904 = vmatpush1.msra.mxu0 0.0
    %5905 = vmatprep.subr.mxu0 0.0
    %5906 = vmatpush1.msra.mxu0 0.0
    %5907 = vmatprep.subr.mxu0 0.0
    %5908 = vmatpush1.msra.mxu0 0.0
    %5909 = vmatprep.subr.mxu0 0.0
    %5910 = vmatpush1.msra.mxu0 0.0
    %5911 = vmatprep.subr.mxu0 0.0
    %5912 = vmatpush1.msra.mxu0 0.0
    %5913 = vmatprep.subr.mxu0 0.0
    %5914 = vmatpush1.msra.mxu0 0.0
    %5915 = vmatprep.subr.mxu0 0.0
    %5916 = vmatpush1.msra.mxu0 0.0
    %5917 = vmatprep.mubr.f32.mxu0 0.0
    %5918 = vmatmul.mubr.f32.gmra.mrb[0].mxu0 %v717
    %v5919 = vpop.f32.mrb[0].mxu0
    %v5920 = vadd.f32 %v5335, %v5919
    %v5921 = vpop.f32.mrb[0].mxu0
    %v5922 = vadd.f32 %v5339, %v5921
    %5923 = vdwg.mxu0
    %vm5924 = vcmp.gt.f32.partialorder %v5423, 0.0
    %vm5925 = vcmp.gt.f32.partialorder %v5425, 0.0
    %vm5926 = vcmp.gt.f32.partialorder %v5494, 0.0
    %vm5927 = vcmp.gt.f32.partialorder %v5496, 0.0
    %vm5928 = vcmp.gt.f32.partialorder %v5565, 0.0
    %vm5929 = vcmp.gt.f32.partialorder %v5567, 0.0
    %vm5930 = vcmp.gt.f32.partialorder %v5636, 0.0
    %vm5931 = vcmp.gt.f32.partialorder %v5638, 0.0
    %vm5932 = vcmp.gt.f32.partialorder %v5707, 0.0
    %vm5933 = vcmp.gt.f32.partialorder %v5709, 0.0
    %vm5934 = vcmp.gt.f32.partialorder %v5778, 0.0
    %vm5935 = vcmp.gt.f32.partialorder %v5780, 0.0
    %vm5936 = vcmp.gt.f32.partialorder %v5849, 0.0
    %vm5937 = vcmp.gt.f32.partialorder %v5851, 0.0
    %vm5938 = vcmp.gt.f32.partialorder %v5920, 0.0
    %vm5939 = vcmp.gt.f32.partialorder %v5922, 0.0
    %v5940 = vmul.f32 %v5423, 0.01
    %v5941 = vmul.f32 %v5425, 0.01
    %v5942 = vmul.f32 %v5494, 0.01
    %v5943 = vmul.f32 %v5496, 0.01
    %v5944 = vmul.f32 %v5565, 0.01
    %v5945 = vmul.f32 %v5567, 0.01
    %v5946 = vmul.f32 %v5636, 0.01
    %v5947 = vmul.f32 %v5638, 0.01
    %v5948 = vmul.f32 %v5707, 0.01
    %v5949 = vmul.f32 %v5709, 0.01
    %v5950 = vmul.f32 %v5778, 0.01
    %v5951 = vmul.f32 %v5780, 0.01
    %v5952 = vmul.f32 %v5849, 0.01
    %v5953 = vmul.f32 %v5851, 0.01
    %v5954 = vmul.f32 %v5920, 0.01
    %v5955 = vmul.f32 %v5922, 0.01
    %v5956 = vsel %vm5924, %v5423, %v5940
    %v5957 = vsel %vm5925, %v5425, %v5941
    %v5958 = vsel %vm5926, %v5494, %v5942
    %v5959 = vsel %vm5927, %v5496, %v5943
    %v5960 = vsel %vm5928, %v5565, %v5944
    %v5961 = vsel %vm5929, %v5567, %v5945
    %v5962 = vsel %vm5930, %v5636, %v5946
    %v5963 = vsel %vm5931, %v5638, %v5947
    %v5964 = vsel %vm5932, %v5707, %v5948
    %v5965 = vsel %vm5933, %v5709, %v5949
    %v5966 = vsel %vm5934, %v5778, %v5950
    %v5967 = vsel %vm5935, %v5780, %v5951
    %v5968 = vsel %vm5936, %v5849, %v5952
    %v5969 = vsel %vm5937, %v5851, %v5953
    %v5970 = vsel %vm5938, %v5920, %v5954
    %v5971 = vsel %vm5939, %v5922, %v5955
    %v5972 = vld [vmem:[#allocation13] sm:$0xff]
    %v5973 = vld [vmem:[#allocation13 + $0x8] sm:$0xff]
    %v5974 = vld [vmem:[#allocation13 + $0x10] sm:$0xff]
    %v5975 = vld [vmem:[#allocation13 + $0x18] sm:$0xff]
    %v5976 = vld [vmem:[#allocation13 + $0x20] sm:$0xff]
    %v5977 = vld [vmem:[#allocation13 + $0x28] sm:$0xff]
    %v5978 = vld [vmem:[#allocation13 + $0x30] sm:$0xff]
    %v5979 = vld [vmem:[#allocation13 + $0x38] sm:$0xff]
    %v5980 = vld [vmem:[#allocation13 + $0x40] sm:$0xff]
    %v5981 = vld [vmem:[#allocation13 + $0x48] sm:$0xff]
    %v5982 = vld [vmem:[#allocation13 + $0x50] sm:$0xff]
    %v5983 = vld [vmem:[#allocation13 + $0x58] sm:$0xff]
    %v5984 = vld [vmem:[#allocation13 + $0x60] sm:$0xff]
    %v5985 = vld [vmem:[#allocation13 + $0x68] sm:$0xff]
    %v5986 = vld [vmem:[#allocation13 + $0x70] sm:$0xff]
    %v5987 = vld [vmem:[#allocation13 + $0x78] sm:$0xff]
    %v5988 = vld [vmem:[#allocation13 + $0x80] sm:$0xff]
    %v5989 = vld [vmem:[#allocation13 + $0x88] sm:$0xff]
    %v5990 = vld [vmem:[#allocation13 + $0x90] sm:$0xff]
    %v5991 = vld [vmem:[#allocation13 + $0x98] sm:$0xff]
    %v5992 = vld [vmem:[#allocation13 + $0xa0] sm:$0xff]
    %v5993 = vld [vmem:[#allocation13 + $0xa8] sm:$0xff]
    %v5994 = vld [vmem:[#allocation13 + $0xb0] sm:$0xff]
    %v5995 = vld [vmem:[#allocation13 + $0xb8] sm:$0xff]
    %v5996 = vld [vmem:[#allocation13 + $0xc0] sm:$0xff]
    %v5997 = vld [vmem:[#allocation13 + $0xc8] sm:$0xff]
    %v5998 = vld [vmem:[#allocation13 + $0xd0] sm:$0xff]
    %v5999 = vld [vmem:[#allocation13 + $0xd8] sm:$0xff]
    %v6000 = vld [vmem:[#allocation13 + $0xe0] sm:$0xff]
    %v6001 = vld [vmem:[#allocation13 + $0xe8] sm:$0xff]
    %v6002 = vld [vmem:[#allocation13 + $0xf0] sm:$0xff]
    %v6003 = vld [vmem:[#allocation13 + $0xf8] sm:$0xff]
    %v6004 = vld [vmem:[#allocation13 + $0x100] sm:$0xff]
    %v6005 = vld [vmem:[#allocation13 + $0x108] sm:$0xff]
    %v6006 = vld [vmem:[#allocation13 + $0x110] sm:$0xff]
    %v6007 = vld [vmem:[#allocation13 + $0x118] sm:$0xff]
    %v6008 = vld [vmem:[#allocation13 + $0x120] sm:$0xff]
    %v6009 = vld [vmem:[#allocation13 + $0x128] sm:$0xff]
    %v6010 = vld [vmem:[#allocation13 + $0x130] sm:$0xff]
    %v6011 = vld [vmem:[#allocation13 + $0x138] sm:$0xff]
    %v6012 = vld [vmem:[#allocation13 + $0x140] sm:$0xff]
    %v6013 = vld [vmem:[#allocation13 + $0x148] sm:$0xff]
    %v6014 = vld [vmem:[#allocation13 + $0x150] sm:$0xff]
    %v6015 = vld [vmem:[#allocation13 + $0x158] sm:$0xff]
    %v6016 = vld [vmem:[#allocation13 + $0x160] sm:$0xff]
    %v6017 = vld [vmem:[#allocation13 + $0x168] sm:$0xff]
    %v6018 = vld [vmem:[#allocation13 + $0x170] sm:$0xff]
    %v6019 = vld [vmem:[#allocation13 + $0x178] sm:$0xff]
    %6020 = vmatprep.subr.mxu0 %v5973
    %6021 = vmatpush1.msra.mxu0 %v5972
    %6022 = vmatprep.subr.mxu0 %v5976
    %6023 = vmatpush1.msra.mxu0 %v5975
    %6024 = vmatprep.subr.mxu0 %v5979
    %6025 = vmatpush1.msra.mxu0 %v5978
    %6026 = vmatprep.subr.mxu0 %v5982
    %6027 = vmatpush1.msra.mxu0 %v5981
    %6028 = vmatprep.subr.mxu0 %v5985
    %6029 = vmatpush1.msra.mxu0 %v5984
    %6030 = vmatprep.subr.mxu0 %v5988
    %6031 = vmatpush1.msra.mxu0 %v5987
    %6032 = vmatprep.subr.mxu0 %v5991
    %6033 = vmatpush1.msra.mxu0 %v5990
    %6034 = vmatprep.subr.mxu0 %v5994
    %6035 = vmatpush1.msra.mxu0 %v5993
    %6036 = vmatprep.subr.mxu0 %v5997
    %6037 = vmatpush1.msra.mxu0 %v5996
    %6038 = vmatprep.subr.mxu0 %v6000
    %6039 = vmatpush1.msra.mxu0 %v5999
    %6040 = vmatprep.subr.mxu0 %v6003
    %6041 = vmatpush1.msra.mxu0 %v6002
    %6042 = vmatprep.subr.mxu0 %v6006
    %6043 = vmatpush1.msra.mxu0 %v6005
    %6044 = vmatprep.subr.mxu0 %v6009
    %6045 = vmatpush1.msra.mxu0 %v6008
    %6046 = vmatprep.subr.mxu0 %v6012
    %6047 = vmatpush1.msra.mxu0 %v6011
    %6048 = vmatprep.subr.mxu0 %v6015
    %6049 = vmatpush1.msra.mxu0 %v6014
    %6050 = vmatprep.subr.mxu0 %v6018
    %6051 = vmatpush1.msra.mxu0 %v6017
    %6052 = vmatprep.subr.mxu0 0.0
    %6053 = vmatpush1.msra.mxu0 0.0
    %6054 = vmatprep.subr.mxu0 0.0
    %6055 = vmatpush1.msra.mxu0 0.0
    %6056 = vmatprep.subr.mxu0 0.0
    %6057 = vmatpush1.msra.mxu0 0.0
    %6058 = vmatprep.subr.mxu0 0.0
    %6059 = vmatpush1.msra.mxu0 0.0
    %6060 = vmatprep.subr.mxu0 0.0
    %6061 = vmatpush1.msra.mxu0 0.0
    %6062 = vmatprep.subr.mxu0 0.0
    %6063 = vmatpush1.msra.mxu0 0.0
    %6064 = vmatprep.subr.mxu0 0.0
    %6065 = vmatpush1.msra.mxu0 0.0
    %6066 = vmatprep.subr.mxu0 0.0
    %6067 = vmatpush1.msra.mxu0 0.0
    %6068 = vmatprep.subr.mxu0 0.0
    %6069 = vmatpush1.msra.mxu0 0.0
    %6070 = vmatprep.subr.mxu0 0.0
    %6071 = vmatpush1.msra.mxu0 0.0
    %6072 = vmatprep.subr.mxu0 0.0
    %6073 = vmatpush1.msra.mxu0 0.0
    %6074 = vmatprep.subr.mxu0 0.0
    %6075 = vmatpush1.msra.mxu0 0.0
    %6076 = vmatprep.subr.mxu0 0.0
    %6077 = vmatpush1.msra.mxu0 0.0
    %6078 = vmatprep.subr.mxu0 0.0
    %6079 = vmatpush1.msra.mxu0 0.0
    %6080 = vmatprep.subr.mxu0 0.0
    %6081 = vmatpush1.msra.mxu0 0.0
    %6082 = vmatprep.subr.mxu0 0.0
    %6083 = vmatpush1.msra.mxu0 0.0
    %6084 = vmatprep.mubr.f32.mxu0 0.0
    %6085 = vmatmul.mubr.f32.gmra.mrb[0].mxu0 %v5956
    %v6086 = vpop.f32.mrb[0].mxu0
    %v6087 = vadd.f32 0.0, %v6086
    %v6088 = vpop.f32.mrb[0].mxu0
    %v6089 = vadd.f32 0.0, %v6088
    %6090 = vmatprep.mubr.f32.mxu0 0.0
    %6091 = vmatmul.mubr.f32.gmra.mrb[0].mxu0 %v5957
    %v6092 = vpop.f32.mrb[0].mxu0
    %v6093 = vadd.f32 0.0, %v6092
    %v6094 = vpop.f32.mrb[0].mxu0
    %v6095 = vadd.f32 0.0, %v6094
    %6096 = vmatprep.mubr.f32.mxu0 0.0
    %6097 = vmatmul.mubr.f32.gmra.mrb[0].mxu0 %v5958
    %v6098 = vpop.f32.mrb[0].mxu0
    %v6099 = vadd.f32 0.0, %v6098
    %v6100 = vpop.f32.mrb[0].mxu0
    %v6101 = vadd.f32 0.0, %v6100
    %6102 = vmatprep.mubr.f32.mxu0 0.0
    %6103 = vmatmul.mubr.f32.gmra.mrb[0].mxu0 %v5959
    %v6104 = vpop.f32.mrb[0].mxu0
    %v6105 = vadd.f32 0.0, %v6104
    %v6106 = vpop.f32.mrb[0].mxu0
    %v6107 = vadd.f32 0.0, %v6106
    %6108 = vmatprep.mubr.f32.mxu0 0.0
    %6109 = vmatmul.mubr.f32.gmra.mrb[0].mxu0 %v5960
    %v6110 = vpop.f32.mrb[0].mxu0
    %v6111 = vadd.f32 0.0, %v6110
    %v6112 = vpop.f32.mrb[0].mxu0
    %v6113 = vadd.f32 0.0, %v6112
    %6114 = vmatprep.mubr.f32.mxu0 0.0
    %6115 = vmatmul.mubr.f32.gmra.mrb[0].mxu0 %v5961
    %v6116 = vpop.f32.mrb[0].mxu0
    %v6117 = vadd.f32 0.0, %v6116
    %v6118 = vpop.f32.mrb[0].mxu0
    %v6119 = vadd.f32 0.0, %v6118
    %6120 = vmatprep.mubr.f32.mxu0 0.0
    %6121 = vmatmul.mubr.f32.gmra.mrb[0].mxu0 %v5962
    %v6122 = vpop.f32.mrb[0].mxu0
    %v6123 = vadd.f32 0.0, %v6122
    %v6124 = vpop.f32.mrb[0].mxu0
    %v6125 = vadd.f32 0.0, %v6124
    %6126 = vmatprep.mubr.f32.mxu0 0.0
    %6127 = vmatmul.mubr.f32.gmra.mrb[0].mxu0 %v5963
    %v6128 = vpop.f32.mrb[0].mxu0
    %v6129 = vadd.f32 0.0, %v6128
    %v6130 = vpop.f32.mrb[0].mxu0
    %v6131 = vadd.f32 0.0, %v6130
    %6132 = vmatprep.mubr.f32.mxu0 0.0
    %6133 = vmatmul.mubr.f32.gmra.mrb[0].mxu0 %v5964
    %v6134 = vpop.f32.mrb[0].mxu0
    %v6135 = vadd.f32 0.0, %v6134
    %v6136 = vpop.f32.mrb[0].mxu0
    %v6137 = vadd.f32 0.0, %v6136
    %6138 = vmatprep.mubr.f32.mxu0 0.0
    %6139 = vmatmul.mubr.f32.gmra.mrb[0].mxu0 %v5965
    %v6140 = vpop.f32.mrb[0].mxu0
    %v6141 = vadd.f32 0.0, %v6140
    %v6142 = vpop.f32.mrb[0].mxu0
    %v6143 = vadd.f32 0.0, %v6142
    %6144 = vmatprep.mubr.f32.mxu0 0.0
    %6145 = vmatmul.mubr.f32.gmra.mrb[0].mxu0 %v5966
    %v6146 = vpop.f32.mrb[0].mxu0
    %v6147 = vadd.f32 0.0, %v6146
    %v6148 = vpop.f32.mrb[0].mxu0
    %v6149 = vadd.f32 0.0, %v6148
    %6150 = vmatprep.mubr.f32.mxu0 0.0
    %6151 = vmatmul.mubr.f32.gmra.mrb[0].mxu0 %v5967
    %v6152 = vpop.f32.mrb[0].mxu0
    %v6153 = vadd.f32 0.0, %v6152
    %v6154 = vpop.f32.mrb[0].mxu0
    %v6155 = vadd.f32 0.0, %v6154
    %6156 = vmatprep.mubr.f32.mxu0 0.0
    %6157 = vmatmul.mubr.f32.gmra.mrb[0].mxu0 %v5968
    %v6158 = vpop.f32.mrb[0].mxu0
    %v6159 = vadd.f32 0.0, %v6158
    %v6160 = vpop.f32.mrb[0].mxu0
    %v6161 = vadd.f32 0.0, %v6160
    %6162 = vmatprep.mubr.f32.mxu0 0.0
    %6163 = vmatmul.mubr.f32.gmra.mrb[0].mxu0 %v5969
    %v6164 = vpop.f32.mrb[0].mxu0
    %v6165 = vadd.f32 0.0, %v6164
    %v6166 = vpop.f32.mrb[0].mxu0
    %v6167 = vadd.f32 0.0, %v6166
    %6168 = vmatprep.mubr.f32.mxu0 0.0
    %6169 = vmatmul.mubr.f32.gmra.mrb[0].mxu0 %v5970
    %v6170 = vpop.f32.mrb[0].mxu0
    %v6171 = vadd.f32 0.0, %v6170
    %v6172 = vpop.f32.mrb[0].mxu0
    %v6173 = vadd.f32 0.0, %v6172
    %6174 = vmatprep.mubr.f32.mxu0 0.0
    %6175 = vmatmul.mubr.f32.gmra.mrb[0].mxu0 %v5971
    %v6176 = vpop.f32.mrb[0].mxu0
    %v6177 = vadd.f32 0.0, %v6176
    %v6178 = vpop.f32.mrb[0].mxu0
    %v6179 = vadd.f32 0.0, %v6178
    %6180 = vdwg.mxu0
    %6181 = vmatprep.subr.mxu0 0.0
    %6182 = vmatpush1.msra.mxu0 %v5974
    %6183 = vmatprep.subr.mxu0 0.0
    %6184 = vmatpush1.msra.mxu0 %v5977
    %6185 = vmatprep.subr.mxu0 0.0
    %6186 = vmatpush1.msra.mxu0 %v5980
    %6187 = vmatprep.subr.mxu0 0.0
    %6188 = vmatpush1.msra.mxu0 %v5983
    %6189 = vmatprep.subr.mxu0 0.0
    %6190 = vmatpush1.msra.mxu0 %v5986
    %6191 = vmatprep.subr.mxu0 0.0
    %6192 = vmatpush1.msra.mxu0 %v5989
    %6193 = vmatprep.subr.mxu0 0.0
    %6194 = vmatpush1.msra.mxu0 %v5992
    %6195 = vmatprep.subr.mxu0 0.0
    %6196 = vmatpush1.msra.mxu0 %v5995
    %6197 = vmatprep.subr.mxu0 0.0
    %6198 = vmatpush1.msra.mxu0 %v5998
    %6199 = vmatprep.subr.mxu0 0.0
    %6200 = vmatpush1.msra.mxu0 %v6001
    %6201 = vmatprep.subr.mxu0 0.0
    %6202 = vmatpush1.msra.mxu0 %v6004
    %6203 = vmatprep.subr.mxu0 0.0
    %6204 = vmatpush1.msra.mxu0 %v6007
    %6205 = vmatprep.subr.mxu0 0.0
    %6206 = vmatpush1.msra.mxu0 %v6010
    %6207 = vmatprep.subr.mxu0 0.0
    %6208 = vmatpush1.msra.mxu0 %v6013
    %6209 = vmatprep.subr.mxu0 0.0
    %6210 = vmatpush1.msra.mxu0 %v6016
    %6211 = vmatprep.subr.mxu0 0.0
    %6212 = vmatpush1.msra.mxu0 %v6019
    %6213 = vmatprep.subr.mxu0 0.0
    %6214 = vmatpush1.msra.mxu0 0.0
    %6215 = vmatprep.subr.mxu0 0.0
    %6216 = vmatpush1.msra.mxu0 0.0
    %6217 = vmatprep.subr.mxu0 0.0
    %6218 = vmatpush1.msra.mxu0 0.0
    %6219 = vmatprep.subr.mxu0 0.0
    %6220 = vmatpush1.msra.mxu0 0.0
    %6221 = vmatprep.subr.mxu0 0.0
    %6222 = vmatpush1.msra.mxu0 0.0
    %6223 = vmatprep.subr.mxu0 0.0
    %6224 = vmatpush1.msra.mxu0 0.0
    %6225 = vmatprep.subr.mxu0 0.0
    %6226 = vmatpush1.msra.mxu0 0.0
    %6227 = vmatprep.subr.mxu0 0.0
    %6228 = vmatpush1.msra.mxu0 0.0
    %6229 = vmatprep.subr.mxu0 0.0
    %6230 = vmatpush1.msra.mxu0 0.0
    %6231 = vmatprep.subr.mxu0 0.0
    %6232 = vmatpush1.msra.mxu0 0.0
    %6233 = vmatprep.subr.mxu0 0.0
    %6234 = vmatpush1.msra.mxu0 0.0
    %6235 = vmatprep.subr.mxu0 0.0
    %6236 = vmatpush1.msra.mxu0 0.0
    %6237 = vmatprep.subr.mxu0 0.0
    %6238 = vmatpush1.msra.mxu0 0.0
    %6239 = vmatprep.subr.mxu0 0.0
    %6240 = vmatpush1.msra.mxu0 0.0
    %6241 = vmatprep.subr.mxu0 0.0
    %6242 = vmatpush1.msra.mxu0 0.0
    %6243 = vmatprep.subr.mxu0 0.0
    %6244 = vmatpush1.msra.mxu0 0.0
    %6245 = vmatprep.mubr.f32.mxu0 0.0
    %6246 = vmatmul.mubr.f32.gmra.mrb[0].mxu0 %v5956
    %v6247 = vpop.f32.mrb[0].mxu0
    %v6248 = vadd.f32 0.0, %v6247
    %v6249 = vpop.f32.mrb[0].mxu0
    %6250 = vmatprep.mubr.f32.mxu0 0.0
    %6251 = vmatmul.mubr.f32.gmra.mrb[0].mxu0 %v5957
    %v6252 = vpop.f32.mrb[0].mxu0
    %v6253 = vadd.f32 0.0, %v6252
    %v6254 = vpop.f32.mrb[0].mxu0
    %6255 = vmatprep.mubr.f32.mxu0 0.0
    %6256 = vmatmul.mubr.f32.gmra.mrb[0].mxu0 %v5958
    %v6257 = vpop.f32.mrb[0].mxu0
    %v6258 = vadd.f32 0.0, %v6257
    %v6259 = vpop.f32.mrb[0].mxu0
    %6260 = vmatprep.mubr.f32.mxu0 0.0
    %6261 = vmatmul.mubr.f32.gmra.mrb[0].mxu0 %v5959
    %v6262 = vpop.f32.mrb[0].mxu0
    %v6263 = vadd.f32 0.0, %v6262
    %v6264 = vpop.f32.mrb[0].mxu0
    %6265 = vmatprep.mubr.f32.mxu0 0.0
    %6266 = vmatmul.mubr.f32.gmra.mrb[0].mxu0 %v5960
    %v6267 = vpop.f32.mrb[0].mxu0
    %v6268 = vadd.f32 0.0, %v6267
    %v6269 = vpop.f32.mrb[0].mxu0
    %6270 = vmatprep.mubr.f32.mxu0 0.0
    %6271 = vmatmul.mubr.f32.gmra.mrb[0].mxu0 %v5961
    %v6272 = vpop.f32.mrb[0].mxu0
    %v6273 = vadd.f32 0.0, %v6272
    %v6274 = vpop.f32.mrb[0].mxu0
    %6275 = vmatprep.mubr.f32.mxu0 0.0
    %6276 = vmatmul.mubr.f32.gmra.mrb[0].mxu0 %v5962
    %v6277 = vpop.f32.mrb[0].mxu0
    %v6278 = vadd.f32 0.0, %v6277
    %v6279 = vpop.f32.mrb[0].mxu0
    %6280 = vmatprep.mubr.f32.mxu0 0.0
    %6281 = vmatmul.mubr.f32.gmra.mrb[0].mxu0 %v5963
    %v6282 = vpop.f32.mrb[0].mxu0
    %v6283 = vadd.f32 0.0, %v6282
    %v6284 = vpop.f32.mrb[0].mxu0
    %6285 = vmatprep.mubr.f32.mxu0 0.0
    %6286 = vmatmul.mubr.f32.gmra.mrb[0].mxu0 %v5964
    %v6287 = vpop.f32.mrb[0].mxu0
    %v6288 = vadd.f32 0.0, %v6287
    %v6289 = vpop.f32.mrb[0].mxu0
    %6290 = vmatprep.mubr.f32.mxu0 0.0
    %6291 = vmatmul.mubr.f32.gmra.mrb[0].mxu0 %v5965
    %v6292 = vpop.f32.mrb[0].mxu0
    %v6293 = vadd.f32 0.0, %v6292
    %v6294 = vpop.f32.mrb[0].mxu0
    %6295 = vmatprep.mubr.f32.mxu0 0.0
    %6296 = vmatmul.mubr.f32.gmra.mrb[0].mxu0 %v5966
    %v6297 = vpop.f32.mrb[0].mxu0
    %v6298 = vadd.f32 0.0, %v6297
    %v6299 = vpop.f32.mrb[0].mxu0
    %6300 = vmatprep.mubr.f32.mxu0 0.0
    %6301 = vmatmul.mubr.f32.gmra.mrb[0].mxu0 %v5967
    %v6302 = vpop.f32.mrb[0].mxu0
    %v6303 = vadd.f32 0.0, %v6302
    %v6304 = vpop.f32.mrb[0].mxu0
    %6305 = vmatprep.mubr.f32.mxu0 0.0
    %6306 = vmatmul.mubr.f32.gmra.mrb[0].mxu0 %v5968
    %v6307 = vpop.f32.mrb[0].mxu0
    %v6308 = vadd.f32 0.0, %v6307
    %v6309 = vpop.f32.mrb[0].mxu0
    %6310 = vmatprep.mubr.f32.mxu0 0.0
    %6311 = vmatmul.mubr.f32.gmra.mrb[0].mxu0 %v5969
    %v6312 = vpop.f32.mrb[0].mxu0
    %v6313 = vadd.f32 0.0, %v6312
    %v6314 = vpop.f32.mrb[0].mxu0
    %6315 = vmatprep.mubr.f32.mxu0 0.0
    %6316 = vmatmul.mubr.f32.gmra.mrb[0].mxu0 %v5970
    %v6317 = vpop.f32.mrb[0].mxu0
    %v6318 = vadd.f32 0.0, %v6317
    %v6319 = vpop.f32.mrb[0].mxu0
    %6320 = vmatprep.mubr.f32.mxu0 0.0
    %6321 = vmatmul.mubr.f32.gmra.mrb[0].mxu0 %v5971
    %v6322 = vpop.f32.mrb[0].mxu0
    %v6323 = vadd.f32 0.0, %v6322
    %v6324 = vpop.f32.mrb[0].mxu0
    %6325 = vdwg.mxu0
    %s6326 = scalar_lea.vmem [#allocation20], 384
    %v6327 = vld [vmem:[%s6326] sm:$0xff]
    %v6328 = vld [vmem:[%s6326 + $0x8] sm:$0xff]
    %v6329 = vld [vmem:[%s6326 + $0x10] sm:$0xff]
    %v6330 = vld [vmem:[%s6326 + $0x18] sm:$0xff]
    %v6331 = vld [vmem:[%s6326 + $0x20] sm:$0xff]
    %v6332 = vld [vmem:[%s6326 + $0x28] sm:$0xff]
    %v6333 = vld [vmem:[%s6326 + $0x30] sm:$0xff]
    %v6334 = vld [vmem:[%s6326 + $0x38] sm:$0xff]
    %v6335 = vld [vmem:[%s6326 + $0x40] sm:$0xff]
    %v6336 = vld [vmem:[%s6326 + $0x48] sm:$0xff]
    %v6337 = vld [vmem:[%s6326 + $0x50] sm:$0xff]
    %v6338 = vld [vmem:[%s6326 + $0x58] sm:$0xff]
    %v6339 = vld [vmem:[%s6326 + $0x60] sm:$0xff]
    %v6340 = vld [vmem:[%s6326 + $0x68] sm:$0xff]
    %v6341 = vld [vmem:[%s6326 + $0x70] sm:$0xff]
    %v6342 = vld [vmem:[%s6326 + $0x78] sm:$0xff]
    %s6343 = scalar_lea.vmem [#allocation20], 512
    %v6344 = vld [vmem:[%s6343] sm:$0xff]
    %v6345 = vld [vmem:[%s6343 + $0x8] sm:$0xff]
    %v6346 = vld [vmem:[%s6343 + $0x10] sm:$0xff]
    %v6347 = vld [vmem:[%s6343 + $0x18] sm:$0xff]
    %v6348 = vld [vmem:[%s6343 + $0x20] sm:$0xff]
    %v6349 = vld [vmem:[%s6343 + $0x28] sm:$0xff]
    %v6350 = vld [vmem:[%s6343 + $0x30] sm:$0xff]
    %v6351 = vld [vmem:[%s6343 + $0x38] sm:$0xff]
    %v6352 = vld [vmem:[%s6343 + $0x40] sm:$0xff]
    %v6353 = vld [vmem:[%s6343 + $0x48] sm:$0xff]
    %v6354 = vld [vmem:[%s6343 + $0x50] sm:$0xff]
    %v6355 = vld [vmem:[%s6343 + $0x58] sm:$0xff]
    %v6356 = vld [vmem:[%s6343 + $0x60] sm:$0xff]
    %v6357 = vld [vmem:[%s6343 + $0x68] sm:$0xff]
    %v6358 = vld [vmem:[%s6343 + $0x70] sm:$0xff]
    %v6359 = vld [vmem:[%s6343 + $0x78] sm:$0xff]
    %6360 = vmatprep.subr.mxu0 0.0
    %6361 = vmatpush1.msra.mxu0 %v6089
    %6362 = vmatprep.subr.mxu0 0.0
    %6363 = vmatpush1.msra.mxu0 %v6095
    %6364 = vmatprep.subr.mxu0 0.0
    %6365 = vmatpush1.msra.mxu0 %v6101
    %6366 = vmatprep.subr.mxu0 0.0
    %6367 = vmatpush1.msra.mxu0 %v6107
    %6368 = vmatprep.subr.mxu0 0.0
    %6369 = vmatpush1.msra.mxu0 %v6113
    %6370 = vmatprep.subr.mxu0 0.0
    %6371 = vmatpush1.msra.mxu0 %v6119
    %6372 = vmatprep.subr.mxu0 0.0
    %6373 = vmatpush1.msra.mxu0 %v6125
    %6374 = vmatprep.subr.mxu0 0.0
    %6375 = vmatpush1.msra.mxu0 %v6131
    %6376 = vmatprep.subr.mxu0 0.0
    %6377 = vmatpush1.msra.mxu0 %v6137
    %6378 = vmatprep.subr.mxu0 0.0
    %6379 = vmatpush1.msra.mxu0 %v6143
    %6380 = vmatprep.subr.mxu0 0.0
    %6381 = vmatpush1.msra.mxu0 %v6149
    %6382 = vmatprep.subr.mxu0 0.0
    %6383 = vmatpush1.msra.mxu0 %v6155
    %6384 = vmatprep.subr.mxu0 0.0
    %6385 = vmatpush1.msra.mxu0 %v6161
    %6386 = vmatprep.subr.mxu0 0.0
    %6387 = vmatpush1.msra.mxu0 %v6167
    %6388 = vmatprep.subr.mxu0 0.0
    %6389 = vmatpush1.msra.mxu0 %v6173
    %6390 = vmatprep.subr.mxu0 0.0
    %6391 = vmatpush1.msra.mxu0 %v6179
    %6392 = vmatprep.subr.mxu0 0.0
    %6393 = vmatpush1.msra.mxu0 0.0
    %6394 = vmatprep.subr.mxu0 0.0
    %6395 = vmatpush1.msra.mxu0 0.0
    %6396 = vmatprep.subr.mxu0 0.0
    %6397 = vmatpush1.msra.mxu0 0.0
    %6398 = vmatprep.subr.mxu0 0.0
    %6399 = vmatpush1.msra.mxu0 0.0
    %6400 = vmatprep.subr.mxu0 0.0
    %6401 = vmatpush1.msra.mxu0 0.0
    %6402 = vmatprep.subr.mxu0 0.0
    %6403 = vmatpush1.msra.mxu0 0.0
    %6404 = vmatprep.subr.mxu0 0.0
    %6405 = vmatpush1.msra.mxu0 0.0
    %6406 = vmatprep.subr.mxu0 0.0
    %6407 = vmatpush1.msra.mxu0 0.0
    %6408 = vmatprep.subr.mxu0 0.0
    %6409 = vmatpush1.msra.mxu0 0.0
    %6410 = vmatprep.subr.mxu0 0.0
    %6411 = vmatpush1.msra.mxu0 0.0
    %6412 = vmatprep.subr.mxu0 0.0
    %6413 = vmatpush1.msra.mxu0 0.0
    %6414 = vmatprep.subr.mxu0 0.0
    %6415 = vmatpush1.msra.mxu0 0.0
    %6416 = vmatprep.subr.mxu0 0.0
    %6417 = vmatpush1.msra.mxu0 0.0
    %6418 = vmatprep.subr.mxu0 0.0
    %6419 = vmatpush1.msra.mxu0 0.0
    %6420 = vmatprep.subr.mxu0 0.0
    %6421 = vmatpush1.msra.mxu0 0.0
    %6422 = vmatprep.subr.mxu0 0.0
    %6423 = vmatpush1.msra.mxu0 0.0
    %6424 = vmatprep.mubr.f32.mxu0 0.0
    %6425 = vmatmul.mubr.f32.gmra.mrb[0].mxu0 %v6344
    %v6426 = vpop.f32.mrb[0].mxu0
    %v6427 = vadd.f32 0.0, %v6426
    %v6428 = vpop.f32.mrb[0].mxu0
    %6429 = vmatprep.mubr.f32.mxu0 0.0
    %6430 = vmatmul.mubr.f32.gmra.mrb[0].mxu0 %v6345
    %v6431 = vpop.f32.mrb[0].mxu0
    %v6432 = vadd.f32 0.0, %v6431
    %v6433 = vpop.f32.mrb[0].mxu0
    %6434 = vmatprep.mubr.f32.mxu0 0.0
    %6435 = vmatmul.mubr.f32.gmra.mrb[0].mxu0 %v6346
    %v6436 = vpop.f32.mrb[0].mxu0
    %v6437 = vadd.f32 0.0, %v6436
    %v6438 = vpop.f32.mrb[0].mxu0
    %6439 = vmatprep.mubr.f32.mxu0 0.0
    %6440 = vmatmul.mubr.f32.gmra.mrb[0].mxu0 %v6347
    %v6441 = vpop.f32.mrb[0].mxu0
    %v6442 = vadd.f32 0.0, %v6441
    %v6443 = vpop.f32.mrb[0].mxu0
    %6444 = vmatprep.mubr.f32.mxu0 0.0
    %6445 = vmatmul.mubr.f32.gmra.mrb[0].mxu0 %v6348
    %v6446 = vpop.f32.mrb[0].mxu0
    %v6447 = vadd.f32 0.0, %v6446
    %v6448 = vpop.f32.mrb[0].mxu0
    %6449 = vmatprep.mubr.f32.mxu0 0.0
    %6450 = vmatmul.mubr.f32.gmra.mrb[0].mxu0 %v6349
    %v6451 = vpop.f32.mrb[0].mxu0
    %v6452 = vadd.f32 0.0, %v6451
    %v6453 = vpop.f32.mrb[0].mxu0
    %6454 = vmatprep.mubr.f32.mxu0 0.0
    %6455 = vmatmul.mubr.f32.gmra.mrb[0].mxu0 %v6350
    %v6456 = vpop.f32.mrb[0].mxu0
    %v6457 = vadd.f32 0.0, %v6456
    %v6458 = vpop.f32.mrb[0].mxu0
    %6459 = vmatprep.mubr.f32.mxu0 0.0
    %6460 = vmatmul.mubr.f32.gmra.mrb[0].mxu0 %v6351
    %v6461 = vpop.f32.mrb[0].mxu0
    %v6462 = vadd.f32 0.0, %v6461
    %v6463 = vpop.f32.mrb[0].mxu0
    %6464 = vmatprep.mubr.f32.mxu0 0.0
    %6465 = vmatmul.mubr.f32.gmra.mrb[0].mxu0 %v6352
    %v6466 = vpop.f32.mrb[0].mxu0
    %v6467 = vadd.f32 0.0, %v6466
    %v6468 = vpop.f32.mrb[0].mxu0
    %6469 = vmatprep.mubr.f32.mxu0 0.0
    %6470 = vmatmul.mubr.f32.gmra.mrb[0].mxu0 %v6353
    %v6471 = vpop.f32.mrb[0].mxu0
    %v6472 = vadd.f32 0.0, %v6471
    %v6473 = vpop.f32.mrb[0].mxu0
    %6474 = vmatprep.mubr.f32.mxu0 0.0
    %6475 = vmatmul.mubr.f32.gmra.mrb[0].mxu0 %v6354
    %v6476 = vpop.f32.mrb[0].mxu0
    %v6477 = vadd.f32 0.0, %v6476
    %v6478 = vpop.f32.mrb[0].mxu0
    %6479 = vmatprep.mubr.f32.mxu0 0.0
    %6480 = vmatmul.mubr.f32.gmra.mrb[0].mxu0 %v6355
    %v6481 = vpop.f32.mrb[0].mxu0
    %v6482 = vadd.f32 0.0, %v6481
    %v6483 = vpop.f32.mrb[0].mxu0
    %6484 = vmatprep.mubr.f32.mxu0 0.0
    %6485 = vmatmul.mubr.f32.gmra.mrb[0].mxu0 %v6356
    %v6486 = vpop.f32.mrb[0].mxu0
    %v6487 = vadd.f32 0.0, %v6486
    %v6488 = vpop.f32.mrb[0].mxu0
    %6489 = vmatprep.mubr.f32.mxu0 0.0
    %6490 = vmatmul.mubr.f32.gmra.mrb[0].mxu0 %v6357
    %v6491 = vpop.f32.mrb[0].mxu0
    %v6492 = vadd.f32 0.0, %v6491
    %v6493 = vpop.f32.mrb[0].mxu0
    %6494 = vmatprep.mubr.f32.mxu0 0.0
    %6495 = vmatmul.mubr.f32.gmra.mrb[0].mxu0 %v6358
    %v6496 = vpop.f32.mrb[0].mxu0
    %v6497 = vadd.f32 0.0, %v6496
    %v6498 = vpop.f32.mrb[0].mxu0
    %6499 = vmatprep.mubr.f32.mxu0 0.0
    %6500 = vmatmul.mubr.f32.gmra.mrb[0].mxu0 %v6359
    %v6501 = vpop.f32.mrb[0].mxu0
    %v6502 = vadd.f32 0.0, %v6501
    %v6503 = vpop.f32.mrb[0].mxu0
    %6504 = vdwg.mxu0
    %6505 = vmatprep.subr.mxu0 0.0
    %6506 = vmatpush1.msra.mxu0 %v6087
    %6507 = vmatprep.subr.mxu0 0.0
    %6508 = vmatpush1.msra.mxu0 %v6093
    %6509 = vmatprep.subr.mxu0 0.0
    %6510 = vmatpush1.msra.mxu0 %v6099
    %6511 = vmatprep.subr.mxu0 0.0
    %6512 = vmatpush1.msra.mxu0 %v6105
    %6513 = vmatprep.subr.mxu0 0.0
    %6514 = vmatpush1.msra.mxu0 %v6111
    %6515 = vmatprep.subr.mxu0 0.0
    %6516 = vmatpush1.msra.mxu0 %v6117
    %6517 = vmatprep.subr.mxu0 0.0
    %6518 = vmatpush1.msra.mxu0 %v6123
    %6519 = vmatprep.subr.mxu0 0.0
    %6520 = vmatpush1.msra.mxu0 %v6129
    %6521 = vmatprep.subr.mxu0 0.0
    %6522 = vmatpush1.msra.mxu0 %v6135
    %6523 = vmatprep.subr.mxu0 0.0
    %6524 = vmatpush1.msra.mxu0 %v6141
    %6525 = vmatprep.subr.mxu0 0.0
    %6526 = vmatpush1.msra.mxu0 %v6147
    %6527 = vmatprep.subr.mxu0 0.0
    %6528 = vmatpush1.msra.mxu0 %v6153
    %6529 = vmatprep.subr.mxu0 0.0
    %6530 = vmatpush1.msra.mxu0 %v6159
    %6531 = vmatprep.subr.mxu0 0.0
    %6532 = vmatpush1.msra.mxu0 %v6165
    %6533 = vmatprep.subr.mxu0 0.0
    %6534 = vmatpush1.msra.mxu0 %v6171
    %6535 = vmatprep.subr.mxu0 0.0
    %6536 = vmatpush1.msra.mxu0 %v6177
    %6537 = vmatprep.subr.mxu0 0.0
    %6538 = vmatpush1.msra.mxu0 0.0
    %6539 = vmatprep.subr.mxu0 0.0
    %6540 = vmatpush1.msra.mxu0 0.0
    %6541 = vmatprep.subr.mxu0 0.0
    %6542 = vmatpush1.msra.mxu0 0.0
    %6543 = vmatprep.subr.mxu0 0.0
    %6544 = vmatpush1.msra.mxu0 0.0
    %6545 = vmatprep.subr.mxu0 0.0
    %6546 = vmatpush1.msra.mxu0 0.0
    %6547 = vmatprep.subr.mxu0 0.0
    %6548 = vmatpush1.msra.mxu0 0.0
    %6549 = vmatprep.subr.mxu0 0.0
    %6550 = vmatpush1.msra.mxu0 0.0
    %6551 = vmatprep.subr.mxu0 0.0
    %6552 = vmatpush1.msra.mxu0 0.0
    %6553 = vmatprep.subr.mxu0 0.0
    %6554 = vmatpush1.msra.mxu0 0.0
    %6555 = vmatprep.subr.mxu0 0.0
    %6556 = vmatpush1.msra.mxu0 0.0
    %6557 = vmatprep.subr.mxu0 0.0
    %6558 = vmatpush1.msra.mxu0 0.0
    %6559 = vmatprep.subr.mxu0 0.0
    %6560 = vmatpush1.msra.mxu0 0.0
    %6561 = vmatprep.subr.mxu0 0.0
    %6562 = vmatpush1.msra.mxu0 0.0
    %6563 = vmatprep.subr.mxu0 0.0
    %6564 = vmatpush1.msra.mxu0 0.0
    %6565 = vmatprep.subr.mxu0 0.0
    %6566 = vmatpush1.msra.mxu0 0.0
    %6567 = vmatprep.subr.mxu0 0.0
    %6568 = vmatpush1.msra.mxu0 0.0
    %6569 = vmatprep.mubr.f32.mxu0 0.0
    %6570 = vmatmul.mubr.f32.gmra.mrb[0].mxu0 %v6327
    %v6571 = vpop.f32.mrb[0].mxu0
    %v6572 = vadd.f32 %v6427, %v6571
    %v6573 = vpop.f32.mrb[0].mxu0
    %6574 = vmatprep.mubr.f32.mxu0 0.0
    %6575 = vmatmul.mubr.f32.gmra.mrb[0].mxu0 %v6328
    %v6576 = vpop.f32.mrb[0].mxu0
    %v6577 = vadd.f32 %v6432, %v6576
    %v6578 = vpop.f32.mrb[0].mxu0
    %6579 = vmatprep.mubr.f32.mxu0 0.0
    %6580 = vmatmul.mubr.f32.gmra.mrb[0].mxu0 %v6329
    %v6581 = vpop.f32.mrb[0].mxu0
    %v6582 = vadd.f32 %v6437, %v6581
    %v6583 = vpop.f32.mrb[0].mxu0
    %6584 = vmatprep.mubr.f32.mxu0 0.0
    %6585 = vmatmul.mubr.f32.gmra.mrb[0].mxu0 %v6330
    %v6586 = vpop.f32.mrb[0].mxu0
    %v6587 = vadd.f32 %v6442, %v6586
    %v6588 = vpop.f32.mrb[0].mxu0
    %6589 = vmatprep.mubr.f32.mxu0 0.0
    %6590 = vmatmul.mubr.f32.gmra.mrb[0].mxu0 %v6331
    %v6591 = vpop.f32.mrb[0].mxu0
    %v6592 = vadd.f32 %v6447, %v6591
    %v6593 = vpop.f32.mrb[0].mxu0
    %6594 = vmatprep.mubr.f32.mxu0 0.0
    %6595 = vmatmul.mubr.f32.gmra.mrb[0].mxu0 %v6332
    %v6596 = vpop.f32.mrb[0].mxu0
    %v6597 = vadd.f32 %v6452, %v6596
    %v6598 = vpop.f32.mrb[0].mxu0
    %6599 = vmatprep.mubr.f32.mxu0 0.0
    %6600 = vmatmul.mubr.f32.gmra.mrb[0].mxu0 %v6333
    %v6601 = vpop.f32.mrb[0].mxu0
    %v6602 = vadd.f32 %v6457, %v6601
    %v6603 = vpop.f32.mrb[0].mxu0
    %6604 = vmatprep.mubr.f32.mxu0 0.0
    %6605 = vmatmul.mubr.f32.gmra.mrb[0].mxu0 %v6334
    %v6606 = vpop.f32.mrb[0].mxu0
    %v6607 = vadd.f32 %v6462, %v6606
    %v6608 = vpop.f32.mrb[0].mxu0
    %6609 = vmatprep.mubr.f32.mxu0 0.0
    %6610 = vmatmul.mubr.f32.gmra.mrb[0].mxu0 %v6335
    %v6611 = vpop.f32.mrb[0].mxu0
    %v6612 = vadd.f32 %v6467, %v6611
    %v6613 = vpop.f32.mrb[0].mxu0
    %6614 = vmatprep.mubr.f32.mxu0 0.0
    %6615 = vmatmul.mubr.f32.gmra.mrb[0].mxu0 %v6336
    %v6616 = vpop.f32.mrb[0].mxu0
    %v6617 = vadd.f32 %v6472, %v6616
    %v6618 = vpop.f32.mrb[0].mxu0
    %6619 = vmatprep.mubr.f32.mxu0 0.0
    %6620 = vmatmul.mubr.f32.gmra.mrb[0].mxu0 %v6337
    %v6621 = vpop.f32.mrb[0].mxu0
    %v6622 = vadd.f32 %v6477, %v6621
    %v6623 = vpop.f32.mrb[0].mxu0
    %6624 = vmatprep.mubr.f32.mxu0 0.0
    %6625 = vmatmul.mubr.f32.gmra.mrb[0].mxu0 %v6338
    %v6626 = vpop.f32.mrb[0].mxu0
    %v6627 = vadd.f32 %v6482, %v6626
    %v6628 = vpop.f32.mrb[0].mxu0
    %6629 = vmatprep.mubr.f32.mxu0 0.0
    %6630 = vmatmul.mubr.f32.gmra.mrb[0].mxu0 %v6339
    %v6631 = vpop.f32.mrb[0].mxu0
    %v6632 = vadd.f32 %v6487, %v6631
    %v6633 = vpop.f32.mrb[0].mxu0
    %6634 = vmatprep.mubr.f32.mxu0 0.0
    %6635 = vmatmul.mubr.f32.gmra.mrb[0].mxu0 %v6340
    %v6636 = vpop.f32.mrb[0].mxu0
    %v6637 = vadd.f32 %v6492, %v6636
    %v6638 = vpop.f32.mrb[0].mxu0
    %6639 = vmatprep.mubr.f32.mxu0 0.0
    %6640 = vmatmul.mubr.f32.gmra.mrb[0].mxu0 %v6341
    %v6641 = vpop.f32.mrb[0].mxu0
    %v6642 = vadd.f32 %v6497, %v6641
    %v6643 = vpop.f32.mrb[0].mxu0
    %6644 = vmatprep.mubr.f32.mxu0 0.0
    %6645 = vmatmul.mubr.f32.gmra.mrb[0].mxu0 %v6342
    %v6646 = vpop.f32.mrb[0].mxu0
    %v6647 = vadd.f32 %v6502, %v6646
    %v6648 = vpop.f32.mrb[0].mxu0
    %6649 = vdwg.mxu0
    %s6650 = scalar_lea.vmem [#allocation20], 640
    %v6651 = vld [vmem:[%s6650] sm:$0xff]
    %v6652 = vld [vmem:[%s6650 + $0x8] sm:$0xff]
    %v6653 = vld [vmem:[%s6650 + $0x10] sm:$0xff]
    %v6654 = vld [vmem:[%s6650 + $0x18] sm:$0xff]
    %v6655 = vld [vmem:[%s6650 + $0x20] sm:$0xff]
    %v6656 = vld [vmem:[%s6650 + $0x28] sm:$0xff]
    %v6657 = vld [vmem:[%s6650 + $0x30] sm:$0xff]
    %v6658 = vld [vmem:[%s6650 + $0x38] sm:$0xff]
    %v6659 = vld [vmem:[%s6650 + $0x40] sm:$0xff]
    %v6660 = vld [vmem:[%s6650 + $0x48] sm:$0xff]
    %v6661 = vld [vmem:[%s6650 + $0x50] sm:$0xff]
    %v6662 = vld [vmem:[%s6650 + $0x58] sm:$0xff]
    %v6663 = vld [vmem:[%s6650 + $0x60] sm:$0xff]
    %v6664 = vld [vmem:[%s6650 + $0x68] sm:$0xff]
    %v6665 = vld [vmem:[%s6650 + $0x70] sm:$0xff]
    %v6666 = vld [vmem:[%s6650 + $0x78] sm:$0xff]
    %6667 = vmatprep.subr.mxu0 0.0
    %6668 = vmatpush1.msra.mxu0 %v6248
    %6669 = vmatprep.subr.mxu0 0.0
    %6670 = vmatpush1.msra.mxu0 %v6253
    %6671 = vmatprep.subr.mxu0 0.0
    %6672 = vmatpush1.msra.mxu0 %v6258
    %6673 = vmatprep.subr.mxu0 0.0
    %6674 = vmatpush1.msra.mxu0 %v6263
    %6675 = vmatprep.subr.mxu0 0.0
    %6676 = vmatpush1.msra.mxu0 %v6268
    %6677 = vmatprep.subr.mxu0 0.0
    %6678 = vmatpush1.msra.mxu0 %v6273
    %6679 = vmatprep.subr.mxu0 0.0
    %6680 = vmatpush1.msra.mxu0 %v6278
    %6681 = vmatprep.subr.mxu0 0.0
    %6682 = vmatpush1.msra.mxu0 %v6283
    %6683 = vmatprep.subr.mxu0 0.0
    %6684 = vmatpush1.msra.mxu0 %v6288
    %6685 = vmatprep.subr.mxu0 0.0
    %6686 = vmatpush1.msra.mxu0 %v6293
    %6687 = vmatprep.subr.mxu0 0.0
    %6688 = vmatpush1.msra.mxu0 %v6298
    %6689 = vmatprep.subr.mxu0 0.0
    %6690 = vmatpush1.msra.mxu0 %v6303
    %6691 = vmatprep.subr.mxu0 0.0
    %6692 = vmatpush1.msra.mxu0 %v6308
    %6693 = vmatprep.subr.mxu0 0.0
    %6694 = vmatpush1.msra.mxu0 %v6313
    %6695 = vmatprep.subr.mxu0 0.0
    %6696 = vmatpush1.msra.mxu0 %v6318
    %6697 = vmatprep.subr.mxu0 0.0
    %6698 = vmatpush1.msra.mxu0 %v6323
    %6699 = vmatprep.subr.mxu0 0.0
    %6700 = vmatpush1.msra.mxu0 0.0
    %6701 = vmatprep.subr.mxu0 0.0
    %6702 = vmatpush1.msra.mxu0 0.0
    %6703 = vmatprep.subr.mxu0 0.0
    %6704 = vmatpush1.msra.mxu0 0.0
    %6705 = vmatprep.subr.mxu0 0.0
    %6706 = vmatpush1.msra.mxu0 0.0
    %6707 = vmatprep.subr.mxu0 0.0
    %6708 = vmatpush1.msra.mxu0 0.0
    %6709 = vmatprep.subr.mxu0 0.0
    %6710 = vmatpush1.msra.mxu0 0.0
    %6711 = vmatprep.subr.mxu0 0.0
    %6712 = vmatpush1.msra.mxu0 0.0
    %6713 = vmatprep.subr.mxu0 0.0
    %6714 = vmatpush1.msra.mxu0 0.0
    %6715 = vmatprep.subr.mxu0 0.0
    %6716 = vmatpush1.msra.mxu0 0.0
    %6717 = vmatprep.subr.mxu0 0.0
    %6718 = vmatpush1.msra.mxu0 0.0
    %6719 = vmatprep.subr.mxu0 0.0
    %6720 = vmatpush1.msra.mxu0 0.0
    %6721 = vmatprep.subr.mxu0 0.0
    %6722 = vmatpush1.msra.mxu0 0.0
    %6723 = vmatprep.subr.mxu0 0.0
    %6724 = vmatpush1.msra.mxu0 0.0
    %6725 = vmatprep.subr.mxu0 0.0
    %6726 = vmatpush1.msra.mxu0 0.0
    %6727 = vmatprep.subr.mxu0 0.0
    %6728 = vmatpush1.msra.mxu0 0.0
    %6729 = vmatprep.subr.mxu0 0.0
    %6730 = vmatpush1.msra.mxu0 0.0
    %6731 = vmatprep.mubr.f32.mxu0 0.0
    %6732 = vmatmul.mubr.f32.gmra.mrb[0].mxu0 %v6651
    %v6733 = vpop.f32.mrb[0].mxu0
    %v6734 = vadd.f32 0.0, %v6733
    %v6735 = vpop.f32.mrb[0].mxu0
    %6736 = vmatprep.mubr.f32.mxu0 0.0
    %6737 = vmatmul.mubr.f32.gmra.mrb[0].mxu0 %v6652
    %v6738 = vpop.f32.mrb[0].mxu0
    %v6739 = vadd.f32 0.0, %v6738
    %v6740 = vpop.f32.mrb[0].mxu0
    %6741 = vmatprep.mubr.f32.mxu0 0.0
    %6742 = vmatmul.mubr.f32.gmra.mrb[0].mxu0 %v6653
    %v6743 = vpop.f32.mrb[0].mxu0
    %v6744 = vadd.f32 0.0, %v6743
    %v6745 = vpop.f32.mrb[0].mxu0
    %6746 = vmatprep.mubr.f32.mxu0 0.0
    %6747 = vmatmul.mubr.f32.gmra.mrb[0].mxu0 %v6654
    %v6748 = vpop.f32.mrb[0].mxu0
    %v6749 = vadd.f32 0.0, %v6748
    %v6750 = vpop.f32.mrb[0].mxu0
    %6751 = vmatprep.mubr.f32.mxu0 0.0
    %6752 = vmatmul.mubr.f32.gmra.mrb[0].mxu0 %v6655
    %v6753 = vpop.f32.mrb[0].mxu0
    %v6754 = vadd.f32 0.0, %v6753
    %v6755 = vpop.f32.mrb[0].mxu0
    %6756 = vmatprep.mubr.f32.mxu0 0.0
    %6757 = vmatmul.mubr.f32.gmra.mrb[0].mxu0 %v6656
    %v6758 = vpop.f32.mrb[0].mxu0
    %v6759 = vadd.f32 0.0, %v6758
    %v6760 = vpop.f32.mrb[0].mxu0
    %6761 = vmatprep.mubr.f32.mxu0 0.0
    %6762 = vmatmul.mubr.f32.gmra.mrb[0].mxu0 %v6657
    %v6763 = vpop.f32.mrb[0].mxu0
    %v6764 = vadd.f32 0.0, %v6763
    %v6765 = vpop.f32.mrb[0].mxu0
    %6766 = vmatprep.mubr.f32.mxu0 0.0
    %6767 = vmatmul.mubr.f32.gmra.mrb[0].mxu0 %v6658
    %v6768 = vpop.f32.mrb[0].mxu0
    %v6769 = vadd.f32 0.0, %v6768
    %v6770 = vpop.f32.mrb[0].mxu0
    %6771 = vmatprep.mubr.f32.mxu0 0.0
    %6772 = vmatmul.mubr.f32.gmra.mrb[0].mxu0 %v6659
    %v6773 = vpop.f32.mrb[0].mxu0
    %v6774 = vadd.f32 0.0, %v6773
    %v6775 = vpop.f32.mrb[0].mxu0
    %6776 = vmatprep.mubr.f32.mxu0 0.0
    %6777 = vmatmul.mubr.f32.gmra.mrb[0].mxu0 %v6660
    %v6778 = vpop.f32.mrb[0].mxu0
    %v6779 = vadd.f32 0.0, %v6778
    %v6780 = vpop.f32.mrb[0].mxu0
    %6781 = vmatprep.mubr.f32.mxu0 0.0
    %6782 = vmatmul.mubr.f32.gmra.mrb[0].mxu0 %v6661
    %v6783 = vpop.f32.mrb[0].mxu0
    %v6784 = vadd.f32 0.0, %v6783
    %v6785 = vpop.f32.mrb[0].mxu0
    %6786 = vmatprep.mubr.f32.mxu0 0.0
    %6787 = vmatmul.mubr.f32.gmra.mrb[0].mxu0 %v6662
    %v6788 = vpop.f32.mrb[0].mxu0
    %v6789 = vadd.f32 0.0, %v6788
    %v6790 = vpop.f32.mrb[0].mxu0
    %6791 = vmatprep.mubr.f32.mxu0 0.0
    %6792 = vmatmul.mubr.f32.gmra.mrb[0].mxu0 %v6663
    %v6793 = vpop.f32.mrb[0].mxu0
    %v6794 = vadd.f32 0.0, %v6793
    %v6795 = vpop.f32.mrb[0].mxu0
    %6796 = vmatprep.mubr.f32.mxu0 0.0
    %6797 = vmatmul.mubr.f32.gmra.mrb[0].mxu0 %v6664
    %v6798 = vpop.f32.mrb[0].mxu0
    %v6799 = vadd.f32 0.0, %v6798
    %v6800 = vpop.f32.mrb[0].mxu0
    %6801 = vmatprep.mubr.f32.mxu0 0.0
    %6802 = vmatmul.mubr.f32.gmra.mrb[0].mxu0 %v6665
    %v6803 = vpop.f32.mrb[0].mxu0
    %v6804 = vadd.f32 0.0, %v6803
    %v6805 = vpop.f32.mrb[0].mxu0
    %6806 = vmatprep.mubr.f32.mxu0 0.0
    %6807 = vmatmul.mubr.f32.gmra.mrb[0].mxu0 %v6666
    %v6808 = vpop.f32.mrb[0].mxu0
    %v6809 = vadd.f32 0.0, %v6808
    %v6810 = vpop.f32.mrb[0].mxu0
    %6811 = vdwg.mxu0
    %v6812 = vadd.f32 %v6572, %v6734
    %v6813 = vadd.f32 %v6577, %v6739
    %v6814 = vadd.f32 %v6582, %v6744
    %v6815 = vadd.f32 %v6587, %v6749
    %v6816 = vadd.f32 %v6592, %v6754
    %v6817 = vadd.f32 %v6597, %v6759
    %v6818 = vadd.f32 %v6602, %v6764
    %v6819 = vadd.f32 %v6607, %v6769
    %v6820 = vadd.f32 %v6612, %v6774
    %v6821 = vadd.f32 %v6617, %v6779
    %v6822 = vadd.f32 %v6622, %v6784
    %v6823 = vadd.f32 %v6627, %v6789
    %v6824 = vadd.f32 %v6632, %v6794
    %v6825 = vadd.f32 %v6637, %v6799
    %v6826 = vadd.f32 %v6642, %v6804
    %v6827 = vadd.f32 %v6647, %v6809
    %s6828 = scalar_lea.vmem %s13, 128
    %v6829 = vld [vmem:[%s6828] sm:$0xff]
    %v6830 = vld [vmem:[%s6828 + $0x8] sm:$0xff]
    %v6831 = vld [vmem:[%s6828 + $0x10] sm:$0xff]
    %v6832 = vld [vmem:[%s6828 + $0x18] sm:$0xff]
    %v6833 = vld [vmem:[%s6828 + $0x20] sm:$0xff]
    %v6834 = vld [vmem:[%s6828 + $0x28] sm:$0xff]
    %v6835 = vld [vmem:[%s6828 + $0x30] sm:$0xff]
    %v6836 = vld [vmem:[%s6828 + $0x38] sm:$0xff]
    %v6837 = vld [vmem:[%s6828 + $0x40] sm:$0xff]
    %v6838 = vld [vmem:[%s6828 + $0x48] sm:$0xff]
    %v6839 = vld [vmem:[%s6828 + $0x50] sm:$0xff]
    %v6840 = vld [vmem:[%s6828 + $0x58] sm:$0xff]
    %v6841 = vld [vmem:[%s6828 + $0x60] sm:$0xff]
    %v6842 = vld [vmem:[%s6828 + $0x68] sm:$0xff]
    %v6843 = vld [vmem:[%s6828 + $0x70] sm:$0xff]
    %v6844 = vld [vmem:[%s6828 + $0x78] sm:$0xff]
    %6846 = vset.pattern.permute.xlu0 0
    %6847 = vperm.xlu0 %6846, %v6829
    %v6848 = vpop.permute.xlu0 %6847
    %6851 = vset.pattern.permute.xlu0 0
    %6852 = vperm.xlu0 %6851, %v6830
    %v6853 = vpop.permute.xlu0 %6852
    %6856 = vset.pattern.permute.xlu0 0
    %6857 = vperm.xlu0 %6856, %v6831
    %v6858 = vpop.permute.xlu0 %6857
    %6861 = vset.pattern.permute.xlu0 0
    %6862 = vperm.xlu0 %6861, %v6832
    %v6863 = vpop.permute.xlu0 %6862
    %6866 = vset.pattern.permute.xlu0 0
    %6867 = vperm.xlu0 %6866, %v6833
    %v6868 = vpop.permute.xlu0 %6867
    %6871 = vset.pattern.permute.xlu0 0
    %6872 = vperm.xlu0 %6871, %v6834
    %v6873 = vpop.permute.xlu0 %6872
    %6876 = vset.pattern.permute.xlu0 0
    %6877 = vperm.xlu0 %6876, %v6835
    %v6878 = vpop.permute.xlu0 %6877
    %6881 = vset.pattern.permute.xlu0 0
    %6882 = vperm.xlu0 %6881, %v6836
    %v6883 = vpop.permute.xlu0 %6882
    %6886 = vset.pattern.permute.xlu0 0
    %6887 = vperm.xlu0 %6886, %v6837
    %v6888 = vpop.permute.xlu0 %6887
    %6891 = vset.pattern.permute.xlu0 0
    %6892 = vperm.xlu0 %6891, %v6838
    %v6893 = vpop.permute.xlu0 %6892
    %6896 = vset.pattern.permute.xlu0 0
    %6897 = vperm.xlu0 %6896, %v6839
    %v6898 = vpop.permute.xlu0 %6897
    %6901 = vset.pattern.permute.xlu0 0
    %6902 = vperm.xlu0 %6901, %v6840
    %v6903 = vpop.permute.xlu0 %6902
    %6906 = vset.pattern.permute.xlu0 0
    %6907 = vperm.xlu0 %6906, %v6841
    %v6908 = vpop.permute.xlu0 %6907
    %6911 = vset.pattern.permute.xlu0 0
    %6912 = vperm.xlu0 %6911, %v6842
    %v6913 = vpop.permute.xlu0 %6912
    %6916 = vset.pattern.permute.xlu0 0
    %6917 = vperm.xlu0 %6916, %v6843
    %v6918 = vpop.permute.xlu0 %6917
    %6921 = vset.pattern.permute.xlu0 0
    %6922 = vperm.xlu0 %6921, %v6844
    %v6923 = vpop.permute.xlu0 %6922
    %v6925 = vadd.f32 %v6812, %v6848
    %v6926 = vadd.f32 %v6813, %v6853
    %v6927 = vadd.f32 %v6814, %v6858
    %v6928 = vadd.f32 %v6815, %v6863
    %v6929 = vadd.f32 %v6816, %v6868
    %v6930 = vadd.f32 %v6817, %v6873
    %v6931 = vadd.f32 %v6818, %v6878
    %v6932 = vadd.f32 %v6819, %v6883
    %v6933 = vadd.f32 %v6820, %v6888
    %v6934 = vadd.f32 %v6821, %v6893
    %v6935 = vadd.f32 %v6822, %v6898
    %v6936 = vadd.f32 %v6823, %v6903
    %v6937 = vadd.f32 %v6824, %v6908
    %v6938 = vadd.f32 %v6825, %v6913
    %v6939 = vadd.f32 %v6826, %v6918
    %v6940 = vadd.f32 %v6827, %v6923
    %vm6941 = vcmp.gt.f32.partialorder %v6925, 0.0
    %vm6942 = vcmp.gt.f32.partialorder %v6926, 0.0
    %vm6943 = vcmp.gt.f32.partialorder %v6927, 0.0
    %vm6944 = vcmp.gt.f32.partialorder %v6928, 0.0
    %vm6945 = vcmp.gt.f32.partialorder %v6929, 0.0
    %vm6946 = vcmp.gt.f32.partialorder %v6930, 0.0
    %vm6947 = vcmp.gt.f32.partialorder %v6931, 0.0
    %vm6948 = vcmp.gt.f32.partialorder %v6932, 0.0
    %vm6949 = vcmp.gt.f32.partialorder %v6933, 0.0
    %vm6950 = vcmp.gt.f32.partialorder %v6934, 0.0
    %vm6951 = vcmp.gt.f32.partialorder %v6935, 0.0
    %vm6952 = vcmp.gt.f32.partialorder %v6936, 0.0
    %vm6953 = vcmp.gt.f32.partialorder %v6937, 0.0
    %vm6954 = vcmp.gt.f32.partialorder %v6938, 0.0
    %vm6955 = vcmp.gt.f32.partialorder %v6939, 0.0
    %vm6956 = vcmp.gt.f32.partialorder %v6940, 0.0
    %v6957 = vmul.f32 %v6925, 0.01
    %v6958 = vmul.f32 %v6926, 0.01
    %v6959 = vmul.f32 %v6927, 0.01
    %v6960 = vmul.f32 %v6928, 0.01
    %v6961 = vmul.f32 %v6929, 0.01
    %v6962 = vmul.f32 %v6930, 0.01
    %v6963 = vmul.f32 %v6931, 0.01
    %v6964 = vmul.f32 %v6932, 0.01
    %v6965 = vmul.f32 %v6933, 0.01
    %v6966 = vmul.f32 %v6934, 0.01
    %v6967 = vmul.f32 %v6935, 0.01
    %v6968 = vmul.f32 %v6936, 0.01
    %v6969 = vmul.f32 %v6937, 0.01
    %v6970 = vmul.f32 %v6938, 0.01
    %v6971 = vmul.f32 %v6939, 0.01
    %v6972 = vmul.f32 %v6940, 0.01
    %v6973 = vsel %vm6941, %v6925, %v6957
    %v6974 = vsel %vm6942, %v6926, %v6958
    %v6975 = vsel %vm6943, %v6927, %v6959
    %v6976 = vsel %vm6944, %v6928, %v6960
    %v6977 = vsel %vm6945, %v6929, %v6961
    %v6978 = vsel %vm6946, %v6930, %v6962
    %v6979 = vsel %vm6947, %v6931, %v6963
    %v6980 = vsel %vm6948, %v6932, %v6964
    %v6981 = vsel %vm6949, %v6933, %v6965
    %v6982 = vsel %vm6950, %v6934, %v6966
    %v6983 = vsel %vm6951, %v6935, %v6967
    %v6984 = vsel %vm6952, %v6936, %v6968
    %v6985 = vsel %vm6953, %v6937, %v6969
    %v6986 = vsel %vm6954, %v6938, %v6970
    %v6987 = vsel %vm6955, %v6939, %v6971
    %v6988 = vsel %vm6956, %v6940, %v6972
    %v6989 = vld [vmem:[#allocation14] sm:$0xff]
    %v6990 = vld [vmem:[#allocation14 + $0x8] sm:$0xff]
    %v6991 = vld [vmem:[#allocation14 + $0x10] sm:$0xff]
    %v6992 = vld [vmem:[#allocation14 + $0x18] sm:$0xff]
    %v6993 = vld [vmem:[#allocation14 + $0x20] sm:$0xff]
    %v6994 = vld [vmem:[#allocation14 + $0x28] sm:$0xff]
    %v6995 = vld [vmem:[#allocation14 + $0x30] sm:$0xff]
    %v6996 = vld [vmem:[#allocation14 + $0x38] sm:$0xff]
    %v6997 = vld [vmem:[#allocation14 + $0x40] sm:$0xff]
    %v6998 = vld [vmem:[#allocation14 + $0x48] sm:$0xff]
    %v6999 = vld [vmem:[#allocation14 + $0x50] sm:$0xff]
    %v7000 = vld [vmem:[#allocation14 + $0x58] sm:$0xff]
    %v7001 = vld [vmem:[#allocation14 + $0x60] sm:$0xff]
    %v7002 = vld [vmem:[#allocation14 + $0x68] sm:$0xff]
    %v7003 = vld [vmem:[#allocation14 + $0x70] sm:$0xff]
    %v7004 = vld [vmem:[#allocation14 + $0x78] sm:$0xff]
    %v7005 = vld [vmem:[#allocation14 + $0x80] sm:$0xff]
    %v7006 = vld [vmem:[#allocation14 + $0x88] sm:$0xff]
    %v7007 = vld [vmem:[#allocation14 + $0x90] sm:$0xff]
    %v7008 = vld [vmem:[#allocation14 + $0x98] sm:$0xff]
    %v7009 = vld [vmem:[#allocation14 + $0xa0] sm:$0xff]
    %v7010 = vld [vmem:[#allocation14 + $0xa8] sm:$0xff]
    %v7011 = vld [vmem:[#allocation14 + $0xb0] sm:$0xff]
    %v7012 = vld [vmem:[#allocation14 + $0xb8] sm:$0xff]
    %v7013 = vld [vmem:[#allocation14 + $0xc0] sm:$0xff]
    %v7014 = vld [vmem:[#allocation14 + $0xc8] sm:$0xff]
    %v7015 = vld [vmem:[#allocation14 + $0xd0] sm:$0xff]
    %v7016 = vld [vmem:[#allocation14 + $0xd8] sm:$0xff]
    %v7017 = vld [vmem:[#allocation14 + $0xe0] sm:$0xff]
    %v7018 = vld [vmem:[#allocation14 + $0xe8] sm:$0xff]
    %v7019 = vld [vmem:[#allocation14 + $0xf0] sm:$0xff]
    %v7020 = vld [vmem:[#allocation14 + $0xf8] sm:$0xff]
    %v7021 = vld [vmem:[#allocation14 + $0x100] sm:$0xff]
    %v7022 = vld [vmem:[#allocation14 + $0x108] sm:$0xff]
    %v7023 = vld [vmem:[#allocation14 + $0x110] sm:$0xff]
    %v7024 = vld [vmem:[#allocation14 + $0x118] sm:$0xff]
    %v7025 = vld [vmem:[#allocation14 + $0x120] sm:$0xff]
    %v7026 = vld [vmem:[#allocation14 + $0x128] sm:$0xff]
    %v7027 = vld [vmem:[#allocation14 + $0x130] sm:$0xff]
    %v7028 = vld [vmem:[#allocation14 + $0x138] sm:$0xff]
    %v7029 = vld [vmem:[#allocation14 + $0x140] sm:$0xff]
    %v7030 = vld [vmem:[#allocation14 + $0x148] sm:$0xff]
    %v7031 = vld [vmem:[#allocation14 + $0x150] sm:$0xff]
    %v7032 = vld [vmem:[#allocation14 + $0x158] sm:$0xff]
    %v7033 = vld [vmem:[#allocation14 + $0x160] sm:$0xff]
    %v7034 = vld [vmem:[#allocation14 + $0x168] sm:$0xff]
    %v7035 = vld [vmem:[#allocation14 + $0x170] sm:$0xff]
    %v7036 = vld [vmem:[#allocation14 + $0x178] sm:$0xff]
    %7037 = vmatprep.subr.mxu0 %v6990
    %7038 = vmatpush1.msra.mxu0 %v6989
    %7039 = vmatprep.subr.mxu0 %v6993
    %7040 = vmatpush1.msra.mxu0 %v6992
    %7041 = vmatprep.subr.mxu0 %v6996
    %7042 = vmatpush1.msra.mxu0 %v6995
    %7043 = vmatprep.subr.mxu0 %v6999
    %7044 = vmatpush1.msra.mxu0 %v6998
    %7045 = vmatprep.subr.mxu0 %v7002
    %7046 = vmatpush1.msra.mxu0 %v7001
    %7047 = vmatprep.subr.mxu0 %v7005
    %7048 = vmatpush1.msra.mxu0 %v7004
    %7049 = vmatprep.subr.mxu0 %v7008
    %7050 = vmatpush1.msra.mxu0 %v7007
    %7051 = vmatprep.subr.mxu0 %v7011
    %7052 = vmatpush1.msra.mxu0 %v7010
    %7053 = vmatprep.subr.mxu0 %v7014
    %7054 = vmatpush1.msra.mxu0 %v7013
    %7055 = vmatprep.subr.mxu0 %v7017
    %7056 = vmatpush1.msra.mxu0 %v7016
    %7057 = vmatprep.subr.mxu0 %v7020
    %7058 = vmatpush1.msra.mxu0 %v7019
    %7059 = vmatprep.subr.mxu0 %v7023
    %7060 = vmatpush1.msra.mxu0 %v7022
    %7061 = vmatprep.subr.mxu0 %v7026
    %7062 = vmatpush1.msra.mxu0 %v7025
    %7063 = vmatprep.subr.mxu0 %v7029
    %7064 = vmatpush1.msra.mxu0 %v7028
    %7065 = vmatprep.subr.mxu0 %v7032
    %7066 = vmatpush1.msra.mxu0 %v7031
    %7067 = vmatprep.subr.mxu0 %v7035
    %7068 = vmatpush1.msra.mxu0 %v7034
    %7069 = vmatprep.subr.mxu0 0.0
    %7070 = vmatpush1.msra.mxu0 0.0
    %7071 = vmatprep.subr.mxu0 0.0
    %7072 = vmatpush1.msra.mxu0 0.0
    %7073 = vmatprep.subr.mxu0 0.0
    %7074 = vmatpush1.msra.mxu0 0.0
    %7075 = vmatprep.subr.mxu0 0.0
    %7076 = vmatpush1.msra.mxu0 0.0
    %7077 = vmatprep.subr.mxu0 0.0
    %7078 = vmatpush1.msra.mxu0 0.0
    %7079 = vmatprep.subr.mxu0 0.0
    %7080 = vmatpush1.msra.mxu0 0.0
    %7081 = vmatprep.subr.mxu0 0.0
    %7082 = vmatpush1.msra.mxu0 0.0
    %7083 = vmatprep.subr.mxu0 0.0
    %7084 = vmatpush1.msra.mxu0 0.0
    %7085 = vmatprep.subr.mxu0 0.0
    %7086 = vmatpush1.msra.mxu0 0.0
    %7087 = vmatprep.subr.mxu0 0.0
    %7088 = vmatpush1.msra.mxu0 0.0
    %7089 = vmatprep.subr.mxu0 0.0
    %7090 = vmatpush1.msra.mxu0 0.0
    %7091 = vmatprep.subr.mxu0 0.0
    %7092 = vmatpush1.msra.mxu0 0.0
    %7093 = vmatprep.subr.mxu0 0.0
    %7094 = vmatpush1.msra.mxu0 0.0
    %7095 = vmatprep.subr.mxu0 0.0
    %7096 = vmatpush1.msra.mxu0 0.0
    %7097 = vmatprep.subr.mxu0 0.0
    %7098 = vmatpush1.msra.mxu0 0.0
    %7099 = vmatprep.subr.mxu0 0.0
    %7100 = vmatpush1.msra.mxu0 0.0
    %7101 = vmatprep.mubr.f32.mxu0 0.0
    %7102 = vmatmul.mubr.f32.gmra.mrb[0].mxu0 %v6973
    %v7103 = vpop.f32.mrb[0].mxu0
    %v7104 = vadd.f32 0.0, %v7103
    %v7105 = vpop.f32.mrb[0].mxu0
    %v7106 = vadd.f32 0.0, %v7105
    %7107 = vmatprep.mubr.f32.mxu0 0.0
    %7108 = vmatmul.mubr.f32.gmra.mrb[0].mxu0 %v6974
    %v7109 = vpop.f32.mrb[0].mxu0
    %v7110 = vadd.f32 0.0, %v7109
    %v7111 = vpop.f32.mrb[0].mxu0
    %v7112 = vadd.f32 0.0, %v7111
    %7113 = vmatprep.mubr.f32.mxu0 0.0
    %7114 = vmatmul.mubr.f32.gmra.mrb[0].mxu0 %v6975
    %v7115 = vpop.f32.mrb[0].mxu0
    %v7116 = vadd.f32 0.0, %v7115
    %v7117 = vpop.f32.mrb[0].mxu0
    %v7118 = vadd.f32 0.0, %v7117
    %7119 = vmatprep.mubr.f32.mxu0 0.0
    %7120 = vmatmul.mubr.f32.gmra.mrb[0].mxu0 %v6976
    %v7121 = vpop.f32.mrb[0].mxu0
    %v7122 = vadd.f32 0.0, %v7121
    %v7123 = vpop.f32.mrb[0].mxu0
    %v7124 = vadd.f32 0.0, %v7123
    %7125 = vmatprep.mubr.f32.mxu0 0.0
    %7126 = vmatmul.mubr.f32.gmra.mrb[0].mxu0 %v6977
    %v7127 = vpop.f32.mrb[0].mxu0
    %v7128 = vadd.f32 0.0, %v7127
    %v7129 = vpop.f32.mrb[0].mxu0
    %v7130 = vadd.f32 0.0, %v7129
    %7131 = vmatprep.mubr.f32.mxu0 0.0
    %7132 = vmatmul.mubr.f32.gmra.mrb[0].mxu0 %v6978
    %v7133 = vpop.f32.mrb[0].mxu0
    %v7134 = vadd.f32 0.0, %v7133
    %v7135 = vpop.f32.mrb[0].mxu0
    %v7136 = vadd.f32 0.0, %v7135
    %7137 = vmatprep.mubr.f32.mxu0 0.0
    %7138 = vmatmul.mubr.f32.gmra.mrb[0].mxu0 %v6979
    %v7139 = vpop.f32.mrb[0].mxu0
    %v7140 = vadd.f32 0.0, %v7139
    %v7141 = vpop.f32.mrb[0].mxu0
    %v7142 = vadd.f32 0.0, %v7141
    %7143 = vmatprep.mubr.f32.mxu0 0.0
    %7144 = vmatmul.mubr.f32.gmra.mrb[0].mxu0 %v6980
    %v7145 = vpop.f32.mrb[0].mxu0
    %v7146 = vadd.f32 0.0, %v7145
    %v7147 = vpop.f32.mrb[0].mxu0
    %v7148 = vadd.f32 0.0, %v7147
    %7149 = vmatprep.mubr.f32.mxu0 0.0
    %7150 = vmatmul.mubr.f32.gmra.mrb[0].mxu0 %v6981
    %v7151 = vpop.f32.mrb[0].mxu0
    %v7152 = vadd.f32 0.0, %v7151
    %v7153 = vpop.f32.mrb[0].mxu0
    %v7154 = vadd.f32 0.0, %v7153
    %7155 = vmatprep.mubr.f32.mxu0 0.0
    %7156 = vmatmul.mubr.f32.gmra.mrb[0].mxu0 %v6982
    %v7157 = vpop.f32.mrb[0].mxu0
    %v7158 = vadd.f32 0.0, %v7157
    %v7159 = vpop.f32.mrb[0].mxu0
    %v7160 = vadd.f32 0.0, %v7159
    %7161 = vmatprep.mubr.f32.mxu0 0.0
    %7162 = vmatmul.mubr.f32.gmra.mrb[0].mxu0 %v6983
    %v7163 = vpop.f32.mrb[0].mxu0
    %v7164 = vadd.f32 0.0, %v7163
    %v7165 = vpop.f32.mrb[0].mxu0
    %v7166 = vadd.f32 0.0, %v7165
    %7167 = vmatprep.mubr.f32.mxu0 0.0
    %7168 = vmatmul.mubr.f32.gmra.mrb[0].mxu0 %v6984
    %v7169 = vpop.f32.mrb[0].mxu0
    %v7170 = vadd.f32 0.0, %v7169
    %v7171 = vpop.f32.mrb[0].mxu0
    %v7172 = vadd.f32 0.0, %v7171
    %7173 = vmatprep.mubr.f32.mxu0 0.0
    %7174 = vmatmul.mubr.f32.gmra.mrb[0].mxu0 %v6985
    %v7175 = vpop.f32.mrb[0].mxu0
    %v7176 = vadd.f32 0.0, %v7175
    %v7177 = vpop.f32.mrb[0].mxu0
    %v7178 = vadd.f32 0.0, %v7177
    %7179 = vmatprep.mubr.f32.mxu0 0.0
    %7180 = vmatmul.mubr.f32.gmra.mrb[0].mxu0 %v6986
    %v7181 = vpop.f32.mrb[0].mxu0
    %v7182 = vadd.f32 0.0, %v7181
    %v7183 = vpop.f32.mrb[0].mxu0
    %v7184 = vadd.f32 0.0, %v7183
    %7185 = vmatprep.mubr.f32.mxu0 0.0
    %7186 = vmatmul.mubr.f32.gmra.mrb[0].mxu0 %v6987
    %v7187 = vpop.f32.mrb[0].mxu0
    %v7188 = vadd.f32 0.0, %v7187
    %v7189 = vpop.f32.mrb[0].mxu0
    %v7190 = vadd.f32 0.0, %v7189
    %7191 = vmatprep.mubr.f32.mxu0 0.0
    %7192 = vmatmul.mubr.f32.gmra.mrb[0].mxu0 %v6988
    %v7193 = vpop.f32.mrb[0].mxu0
    %v7194 = vadd.f32 0.0, %v7193
    %v7195 = vpop.f32.mrb[0].mxu0
    %v7196 = vadd.f32 0.0, %v7195
    %7197 = vdwg.mxu0
    %7198 = vmatprep.subr.mxu0 0.0
    %7199 = vmatpush1.msra.mxu0 %v6991
    %7200 = vmatprep.subr.mxu0 0.0
    %7201 = vmatpush1.msra.mxu0 %v6994
    %7202 = vmatprep.subr.mxu0 0.0
    %7203 = vmatpush1.msra.mxu0 %v6997
    %7204 = vmatprep.subr.mxu0 0.0
    %7205 = vmatpush1.msra.mxu0 %v7000
    %7206 = vmatprep.subr.mxu0 0.0
    %7207 = vmatpush1.msra.mxu0 %v7003
    %7208 = vmatprep.subr.mxu0 0.0
    %7209 = vmatpush1.msra.mxu0 %v7006
    %7210 = vmatprep.subr.mxu0 0.0
    %7211 = vmatpush1.msra.mxu0 %v7009
    %7212 = vmatprep.subr.mxu0 0.0
    %7213 = vmatpush1.msra.mxu0 %v7012
    %7214 = vmatprep.subr.mxu0 0.0
    %7215 = vmatpush1.msra.mxu0 %v7015
    %7216 = vmatprep.subr.mxu0 0.0
    %7217 = vmatpush1.msra.mxu0 %v7018
    %7218 = vmatprep.subr.mxu0 0.0
    %7219 = vmatpush1.msra.mxu0 %v7021
    %7220 = vmatprep.subr.mxu0 0.0
    %7221 = vmatpush1.msra.mxu0 %v7024
    %7222 = vmatprep.subr.mxu0 0.0
    %7223 = vmatpush1.msra.mxu0 %v7027
    %7224 = vmatprep.subr.mxu0 0.0
    %7225 = vmatpush1.msra.mxu0 %v7030
    %7226 = vmatprep.subr.mxu0 0.0
    %7227 = vmatpush1.msra.mxu0 %v7033
    %7228 = vmatprep.subr.mxu0 0.0
    %7229 = vmatpush1.msra.mxu0 %v7036
    %7230 = vmatprep.subr.mxu0 0.0
    %7231 = vmatpush1.msra.mxu0 0.0
    %7232 = vmatprep.subr.mxu0 0.0
    %7233 = vmatpush1.msra.mxu0 0.0
    %7234 = vmatprep.subr.mxu0 0.0
    %7235 = vmatpush1.msra.mxu0 0.0
    %7236 = vmatprep.subr.mxu0 0.0
    %7237 = vmatpush1.msra.mxu0 0.0
    %7238 = vmatprep.subr.mxu0 0.0
    %7239 = vmatpush1.msra.mxu0 0.0
    %7240 = vmatprep.subr.mxu0 0.0
    %7241 = vmatpush1.msra.mxu0 0.0
    %7242 = vmatprep.subr.mxu0 0.0
    %7243 = vmatpush1.msra.mxu0 0.0
    %7244 = vmatprep.subr.mxu0 0.0
    %7245 = vmatpush1.msra.mxu0 0.0
    %7246 = vmatprep.subr.mxu0 0.0
    %7247 = vmatpush1.msra.mxu0 0.0
    %7248 = vmatprep.subr.mxu0 0.0
    %7249 = vmatpush1.msra.mxu0 0.0
    %7250 = vmatprep.subr.mxu0 0.0
    %7251 = vmatpush1.msra.mxu0 0.0
    %7252 = vmatprep.subr.mxu0 0.0
    %7253 = vmatpush1.msra.mxu0 0.0
    %7254 = vmatprep.subr.mxu0 0.0
    %7255 = vmatpush1.msra.mxu0 0.0
    %7256 = vmatprep.subr.mxu0 0.0
    %7257 = vmatpush1.msra.mxu0 0.0
    %7258 = vmatprep.subr.mxu0 0.0
    %7259 = vmatpush1.msra.mxu0 0.0
    %7260 = vmatprep.subr.mxu0 0.0
    %7261 = vmatpush1.msra.mxu0 0.0
    %7262 = vmatprep.mubr.f32.mxu0 0.0
    %7263 = vmatmul.mubr.f32.gmra.mrb[0].mxu0 %v6973
    %v7264 = vpop.f32.mrb[0].mxu0
    %v7265 = vadd.f32 0.0, %v7264
    %v7266 = vpop.f32.mrb[0].mxu0
    %7267 = vmatprep.mubr.f32.mxu0 0.0
    %7268 = vmatmul.mubr.f32.gmra.mrb[0].mxu0 %v6974
    %v7269 = vpop.f32.mrb[0].mxu0
    %v7270 = vadd.f32 0.0, %v7269
    %v7271 = vpop.f32.mrb[0].mxu0
    %7272 = vmatprep.mubr.f32.mxu0 0.0
    %7273 = vmatmul.mubr.f32.gmra.mrb[0].mxu0 %v6975
    %v7274 = vpop.f32.mrb[0].mxu0
    %v7275 = vadd.f32 0.0, %v7274
    %v7276 = vpop.f32.mrb[0].mxu0
    %7277 = vmatprep.mubr.f32.mxu0 0.0
    %7278 = vmatmul.mubr.f32.gmra.mrb[0].mxu0 %v6976
    %v7279 = vpop.f32.mrb[0].mxu0
    %v7280 = vadd.f32 0.0, %v7279
    %v7281 = vpop.f32.mrb[0].mxu0
    %7282 = vmatprep.mubr.f32.mxu0 0.0
    %7283 = vmatmul.mubr.f32.gmra.mrb[0].mxu0 %v6977
    %v7284 = vpop.f32.mrb[0].mxu0
    %v7285 = vadd.f32 0.0, %v7284
    %v7286 = vpop.f32.mrb[0].mxu0
    %7287 = vmatprep.mubr.f32.mxu0 0.0
    %7288 = vmatmul.mubr.f32.gmra.mrb[0].mxu0 %v6978
    %v7289 = vpop.f32.mrb[0].mxu0
    %v7290 = vadd.f32 0.0, %v7289
    %v7291 = vpop.f32.mrb[0].mxu0
    %7292 = vmatprep.mubr.f32.mxu0 0.0
    %7293 = vmatmul.mubr.f32.gmra.mrb[0].mxu0 %v6979
    %v7294 = vpop.f32.mrb[0].mxu0
    %v7295 = vadd.f32 0.0, %v7294
    %v7296 = vpop.f32.mrb[0].mxu0
    %7297 = vmatprep.mubr.f32.mxu0 0.0
    %7298 = vmatmul.mubr.f32.gmra.mrb[0].mxu0 %v6980
    %v7299 = vpop.f32.mrb[0].mxu0
    %v7300 = vadd.f32 0.0, %v7299
    %v7301 = vpop.f32.mrb[0].mxu0
    %7302 = vmatprep.mubr.f32.mxu0 0.0
    %7303 = vmatmul.mubr.f32.gmra.mrb[0].mxu0 %v6981
    %v7304 = vpop.f32.mrb[0].mxu0
    %v7305 = vadd.f32 0.0, %v7304
    %v7306 = vpop.f32.mrb[0].mxu0
    %7307 = vmatprep.mubr.f32.mxu0 0.0
    %7308 = vmatmul.mubr.f32.gmra.mrb[0].mxu0 %v6982
    %v7309 = vpop.f32.mrb[0].mxu0
    %v7310 = vadd.f32 0.0, %v7309
    %v7311 = vpop.f32.mrb[0].mxu0
    %7312 = vmatprep.mubr.f32.mxu0 0.0
    %7313 = vmatmul.mubr.f32.gmra.mrb[0].mxu0 %v6983
    %v7314 = vpop.f32.mrb[0].mxu0
    %v7315 = vadd.f32 0.0, %v7314
    %v7316 = vpop.f32.mrb[0].mxu0
    %7317 = vmatprep.mubr.f32.mxu0 0.0
    %7318 = vmatmul.mubr.f32.gmra.mrb[0].mxu0 %v6984
    %v7319 = vpop.f32.mrb[0].mxu0
    %v7320 = vadd.f32 0.0, %v7319
    %v7321 = vpop.f32.mrb[0].mxu0
    %7322 = vmatprep.mubr.f32.mxu0 0.0
    %7323 = vmatmul.mubr.f32.gmra.mrb[0].mxu0 %v6985
    %v7324 = vpop.f32.mrb[0].mxu0
    %v7325 = vadd.f32 0.0, %v7324
    %v7326 = vpop.f32.mrb[0].mxu0
    %7327 = vmatprep.mubr.f32.mxu0 0.0
    %7328 = vmatmul.mubr.f32.gmra.mrb[0].mxu0 %v6986
    %v7329 = vpop.f32.mrb[0].mxu0
    %v7330 = vadd.f32 0.0, %v7329
    %v7331 = vpop.f32.mrb[0].mxu0
    %7332 = vmatprep.mubr.f32.mxu0 0.0
    %7333 = vmatmul.mubr.f32.gmra.mrb[0].mxu0 %v6987
    %v7334 = vpop.f32.mrb[0].mxu0
    %v7335 = vadd.f32 0.0, %v7334
    %v7336 = vpop.f32.mrb[0].mxu0
    %7337 = vmatprep.mubr.f32.mxu0 0.0
    %7338 = vmatmul.mubr.f32.gmra.mrb[0].mxu0 %v6988
    %v7339 = vpop.f32.mrb[0].mxu0
    %v7340 = vadd.f32 0.0, %v7339
    %v7341 = vpop.f32.mrb[0].mxu0
    %7342 = vdwg.mxu0
    %s7343 = scalar_lea.vmem [#allocation22], 64
    %v7344 = vld [vmem:[%s7343] sm:$0xff]
    %v7345 = vld [vmem:[%s7343 + $0x8] sm:$0xff]
    %v7346 = vld [vmem:[%s7343 + $0x10] sm:$0xff]
    %v7347 = vld [vmem:[%s7343 + $0x18] sm:$0xff]
    %v7348 = vld [vmem:[%s7343 + $0x20] sm:$0xff]
    %v7349 = vld [vmem:[%s7343 + $0x28] sm:$0xff]
    %v7350 = vld [vmem:[%s7343 + $0x30] sm:$0xff]
    %v7351 = vld [vmem:[%s7343 + $0x38] sm:$0xff]
    %s7352 = scalar_lea.vmem %s15, 64
    %v7353 = vld [vmem:[%s7352] sm:$0xff]
    %v7354 = vld [vmem:[%s7352 + $0x8] sm:$0xff]
    %v7355 = vld [vmem:[%s7352 + $0x10] sm:$0xff]
    %v7356 = vld [vmem:[%s7352 + $0x18] sm:$0xff]
    %v7357 = vld [vmem:[%s7352 + $0x20] sm:$0xff]
    %v7358 = vld [vmem:[%s7352 + $0x28] sm:$0xff]
    %v7359 = vld [vmem:[%s7352 + $0x30] sm:$0xff]
    %v7360 = vld [vmem:[%s7352 + $0x38] sm:$0xff]
    %7362 = vset.pattern.permute.xlu0 0
    %7363 = vperm.xlu0 %7362, %v7353
    %v7364 = vpop.permute.xlu0 %7363
    %7367 = vset.pattern.permute.xlu0 0
    %7368 = vperm.xlu0 %7367, %v7354
    %v7369 = vpop.permute.xlu0 %7368
    %7372 = vset.pattern.permute.xlu0 0
    %7373 = vperm.xlu0 %7372, %v7355
    %v7374 = vpop.permute.xlu0 %7373
    %7377 = vset.pattern.permute.xlu0 0
    %7378 = vperm.xlu0 %7377, %v7356
    %v7379 = vpop.permute.xlu0 %7378
    %7382 = vset.pattern.permute.xlu0 0
    %7383 = vperm.xlu0 %7382, %v7357
    %v7384 = vpop.permute.xlu0 %7383
    %7387 = vset.pattern.permute.xlu0 0
    %7388 = vperm.xlu0 %7387, %v7358
    %v7389 = vpop.permute.xlu0 %7388
    %7392 = vset.pattern.permute.xlu0 0
    %7393 = vperm.xlu0 %7392, %v7359
    %v7394 = vpop.permute.xlu0 %7393
    %7397 = vset.pattern.permute.xlu0 0
    %7398 = vperm.xlu0 %7397, %v7360
    %v7399 = vpop.permute.xlu0 %7398
    %7401 = vmatprep.subr.mxu0 %v7106
    %7402 = vmatpush1.msra.mxu0 %v7104
    %7403 = vmatprep.subr.mxu0 %v7112
    %7404 = vmatpush1.msra.mxu0 %v7110
    %7405 = vmatprep.subr.mxu0 %v7118
    %7406 = vmatpush1.msra.mxu0 %v7116
    %7407 = vmatprep.subr.mxu0 %v7124
    %7408 = vmatpush1.msra.mxu0 %v7122
    %7409 = vmatprep.subr.mxu0 %v7130
    %7410 = vmatpush1.msra.mxu0 %v7128
    %7411 = vmatprep.subr.mxu0 %v7136
    %7412 = vmatpush1.msra.mxu0 %v7134
    %7413 = vmatprep.subr.mxu0 %v7142
    %7414 = vmatpush1.msra.mxu0 %v7140
    %7415 = vmatprep.subr.mxu0 %v7148
    %7416 = vmatpush1.msra.mxu0 %v7146
    %7417 = vmatprep.subr.mxu0 %v7154
    %7418 = vmatpush1.msra.mxu0 %v7152
    %7419 = vmatprep.subr.mxu0 %v7160
    %7420 = vmatpush1.msra.mxu0 %v7158
    %7421 = vmatprep.subr.mxu0 %v7166
    %7422 = vmatpush1.msra.mxu0 %v7164
    %7423 = vmatprep.subr.mxu0 %v7172
    %7424 = vmatpush1.msra.mxu0 %v7170
    %7425 = vmatprep.subr.mxu0 %v7178
    %7426 = vmatpush1.msra.mxu0 %v7176
    %7427 = vmatprep.subr.mxu0 %v7184
    %7428 = vmatpush1.msra.mxu0 %v7182
    %7429 = vmatprep.subr.mxu0 %v7190
    %7430 = vmatpush1.msra.mxu0 %v7188
    %7431 = vmatprep.subr.mxu0 %v7196
    %7432 = vmatpush1.msra.mxu0 %v7194
    %7433 = vmatprep.subr.mxu0 0.0
    %7434 = vmatpush1.msra.mxu0 0.0
    %7435 = vmatprep.subr.mxu0 0.0
    %7436 = vmatpush1.msra.mxu0 0.0
    %7437 = vmatprep.subr.mxu0 0.0
    %7438 = vmatpush1.msra.mxu0 0.0
    %7439 = vmatprep.subr.mxu0 0.0
    %7440 = vmatpush1.msra.mxu0 0.0
    %7441 = vmatprep.subr.mxu0 0.0
    %7442 = vmatpush1.msra.mxu0 0.0
    %7443 = vmatprep.subr.mxu0 0.0
    %7444 = vmatpush1.msra.mxu0 0.0
    %7445 = vmatprep.subr.mxu0 0.0
    %7446 = vmatpush1.msra.mxu0 0.0
    %7447 = vmatprep.subr.mxu0 0.0
    %7448 = vmatpush1.msra.mxu0 0.0
    %7449 = vmatprep.subr.mxu0 0.0
    %7450 = vmatpush1.msra.mxu0 0.0
    %7451 = vmatprep.subr.mxu0 0.0
    %7452 = vmatpush1.msra.mxu0 0.0
    %7453 = vmatprep.subr.mxu0 0.0
    %7454 = vmatpush1.msra.mxu0 0.0
    %7455 = vmatprep.subr.mxu0 0.0
    %7456 = vmatpush1.msra.mxu0 0.0
    %7457 = vmatprep.subr.mxu0 0.0
    %7458 = vmatpush1.msra.mxu0 0.0
    %7459 = vmatprep.subr.mxu0 0.0
    %7460 = vmatpush1.msra.mxu0 0.0
    %7461 = vmatprep.subr.mxu0 0.0
    %7462 = vmatpush1.msra.mxu0 0.0
    %7463 = vmatprep.subr.mxu0 0.0
    %7464 = vmatpush1.msra.mxu0 0.0
    %7465 = vmatprep.mubr.f32.mxu0 0.0
    %7466 = vmatmul.mubr.f32.gmra.mrb[0].mxu0 %v7344
    %v7467 = vpop.f32.mrb[0].mxu0
    %v7468 = vadd.f32 %v7364, %v7467
    %v7469 = vpop.f32.mrb[0].mxu0
    %v7470 = vadd.f32 %v7364, %v7469
    %7471 = vmatprep.mubr.f32.mxu0 0.0
    %7472 = vmatmul.mubr.f32.gmra.mrb[0].mxu0 %v7345
    %v7473 = vpop.f32.mrb[0].mxu0
    %v7474 = vadd.f32 %v7369, %v7473
    %v7475 = vpop.f32.mrb[0].mxu0
    %v7476 = vadd.f32 %v7369, %v7475
    %7477 = vmatprep.mubr.f32.mxu0 0.0
    %7478 = vmatmul.mubr.f32.gmra.mrb[0].mxu0 %v7346
    %v7479 = vpop.f32.mrb[0].mxu0
    %v7480 = vadd.f32 %v7374, %v7479
    %v7481 = vpop.f32.mrb[0].mxu0
    %v7482 = vadd.f32 %v7374, %v7481
    %7483 = vmatprep.mubr.f32.mxu0 0.0
    %7484 = vmatmul.mubr.f32.gmra.mrb[0].mxu0 %v7347
    %v7485 = vpop.f32.mrb[0].mxu0
    %v7486 = vadd.f32 %v7379, %v7485
    %v7487 = vpop.f32.mrb[0].mxu0
    %v7488 = vadd.f32 %v7379, %v7487
    %7489 = vmatprep.mubr.f32.mxu0 0.0
    %7490 = vmatmul.mubr.f32.gmra.mrb[0].mxu0 %v7348
    %v7491 = vpop.f32.mrb[0].mxu0
    %v7492 = vadd.f32 %v7384, %v7491
    %v7493 = vpop.f32.mrb[0].mxu0
    %v7494 = vadd.f32 %v7384, %v7493
    %7495 = vmatprep.mubr.f32.mxu0 0.0
    %7496 = vmatmul.mubr.f32.gmra.mrb[0].mxu0 %v7349
    %v7497 = vpop.f32.mrb[0].mxu0
    %v7498 = vadd.f32 %v7389, %v7497
    %v7499 = vpop.f32.mrb[0].mxu0
    %v7500 = vadd.f32 %v7389, %v7499
    %7501 = vmatprep.mubr.f32.mxu0 0.0
    %7502 = vmatmul.mubr.f32.gmra.mrb[0].mxu0 %v7350
    %v7503 = vpop.f32.mrb[0].mxu0
    %v7504 = vadd.f32 %v7394, %v7503
    %v7505 = vpop.f32.mrb[0].mxu0
    %v7506 = vadd.f32 %v7394, %v7505
    %7507 = vmatprep.mubr.f32.mxu0 0.0
    %7508 = vmatmul.mubr.f32.gmra.mrb[0].mxu0 %v7351
    %v7509 = vpop.f32.mrb[0].mxu0
    %v7510 = vadd.f32 %v7399, %v7509
    %v7511 = vpop.f32.mrb[0].mxu0
    %v7512 = vadd.f32 %v7399, %v7511
    %7513 = vdwg.mxu0
    %7514 = vmatprep.subr.mxu0 0.0
    %7515 = vmatpush1.msra.mxu0 %v7265
    %7516 = vmatprep.subr.mxu0 0.0
    %7517 = vmatpush1.msra.mxu0 %v7270
    %7518 = vmatprep.subr.mxu0 0.0
    %7519 = vmatpush1.msra.mxu0 %v7275
    %7520 = vmatprep.subr.mxu0 0.0
    %7521 = vmatpush1.msra.mxu0 %v7280
    %7522 = vmatprep.subr.mxu0 0.0
    %7523 = vmatpush1.msra.mxu0 %v7285
    %7524 = vmatprep.subr.mxu0 0.0
    %7525 = vmatpush1.msra.mxu0 %v7290
    %7526 = vmatprep.subr.mxu0 0.0
    %7527 = vmatpush1.msra.mxu0 %v7295
    %7528 = vmatprep.subr.mxu0 0.0
    %7529 = vmatpush1.msra.mxu0 %v7300
    %7530 = vmatprep.subr.mxu0 0.0
    %7531 = vmatpush1.msra.mxu0 %v7305
    %7532 = vmatprep.subr.mxu0 0.0
    %7533 = vmatpush1.msra.mxu0 %v7310
    %7534 = vmatprep.subr.mxu0 0.0
    %7535 = vmatpush1.msra.mxu0 %v7315
    %7536 = vmatprep.subr.mxu0 0.0
    %7537 = vmatpush1.msra.mxu0 %v7320
    %7538 = vmatprep.subr.mxu0 0.0
    %7539 = vmatpush1.msra.mxu0 %v7325
    %7540 = vmatprep.subr.mxu0 0.0
    %7541 = vmatpush1.msra.mxu0 %v7330
    %7542 = vmatprep.subr.mxu0 0.0
    %7543 = vmatpush1.msra.mxu0 %v7335
    %7544 = vmatprep.subr.mxu0 0.0
    %7545 = vmatpush1.msra.mxu0 %v7340
    %7546 = vmatprep.subr.mxu0 0.0
    %7547 = vmatpush1.msra.mxu0 0.0
    %7548 = vmatprep.subr.mxu0 0.0
    %7549 = vmatpush1.msra.mxu0 0.0
    %7550 = vmatprep.subr.mxu0 0.0
    %7551 = vmatpush1.msra.mxu0 0.0
    %7552 = vmatprep.subr.mxu0 0.0
    %7553 = vmatpush1.msra.mxu0 0.0
    %7554 = vmatprep.subr.mxu0 0.0
    %7555 = vmatpush1.msra.mxu0 0.0
    %7556 = vmatprep.subr.mxu0 0.0
    %7557 = vmatpush1.msra.mxu0 0.0
    %7558 = vmatprep.subr.mxu0 0.0
    %7559 = vmatpush1.msra.mxu0 0.0
    %7560 = vmatprep.subr.mxu0 0.0
    %7561 = vmatpush1.msra.mxu0 0.0
    %7562 = vmatprep.subr.mxu0 0.0
    %7563 = vmatpush1.msra.mxu0 0.0
    %7564 = vmatprep.subr.mxu0 0.0
    %7565 = vmatpush1.msra.mxu0 0.0
    %7566 = vmatprep.subr.mxu0 0.0
    %7567 = vmatpush1.msra.mxu0 0.0
    %7568 = vmatprep.subr.mxu0 0.0
    %7569 = vmatpush1.msra.mxu0 0.0
    %7570 = vmatprep.subr.mxu0 0.0
    %7571 = vmatpush1.msra.mxu0 0.0
    %7572 = vmatprep.subr.mxu0 0.0
    %7573 = vmatpush1.msra.mxu0 0.0
    %7574 = vmatprep.subr.mxu0 0.0
    %7575 = vmatpush1.msra.mxu0 0.0
    %7576 = vmatprep.subr.mxu0 0.0
    %7577 = vmatpush1.msra.mxu0 0.0
    %7578 = vmatprep.mubr.f32.mxu0 0.0
    %7579 = vmatmul.mubr.f32.gmra.mrb[0].mxu0 %v7344
    %v7580 = vpop.f32.mrb[0].mxu0
    %v7581 = vadd.f32 %v7364, %v7580
    %v7582 = vpop.f32.mrb[0].mxu0
    %7583 = vmatprep.mubr.f32.mxu0 0.0
    %7584 = vmatmul.mubr.f32.gmra.mrb[0].mxu0 %v7345
    %v7585 = vpop.f32.mrb[0].mxu0
    %v7586 = vadd.f32 %v7369, %v7585
    %v7587 = vpop.f32.mrb[0].mxu0
    %7588 = vmatprep.mubr.f32.mxu0 0.0
    %7589 = vmatmul.mubr.f32.gmra.mrb[0].mxu0 %v7346
    %v7590 = vpop.f32.mrb[0].mxu0
    %v7591 = vadd.f32 %v7374, %v7590
    %v7592 = vpop.f32.mrb[0].mxu0
    %7593 = vmatprep.mubr.f32.mxu0 0.0
    %7594 = vmatmul.mubr.f32.gmra.mrb[0].mxu0 %v7347
    %v7595 = vpop.f32.mrb[0].mxu0
    %v7596 = vadd.f32 %v7379, %v7595
    %v7597 = vpop.f32.mrb[0].mxu0
    %7598 = vmatprep.mubr.f32.mxu0 0.0
    %7599 = vmatmul.mubr.f32.gmra.mrb[0].mxu0 %v7348
    %v7600 = vpop.f32.mrb[0].mxu0
    %v7601 = vadd.f32 %v7384, %v7600
    %v7602 = vpop.f32.mrb[0].mxu0
    %7603 = vmatprep.mubr.f32.mxu0 0.0
    %7604 = vmatmul.mubr.f32.gmra.mrb[0].mxu0 %v7349
    %v7605 = vpop.f32.mrb[0].mxu0
    %v7606 = vadd.f32 %v7389, %v7605
    %v7607 = vpop.f32.mrb[0].mxu0
    %7608 = vmatprep.mubr.f32.mxu0 0.0
    %7609 = vmatmul.mubr.f32.gmra.mrb[0].mxu0 %v7350
    %v7610 = vpop.f32.mrb[0].mxu0
    %v7611 = vadd.f32 %v7394, %v7610
    %v7612 = vpop.f32.mrb[0].mxu0
    %7613 = vmatprep.mubr.f32.mxu0 0.0
    %7614 = vmatmul.mubr.f32.gmra.mrb[0].mxu0 %v7351
    %v7615 = vpop.f32.mrb[0].mxu0
    %v7616 = vadd.f32 %v7399, %v7615
    %v7617 = vpop.f32.mrb[0].mxu0
    %7618 = vdwg.mxu0
    %vm7619 = vcmp.gt.f32.partialorder %v7468, 0.0
    %vm7620 = vcmp.gt.f32.partialorder %v7470, 0.0
    %vm7621 = vcmp.gt.f32.partialorder %v7581, 0.0
    %vm7622 = vcmp.gt.f32.partialorder %v7474, 0.0
    %vm7623 = vcmp.gt.f32.partialorder %v7476, 0.0
    %vm7624 = vcmp.gt.f32.partialorder %v7586, 0.0
    %vm7625 = vcmp.gt.f32.partialorder %v7480, 0.0
    %vm7626 = vcmp.gt.f32.partialorder %v7482, 0.0
    %vm7627 = vcmp.gt.f32.partialorder %v7591, 0.0
    %vm7628 = vcmp.gt.f32.partialorder %v7486, 0.0
    %vm7629 = vcmp.gt.f32.partialorder %v7488, 0.0
    %vm7630 = vcmp.gt.f32.partialorder %v7596, 0.0
    %vm7631 = vcmp.gt.f32.partialorder %v7492, 0.0
    %vm7632 = vcmp.gt.f32.partialorder %v7494, 0.0
    %vm7633 = vcmp.gt.f32.partialorder %v7601, 0.0
    %vm7634 = vcmp.gt.f32.partialorder %v7498, 0.0
    %vm7635 = vcmp.gt.f32.partialorder %v7500, 0.0
    %vm7636 = vcmp.gt.f32.partialorder %v7606, 0.0
    %vm7637 = vcmp.gt.f32.partialorder %v7504, 0.0
    %vm7638 = vcmp.gt.f32.partialorder %v7506, 0.0
    %vm7639 = vcmp.gt.f32.partialorder %v7611, 0.0
    %vm7640 = vcmp.gt.f32.partialorder %v7510, 0.0
    %vm7641 = vcmp.gt.f32.partialorder %v7512, 0.0
    %vm7642 = vcmp.gt.f32.partialorder %v7616, 0.0
    %v7643 = vmul.f32 %v7468, 0.01
    %v7644 = vmul.f32 %v7470, 0.01
    %v7645 = vmul.f32 %v7581, 0.01
    %v7646 = vmul.f32 %v7474, 0.01
    %v7647 = vmul.f32 %v7476, 0.01
    %v7648 = vmul.f32 %v7586, 0.01
    %v7649 = vmul.f32 %v7480, 0.01
    %v7650 = vmul.f32 %v7482, 0.01
    %v7651 = vmul.f32 %v7591, 0.01
    %v7652 = vmul.f32 %v7486, 0.01
    %v7653 = vmul.f32 %v7488, 0.01
    %v7654 = vmul.f32 %v7596, 0.01
    %v7655 = vmul.f32 %v7492, 0.01
    %v7656 = vmul.f32 %v7494, 0.01
    %v7657 = vmul.f32 %v7601, 0.01
    %v7658 = vmul.f32 %v7498, 0.01
    %v7659 = vmul.f32 %v7500, 0.01
    %v7660 = vmul.f32 %v7606, 0.01
    %v7661 = vmul.f32 %v7504, 0.01
    %v7662 = vmul.f32 %v7506, 0.01
    %v7663 = vmul.f32 %v7611, 0.01
    %v7664 = vmul.f32 %v7510, 0.01
    %v7665 = vmul.f32 %v7512, 0.01
    %v7666 = vmul.f32 %v7616, 0.01
    %v7667 = vsel %vm7619, %v7468, %v7643
    %v7668 = vsel %vm7620, %v7470, %v7644
    %v7669 = vsel %vm7621, %v7581, %v7645
    %v7670 = vsel %vm7622, %v7474, %v7646
    %v7671 = vsel %vm7623, %v7476, %v7647
    %v7672 = vsel %vm7624, %v7586, %v7648
    %v7673 = vsel %vm7625, %v7480, %v7649
    %v7674 = vsel %vm7626, %v7482, %v7650
    %v7675 = vsel %vm7627, %v7591, %v7651
    %v7676 = vsel %vm7628, %v7486, %v7652
    %v7677 = vsel %vm7629, %v7488, %v7653
    %v7678 = vsel %vm7630, %v7596, %v7654
    %v7679 = vsel %vm7631, %v7492, %v7655
    %v7680 = vsel %vm7632, %v7494, %v7656
    %v7681 = vsel %vm7633, %v7601, %v7657
    %v7682 = vsel %vm7634, %v7498, %v7658
    %v7683 = vsel %vm7635, %v7500, %v7659
    %v7684 = vsel %vm7636, %v7606, %v7660
    %v7685 = vsel %vm7637, %v7504, %v7661
    %v7686 = vsel %vm7638, %v7506, %v7662
    %v7687 = vsel %vm7639, %v7611, %v7663
    %v7688 = vsel %vm7640, %v7510, %v7664
    %v7689 = vsel %vm7641, %v7512, %v7665
    %v7690 = vsel %vm7642, %v7616, %v7666
    %v7691 = vld [vmem:[#allocation16] sm:$0xff]
    %v7692 = vld [vmem:[#allocation16 + $0x8] sm:$0xff]
    %v7693 = vld [vmem:[#allocation16 + $0x10] sm:$0xff]
    %v7694 = vld [vmem:[#allocation16 + $0x18] sm:$0xff]
    %v7695 = vld [vmem:[#allocation16 + $0x20] sm:$0xff]
    %v7696 = vld [vmem:[#allocation16 + $0x28] sm:$0xff]
    %v7697 = vld [vmem:[#allocation16 + $0x30] sm:$0xff]
    %v7698 = vld [vmem:[#allocation16 + $0x38] sm:$0xff]
    %v7699 = vld [vmem:[#allocation16 + $0x40] sm:$0xff]
    %v7700 = vld [vmem:[#allocation16 + $0x48] sm:$0xff]
    %v7701 = vld [vmem:[#allocation16 + $0x50] sm:$0xff]
    %v7702 = vld [vmem:[#allocation16 + $0x58] sm:$0xff]
    %v7703 = vld [vmem:[#allocation16 + $0x60] sm:$0xff]
    %v7704 = vld [vmem:[#allocation16 + $0x68] sm:$0xff]
    %v7705 = vld [vmem:[#allocation16 + $0x70] sm:$0xff]
    %v7706 = vld [vmem:[#allocation16 + $0x78] sm:$0xff]
    %v7707 = vld [vmem:[#allocation16 + $0x80] sm:$0xff]
    %v7708 = vld [vmem:[#allocation16 + $0x88] sm:$0xff]
    %v7709 = vld [vmem:[#allocation16 + $0x90] sm:$0xff]
    %v7710 = vld [vmem:[#allocation16 + $0x98] sm:$0xff]
    %v7711 = vld [vmem:[#allocation16 + $0xa0] sm:$0xff]
    %v7712 = vld [vmem:[#allocation16 + $0xa8] sm:$0xff]
    %v7713 = vld [vmem:[#allocation16 + $0xb0] sm:$0xff]
    %v7714 = vld [vmem:[#allocation16 + $0xb8] sm:$0xff]
    %v7715 = vld [vmem:[#allocation16 + $0xc0] sm:$0xff]
    %v7716 = vld [vmem:[#allocation16 + $0xc8] sm:$0xff]
    %v7717 = vld [vmem:[#allocation16 + $0xd0] sm:$0xff]
    %v7718 = vld [vmem:[#allocation16 + $0xd8] sm:$0xff]
    %v7719 = vld [vmem:[#allocation16 + $0xe0] sm:$0xff]
    %v7720 = vld [vmem:[#allocation16 + $0xe8] sm:$0xff]
    %v7721 = vld [vmem:[#allocation16 + $0xf0] sm:$0xff]
    %v7722 = vld [vmem:[#allocation16 + $0xf8] sm:$0xff]
    %v7723 = vld [vmem:[#allocation16 + $0x100] sm:$0xff]
    %v7724 = vld [vmem:[#allocation16 + $0x108] sm:$0xff]
    %v7725 = vld [vmem:[#allocation16 + $0x110] sm:$0xff]
    %v7726 = vld [vmem:[#allocation16 + $0x118] sm:$0xff]
    %v7727 = vld [vmem:[#allocation16 + $0x120] sm:$0xff]
    %v7728 = vld [vmem:[#allocation16 + $0x128] sm:$0xff]
    %v7729 = vld [vmem:[#allocation16 + $0x130] sm:$0xff]
    %v7730 = vld [vmem:[#allocation16 + $0x138] sm:$0xff]
    %v7731 = vld [vmem:[#allocation16 + $0x140] sm:$0xff]
    %v7732 = vld [vmem:[#allocation16 + $0x148] sm:$0xff]
    %v7733 = vld [vmem:[#allocation16 + $0x150] sm:$0xff]
    %v7734 = vld [vmem:[#allocation16 + $0x158] sm:$0xff]
    %v7735 = vld [vmem:[#allocation16 + $0x160] sm:$0xff]
    %v7736 = vld [vmem:[#allocation16 + $0x168] sm:$0xff]
    %v7737 = vld [vmem:[#allocation16 + $0x170] sm:$0xff]
    %v7738 = vld [vmem:[#allocation16 + $0x178] sm:$0xff]
    %v7739 = vld [vmem:[#allocation16 + $0x180] sm:$0xff]
    %v7740 = vld [vmem:[#allocation16 + $0x188] sm:$0xff]
    %v7741 = vld [vmem:[#allocation16 + $0x190] sm:$0xff]
    %v7742 = vld [vmem:[#allocation16 + $0x198] sm:$0xff]
    %v7743 = vld [vmem:[#allocation16 + $0x1a0] sm:$0xff]
    %v7744 = vld [vmem:[#allocation16 + $0x1a8] sm:$0xff]
    %v7745 = vld [vmem:[#allocation16 + $0x1b0] sm:$0xff]
    %v7746 = vld [vmem:[#allocation16 + $0x1b8] sm:$0xff]
    %v7747 = vld [vmem:[#allocation16 + $0x1c0] sm:$0xff]
    %v7748 = vld [vmem:[#allocation16 + $0x1c8] sm:$0xff]
    %v7749 = vld [vmem:[#allocation16 + $0x1d0] sm:$0xff]
    %v7750 = vld [vmem:[#allocation16 + $0x1d8] sm:$0xff]
    %v7751 = vld [vmem:[#allocation16 + $0x1e0] sm:$0xff]
    %v7752 = vld [vmem:[#allocation16 + $0x1e8] sm:$0xff]
    %v7753 = vld [vmem:[#allocation16 + $0x1f0] sm:$0xff]
    %v7754 = vld [vmem:[#allocation16 + $0x1f8] sm:$0xff]
    %v7755 = vld [vmem:[#allocation16 + $0x200] sm:$0xff]
    %v7756 = vld [vmem:[#allocation16 + $0x208] sm:$0xff]
    %v7757 = vld [vmem:[#allocation16 + $0x210] sm:$0xff]
    %v7758 = vld [vmem:[#allocation16 + $0x218] sm:$0xff]
    %v7759 = vld [vmem:[#allocation16 + $0x220] sm:$0xff]
    %v7760 = vld [vmem:[#allocation16 + $0x228] sm:$0xff]
    %v7761 = vld [vmem:[#allocation16 + $0x230] sm:$0xff]
    %v7762 = vld [vmem:[#allocation16 + $0x238] sm:$0xff]
    %v7763 = vld [vmem:[#allocation16 + $0x240] sm:$0xff]
    %v7764 = vld [vmem:[#allocation16 + $0x248] sm:$0xff]
    %v7765 = vld [vmem:[#allocation16 + $0x250] sm:$0xff]
    %v7766 = vld [vmem:[#allocation16 + $0x258] sm:$0xff]
    %v7767 = vld [vmem:[#allocation16 + $0x260] sm:$0xff]
    %v7768 = vld [vmem:[#allocation16 + $0x268] sm:$0xff]
    %v7769 = vld [vmem:[#allocation16 + $0x270] sm:$0xff]
    %v7770 = vld [vmem:[#allocation16 + $0x278] sm:$0xff]
    %v7771 = vld [vmem:[#allocation16 + $0x280] sm:$0xff]
    %v7772 = vld [vmem:[#allocation16 + $0x288] sm:$0xff]
    %v7773 = vld [vmem:[#allocation16 + $0x290] sm:$0xff]
    %v7774 = vld [vmem:[#allocation16 + $0x298] sm:$0xff]
    %v7775 = vld [vmem:[#allocation16 + $0x2a0] sm:$0xff]
    %v7776 = vld [vmem:[#allocation16 + $0x2a8] sm:$0xff]
    %v7777 = vld [vmem:[#allocation16 + $0x2b0] sm:$0xff]
    %v7778 = vld [vmem:[#allocation16 + $0x2b8] sm:$0xff]
    %v7779 = vld [vmem:[#allocation16 + $0x2c0] sm:$0xff]
    %v7780 = vld [vmem:[#allocation16 + $0x2c8] sm:$0xff]
    %v7781 = vld [vmem:[#allocation16 + $0x2d0] sm:$0xff]
    %v7782 = vld [vmem:[#allocation16 + $0x2d8] sm:$0xff]
    %v7783 = vld [vmem:[#allocation16 + $0x2e0] sm:$0xff]
    %v7784 = vld [vmem:[#allocation16 + $0x2e8] sm:$0xff]
    %v7785 = vld [vmem:[#allocation16 + $0x2f0] sm:$0xff]
    %v7786 = vld [vmem:[#allocation16 + $0x2f8] sm:$0xff]
    %v7787 = vld [vmem:[#allocation16 + $0x300] sm:$0xff]
    %v7788 = vld [vmem:[#allocation16 + $0x308] sm:$0xff]
    %v7789 = vld [vmem:[#allocation16 + $0x310] sm:$0xff]
    %v7790 = vld [vmem:[#allocation16 + $0x318] sm:$0xff]
    %v7791 = vld [vmem:[#allocation16 + $0x320] sm:$0xff]
    %v7792 = vld [vmem:[#allocation16 + $0x328] sm:$0xff]
    %v7793 = vld [vmem:[#allocation16 + $0x330] sm:$0xff]
    %v7794 = vld [vmem:[#allocation16 + $0x338] sm:$0xff]
    %v7795 = vld [vmem:[#allocation16 + $0x340] sm:$0xff]
    %v7796 = vld [vmem:[#allocation16 + $0x348] sm:$0xff]
    %v7797 = vld [vmem:[#allocation16 + $0x350] sm:$0xff]
    %v7798 = vld [vmem:[#allocation16 + $0x358] sm:$0xff]
    %v7799 = vld [vmem:[#allocation16 + $0x360] sm:$0xff]
    %v7800 = vld [vmem:[#allocation16 + $0x368] sm:$0xff]
    %v7801 = vld [vmem:[#allocation16 + $0x370] sm:$0xff]
    %v7802 = vld [vmem:[#allocation16 + $0x378] sm:$0xff]
    %v7803 = vld [vmem:[#allocation16 + $0x380] sm:$0xff]
    %v7804 = vld [vmem:[#allocation16 + $0x388] sm:$0xff]
    %v7805 = vld [vmem:[#allocation16 + $0x390] sm:$0xff]
    %v7806 = vld [vmem:[#allocation16 + $0x398] sm:$0xff]
    %v7807 = vld [vmem:[#allocation16 + $0x3a0] sm:$0xff]
    %v7808 = vld [vmem:[#allocation16 + $0x3a8] sm:$0xff]
    %v7809 = vld [vmem:[#allocation16 + $0x3b0] sm:$0xff]
    %v7810 = vld [vmem:[#allocation16 + $0x3b8] sm:$0xff]
    %v7811 = vld [vmem:[#allocation16 + $0x3c0] sm:$0xff]
    %v7812 = vld [vmem:[#allocation16 + $0x3c8] sm:$0xff]
    %v7813 = vld [vmem:[#allocation16 + $0x3d0] sm:$0xff]
    %v7814 = vld [vmem:[#allocation16 + $0x3d8] sm:$0xff]
    %v7815 = vld [vmem:[#allocation16 + $0x3e0] sm:$0xff]
    %v7816 = vld [vmem:[#allocation16 + $0x3e8] sm:$0xff]
    %v7817 = vld [vmem:[#allocation16 + $0x3f0] sm:$0xff]
    %v7818 = vld [vmem:[#allocation16 + $0x3f8] sm:$0xff]
    %v7819 = vld [vmem:[#allocation16 + $0x400] sm:$0xff]
    %v7820 = vld [vmem:[#allocation16 + $0x408] sm:$0xff]
    %v7821 = vld [vmem:[#allocation16 + $0x410] sm:$0xff]
    %v7822 = vld [vmem:[#allocation16 + $0x418] sm:$0xff]
    %v7823 = vld [vmem:[#allocation16 + $0x420] sm:$0xff]
    %v7824 = vld [vmem:[#allocation16 + $0x428] sm:$0xff]
    %v7825 = vld [vmem:[#allocation16 + $0x430] sm:$0xff]
    %v7826 = vld [vmem:[#allocation16 + $0x438] sm:$0xff]
    %v7827 = vld [vmem:[#allocation16 + $0x440] sm:$0xff]
    %v7828 = vld [vmem:[#allocation16 + $0x448] sm:$0xff]
    %v7829 = vld [vmem:[#allocation16 + $0x450] sm:$0xff]
    %v7830 = vld [vmem:[#allocation16 + $0x458] sm:$0xff]
    %v7831 = vld [vmem:[#allocation16 + $0x460] sm:$0xff]
    %v7832 = vld [vmem:[#allocation16 + $0x468] sm:$0xff]
    %v7833 = vld [vmem:[#allocation16 + $0x470] sm:$0xff]
    %v7834 = vld [vmem:[#allocation16 + $0x478] sm:$0xff]
    %v7835 = vld [vmem:[#allocation16 + $0x480] sm:$0xff]
    %v7836 = vld [vmem:[#allocation16 + $0x488] sm:$0xff]
    %v7837 = vld [vmem:[#allocation16 + $0x490] sm:$0xff]
    %v7838 = vld [vmem:[#allocation16 + $0x498] sm:$0xff]
    %v7839 = vld [vmem:[#allocation16 + $0x4a0] sm:$0xff]
    %v7840 = vld [vmem:[#allocation16 + $0x4a8] sm:$0xff]
    %v7841 = vld [vmem:[#allocation16 + $0x4b0] sm:$0xff]
    %v7842 = vld [vmem:[#allocation16 + $0x4b8] sm:$0xff]
    %v7843 = vld [vmem:[#allocation16 + $0x4c0] sm:$0xff]
    %v7844 = vld [vmem:[#allocation16 + $0x4c8] sm:$0xff]
    %v7845 = vld [vmem:[#allocation16 + $0x4d0] sm:$0xff]
    %v7846 = vld [vmem:[#allocation16 + $0x4d8] sm:$0xff]
    %v7847 = vld [vmem:[#allocation16 + $0x4e0] sm:$0xff]
    %v7848 = vld [vmem:[#allocation16 + $0x4e8] sm:$0xff]
    %v7849 = vld [vmem:[#allocation16 + $0x4f0] sm:$0xff]
    %v7850 = vld [vmem:[#allocation16 + $0x4f8] sm:$0xff]
    %v7851 = vld [vmem:[#allocation16 + $0x500] sm:$0xff]
    %v7852 = vld [vmem:[#allocation16 + $0x508] sm:$0xff]
    %v7853 = vld [vmem:[#allocation16 + $0x510] sm:$0xff]
    %v7854 = vld [vmem:[#allocation16 + $0x518] sm:$0xff]
    %v7855 = vld [vmem:[#allocation16 + $0x520] sm:$0xff]
    %v7856 = vld [vmem:[#allocation16 + $0x528] sm:$0xff]
    %v7857 = vld [vmem:[#allocation16 + $0x530] sm:$0xff]
    %v7858 = vld [vmem:[#allocation16 + $0x538] sm:$0xff]
    %v7859 = vld [vmem:[#allocation16 + $0x540] sm:$0xff]
    %v7860 = vld [vmem:[#allocation16 + $0x548] sm:$0xff]
    %v7861 = vld [vmem:[#allocation16 + $0x550] sm:$0xff]
    %v7862 = vld [vmem:[#allocation16 + $0x558] sm:$0xff]
    %v7863 = vld [vmem:[#allocation16 + $0x560] sm:$0xff]
    %v7864 = vld [vmem:[#allocation16 + $0x568] sm:$0xff]
    %v7865 = vld [vmem:[#allocation16 + $0x570] sm:$0xff]
    %v7866 = vld [vmem:[#allocation16 + $0x578] sm:$0xff]
    %v7867 = vld [vmem:[#allocation16 + $0x580] sm:$0xff]
    %v7868 = vld [vmem:[#allocation16 + $0x588] sm:$0xff]
    %v7869 = vld [vmem:[#allocation16 + $0x590] sm:$0xff]
    %v7870 = vld [vmem:[#allocation16 + $0x598] sm:$0xff]
    %v7871 = vld [vmem:[#allocation16 + $0x5a0] sm:$0xff]
    %v7872 = vld [vmem:[#allocation16 + $0x5a8] sm:$0xff]
    %v7873 = vld [vmem:[#allocation16 + $0x5b0] sm:$0xff]
    %v7874 = vld [vmem:[#allocation16 + $0x5b8] sm:$0xff]
    %v7875 = vld [vmem:[#allocation16 + $0x5c0] sm:$0xff]
    %v7876 = vld [vmem:[#allocation16 + $0x5c8] sm:$0xff]
    %v7877 = vld [vmem:[#allocation16 + $0x5d0] sm:$0xff]
    %v7878 = vld [vmem:[#allocation16 + $0x5d8] sm:$0xff]
    %v7879 = vld [vmem:[#allocation16 + $0x5e0] sm:$0xff]
    %v7880 = vld [vmem:[#allocation16 + $0x5e8] sm:$0xff]
    %v7881 = vld [vmem:[#allocation16 + $0x5f0] sm:$0xff]
    %v7882 = vld [vmem:[#allocation16 + $0x5f8] sm:$0xff]
    %v7883 = vld [vmem:[#allocation16 + $0x600] sm:$0xff]
    %v7884 = vld [vmem:[#allocation16 + $0x608] sm:$0xff]
    %v7885 = vld [vmem:[#allocation16 + $0x610] sm:$0xff]
    %v7886 = vld [vmem:[#allocation16 + $0x618] sm:$0xff]
    %v7887 = vld [vmem:[#allocation16 + $0x620] sm:$0xff]
    %v7888 = vld [vmem:[#allocation16 + $0x628] sm:$0xff]
    %v7889 = vld [vmem:[#allocation16 + $0x630] sm:$0xff]
    %v7890 = vld [vmem:[#allocation16 + $0x638] sm:$0xff]
    %v7891 = vld [vmem:[#allocation16 + $0x640] sm:$0xff]
    %v7892 = vld [vmem:[#allocation16 + $0x648] sm:$0xff]
    %v7893 = vld [vmem:[#allocation16 + $0x650] sm:$0xff]
    %v7894 = vld [vmem:[#allocation16 + $0x658] sm:$0xff]
    %v7895 = vld [vmem:[#allocation16 + $0x660] sm:$0xff]
    %v7896 = vld [vmem:[#allocation16 + $0x668] sm:$0xff]
    %v7897 = vld [vmem:[#allocation16 + $0x670] sm:$0xff]
    %v7898 = vld [vmem:[#allocation16 + $0x678] sm:$0xff]
    %v7899 = vld [vmem:[#allocation16 + $0x680] sm:$0xff]
    %v7900 = vld [vmem:[#allocation16 + $0x688] sm:$0xff]
    %v7901 = vld [vmem:[#allocation16 + $0x690] sm:$0xff]
    %v7902 = vld [vmem:[#allocation16 + $0x698] sm:$0xff]
    %v7903 = vld [vmem:[#allocation16 + $0x6a0] sm:$0xff]
    %v7904 = vld [vmem:[#allocation16 + $0x6a8] sm:$0xff]
    %v7905 = vld [vmem:[#allocation16 + $0x6b0] sm:$0xff]
    %v7906 = vld [vmem:[#allocation16 + $0x6b8] sm:$0xff]
    %v7907 = vld [vmem:[#allocation16 + $0x6c0] sm:$0xff]
    %v7908 = vld [vmem:[#allocation16 + $0x6c8] sm:$0xff]
    %v7909 = vld [vmem:[#allocation16 + $0x6d0] sm:$0xff]
    %v7910 = vld [vmem:[#allocation16 + $0x6d8] sm:$0xff]
    %v7911 = vld [vmem:[#allocation16 + $0x6e0] sm:$0xff]
    %v7912 = vld [vmem:[#allocation16 + $0x6e8] sm:$0xff]
    %v7913 = vld [vmem:[#allocation16 + $0x6f0] sm:$0xff]
    %v7914 = vld [vmem:[#allocation16 + $0x6f8] sm:$0xff]
    %v7915 = vld [vmem:[#allocation16 + $0x700] sm:$0xff]
    %v7916 = vld [vmem:[#allocation16 + $0x708] sm:$0xff]
    %v7917 = vld [vmem:[#allocation16 + $0x710] sm:$0xff]
    %v7918 = vld [vmem:[#allocation16 + $0x718] sm:$0xff]
    %v7919 = vld [vmem:[#allocation16 + $0x720] sm:$0xff]
    %v7920 = vld [vmem:[#allocation16 + $0x728] sm:$0xff]
    %v7921 = vld [vmem:[#allocation16 + $0x730] sm:$0xff]
    %v7922 = vld [vmem:[#allocation16 + $0x738] sm:$0xff]
    %v7923 = vld [vmem:[#allocation16 + $0x740] sm:$0xff]
    %v7924 = vld [vmem:[#allocation16 + $0x748] sm:$0xff]
    %v7925 = vld [vmem:[#allocation16 + $0x750] sm:$0xff]
    %v7926 = vld [vmem:[#allocation16 + $0x758] sm:$0xff]
    %v7927 = vld [vmem:[#allocation16 + $0x760] sm:$0xff]
    %v7928 = vld [vmem:[#allocation16 + $0x768] sm:$0xff]
    %v7929 = vld [vmem:[#allocation16 + $0x770] sm:$0xff]
    %v7930 = vld [vmem:[#allocation16 + $0x778] sm:$0xff]
    %v7931 = vld [vmem:[#allocation16 + $0x780] sm:$0xff]
    %v7932 = vld [vmem:[#allocation16 + $0x788] sm:$0xff]
    %v7933 = vld [vmem:[#allocation16 + $0x790] sm:$0xff]
    %v7934 = vld [vmem:[#allocation16 + $0x798] sm:$0xff]
    %v7935 = vld [vmem:[#allocation16 + $0x7a0] sm:$0xff]
    %v7936 = vld [vmem:[#allocation16 + $0x7a8] sm:$0xff]
    %v7937 = vld [vmem:[#allocation16 + $0x7b0] sm:$0xff]
    %v7938 = vld [vmem:[#allocation16 + $0x7b8] sm:$0xff]
    %v7939 = vld [vmem:[#allocation16 + $0x7c0] sm:$0xff]
    %v7940 = vld [vmem:[#allocation16 + $0x7c8] sm:$0xff]
    %v7941 = vld [vmem:[#allocation16 + $0x7d0] sm:$0xff]
    %v7942 = vld [vmem:[#allocation16 + $0x7d8] sm:$0xff]
    %v7943 = vld [vmem:[#allocation16 + $0x7e0] sm:$0xff]
    %v7944 = vld [vmem:[#allocation16 + $0x7e8] sm:$0xff]
    %v7945 = vld [vmem:[#allocation16 + $0x7f0] sm:$0xff]
    %v7946 = vld [vmem:[#allocation16 + $0x7f8] sm:$0xff]
    %v7947 = vld [vmem:[#allocation16 + $0x800] sm:$0xff]
    %v7948 = vld [vmem:[#allocation16 + $0x808] sm:$0xff]
    %v7949 = vld [vmem:[#allocation16 + $0x810] sm:$0xff]
    %v7950 = vld [vmem:[#allocation16 + $0x818] sm:$0xff]
    %v7951 = vld [vmem:[#allocation16 + $0x820] sm:$0xff]
    %v7952 = vld [vmem:[#allocation16 + $0x828] sm:$0xff]
    %v7953 = vld [vmem:[#allocation16 + $0x830] sm:$0xff]
    %v7954 = vld [vmem:[#allocation16 + $0x838] sm:$0xff]
    %v7955 = vld [vmem:[#allocation16 + $0x840] sm:$0xff]
    %v7956 = vld [vmem:[#allocation16 + $0x848] sm:$0xff]
    %v7957 = vld [vmem:[#allocation16 + $0x850] sm:$0xff]
    %v7958 = vld [vmem:[#allocation16 + $0x858] sm:$0xff]
    %v7959 = vld [vmem:[#allocation16 + $0x860] sm:$0xff]
    %v7960 = vld [vmem:[#allocation16 + $0x868] sm:$0xff]
    %v7961 = vld [vmem:[#allocation16 + $0x870] sm:$0xff]
    %v7962 = vld [vmem:[#allocation16 + $0x878] sm:$0xff]
    %v7963 = vld [vmem:[#allocation16 + $0x880] sm:$0xff]
    %v7964 = vld [vmem:[#allocation16 + $0x888] sm:$0xff]
    %v7965 = vld [vmem:[#allocation16 + $0x890] sm:$0xff]
    %v7966 = vld [vmem:[#allocation16 + $0x898] sm:$0xff]
    %v7967 = vld [vmem:[#allocation16 + $0x8a0] sm:$0xff]
    %v7968 = vld [vmem:[#allocation16 + $0x8a8] sm:$0xff]
    %v7969 = vld [vmem:[#allocation16 + $0x8b0] sm:$0xff]
    %v7970 = vld [vmem:[#allocation16 + $0x8b8] sm:$0xff]
    %v7971 = vld [vmem:[#allocation16 + $0x8c0] sm:$0xff]
    %v7972 = vld [vmem:[#allocation16 + $0x8c8] sm:$0xff]
    %v7973 = vld [vmem:[#allocation16 + $0x8d0] sm:$0xff]
    %v7974 = vld [vmem:[#allocation16 + $0x8d8] sm:$0xff]
    %v7975 = vld [vmem:[#allocation16 + $0x8e0] sm:$0xff]
    %v7976 = vld [vmem:[#allocation16 + $0x8e8] sm:$0xff]
    %v7977 = vld [vmem:[#allocation16 + $0x8f0] sm:$0xff]
    %v7978 = vld [vmem:[#allocation16 + $0x8f8] sm:$0xff]
    %v7979 = vld [vmem:[#allocation16 + $0x900] sm:$0xff]
    %v7980 = vld [vmem:[#allocation16 + $0x908] sm:$0xff]
    %v7981 = vld [vmem:[#allocation16 + $0x910] sm:$0xff]
    %v7982 = vld [vmem:[#allocation16 + $0x918] sm:$0xff]
    %v7983 = vld [vmem:[#allocation16 + $0x920] sm:$0xff]
    %v7984 = vld [vmem:[#allocation16 + $0x928] sm:$0xff]
    %v7985 = vld [vmem:[#allocation16 + $0x930] sm:$0xff]
    %v7986 = vld [vmem:[#allocation16 + $0x938] sm:$0xff]
    %v7987 = vld [vmem:[#allocation16 + $0x940] sm:$0xff]
    %v7988 = vld [vmem:[#allocation16 + $0x948] sm:$0xff]
    %v7989 = vld [vmem:[#allocation16 + $0x950] sm:$0xff]
    %v7990 = vld [vmem:[#allocation16 + $0x958] sm:$0xff]
    %v7991 = vld [vmem:[#allocation16 + $0x960] sm:$0xff]
    %v7992 = vld [vmem:[#allocation16 + $0x968] sm:$0xff]
    %v7993 = vld [vmem:[#allocation16 + $0x970] sm:$0xff]
    %v7994 = vld [vmem:[#allocation16 + $0x978] sm:$0xff]
    %v7995 = vld [vmem:[#allocation16 + $0x980] sm:$0xff]
    %v7996 = vld [vmem:[#allocation16 + $0x988] sm:$0xff]
    %v7997 = vld [vmem:[#allocation16 + $0x990] sm:$0xff]
    %v7998 = vld [vmem:[#allocation16 + $0x998] sm:$0xff]
    %v7999 = vld [vmem:[#allocation16 + $0x9a0] sm:$0xff]
    %v8000 = vld [vmem:[#allocation16 + $0x9a8] sm:$0xff]
    %v8001 = vld [vmem:[#allocation16 + $0x9b0] sm:$0xff]
    %v8002 = vld [vmem:[#allocation16 + $0x9b8] sm:$0xff]
    %v8003 = vld [vmem:[#allocation16 + $0x9c0] sm:$0xff]
    %v8004 = vld [vmem:[#allocation16 + $0x9c8] sm:$0xff]
    %v8005 = vld [vmem:[#allocation16 + $0x9d0] sm:$0xff]
    %v8006 = vld [vmem:[#allocation16 + $0x9d8] sm:$0xff]
    %v8007 = vld [vmem:[#allocation16 + $0x9e0] sm:$0xff]
    %v8008 = vld [vmem:[#allocation16 + $0x9e8] sm:$0xff]
    %v8009 = vld [vmem:[#allocation16 + $0x9f0] sm:$0xff]
    %v8010 = vld [vmem:[#allocation16 + $0x9f8] sm:$0xff]
    %v8011 = vld [vmem:[#allocation16 + $0xa00] sm:$0xff]
    %v8012 = vld [vmem:[#allocation16 + $0xa08] sm:$0xff]
    %v8013 = vld [vmem:[#allocation16 + $0xa10] sm:$0xff]
    %v8014 = vld [vmem:[#allocation16 + $0xa18] sm:$0xff]
    %v8015 = vld [vmem:[#allocation16 + $0xa20] sm:$0xff]
    %v8016 = vld [vmem:[#allocation16 + $0xa28] sm:$0xff]
    %v8017 = vld [vmem:[#allocation16 + $0xa30] sm:$0xff]
    %v8018 = vld [vmem:[#allocation16 + $0xa38] sm:$0xff]
    %v8019 = vld [vmem:[#allocation16 + $0xa40] sm:$0xff]
    %v8020 = vld [vmem:[#allocation16 + $0xa48] sm:$0xff]
    %v8021 = vld [vmem:[#allocation16 + $0xa50] sm:$0xff]
    %v8022 = vld [vmem:[#allocation16 + $0xa58] sm:$0xff]
    %v8023 = vld [vmem:[#allocation16 + $0xa60] sm:$0xff]
    %v8024 = vld [vmem:[#allocation16 + $0xa68] sm:$0xff]
    %v8025 = vld [vmem:[#allocation16 + $0xa70] sm:$0xff]
    %v8026 = vld [vmem:[#allocation16 + $0xa78] sm:$0xff]
    %v8027 = vld [vmem:[#allocation16 + $0xa80] sm:$0xff]
    %v8028 = vld [vmem:[#allocation16 + $0xa88] sm:$0xff]
    %v8029 = vld [vmem:[#allocation16 + $0xa90] sm:$0xff]
    %v8030 = vld [vmem:[#allocation16 + $0xa98] sm:$0xff]
    %v8031 = vld [vmem:[#allocation16 + $0xaa0] sm:$0xff]
    %v8032 = vld [vmem:[#allocation16 + $0xaa8] sm:$0xff]
    %v8033 = vld [vmem:[#allocation16 + $0xab0] sm:$0xff]
    %v8034 = vld [vmem:[#allocation16 + $0xab8] sm:$0xff]
    %v8035 = vld [vmem:[#allocation16 + $0xac0] sm:$0xff]
    %v8036 = vld [vmem:[#allocation16 + $0xac8] sm:$0xff]
    %v8037 = vld [vmem:[#allocation16 + $0xad0] sm:$0xff]
    %v8038 = vld [vmem:[#allocation16 + $0xad8] sm:$0xff]
    %v8039 = vld [vmem:[#allocation16 + $0xae0] sm:$0xff]
    %v8040 = vld [vmem:[#allocation16 + $0xae8] sm:$0xff]
    %v8041 = vld [vmem:[#allocation16 + $0xaf0] sm:$0xff]
    %v8042 = vld [vmem:[#allocation16 + $0xaf8] sm:$0xff]
    %v8043 = vld [vmem:[#allocation16 + $0xb00] sm:$0xff]
    %v8044 = vld [vmem:[#allocation16 + $0xb08] sm:$0xff]
    %v8045 = vld [vmem:[#allocation16 + $0xb10] sm:$0xff]
    %v8046 = vld [vmem:[#allocation16 + $0xb18] sm:$0xff]
    %v8047 = vld [vmem:[#allocation16 + $0xb20] sm:$0xff]
    %v8048 = vld [vmem:[#allocation16 + $0xb28] sm:$0xff]
    %v8049 = vld [vmem:[#allocation16 + $0xb30] sm:$0xff]
    %v8050 = vld [vmem:[#allocation16 + $0xb38] sm:$0xff]
    %v8051 = vld [vmem:[#allocation16 + $0xb40] sm:$0xff]
    %v8052 = vld [vmem:[#allocation16 + $0xb48] sm:$0xff]
    %v8053 = vld [vmem:[#allocation16 + $0xb50] sm:$0xff]
    %v8054 = vld [vmem:[#allocation16 + $0xb58] sm:$0xff]
    %v8055 = vld [vmem:[#allocation16 + $0xb60] sm:$0xff]
    %v8056 = vld [vmem:[#allocation16 + $0xb68] sm:$0xff]
    %v8057 = vld [vmem:[#allocation16 + $0xb70] sm:$0xff]
    %v8058 = vld [vmem:[#allocation16 + $0xb78] sm:$0xff]
    %v8059 = vld [vmem:[#allocation16 + $0xb80] sm:$0xff]
    %v8060 = vld [vmem:[#allocation16 + $0xb88] sm:$0xff]
    %v8061 = vld [vmem:[#allocation16 + $0xb90] sm:$0xff]
    %v8062 = vld [vmem:[#allocation16 + $0xb98] sm:$0xff]
    %v8063 = vld [vmem:[#allocation16 + $0xba0] sm:$0xff]
    %v8064 = vld [vmem:[#allocation16 + $0xba8] sm:$0xff]
    %v8065 = vld [vmem:[#allocation16 + $0xbb0] sm:$0xff]
    %v8066 = vld [vmem:[#allocation16 + $0xbb8] sm:$0xff]
    %v8067 = vld [vmem:[#allocation16 + $0xbc0] sm:$0xff]
    %v8068 = vld [vmem:[#allocation16 + $0xbc8] sm:$0xff]
    %v8069 = vld [vmem:[#allocation16 + $0xbd0] sm:$0xff]
    %v8070 = vld [vmem:[#allocation16 + $0xbd8] sm:$0xff]
    %v8071 = vld [vmem:[#allocation16 + $0xbe0] sm:$0xff]
    %v8072 = vld [vmem:[#allocation16 + $0xbe8] sm:$0xff]
    %v8073 = vld [vmem:[#allocation16 + $0xbf0] sm:$0xff]
    %v8074 = vld [vmem:[#allocation16 + $0xbf8] sm:$0xff]
    %v8075 = vld [vmem:[#allocation16 + $0xc00] sm:$0xff]
    %v8076 = vld [vmem:[#allocation16 + $0xc08] sm:$0xff]
    %v8077 = vld [vmem:[#allocation16 + $0xc10] sm:$0xff]
    %v8078 = vld [vmem:[#allocation16 + $0xc18] sm:$0xff]
    %v8079 = vld [vmem:[#allocation16 + $0xc20] sm:$0xff]
    %v8080 = vld [vmem:[#allocation16 + $0xc28] sm:$0xff]
    %v8081 = vld [vmem:[#allocation16 + $0xc30] sm:$0xff]
    %v8082 = vld [vmem:[#allocation16 + $0xc38] sm:$0xff]
    %v8083 = vld [vmem:[#allocation16 + $0xc40] sm:$0xff]
    %v8084 = vld [vmem:[#allocation16 + $0xc48] sm:$0xff]
    %v8085 = vld [vmem:[#allocation16 + $0xc50] sm:$0xff]
    %v8086 = vld [vmem:[#allocation16 + $0xc58] sm:$0xff]
    %v8087 = vld [vmem:[#allocation16 + $0xc60] sm:$0xff]
    %v8088 = vld [vmem:[#allocation16 + $0xc68] sm:$0xff]
    %v8089 = vld [vmem:[#allocation16 + $0xc70] sm:$0xff]
    %v8090 = vld [vmem:[#allocation16 + $0xc78] sm:$0xff]
    %v8091 = vld [vmem:[#allocation16 + $0xc80] sm:$0xff]
    %v8092 = vld [vmem:[#allocation16 + $0xc88] sm:$0xff]
    %v8093 = vld [vmem:[#allocation16 + $0xc90] sm:$0xff]
    %v8094 = vld [vmem:[#allocation16 + $0xc98] sm:$0xff]
    %v8095 = vld [vmem:[#allocation16 + $0xca0] sm:$0xff]
    %v8096 = vld [vmem:[#allocation16 + $0xca8] sm:$0xff]
    %v8097 = vld [vmem:[#allocation16 + $0xcb0] sm:$0xff]
    %v8098 = vld [vmem:[#allocation16 + $0xcb8] sm:$0xff]
    %v8099 = vld [vmem:[#allocation16 + $0xcc0] sm:$0xff]
    %v8100 = vld [vmem:[#allocation16 + $0xcc8] sm:$0xff]
    %v8101 = vld [vmem:[#allocation16 + $0xcd0] sm:$0xff]
    %v8102 = vld [vmem:[#allocation16 + $0xcd8] sm:$0xff]
    %v8103 = vld [vmem:[#allocation16 + $0xce0] sm:$0xff]
    %v8104 = vld [vmem:[#allocation16 + $0xce8] sm:$0xff]
    %v8105 = vld [vmem:[#allocation16 + $0xcf0] sm:$0xff]
    %v8106 = vld [vmem:[#allocation16 + $0xcf8] sm:$0xff]
    %v8107 = vld [vmem:[#allocation16 + $0xd00] sm:$0xff]
    %v8108 = vld [vmem:[#allocation16 + $0xd08] sm:$0xff]
    %v8109 = vld [vmem:[#allocation16 + $0xd10] sm:$0xff]
    %v8110 = vld [vmem:[#allocation16 + $0xd18] sm:$0xff]
    %v8111 = vld [vmem:[#allocation16 + $0xd20] sm:$0xff]
    %v8112 = vld [vmem:[#allocation16 + $0xd28] sm:$0xff]
    %v8113 = vld [vmem:[#allocation16 + $0xd30] sm:$0xff]
    %v8114 = vld [vmem:[#allocation16 + $0xd38] sm:$0xff]
    %v8115 = vld [vmem:[#allocation16 + $0xd40] sm:$0xff]
    %v8116 = vld [vmem:[#allocation16 + $0xd48] sm:$0xff]
    %v8117 = vld [vmem:[#allocation16 + $0xd50] sm:$0xff]
    %v8118 = vld [vmem:[#allocation16 + $0xd58] sm:$0xff]
    %v8119 = vld [vmem:[#allocation16 + $0xd60] sm:$0xff]
    %v8120 = vld [vmem:[#allocation16 + $0xd68] sm:$0xff]
    %v8121 = vld [vmem:[#allocation16 + $0xd70] sm:$0xff]
    %v8122 = vld [vmem:[#allocation16 + $0xd78] sm:$0xff]
    %8123 = vmatprep.subr.mxu0 %v7692
    %8124 = vmatpush1.msra.mxu0 %v7691
    %8125 = vmatprep.subr.mxu0 %v7701
    %8126 = vmatpush1.msra.mxu0 %v7700
    %8127 = vmatprep.subr.mxu0 %v7710
    %8128 = vmatpush1.msra.mxu0 %v7709
    %8129 = vmatprep.subr.mxu0 %v7719
    %8130 = vmatpush1.msra.mxu0 %v7718
    %8131 = vmatprep.subr.mxu0 %v7728
    %8132 = vmatpush1.msra.mxu0 %v7727
    %8133 = vmatprep.subr.mxu0 %v7737
    %8134 = vmatpush1.msra.mxu0 %v7736
    %8135 = vmatprep.subr.mxu0 %v7746
    %8136 = vmatpush1.msra.mxu0 %v7745
    %8137 = vmatprep.subr.mxu0 %v7755
    %8138 = vmatpush1.msra.mxu0 %v7754
    %8139 = vmatprep.subr.mxu0 %v7764
    %8140 = vmatpush1.msra.mxu0 %v7763
    %8141 = vmatprep.subr.mxu0 %v7773
    %8142 = vmatpush1.msra.mxu0 %v7772
    %8143 = vmatprep.subr.mxu0 %v7782
    %8144 = vmatpush1.msra.mxu0 %v7781
    %8145 = vmatprep.subr.mxu0 %v7791
    %8146 = vmatpush1.msra.mxu0 %v7790
    %8147 = vmatprep.subr.mxu0 %v7800
    %8148 = vmatpush1.msra.mxu0 %v7799
    %8149 = vmatprep.subr.mxu0 %v7809
    %8150 = vmatpush1.msra.mxu0 %v7808
    %8151 = vmatprep.subr.mxu0 %v7818
    %8152 = vmatpush1.msra.mxu0 %v7817
    %8153 = vmatprep.subr.mxu0 %v7827
    %8154 = vmatpush1.msra.mxu0 %v7826
    %8155 = vmatprep.subr.mxu0 %v7836
    %8156 = vmatpush1.msra.mxu0 %v7835
    %8157 = vmatprep.subr.mxu0 %v7845
    %8158 = vmatpush1.msra.mxu0 %v7844
    %8159 = vmatprep.subr.mxu0 %v7854
    %8160 = vmatpush1.msra.mxu0 %v7853
    %8161 = vmatprep.subr.mxu0 %v7863
    %8162 = vmatpush1.msra.mxu0 %v7862
    %8163 = vmatprep.subr.mxu0 %v7872
    %8164 = vmatpush1.msra.mxu0 %v7871
    %8165 = vmatprep.subr.mxu0 %v7881
    %8166 = vmatpush1.msra.mxu0 %v7880
    %8167 = vmatprep.subr.mxu0 %v7890
    %8168 = vmatpush1.msra.mxu0 %v7889
    %8169 = vmatprep.subr.mxu0 %v7899
    %8170 = vmatpush1.msra.mxu0 %v7898
    %8171 = vmatprep.subr.mxu0 %v7908
    %8172 = vmatpush1.msra.mxu0 %v7907
    %8173 = vmatprep.subr.mxu0 %v7917
    %8174 = vmatpush1.msra.mxu0 %v7916
    %8175 = vmatprep.subr.mxu0 %v7926
    %8176 = vmatpush1.msra.mxu0 %v7925
    %8177 = vmatprep.subr.mxu0 %v7935
    %8178 = vmatpush1.msra.mxu0 %v7934
    %8179 = vmatprep.subr.mxu0 %v7944
    %8180 = vmatpush1.msra.mxu0 %v7943
    %8181 = vmatprep.subr.mxu0 %v7953
    %8182 = vmatpush1.msra.mxu0 %v7952
    %8183 = vmatprep.subr.mxu0 %v7962
    %8184 = vmatpush1.msra.mxu0 %v7961
    %8185 = vmatprep.subr.mxu0 %v7971
    %8186 = vmatpush1.msra.mxu0 %v7970
    %8187 = vmatprep.mubr.f32.mxu0 %v7668
    %8188 = vmatmul.mubr.f32.gmra.mrb[0].mxu0 %v7667
    %v8189 = vpop.f32.mrb[0].mxu0
    %v8190 = vadd.f32 0.0, %v8189
    %v8191 = vpop.f32.mrb[0].mxu0
    %v8192 = vadd.f32 0.0, %v8191
    %8193 = vmatprep.mubr.f32.mxu0 %v7671
    %8194 = vmatmul.mubr.f32.gmra.mrb[0].mxu0 %v7670
    %v8195 = vpop.f32.mrb[0].mxu0
    %v8196 = vadd.f32 0.0, %v8195
    %v8197 = vpop.f32.mrb[0].mxu0
    %v8198 = vadd.f32 0.0, %v8197
    %8199 = vmatprep.mubr.f32.mxu0 %v7674
    %8200 = vmatmul.mubr.f32.gmra.mrb[0].mxu0 %v7673
    %v8201 = vpop.f32.mrb[0].mxu0
    %v8202 = vadd.f32 0.0, %v8201
    %v8203 = vpop.f32.mrb[0].mxu0
    %v8204 = vadd.f32 0.0, %v8203
    %8205 = vmatprep.mubr.f32.mxu0 %v7677
    %8206 = vmatmul.mubr.f32.gmra.mrb[0].mxu0 %v7676
    %v8207 = vpop.f32.mrb[0].mxu0
    %v8208 = vadd.f32 0.0, %v8207
    %v8209 = vpop.f32.mrb[0].mxu0
    %v8210 = vadd.f32 0.0, %v8209
    %8211 = vmatprep.mubr.f32.mxu0 %v7680
    %8212 = vmatmul.mubr.f32.gmra.mrb[0].mxu0 %v7679
    %v8213 = vpop.f32.mrb[0].mxu0
    %v8214 = vadd.f32 0.0, %v8213
    %v8215 = vpop.f32.mrb[0].mxu0
    %v8216 = vadd.f32 0.0, %v8215
    %8217 = vmatprep.mubr.f32.mxu0 %v7683
    %8218 = vmatmul.mubr.f32.gmra.mrb[0].mxu0 %v7682
    %v8219 = vpop.f32.mrb[0].mxu0
    %v8220 = vadd.f32 0.0, %v8219
    %v8221 = vpop.f32.mrb[0].mxu0
    %v8222 = vadd.f32 0.0, %v8221
    %8223 = vmatprep.mubr.f32.mxu0 %v7686
    %8224 = vmatmul.mubr.f32.gmra.mrb[0].mxu0 %v7685
    %v8225 = vpop.f32.mrb[0].mxu0
    %v8226 = vadd.f32 0.0, %v8225
    %v8227 = vpop.f32.mrb[0].mxu0
    %v8228 = vadd.f32 0.0, %v8227
    %8229 = vmatprep.mubr.f32.mxu0 %v7689
    %8230 = vmatmul.mubr.f32.gmra.mrb[0].mxu0 %v7688
    %v8231 = vpop.f32.mrb[0].mxu0
    %v8232 = vadd.f32 0.0, %v8231
    %v8233 = vpop.f32.mrb[0].mxu0
    %v8234 = vadd.f32 0.0, %v8233
    %8235 = vdwg.mxu0
    %8236 = vmatprep.subr.mxu0 %v7980
    %8237 = vmatpush1.msra.mxu0 %v7979
    %8238 = vmatprep.subr.mxu0 %v7989
    %8239 = vmatpush1.msra.mxu0 %v7988
    %8240 = vmatprep.subr.mxu0 %v7998
    %8241 = vmatpush1.msra.mxu0 %v7997
    %8242 = vmatprep.subr.mxu0 %v8007
    %8243 = vmatpush1.msra.mxu0 %v8006
    %8244 = vmatprep.subr.mxu0 %v8016
    %8245 = vmatpush1.msra.mxu0 %v8015
    %8246 = vmatprep.subr.mxu0 %v8025
    %8247 = vmatpush1.msra.mxu0 %v8024
    %8248 = vmatprep.subr.mxu0 %v8034
    %8249 = vmatpush1.msra.mxu0 %v8033
    %8250 = vmatprep.subr.mxu0 %v8043
    %8251 = vmatpush1.msra.mxu0 %v8042
    %8252 = vmatprep.subr.mxu0 %v8052
    %8253 = vmatpush1.msra.mxu0 %v8051
    %8254 = vmatprep.subr.mxu0 %v8061
    %8255 = vmatpush1.msra.mxu0 %v8060
    %8256 = vmatprep.subr.mxu0 %v8070
    %8257 = vmatpush1.msra.mxu0 %v8069
    %8258 = vmatprep.subr.mxu0 %v8079
    %8259 = vmatpush1.msra.mxu0 %v8078
    %8260 = vmatprep.subr.mxu0 %v8088
    %8261 = vmatpush1.msra.mxu0 %v8087
    %8262 = vmatprep.subr.mxu0 %v8097
    %8263 = vmatpush1.msra.mxu0 %v8096
    %8264 = vmatprep.subr.mxu0 %v8106
    %8265 = vmatpush1.msra.mxu0 %v8105
    %8266 = vmatprep.subr.mxu0 %v8115
    %8267 = vmatpush1.msra.mxu0 %v8114
    %8268 = vmatprep.subr.mxu0 0.0
    %8269 = vmatpush1.msra.mxu0 0.0
    %8270 = vmatprep.subr.mxu0 0.0
    %8271 = vmatpush1.msra.mxu0 0.0
    %8272 = vmatprep.subr.mxu0 0.0
    %8273 = vmatpush1.msra.mxu0 0.0
    %8274 = vmatprep.subr.mxu0 0.0
    %8275 = vmatpush1.msra.mxu0 0.0
    %8276 = vmatprep.subr.mxu0 0.0
    %8277 = vmatpush1.msra.mxu0 0.0
    %8278 = vmatprep.subr.mxu0 0.0
    %8279 = vmatpush1.msra.mxu0 0.0
    %8280 = vmatprep.subr.mxu0 0.0
    %8281 = vmatpush1.msra.mxu0 0.0
    %8282 = vmatprep.subr.mxu0 0.0
    %8283 = vmatpush1.msra.mxu0 0.0
    %8284 = vmatprep.subr.mxu0 0.0
    %8285 = vmatpush1.msra.mxu0 0.0
    %8286 = vmatprep.subr.mxu0 0.0
    %8287 = vmatpush1.msra.mxu0 0.0
    %8288 = vmatprep.subr.mxu0 0.0
    %8289 = vmatpush1.msra.mxu0 0.0
    %8290 = vmatprep.subr.mxu0 0.0
    %8291 = vmatpush1.msra.mxu0 0.0
    %8292 = vmatprep.subr.mxu0 0.0
    %8293 = vmatpush1.msra.mxu0 0.0
    %8294 = vmatprep.subr.mxu0 0.0
    %8295 = vmatpush1.msra.mxu0 0.0
    %8296 = vmatprep.subr.mxu0 0.0
    %8297 = vmatpush1.msra.mxu0 0.0
    %8298 = vmatprep.subr.mxu0 0.0
    %8299 = vmatpush1.msra.mxu0 0.0
    %8300 = vmatprep.mubr.f32.mxu0 0.0
    %8301 = vmatmul.mubr.f32.gmra.mrb[0].mxu0 %v7669
    %v8302 = vpop.f32.mrb[0].mxu0
    %v8303 = vadd.f32 %v8190, %v8302
    %v8304 = vpop.f32.mrb[0].mxu0
    %v8305 = vadd.f32 %v8192, %v8304
    %8306 = vmatprep.mubr.f32.mxu0 0.0
    %8307 = vmatmul.mubr.f32.gmra.mrb[0].mxu0 %v7672
    %v8308 = vpop.f32.mrb[0].mxu0
    %v8309 = vadd.f32 %v8196, %v8308
    %v8310 = vpop.f32.mrb[0].mxu0
    %v8311 = vadd.f32 %v8198, %v8310
    %8312 = vmatprep.mubr.f32.mxu0 0.0
    %8313 = vmatmul.mubr.f32.gmra.mrb[0].mxu0 %v7675
    %v8314 = vpop.f32.mrb[0].mxu0
    %v8315 = vadd.f32 %v8202, %v8314
    %v8316 = vpop.f32.mrb[0].mxu0
    %v8317 = vadd.f32 %v8204, %v8316
    %8318 = vmatprep.mubr.f32.mxu0 0.0
    %8319 = vmatmul.mubr.f32.gmra.mrb[0].mxu0 %v7678
    %v8320 = vpop.f32.mrb[0].mxu0
    %v8321 = vadd.f32 %v8208, %v8320
    %v8322 = vpop.f32.mrb[0].mxu0
    %v8323 = vadd.f32 %v8210, %v8322
    %8324 = vmatprep.mubr.f32.mxu0 0.0
    %8325 = vmatmul.mubr.f32.gmra.mrb[0].mxu0 %v7681
    %v8326 = vpop.f32.mrb[0].mxu0
    %v8327 = vadd.f32 %v8214, %v8326
    %v8328 = vpop.f32.mrb[0].mxu0
    %v8329 = vadd.f32 %v8216, %v8328
    %8330 = vmatprep.mubr.f32.mxu0 0.0
    %8331 = vmatmul.mubr.f32.gmra.mrb[0].mxu0 %v7684
    %v8332 = vpop.f32.mrb[0].mxu0
    %v8333 = vadd.f32 %v8220, %v8332
    %v8334 = vpop.f32.mrb[0].mxu0
    %v8335 = vadd.f32 %v8222, %v8334
    %8336 = vmatprep.mubr.f32.mxu0 0.0
    %8337 = vmatmul.mubr.f32.gmra.mrb[0].mxu0 %v7687
    %v8338 = vpop.f32.mrb[0].mxu0
    %v8339 = vadd.f32 %v8226, %v8338
    %v8340 = vpop.f32.mrb[0].mxu0
    %v8341 = vadd.f32 %v8228, %v8340
    %8342 = vmatprep.mubr.f32.mxu0 0.0
    %8343 = vmatmul.mubr.f32.gmra.mrb[0].mxu0 %v7690
    %v8344 = vpop.f32.mrb[0].mxu0
    %v8345 = vadd.f32 %v8232, %v8344
    %v8346 = vpop.f32.mrb[0].mxu0
    %v8347 = vadd.f32 %v8234, %v8346
    %8348 = vdwg.mxu0
    %8349 = vmatprep.subr.mxu0 %v7694
    %8350 = vmatpush1.msra.mxu0 %v7693
    %8351 = vmatprep.subr.mxu0 %v7703
    %8352 = vmatpush1.msra.mxu0 %v7702
    %8353 = vmatprep.subr.mxu0 %v7712
    %8354 = vmatpush1.msra.mxu0 %v7711
    %8355 = vmatprep.subr.mxu0 %v7721
    %8356 = vmatpush1.msra.mxu0 %v7720
    %8357 = vmatprep.subr.mxu0 %v7730
    %8358 = vmatpush1.msra.mxu0 %v7729
    %8359 = vmatprep.subr.mxu0 %v7739
    %8360 = vmatpush1.msra.mxu0 %v7738
    %8361 = vmatprep.subr.mxu0 %v7748
    %8362 = vmatpush1.msra.mxu0 %v7747
    %8363 = vmatprep.subr.mxu0 %v7757
    %8364 = vmatpush1.msra.mxu0 %v7756
    %8365 = vmatprep.subr.mxu0 %v7766
    %8366 = vmatpush1.msra.mxu0 %v7765
    %8367 = vmatprep.subr.mxu0 %v7775
    %8368 = vmatpush1.msra.mxu0 %v7774
    %8369 = vmatprep.subr.mxu0 %v7784
    %8370 = vmatpush1.msra.mxu0 %v7783
    %8371 = vmatprep.subr.mxu0 %v7793
    %8372 = vmatpush1.msra.mxu0 %v7792
    %8373 = vmatprep.subr.mxu0 %v7802
    %8374 = vmatpush1.msra.mxu0 %v7801
    %8375 = vmatprep.subr.mxu0 %v7811
    %8376 = vmatpush1.msra.mxu0 %v7810
    %8377 = vmatprep.subr.mxu0 %v7820
    %8378 = vmatpush1.msra.mxu0 %v7819
    %8379 = vmatprep.subr.mxu0 %v7829
    %8380 = vmatpush1.msra.mxu0 %v7828
    %8381 = vmatprep.subr.mxu0 %v7838
    %8382 = vmatpush1.msra.mxu0 %v7837
    %8383 = vmatprep.subr.mxu0 %v7847
    %8384 = vmatpush1.msra.mxu0 %v7846
    %8385 = vmatprep.subr.mxu0 %v7856
    %8386 = vmatpush1.msra.mxu0 %v7855
    %8387 = vmatprep.subr.mxu0 %v7865
    %8388 = vmatpush1.msra.mxu0 %v7864
    %8389 = vmatprep.subr.mxu0 %v7874
    %8390 = vmatpush1.msra.mxu0 %v7873
    %8391 = vmatprep.subr.mxu0 %v7883
    %8392 = vmatpush1.msra.mxu0 %v7882
    %8393 = vmatprep.subr.mxu0 %v7892
    %8394 = vmatpush1.msra.mxu0 %v7891
    %8395 = vmatprep.subr.mxu0 %v7901
    %8396 = vmatpush1.msra.mxu0 %v7900
    %8397 = vmatprep.subr.mxu0 %v7910
    %8398 = vmatpush1.msra.mxu0 %v7909
    %8399 = vmatprep.subr.mxu0 %v7919
    %8400 = vmatpush1.msra.mxu0 %v7918
    %8401 = vmatprep.subr.mxu0 %v7928
    %8402 = vmatpush1.msra.mxu0 %v7927
    %8403 = vmatprep.subr.mxu0 %v7937
    %8404 = vmatpush1.msra.mxu0 %v7936
    %8405 = vmatprep.subr.mxu0 %v7946
    %8406 = vmatpush1.msra.mxu0 %v7945
    %8407 = vmatprep.subr.mxu0 %v7955
    %8408 = vmatpush1.msra.mxu0 %v7954
    %8409 = vmatprep.subr.mxu0 %v7964
    %8410 = vmatpush1.msra.mxu0 %v7963
    %8411 = vmatprep.subr.mxu0 %v7973
    %8412 = vmatpush1.msra.mxu0 %v7972
    %8413 = vmatprep.mubr.f32.mxu0 %v7668
    %8414 = vmatmul.mubr.f32.gmra.mrb[0].mxu0 %v7667
    %v8415 = vpop.f32.mrb[0].mxu0
    %v8416 = vadd.f32 0.0, %v8415
    %v8417 = vpop.f32.mrb[0].mxu0
    %v8418 = vadd.f32 0.0, %v8417
    %8419 = vmatprep.mubr.f32.mxu0 %v7671
    %8420 = vmatmul.mubr.f32.gmra.mrb[0].mxu0 %v7670
    %v8421 = vpop.f32.mrb[0].mxu0
    %v8422 = vadd.f32 0.0, %v8421
    %v8423 = vpop.f32.mrb[0].mxu0
    %v8424 = vadd.f32 0.0, %v8423
    %8425 = vmatprep.mubr.f32.mxu0 %v7674
    %8426 = vmatmul.mubr.f32.gmra.mrb[0].mxu0 %v7673
    %v8427 = vpop.f32.mrb[0].mxu0
    %v8428 = vadd.f32 0.0, %v8427
    %v8429 = vpop.f32.mrb[0].mxu0
    %v8430 = vadd.f32 0.0, %v8429
    %8431 = vmatprep.mubr.f32.mxu0 %v7677
    %8432 = vmatmul.mubr.f32.gmra.mrb[0].mxu0 %v7676
    %v8433 = vpop.f32.mrb[0].mxu0
    %v8434 = vadd.f32 0.0, %v8433
    %v8435 = vpop.f32.mrb[0].mxu0
    %v8436 = vadd.f32 0.0, %v8435
    %8437 = vmatprep.mubr.f32.mxu0 %v7680
    %8438 = vmatmul.mubr.f32.gmra.mrb[0].mxu0 %v7679
    %v8439 = vpop.f32.mrb[0].mxu0
    %v8440 = vadd.f32 0.0, %v8439
    %v8441 = vpop.f32.mrb[0].mxu0
    %v8442 = vadd.f32 0.0, %v8441
    %8443 = vmatprep.mubr.f32.mxu0 %v7683
    %8444 = vmatmul.mubr.f32.gmra.mrb[0].mxu0 %v7682
    %v8445 = vpop.f32.mrb[0].mxu0
    %v8446 = vadd.f32 0.0, %v8445
    %v8447 = vpop.f32.mrb[0].mxu0
    %v8448 = vadd.f32 0.0, %v8447
    %8449 = vmatprep.mubr.f32.mxu0 %v7686
    %8450 = vmatmul.mubr.f32.gmra.mrb[0].mxu0 %v7685
    %v8451 = vpop.f32.mrb[0].mxu0
    %v8452 = vadd.f32 0.0, %v8451
    %v8453 = vpop.f32.mrb[0].mxu0
    %v8454 = vadd.f32 0.0, %v8453
    %8455 = vmatprep.mubr.f32.mxu0 %v7689
    %8456 = vmatmul.mubr.f32.gmra.mrb[0].mxu0 %v7688
    %v8457 = vpop.f32.mrb[0].mxu0
    %v8458 = vadd.f32 0.0, %v8457
    %v8459 = vpop.f32.mrb[0].mxu0
    %v8460 = vadd.f32 0.0, %v8459
    %8461 = vdwg.mxu0
    %8462 = vmatprep.subr.mxu0 %v7982
    %8463 = vmatpush1.msra.mxu0 %v7981
    %8464 = vmatprep.subr.mxu0 %v7991
    %8465 = vmatpush1.msra.mxu0 %v7990
    %8466 = vmatprep.subr.mxu0 %v8000
    %8467 = vmatpush1.msra.mxu0 %v7999
    %8468 = vmatprep.subr.mxu0 %v8009
    %8469 = vmatpush1.msra.mxu0 %v8008
    %8470 = vmatprep.subr.mxu0 %v8018
    %8471 = vmatpush1.msra.mxu0 %v8017
    %8472 = vmatprep.subr.mxu0 %v8027
    %8473 = vmatpush1.msra.mxu0 %v8026
    %8474 = vmatprep.subr.mxu0 %v8036
    %8475 = vmatpush1.msra.mxu0 %v8035
    %8476 = vmatprep.subr.mxu0 %v8045
    %8477 = vmatpush1.msra.mxu0 %v8044
    %8478 = vmatprep.subr.mxu0 %v8054
    %8479 = vmatpush1.msra.mxu0 %v8053
    %8480 = vmatprep.subr.mxu0 %v8063
    %8481 = vmatpush1.msra.mxu0 %v8062
    %8482 = vmatprep.subr.mxu0 %v8072
    %8483 = vmatpush1.msra.mxu0 %v8071
    %8484 = vmatprep.subr.mxu0 %v8081
    %8485 = vmatpush1.msra.mxu0 %v8080
    %8486 = vmatprep.subr.mxu0 %v8090
    %8487 = vmatpush1.msra.mxu0 %v8089
    %8488 = vmatprep.subr.mxu0 %v8099
    %8489 = vmatpush1.msra.mxu0 %v8098
    %8490 = vmatprep.subr.mxu0 %v8108
    %8491 = vmatpush1.msra.mxu0 %v8107
    %8492 = vmatprep.subr.mxu0 %v8117
    %8493 = vmatpush1.msra.mxu0 %v8116
    %8494 = vmatprep.subr.mxu0 0.0
    %8495 = vmatpush1.msra.mxu0 0.0
    %8496 = vmatprep.subr.mxu0 0.0
    %8497 = vmatpush1.msra.mxu0 0.0
    %8498 = vmatprep.subr.mxu0 0.0
    %8499 = vmatpush1.msra.mxu0 0.0
    %8500 = vmatprep.subr.mxu0 0.0
    %8501 = vmatpush1.msra.mxu0 0.0
    %8502 = vmatprep.subr.mxu0 0.0
    %8503 = vmatpush1.msra.mxu0 0.0
    %8504 = vmatprep.subr.mxu0 0.0
    %8505 = vmatpush1.msra.mxu0 0.0
    %8506 = vmatprep.subr.mxu0 0.0
    %8507 = vmatpush1.msra.mxu0 0.0
    %8508 = vmatprep.subr.mxu0 0.0
    %8509 = vmatpush1.msra.mxu0 0.0
    %8510 = vmatprep.subr.mxu0 0.0
    %8511 = vmatpush1.msra.mxu0 0.0
    %8512 = vmatprep.subr.mxu0 0.0
    %8513 = vmatpush1.msra.mxu0 0.0
    %8514 = vmatprep.subr.mxu0 0.0
    %8515 = vmatpush1.msra.mxu0 0.0
    %8516 = vmatprep.subr.mxu0 0.0
    %8517 = vmatpush1.msra.mxu0 0.0
    %8518 = vmatprep.subr.mxu0 0.0
    %8519 = vmatpush1.msra.mxu0 0.0
    %8520 = vmatprep.subr.mxu0 0.0
    %8521 = vmatpush1.msra.mxu0 0.0
    %8522 = vmatprep.subr.mxu0 0.0
    %8523 = vmatpush1.msra.mxu0 0.0
    %8524 = vmatprep.subr.mxu0 0.0
    %8525 = vmatpush1.msra.mxu0 0.0
    %8526 = vmatprep.mubr.f32.mxu0 0.0
    %8527 = vmatmul.mubr.f32.gmra.mrb[0].mxu0 %v7669
    %v8528 = vpop.f32.mrb[0].mxu0
    %v8529 = vadd.f32 %v8416, %v8528
    %v8530 = vpop.f32.mrb[0].mxu0
    %v8531 = vadd.f32 %v8418, %v8530
    %8532 = vmatprep.mubr.f32.mxu0 0.0
    %8533 = vmatmul.mubr.f32.gmra.mrb[0].mxu0 %v7672
    %v8534 = vpop.f32.mrb[0].mxu0
    %v8535 = vadd.f32 %v8422, %v8534
    %v8536 = vpop.f32.mrb[0].mxu0
    %v8537 = vadd.f32 %v8424, %v8536
    %8538 = vmatprep.mubr.f32.mxu0 0.0
    %8539 = vmatmul.mubr.f32.gmra.mrb[0].mxu0 %v7675
    %v8540 = vpop.f32.mrb[0].mxu0
    %v8541 = vadd.f32 %v8428, %v8540
    %v8542 = vpop.f32.mrb[0].mxu0
    %v8543 = vadd.f32 %v8430, %v8542
    %8544 = vmatprep.mubr.f32.mxu0 0.0
    %8545 = vmatmul.mubr.f32.gmra.mrb[0].mxu0 %v7678
    %v8546 = vpop.f32.mrb[0].mxu0
    %v8547 = vadd.f32 %v8434, %v8546
    %v8548 = vpop.f32.mrb[0].mxu0
    %v8549 = vadd.f32 %v8436, %v8548
    %8550 = vmatprep.mubr.f32.mxu0 0.0
    %8551 = vmatmul.mubr.f32.gmra.mrb[0].mxu0 %v7681
    %v8552 = vpop.f32.mrb[0].mxu0
    %v8553 = vadd.f32 %v8440, %v8552
    %v8554 = vpop.f32.mrb[0].mxu0
    %v8555 = vadd.f32 %v8442, %v8554
    %8556 = vmatprep.mubr.f32.mxu0 0.0
    %8557 = vmatmul.mubr.f32.gmra.mrb[0].mxu0 %v7684
    %v8558 = vpop.f32.mrb[0].mxu0
    %v8559 = vadd.f32 %v8446, %v8558
    %v8560 = vpop.f32.mrb[0].mxu0
    %v8561 = vadd.f32 %v8448, %v8560
    %8562 = vmatprep.mubr.f32.mxu0 0.0
    %8563 = vmatmul.mubr.f32.gmra.mrb[0].mxu0 %v7687
    %v8564 = vpop.f32.mrb[0].mxu0
    %v8565 = vadd.f32 %v8452, %v8564
    %v8566 = vpop.f32.mrb[0].mxu0
    %v8567 = vadd.f32 %v8454, %v8566
    %8568 = vmatprep.mubr.f32.mxu0 0.0
    %8569 = vmatmul.mubr.f32.gmra.mrb[0].mxu0 %v7690
    %v8570 = vpop.f32.mrb[0].mxu0
    %v8571 = vadd.f32 %v8458, %v8570
    %v8572 = vpop.f32.mrb[0].mxu0
    %v8573 = vadd.f32 %v8460, %v8572
    %8574 = vdwg.mxu0
    %8575 = vmatprep.subr.mxu0 %v7696
    %8576 = vmatpush1.msra.mxu0 %v7695
    %8577 = vmatprep.subr.mxu0 %v7705
    %8578 = vmatpush1.msra.mxu0 %v7704
    %8579 = vmatprep.subr.mxu0 %v7714
    %8580 = vmatpush1.msra.mxu0 %v7713
    %8581 = vmatprep.subr.mxu0 %v7723
    %8582 = vmatpush1.msra.mxu0 %v7722
    %8583 = vmatprep.subr.mxu0 %v7732
    %8584 = vmatpush1.msra.mxu0 %v7731
    %8585 = vmatprep.subr.mxu0 %v7741
    %8586 = vmatpush1.msra.mxu0 %v7740
    %8587 = vmatprep.subr.mxu0 %v7750
    %8588 = vmatpush1.msra.mxu0 %v7749
    %8589 = vmatprep.subr.mxu0 %v7759
    %8590 = vmatpush1.msra.mxu0 %v7758
    %8591 = vmatprep.subr.mxu0 %v7768
    %8592 = vmatpush1.msra.mxu0 %v7767
    %8593 = vmatprep.subr.mxu0 %v7777
    %8594 = vmatpush1.msra.mxu0 %v7776
    %8595 = vmatprep.subr.mxu0 %v7786
    %8596 = vmatpush1.msra.mxu0 %v7785
    %8597 = vmatprep.subr.mxu0 %v7795
    %8598 = vmatpush1.msra.mxu0 %v7794
    %8599 = vmatprep.subr.mxu0 %v7804
    %8600 = vmatpush1.msra.mxu0 %v7803
    %8601 = vmatprep.subr.mxu0 %v7813
    %8602 = vmatpush1.msra.mxu0 %v7812
    %8603 = vmatprep.subr.mxu0 %v7822
    %8604 = vmatpush1.msra.mxu0 %v7821
    %8605 = vmatprep.subr.mxu0 %v7831
    %8606 = vmatpush1.msra.mxu0 %v7830
    %8607 = vmatprep.subr.mxu0 %v7840
    %8608 = vmatpush1.msra.mxu0 %v7839
    %8609 = vmatprep.subr.mxu0 %v7849
    %8610 = vmatpush1.msra.mxu0 %v7848
    %8611 = vmatprep.subr.mxu0 %v7858
    %8612 = vmatpush1.msra.mxu0 %v7857
    %8613 = vmatprep.subr.mxu0 %v7867
    %8614 = vmatpush1.msra.mxu0 %v7866
    %8615 = vmatprep.subr.mxu0 %v7876
    %8616 = vmatpush1.msra.mxu0 %v7875
    %8617 = vmatprep.subr.mxu0 %v7885
    %8618 = vmatpush1.msra.mxu0 %v7884
    %8619 = vmatprep.subr.mxu0 %v7894
    %8620 = vmatpush1.msra.mxu0 %v7893
    %8621 = vmatprep.subr.mxu0 %v7903
    %8622 = vmatpush1.msra.mxu0 %v7902
    %8623 = vmatprep.subr.mxu0 %v7912
    %8624 = vmatpush1.msra.mxu0 %v7911
    %8625 = vmatprep.subr.mxu0 %v7921
    %8626 = vmatpush1.msra.mxu0 %v7920
    %8627 = vmatprep.subr.mxu0 %v7930
    %8628 = vmatpush1.msra.mxu0 %v7929
    %8629 = vmatprep.subr.mxu0 %v7939
    %8630 = vmatpush1.msra.mxu0 %v7938
    %8631 = vmatprep.subr.mxu0 %v7948
    %8632 = vmatpush1.msra.mxu0 %v7947
    %8633 = vmatprep.subr.mxu0 %v7957
    %8634 = vmatpush1.msra.mxu0 %v7956
    %8635 = vmatprep.subr.mxu0 %v7966
    %8636 = vmatpush1.msra.mxu0 %v7965
    %8637 = vmatprep.subr.mxu0 %v7975
    %8638 = vmatpush1.msra.mxu0 %v7974
    %8639 = vmatprep.mubr.f32.mxu0 %v7668
    %8640 = vmatmul.mubr.f32.gmra.mrb[0].mxu0 %v7667
    %v8641 = vpop.f32.mrb[0].mxu0
    %v8642 = vadd.f32 0.0, %v8641
    %v8643 = vpop.f32.mrb[0].mxu0
    %v8644 = vadd.f32 0.0, %v8643
    %8645 = vmatprep.mubr.f32.mxu0 %v7671
    %8646 = vmatmul.mubr.f32.gmra.mrb[0].mxu0 %v7670
    %v8647 = vpop.f32.mrb[0].mxu0
    %v8648 = vadd.f32 0.0, %v8647
    %v8649 = vpop.f32.mrb[0].mxu0
    %v8650 = vadd.f32 0.0, %v8649
    %8651 = vmatprep.mubr.f32.mxu0 %v7674
    %8652 = vmatmul.mubr.f32.gmra.mrb[0].mxu0 %v7673
    %v8653 = vpop.f32.mrb[0].mxu0
    %v8654 = vadd.f32 0.0, %v8653
    %v8655 = vpop.f32.mrb[0].mxu0
    %v8656 = vadd.f32 0.0, %v8655
    %8657 = vmatprep.mubr.f32.mxu0 %v7677
    %8658 = vmatmul.mubr.f32.gmra.mrb[0].mxu0 %v7676
    %v8659 = vpop.f32.mrb[0].mxu0
    %v8660 = vadd.f32 0.0, %v8659
    %v8661 = vpop.f32.mrb[0].mxu0
    %v8662 = vadd.f32 0.0, %v8661
    %8663 = vmatprep.mubr.f32.mxu0 %v7680
    %8664 = vmatmul.mubr.f32.gmra.mrb[0].mxu0 %v7679
    %v8665 = vpop.f32.mrb[0].mxu0
    %v8666 = vadd.f32 0.0, %v8665
    %v8667 = vpop.f32.mrb[0].mxu0
    %v8668 = vadd.f32 0.0, %v8667
    %8669 = vmatprep.mubr.f32.mxu0 %v7683
    %8670 = vmatmul.mubr.f32.gmra.mrb[0].mxu0 %v7682
    %v8671 = vpop.f32.mrb[0].mxu0
    %v8672 = vadd.f32 0.0, %v8671
    %v8673 = vpop.f32.mrb[0].mxu0
    %v8674 = vadd.f32 0.0, %v8673
    %8675 = vmatprep.mubr.f32.mxu0 %v7686
    %8676 = vmatmul.mubr.f32.gmra.mrb[0].mxu0 %v7685
    %v8677 = vpop.f32.mrb[0].mxu0
    %v8678 = vadd.f32 0.0, %v8677
    %v8679 = vpop.f32.mrb[0].mxu0
    %v8680 = vadd.f32 0.0, %v8679
    %8681 = vmatprep.mubr.f32.mxu0 %v7689
    %8682 = vmatmul.mubr.f32.gmra.mrb[0].mxu0 %v7688
    %v8683 = vpop.f32.mrb[0].mxu0
    %v8684 = vadd.f32 0.0, %v8683
    %v8685 = vpop.f32.mrb[0].mxu0
    %v8686 = vadd.f32 0.0, %v8685
    %8687 = vdwg.mxu0
    %8688 = vmatprep.subr.mxu0 %v7984
    %8689 = vmatpush1.msra.mxu0 %v7983
    %8690 = vmatprep.subr.mxu0 %v7993
    %8691 = vmatpush1.msra.mxu0 %v7992
    %8692 = vmatprep.subr.mxu0 %v8002
    %8693 = vmatpush1.msra.mxu0 %v8001
    %8694 = vmatprep.subr.mxu0 %v8011
    %8695 = vmatpush1.msra.mxu0 %v8010
    %8696 = vmatprep.subr.mxu0 %v8020
    %8697 = vmatpush1.msra.mxu0 %v8019
    %8698 = vmatprep.subr.mxu0 %v8029
    %8699 = vmatpush1.msra.mxu0 %v8028
    %8700 = vmatprep.subr.mxu0 %v8038
    %8701 = vmatpush1.msra.mxu0 %v8037
    %8702 = vmatprep.subr.mxu0 %v8047
    %8703 = vmatpush1.msra.mxu0 %v8046
    %8704 = vmatprep.subr.mxu0 %v8056
    %8705 = vmatpush1.msra.mxu0 %v8055
    %8706 = vmatprep.subr.mxu0 %v8065
    %8707 = vmatpush1.msra.mxu0 %v8064
    %8708 = vmatprep.subr.mxu0 %v8074
    %8709 = vmatpush1.msra.mxu0 %v8073
    %8710 = vmatprep.subr.mxu0 %v8083
    %8711 = vmatpush1.msra.mxu0 %v8082
    %8712 = vmatprep.subr.mxu0 %v8092
    %8713 = vmatpush1.msra.mxu0 %v8091
    %8714 = vmatprep.subr.mxu0 %v8101
    %8715 = vmatpush1.msra.mxu0 %v8100
    %8716 = vmatprep.subr.mxu0 %v8110
    %8717 = vmatpush1.msra.mxu0 %v8109
    %8718 = vmatprep.subr.mxu0 %v8119
    %8719 = vmatpush1.msra.mxu0 %v8118
    %8720 = vmatprep.subr.mxu0 0.0
    %8721 = vmatpush1.msra.mxu0 0.0
    %8722 = vmatprep.subr.mxu0 0.0
    %8723 = vmatpush1.msra.mxu0 0.0
    %8724 = vmatprep.subr.mxu0 0.0
    %8725 = vmatpush1.msra.mxu0 0.0
    %8726 = vmatprep.subr.mxu0 0.0
    %8727 = vmatpush1.msra.mxu0 0.0
    %8728 = vmatprep.subr.mxu0 0.0
    %8729 = vmatpush1.msra.mxu0 0.0
    %8730 = vmatprep.subr.mxu0 0.0
    %8731 = vmatpush1.msra.mxu0 0.0
    %8732 = vmatprep.subr.mxu0 0.0
    %8733 = vmatpush1.msra.mxu0 0.0
    %8734 = vmatprep.subr.mxu0 0.0
    %8735 = vmatpush1.msra.mxu0 0.0
    %8736 = vmatprep.subr.mxu0 0.0
    %8737 = vmatpush1.msra.mxu0 0.0
    %8738 = vmatprep.subr.mxu0 0.0
    %8739 = vmatpush1.msra.mxu0 0.0
    %8740 = vmatprep.subr.mxu0 0.0
    %8741 = vmatpush1.msra.mxu0 0.0
    %8742 = vmatprep.subr.mxu0 0.0
    %8743 = vmatpush1.msra.mxu0 0.0
    %8744 = vmatprep.subr.mxu0 0.0
    %8745 = vmatpush1.msra.mxu0 0.0
    %8746 = vmatprep.subr.mxu0 0.0
    %8747 = vmatpush1.msra.mxu0 0.0
    %8748 = vmatprep.subr.mxu0 0.0
    %8749 = vmatpush1.msra.mxu0 0.0
    %8750 = vmatprep.subr.mxu0 0.0
    %8751 = vmatpush1.msra.mxu0 0.0
    %8752 = vmatprep.mubr.f32.mxu0 0.0
    %8753 = vmatmul.mubr.f32.gmra.mrb[0].mxu0 %v7669
    %v8754 = vpop.f32.mrb[0].mxu0
    %v8755 = vadd.f32 %v8642, %v8754
    %v8756 = vpop.f32.mrb[0].mxu0
    %v8757 = vadd.f32 %v8644, %v8756
    %8758 = vmatprep.mubr.f32.mxu0 0.0
    %8759 = vmatmul.mubr.f32.gmra.mrb[0].mxu0 %v7672
    %v8760 = vpop.f32.mrb[0].mxu0
    %v8761 = vadd.f32 %v8648, %v8760
    %v8762 = vpop.f32.mrb[0].mxu0
    %v8763 = vadd.f32 %v8650, %v8762
    %8764 = vmatprep.mubr.f32.mxu0 0.0
    %8765 = vmatmul.mubr.f32.gmra.mrb[0].mxu0 %v7675
    %v8766 = vpop.f32.mrb[0].mxu0
    %v8767 = vadd.f32 %v8654, %v8766
    %v8768 = vpop.f32.mrb[0].mxu0
    %v8769 = vadd.f32 %v8656, %v8768
    %8770 = vmatprep.mubr.f32.mxu0 0.0
    %8771 = vmatmul.mubr.f32.gmra.mrb[0].mxu0 %v7678
    %v8772 = vpop.f32.mrb[0].mxu0
    %v8773 = vadd.f32 %v8660, %v8772
    %v8774 = vpop.f32.mrb[0].mxu0
    %v8775 = vadd.f32 %v8662, %v8774
    %8776 = vmatprep.mubr.f32.mxu0 0.0
    %8777 = vmatmul.mubr.f32.gmra.mrb[0].mxu0 %v7681
    %v8778 = vpop.f32.mrb[0].mxu0
    %v8779 = vadd.f32 %v8666, %v8778
    %v8780 = vpop.f32.mrb[0].mxu0
    %v8781 = vadd.f32 %v8668, %v8780
    %8782 = vmatprep.mubr.f32.mxu0 0.0
    %8783 = vmatmul.mubr.f32.gmra.mrb[0].mxu0 %v7684
    %v8784 = vpop.f32.mrb[0].mxu0
    %v8785 = vadd.f32 %v8672, %v8784
    %v8786 = vpop.f32.mrb[0].mxu0
    %v8787 = vadd.f32 %v8674, %v8786
    %8788 = vmatprep.mubr.f32.mxu0 0.0
    %8789 = vmatmul.mubr.f32.gmra.mrb[0].mxu0 %v7687
    %v8790 = vpop.f32.mrb[0].mxu0
    %v8791 = vadd.f32 %v8678, %v8790
    %v8792 = vpop.f32.mrb[0].mxu0
    %v8793 = vadd.f32 %v8680, %v8792
    %8794 = vmatprep.mubr.f32.mxu0 0.0
    %8795 = vmatmul.mubr.f32.gmra.mrb[0].mxu0 %v7690
    %v8796 = vpop.f32.mrb[0].mxu0
    %v8797 = vadd.f32 %v8684, %v8796
    %v8798 = vpop.f32.mrb[0].mxu0
    %v8799 = vadd.f32 %v8686, %v8798
    %8800 = vdwg.mxu0
    %8801 = vmatprep.subr.mxu0 %v7698
    %8802 = vmatpush1.msra.mxu0 %v7697
    %8803 = vmatprep.subr.mxu0 %v7707
    %8804 = vmatpush1.msra.mxu0 %v7706
    %8805 = vmatprep.subr.mxu0 %v7716
    %8806 = vmatpush1.msra.mxu0 %v7715
    %8807 = vmatprep.subr.mxu0 %v7725
    %8808 = vmatpush1.msra.mxu0 %v7724
    %8809 = vmatprep.subr.mxu0 %v7734
    %8810 = vmatpush1.msra.mxu0 %v7733
    %8811 = vmatprep.subr.mxu0 %v7743
    %8812 = vmatpush1.msra.mxu0 %v7742
    %8813 = vmatprep.subr.mxu0 %v7752
    %8814 = vmatpush1.msra.mxu0 %v7751
    %8815 = vmatprep.subr.mxu0 %v7761
    %8816 = vmatpush1.msra.mxu0 %v7760
    %8817 = vmatprep.subr.mxu0 %v7770
    %8818 = vmatpush1.msra.mxu0 %v7769
    %8819 = vmatprep.subr.mxu0 %v7779
    %8820 = vmatpush1.msra.mxu0 %v7778
    %8821 = vmatprep.subr.mxu0 %v7788
    %8822 = vmatpush1.msra.mxu0 %v7787
    %8823 = vmatprep.subr.mxu0 %v7797
    %8824 = vmatpush1.msra.mxu0 %v7796
    %8825 = vmatprep.subr.mxu0 %v7806
    %8826 = vmatpush1.msra.mxu0 %v7805
    %8827 = vmatprep.subr.mxu0 %v7815
    %8828 = vmatpush1.msra.mxu0 %v7814
    %8829 = vmatprep.subr.mxu0 %v7824
    %8830 = vmatpush1.msra.mxu0 %v7823
    %8831 = vmatprep.subr.mxu0 %v7833
    %8832 = vmatpush1.msra.mxu0 %v7832
    %8833 = vmatprep.subr.mxu0 %v7842
    %8834 = vmatpush1.msra.mxu0 %v7841
    %8835 = vmatprep.subr.mxu0 %v7851
    %8836 = vmatpush1.msra.mxu0 %v7850
    %8837 = vmatprep.subr.mxu0 %v7860
    %8838 = vmatpush1.msra.mxu0 %v7859
    %8839 = vmatprep.subr.mxu0 %v7869
    %8840 = vmatpush1.msra.mxu0 %v7868
    %8841 = vmatprep.subr.mxu0 %v7878
    %8842 = vmatpush1.msra.mxu0 %v7877
    %8843 = vmatprep.subr.mxu0 %v7887
    %8844 = vmatpush1.msra.mxu0 %v7886
    %8845 = vmatprep.subr.mxu0 %v7896
    %8846 = vmatpush1.msra.mxu0 %v7895
    %8847 = vmatprep.subr.mxu0 %v7905
    %8848 = vmatpush1.msra.mxu0 %v7904
    %8849 = vmatprep.subr.mxu0 %v7914
    %8850 = vmatpush1.msra.mxu0 %v7913
    %8851 = vmatprep.subr.mxu0 %v7923
    %8852 = vmatpush1.msra.mxu0 %v7922
    %8853 = vmatprep.subr.mxu0 %v7932
    %8854 = vmatpush1.msra.mxu0 %v7931
    %8855 = vmatprep.subr.mxu0 %v7941
    %8856 = vmatpush1.msra.mxu0 %v7940
    %8857 = vmatprep.subr.mxu0 %v7950
    %8858 = vmatpush1.msra.mxu0 %v7949
    %8859 = vmatprep.subr.mxu0 %v7959
    %8860 = vmatpush1.msra.mxu0 %v7958
    %8861 = vmatprep.subr.mxu0 %v7968
    %8862 = vmatpush1.msra.mxu0 %v7967
    %8863 = vmatprep.subr.mxu0 %v7977
    %8864 = vmatpush1.msra.mxu0 %v7976
    %8865 = vmatprep.mubr.f32.mxu0 %v7668
    %8866 = vmatmul.mubr.f32.gmra.mrb[0].mxu0 %v7667
    %v8867 = vpop.f32.mrb[0].mxu0
    %v8868 = vadd.f32 0.0, %v8867
    %v8869 = vpop.f32.mrb[0].mxu0
    %v8870 = vadd.f32 0.0, %v8869
    %8871 = vmatprep.mubr.f32.mxu0 %v7671
    %8872 = vmatmul.mubr.f32.gmra.mrb[0].mxu0 %v7670
    %v8873 = vpop.f32.mrb[0].mxu0
    %v8874 = vadd.f32 0.0, %v8873
    %v8875 = vpop.f32.mrb[0].mxu0
    %v8876 = vadd.f32 0.0, %v8875
    %8877 = vmatprep.mubr.f32.mxu0 %v7674
    %8878 = vmatmul.mubr.f32.gmra.mrb[0].mxu0 %v7673
    %v8879 = vpop.f32.mrb[0].mxu0
    %v8880 = vadd.f32 0.0, %v8879
    %v8881 = vpop.f32.mrb[0].mxu0
    %v8882 = vadd.f32 0.0, %v8881
    %8883 = vmatprep.mubr.f32.mxu0 %v7677
    %8884 = vmatmul.mubr.f32.gmra.mrb[0].mxu0 %v7676
    %v8885 = vpop.f32.mrb[0].mxu0
    %v8886 = vadd.f32 0.0, %v8885
    %v8887 = vpop.f32.mrb[0].mxu0
    %v8888 = vadd.f32 0.0, %v8887
    %8889 = vmatprep.mubr.f32.mxu0 %v7680
    %8890 = vmatmul.mubr.f32.gmra.mrb[0].mxu0 %v7679
    %v8891 = vpop.f32.mrb[0].mxu0
    %v8892 = vadd.f32 0.0, %v8891
    %v8893 = vpop.f32.mrb[0].mxu0
    %v8894 = vadd.f32 0.0, %v8893
    %8895 = vmatprep.mubr.f32.mxu0 %v7683
    %8896 = vmatmul.mubr.f32.gmra.mrb[0].mxu0 %v7682
    %v8897 = vpop.f32.mrb[0].mxu0
    %v8898 = vadd.f32 0.0, %v8897
    %v8899 = vpop.f32.mrb[0].mxu0
    %v8900 = vadd.f32 0.0, %v8899
    %8901 = vmatprep.mubr.f32.mxu0 %v7686
    %8902 = vmatmul.mubr.f32.gmra.mrb[0].mxu0 %v7685
    %v8903 = vpop.f32.mrb[0].mxu0
    %v8904 = vadd.f32 0.0, %v8903
    %v8905 = vpop.f32.mrb[0].mxu0
    %v8906 = vadd.f32 0.0, %v8905
    %8907 = vmatprep.mubr.f32.mxu0 %v7689
    %8908 = vmatmul.mubr.f32.gmra.mrb[0].mxu0 %v7688
    %v8909 = vpop.f32.mrb[0].mxu0
    %v8910 = vadd.f32 0.0, %v8909
    %v8911 = vpop.f32.mrb[0].mxu0
    %v8912 = vadd.f32 0.0, %v8911
    %8913 = vdwg.mxu0
    %8914 = vmatprep.subr.mxu0 %v7986
    %8915 = vmatpush1.msra.mxu0 %v7985
    %8916 = vmatprep.subr.mxu0 %v7995
    %8917 = vmatpush1.msra.mxu0 %v7994
    %8918 = vmatprep.subr.mxu0 %v8004
    %8919 = vmatpush1.msra.mxu0 %v8003
    %8920 = vmatprep.subr.mxu0 %v8013
    %8921 = vmatpush1.msra.mxu0 %v8012
    %8922 = vmatprep.subr.mxu0 %v8022
    %8923 = vmatpush1.msra.mxu0 %v8021
    %8924 = vmatprep.subr.mxu0 %v8031
    %8925 = vmatpush1.msra.mxu0 %v8030
    %8926 = vmatprep.subr.mxu0 %v8040
    %8927 = vmatpush1.msra.mxu0 %v8039
    %8928 = vmatprep.subr.mxu0 %v8049
    %8929 = vmatpush1.msra.mxu0 %v8048
    %8930 = vmatprep.subr.mxu0 %v8058
    %8931 = vmatpush1.msra.mxu0 %v8057
    %8932 = vmatprep.subr.mxu0 %v8067
    %8933 = vmatpush1.msra.mxu0 %v8066
    %8934 = vmatprep.subr.mxu0 %v8076
    %8935 = vmatpush1.msra.mxu0 %v8075
    %8936 = vmatprep.subr.mxu0 %v8085
    %8937 = vmatpush1.msra.mxu0 %v8084
    %8938 = vmatprep.subr.mxu0 %v8094
    %8939 = vmatpush1.msra.mxu0 %v8093
    %8940 = vmatprep.subr.mxu0 %v8103
    %8941 = vmatpush1.msra.mxu0 %v8102
    %8942 = vmatprep.subr.mxu0 %v8112
    %8943 = vmatpush1.msra.mxu0 %v8111
    %8944 = vmatprep.subr.mxu0 %v8121
    %8945 = vmatpush1.msra.mxu0 %v8120
    %8946 = vmatprep.subr.mxu0 0.0
    %8947 = vmatpush1.msra.mxu0 0.0
    %8948 = vmatprep.subr.mxu0 0.0
    %8949 = vmatpush1.msra.mxu0 0.0
    %8950 = vmatprep.subr.mxu0 0.0
    %8951 = vmatpush1.msra.mxu0 0.0
    %8952 = vmatprep.subr.mxu0 0.0
    %8953 = vmatpush1.msra.mxu0 0.0
    %8954 = vmatprep.subr.mxu0 0.0
    %8955 = vmatpush1.msra.mxu0 0.0
    %8956 = vmatprep.subr.mxu0 0.0
    %8957 = vmatpush1.msra.mxu0 0.0
    %8958 = vmatprep.subr.mxu0 0.0
    %8959 = vmatpush1.msra.mxu0 0.0
    %8960 = vmatprep.subr.mxu0 0.0
    %8961 = vmatpush1.msra.mxu0 0.0
    %8962 = vmatprep.subr.mxu0 0.0
    %8963 = vmatpush1.msra.mxu0 0.0
    %8964 = vmatprep.subr.mxu0 0.0
    %8965 = vmatpush1.msra.mxu0 0.0
    %8966 = vmatprep.subr.mxu0 0.0
    %8967 = vmatpush1.msra.mxu0 0.0
    %8968 = vmatprep.subr.mxu0 0.0
    %8969 = vmatpush1.msra.mxu0 0.0
    %8970 = vmatprep.subr.mxu0 0.0
    %8971 = vmatpush1.msra.mxu0 0.0
    %8972 = vmatprep.subr.mxu0 0.0
    %8973 = vmatpush1.msra.mxu0 0.0
    %8974 = vmatprep.subr.mxu0 0.0
    %8975 = vmatpush1.msra.mxu0 0.0
    %8976 = vmatprep.subr.mxu0 0.0
    %8977 = vmatpush1.msra.mxu0 0.0
    %8978 = vmatprep.mubr.f32.mxu0 0.0
    %8979 = vmatmul.mubr.f32.gmra.mrb[0].mxu0 %v7669
    %v8980 = vpop.f32.mrb[0].mxu0
    %v8981 = vadd.f32 %v8868, %v8980
    %v8982 = vpop.f32.mrb[0].mxu0
    %v8983 = vadd.f32 %v8870, %v8982
    %8984 = vmatprep.mubr.f32.mxu0 0.0
    %8985 = vmatmul.mubr.f32.gmra.mrb[0].mxu0 %v7672
    %v8986 = vpop.f32.mrb[0].mxu0
    %v8987 = vadd.f32 %v8874, %v8986
    %v8988 = vpop.f32.mrb[0].mxu0
    %v8989 = vadd.f32 %v8876, %v8988
    %8990 = vmatprep.mubr.f32.mxu0 0.0
    %8991 = vmatmul.mubr.f32.gmra.mrb[0].mxu0 %v7675
    %v8992 = vpop.f32.mrb[0].mxu0
    %v8993 = vadd.f32 %v8880, %v8992
    %v8994 = vpop.f32.mrb[0].mxu0
    %v8995 = vadd.f32 %v8882, %v8994
    %8996 = vmatprep.mubr.f32.mxu0 0.0
    %8997 = vmatmul.mubr.f32.gmra.mrb[0].mxu0 %v7678
    %v8998 = vpop.f32.mrb[0].mxu0
    %v8999 = vadd.f32 %v8886, %v8998
    %v9000 = vpop.f32.mrb[0].mxu0
    %v9001 = vadd.f32 %v8888, %v9000
    %9002 = vmatprep.mubr.f32.mxu0 0.0
    %9003 = vmatmul.mubr.f32.gmra.mrb[0].mxu0 %v7681
    %v9004 = vpop.f32.mrb[0].mxu0
    %v9005 = vadd.f32 %v8892, %v9004
    %v9006 = vpop.f32.mrb[0].mxu0
    %v9007 = vadd.f32 %v8894, %v9006
    %9008 = vmatprep.mubr.f32.mxu0 0.0
    %9009 = vmatmul.mubr.f32.gmra.mrb[0].mxu0 %v7684
    %v9010 = vpop.f32.mrb[0].mxu0
    %v9011 = vadd.f32 %v8898, %v9010
    %v9012 = vpop.f32.mrb[0].mxu0
    %v9013 = vadd.f32 %v8900, %v9012
    %9014 = vmatprep.mubr.f32.mxu0 0.0
    %9015 = vmatmul.mubr.f32.gmra.mrb[0].mxu0 %v7687
    %v9016 = vpop.f32.mrb[0].mxu0
    %v9017 = vadd.f32 %v8904, %v9016
    %v9018 = vpop.f32.mrb[0].mxu0
    %v9019 = vadd.f32 %v8906, %v9018
    %9020 = vmatprep.mubr.f32.mxu0 0.0
    %9021 = vmatmul.mubr.f32.gmra.mrb[0].mxu0 %v7690
    %v9022 = vpop.f32.mrb[0].mxu0
    %v9023 = vadd.f32 %v8910, %v9022
    %v9024 = vpop.f32.mrb[0].mxu0
    %v9025 = vadd.f32 %v8912, %v9024
    %9026 = vdwg.mxu0
    %9027 = vmatprep.subr.mxu0 0.0
    %9028 = vmatpush1.msra.mxu0 %v7699
    %9029 = vmatprep.subr.mxu0 0.0
    %9030 = vmatpush1.msra.mxu0 %v7708
    %9031 = vmatprep.subr.mxu0 0.0
    %9032 = vmatpush1.msra.mxu0 %v7717
    %9033 = vmatprep.subr.mxu0 0.0
    %9034 = vmatpush1.msra.mxu0 %v7726
    %9035 = vmatprep.subr.mxu0 0.0
    %9036 = vmatpush1.msra.mxu0 %v7735
    %9037 = vmatprep.subr.mxu0 0.0
    %9038 = vmatpush1.msra.mxu0 %v7744
    %9039 = vmatprep.subr.mxu0 0.0
    %9040 = vmatpush1.msra.mxu0 %v7753
    %9041 = vmatprep.subr.mxu0 0.0
    %9042 = vmatpush1.msra.mxu0 %v7762
    %9043 = vmatprep.subr.mxu0 0.0
    %9044 = vmatpush1.msra.mxu0 %v7771
    %9045 = vmatprep.subr.mxu0 0.0
    %9046 = vmatpush1.msra.mxu0 %v7780
    %9047 = vmatprep.subr.mxu0 0.0
    %9048 = vmatpush1.msra.mxu0 %v7789
    %9049 = vmatprep.subr.mxu0 0.0
    %9050 = vmatpush1.msra.mxu0 %v7798
    %9051 = vmatprep.subr.mxu0 0.0
    %9052 = vmatpush1.msra.mxu0 %v7807
    %9053 = vmatprep.subr.mxu0 0.0
    %9054 = vmatpush1.msra.mxu0 %v7816
    %9055 = vmatprep.subr.mxu0 0.0
    %9056 = vmatpush1.msra.mxu0 %v7825
    %9057 = vmatprep.subr.mxu0 0.0
    %9058 = vmatpush1.msra.mxu0 %v7834
    %9059 = vmatprep.subr.mxu0 0.0
    %9060 = vmatpush1.msra.mxu0 %v7843
    %9061 = vmatprep.subr.mxu0 0.0
    %9062 = vmatpush1.msra.mxu0 %v7852
    %9063 = vmatprep.subr.mxu0 0.0
    %9064 = vmatpush1.msra.mxu0 %v7861
    %9065 = vmatprep.subr.mxu0 0.0
    %9066 = vmatpush1.msra.mxu0 %v7870
    %9067 = vmatprep.subr.mxu0 0.0
    %9068 = vmatpush1.msra.mxu0 %v7879
    %9069 = vmatprep.subr.mxu0 0.0
    %9070 = vmatpush1.msra.mxu0 %v7888
    %9071 = vmatprep.subr.mxu0 0.0
    %9072 = vmatpush1.msra.mxu0 %v7897
    %9073 = vmatprep.subr.mxu0 0.0
    %9074 = vmatpush1.msra.mxu0 %v7906
    %9075 = vmatprep.subr.mxu0 0.0
    %9076 = vmatpush1.msra.mxu0 %v7915
    %9077 = vmatprep.subr.mxu0 0.0
    %9078 = vmatpush1.msra.mxu0 %v7924
    %9079 = vmatprep.subr.mxu0 0.0
    %9080 = vmatpush1.msra.mxu0 %v7933
    %9081 = vmatprep.subr.mxu0 0.0
    %9082 = vmatpush1.msra.mxu0 %v7942
    %9083 = vmatprep.subr.mxu0 0.0
    %9084 = vmatpush1.msra.mxu0 %v7951
    %9085 = vmatprep.subr.mxu0 0.0
    %9086 = vmatpush1.msra.mxu0 %v7960
    %9087 = vmatprep.subr.mxu0 0.0
    %9088 = vmatpush1.msra.mxu0 %v7969
    %9089 = vmatprep.subr.mxu0 0.0
    %9090 = vmatpush1.msra.mxu0 %v7978
    %9091 = vmatprep.mubr.f32.mxu0 %v7668
    %9092 = vmatmul.mubr.f32.gmra.mrb[0].mxu0 %v7667
    %v9093 = vpop.f32.mrb[0].mxu0
    %v9094 = vadd.f32 0.0, %v9093
    %v9095 = vpop.f32.mrb[0].mxu0
    %9096 = vmatprep.mubr.f32.mxu0 %v7671
    %9097 = vmatmul.mubr.f32.gmra.mrb[0].mxu0 %v7670
    %v9098 = vpop.f32.mrb[0].mxu0
    %v9099 = vadd.f32 0.0, %v9098
    %v9100 = vpop.f32.mrb[0].mxu0
    %9101 = vmatprep.mubr.f32.mxu0 %v7674
    %9102 = vmatmul.mubr.f32.gmra.mrb[0].mxu0 %v7673
    %v9103 = vpop.f32.mrb[0].mxu0
    %v9104 = vadd.f32 0.0, %v9103
    %v9105 = vpop.f32.mrb[0].mxu0
    %9106 = vmatprep.mubr.f32.mxu0 %v7677
    %9107 = vmatmul.mubr.f32.gmra.mrb[0].mxu0 %v7676
    %v9108 = vpop.f32.mrb[0].mxu0
    %v9109 = vadd.f32 0.0, %v9108
    %v9110 = vpop.f32.mrb[0].mxu0
    %9111 = vmatprep.mubr.f32.mxu0 %v7680
    %9112 = vmatmul.mubr.f32.gmra.mrb[0].mxu0 %v7679
    %v9113 = vpop.f32.mrb[0].mxu0
    %v9114 = vadd.f32 0.0, %v9113
    %v9115 = vpop.f32.mrb[0].mxu0
    %9116 = vmatprep.mubr.f32.mxu0 %v7683
    %9117 = vmatmul.mubr.f32.gmra.mrb[0].mxu0 %v7682
    %v9118 = vpop.f32.mrb[0].mxu0
    %v9119 = vadd.f32 0.0, %v9118
    %v9120 = vpop.f32.mrb[0].mxu0
    %9121 = vmatprep.mubr.f32.mxu0 %v7686
    %9122 = vmatmul.mubr.f32.gmra.mrb[0].mxu0 %v7685
    %v9123 = vpop.f32.mrb[0].mxu0
    %v9124 = vadd.f32 0.0, %v9123
    %v9125 = vpop.f32.mrb[0].mxu0
    %9126 = vmatprep.mubr.f32.mxu0 %v7689
    %9127 = vmatmul.mubr.f32.gmra.mrb[0].mxu0 %v7688
    %v9128 = vpop.f32.mrb[0].mxu0
    %v9129 = vadd.f32 0.0, %v9128
    %v9130 = vpop.f32.mrb[0].mxu0
    %9131 = vdwg.mxu0
    %9132 = vmatprep.subr.mxu0 0.0
    %9133 = vmatpush1.msra.mxu0 %v7987
    %9134 = vmatprep.subr.mxu0 0.0
    %9135 = vmatpush1.msra.mxu0 %v7996
    %9136 = vmatprep.subr.mxu0 0.0
    %9137 = vmatpush1.msra.mxu0 %v8005
    %9138 = vmatprep.subr.mxu0 0.0
    %9139 = vmatpush1.msra.mxu0 %v8014
    %9140 = vmatprep.subr.mxu0 0.0
    %9141 = vmatpush1.msra.mxu0 %v8023
    %9142 = vmatprep.subr.mxu0 0.0
    %9143 = vmatpush1.msra.mxu0 %v8032
    %9144 = vmatprep.subr.mxu0 0.0
    %9145 = vmatpush1.msra.mxu0 %v8041
    %9146 = vmatprep.subr.mxu0 0.0
    %9147 = vmatpush1.msra.mxu0 %v8050
    %9148 = vmatprep.subr.mxu0 0.0
    %9149 = vmatpush1.msra.mxu0 %v8059
    %9150 = vmatprep.subr.mxu0 0.0
    %9151 = vmatpush1.msra.mxu0 %v8068
    %9152 = vmatprep.subr.mxu0 0.0
    %9153 = vmatpush1.msra.mxu0 %v8077
    %9154 = vmatprep.subr.mxu0 0.0
    %9155 = vmatpush1.msra.mxu0 %v8086
    %9156 = vmatprep.subr.mxu0 0.0
    %9157 = vmatpush1.msra.mxu0 %v8095
    %9158 = vmatprep.subr.mxu0 0.0
    %9159 = vmatpush1.msra.mxu0 %v8104
    %9160 = vmatprep.subr.mxu0 0.0
    %9161 = vmatpush1.msra.mxu0 %v8113
    %9162 = vmatprep.subr.mxu0 0.0
    %9163 = vmatpush1.msra.mxu0 %v8122
    %9164 = vmatprep.subr.mxu0 0.0
    %9165 = vmatpush1.msra.mxu0 0.0
    %9166 = vmatprep.subr.mxu0 0.0
    %9167 = vmatpush1.msra.mxu0 0.0
    %9168 = vmatprep.subr.mxu0 0.0
    %9169 = vmatpush1.msra.mxu0 0.0
    %9170 = vmatprep.subr.mxu0 0.0
    %9171 = vmatpush1.msra.mxu0 0.0
    %9172 = vmatprep.subr.mxu0 0.0
    %9173 = vmatpush1.msra.mxu0 0.0
    %9174 = vmatprep.subr.mxu0 0.0
    %9175 = vmatpush1.msra.mxu0 0.0
    %9176 = vmatprep.subr.mxu0 0.0
    %9177 = vmatpush1.msra.mxu0 0.0
    %9178 = vmatprep.subr.mxu0 0.0
    %9179 = vmatpush1.msra.mxu0 0.0
    %9180 = vmatprep.subr.mxu0 0.0
    %9181 = vmatpush1.msra.mxu0 0.0
    %9182 = vmatprep.subr.mxu0 0.0
    %9183 = vmatpush1.msra.mxu0 0.0
    %9184 = vmatprep.subr.mxu0 0.0
    %9185 = vmatpush1.msra.mxu0 0.0
    %9186 = vmatprep.subr.mxu0 0.0
    %9187 = vmatpush1.msra.mxu0 0.0
    %9188 = vmatprep.subr.mxu0 0.0
    %9189 = vmatpush1.msra.mxu0 0.0
    %9190 = vmatprep.subr.mxu0 0.0
    %9191 = vmatpush1.msra.mxu0 0.0
    %9192 = vmatprep.subr.mxu0 0.0
    %9193 = vmatpush1.msra.mxu0 0.0
    %9194 = vmatprep.subr.mxu0 0.0
    %9195 = vmatpush1.msra.mxu0 0.0
    %9196 = vmatprep.mubr.f32.mxu0 0.0
    %9197 = vmatmul.mubr.f32.gmra.mrb[0].mxu0 %v7669
    %v9198 = vpop.f32.mrb[0].mxu0
    %v9199 = vadd.f32 %v9094, %v9198
    %v9200 = vpop.f32.mrb[0].mxu0
    %9201 = vmatprep.mubr.f32.mxu0 0.0
    %9202 = vmatmul.mubr.f32.gmra.mrb[0].mxu0 %v7672
    %v9203 = vpop.f32.mrb[0].mxu0
    %v9204 = vadd.f32 %v9099, %v9203
    %v9205 = vpop.f32.mrb[0].mxu0
    %9206 = vmatprep.mubr.f32.mxu0 0.0
    %9207 = vmatmul.mubr.f32.gmra.mrb[0].mxu0 %v7675
    %v9208 = vpop.f32.mrb[0].mxu0
    %v9209 = vadd.f32 %v9104, %v9208
    %v9210 = vpop.f32.mrb[0].mxu0
    %9211 = vmatprep.mubr.f32.mxu0 0.0
    %9212 = vmatmul.mubr.f32.gmra.mrb[0].mxu0 %v7678
    %v9213 = vpop.f32.mrb[0].mxu0
    %v9214 = vadd.f32 %v9109, %v9213
    %v9215 = vpop.f32.mrb[0].mxu0
    %9216 = vmatprep.mubr.f32.mxu0 0.0
    %9217 = vmatmul.mubr.f32.gmra.mrb[0].mxu0 %v7681
    %v9218 = vpop.f32.mrb[0].mxu0
    %v9219 = vadd.f32 %v9114, %v9218
    %v9220 = vpop.f32.mrb[0].mxu0
    %9221 = vmatprep.mubr.f32.mxu0 0.0
    %9222 = vmatmul.mubr.f32.gmra.mrb[0].mxu0 %v7684
    %v9223 = vpop.f32.mrb[0].mxu0
    %v9224 = vadd.f32 %v9119, %v9223
    %v9225 = vpop.f32.mrb[0].mxu0
    %9226 = vmatprep.mubr.f32.mxu0 0.0
    %9227 = vmatmul.mubr.f32.gmra.mrb[0].mxu0 %v7687
    %v9228 = vpop.f32.mrb[0].mxu0
    %v9229 = vadd.f32 %v9124, %v9228
    %v9230 = vpop.f32.mrb[0].mxu0
    %9231 = vmatprep.mubr.f32.mxu0 0.0
    %9232 = vmatmul.mubr.f32.gmra.mrb[0].mxu0 %v7690
    %v9233 = vpop.f32.mrb[0].mxu0
    %v9234 = vadd.f32 %v9129, %v9233
    %v9235 = vpop.f32.mrb[0].mxu0
    %9236 = vdwg.mxu0
    %s9237 = scalar_lea.vmem [#allocation23], 24
    %v9238 = vld [vmem:[%s9237] sm:$0xff]
    %s9239 = scalar_lea.vmem [#allocation23], 32
    %v9240 = vld [vmem:[%s9239] sm:$0xff]
    %v9242 = vsel %vm715, %v9240, 0
    %9244 = vmatprep.subr.mxu0 %v8755
    %9245 = vmatpush1.msra.mxu0 %v8531
    %9246 = vmatprep.subr.mxu0 %v8761
    %9247 = vmatpush1.msra.mxu0 %v8537
    %9248 = vmatprep.subr.mxu0 %v8767
    %9249 = vmatpush1.msra.mxu0 %v8543
    %9250 = vmatprep.subr.mxu0 %v8773
    %9251 = vmatpush1.msra.mxu0 %v8549
    %9252 = vmatprep.subr.mxu0 %v8779
    %9253 = vmatpush1.msra.mxu0 %v8555
    %9254 = vmatprep.subr.mxu0 %v8785
    %9255 = vmatpush1.msra.mxu0 %v8561
    %9256 = vmatprep.subr.mxu0 %v8791
    %9257 = vmatpush1.msra.mxu0 %v8567
    %9258 = vmatprep.subr.mxu0 %v8797
    %9259 = vmatpush1.msra.mxu0 %v8573
    %9260 = vmatprep.subr.mxu0 0.0
    %9261 = vmatpush1.msra.mxu0 0.0
    %9262 = vmatprep.subr.mxu0 0.0
    %9263 = vmatpush1.msra.mxu0 0.0
    %9264 = vmatprep.subr.mxu0 0.0
    %9265 = vmatpush1.msra.mxu0 0.0
    %9266 = vmatprep.subr.mxu0 0.0
    %9267 = vmatpush1.msra.mxu0 0.0
    %9268 = vmatprep.subr.mxu0 0.0
    %9269 = vmatpush1.msra.mxu0 0.0
    %9270 = vmatprep.subr.mxu0 0.0
    %9271 = vmatpush1.msra.mxu0 0.0
    %9272 = vmatprep.subr.mxu0 0.0
    %9273 = vmatpush1.msra.mxu0 0.0
    %9274 = vmatprep.subr.mxu0 0.0
    %9275 = vmatpush1.msra.mxu0 0.0
    %9276 = vmatprep.subr.mxu0 0.0
    %9277 = vmatpush1.msra.mxu0 0.0
    %9278 = vmatprep.subr.mxu0 0.0
    %9279 = vmatpush1.msra.mxu0 0.0
    %9280 = vmatprep.subr.mxu0 0.0
    %9281 = vmatpush1.msra.mxu0 0.0
    %9282 = vmatprep.subr.mxu0 0.0
    %9283 = vmatpush1.msra.mxu0 0.0
    %9284 = vmatprep.subr.mxu0 0.0
    %9285 = vmatpush1.msra.mxu0 0.0
    %9286 = vmatprep.subr.mxu0 0.0
    %9287 = vmatpush1.msra.mxu0 0.0
    %9288 = vmatprep.subr.mxu0 0.0
    %9289 = vmatpush1.msra.mxu0 0.0
    %9290 = vmatprep.subr.mxu0 0.0
    %9291 = vmatpush1.msra.mxu0 0.0
    %9292 = vmatprep.subr.mxu0 0.0
    %9293 = vmatpush1.msra.mxu0 0.0
    %9294 = vmatprep.subr.mxu0 0.0
    %9295 = vmatpush1.msra.mxu0 0.0
    %9296 = vmatprep.subr.mxu0 0.0
    %9297 = vmatpush1.msra.mxu0 0.0
    %9298 = vmatprep.subr.mxu0 0.0
    %9299 = vmatpush1.msra.mxu0 0.0
    %9300 = vmatprep.subr.mxu0 0.0
    %9301 = vmatpush1.msra.mxu0 0.0
    %9302 = vmatprep.subr.mxu0 0.0
    %9303 = vmatpush1.msra.mxu0 0.0
    %9304 = vmatprep.subr.mxu0 0.0
    %9305 = vmatpush1.msra.mxu0 0.0
    %9306 = vmatprep.subr.mxu0 0.0
    %9307 = vmatpush1.msra.mxu0 0.0
    %9308 = vmatprep.mubr.f32.mxu0 0.0
    %9309 = vmatmul.mubr.f32.gmra.mrb[0].mxu0 %v9242
    %v9310 = vpop.f32.mrb[0].mxu0
    %v9311 = vadd.f32 0.0, %v9310
    %v9312 = vpop.f32.mrb[0].mxu0
    %v9313 = vadd.f32 0.0, %v9312
    %9314 = vdwg.mxu0
    %9315 = vmatprep.subr.mxu0 0.0
    %9316 = vmatpush1.msra.mxu0 %v8757
    %9317 = vmatprep.subr.mxu0 0.0
    %9318 = vmatpush1.msra.mxu0 %v8763
    %9319 = vmatprep.subr.mxu0 0.0
    %9320 = vmatpush1.msra.mxu0 %v8769
    %9321 = vmatprep.subr.mxu0 0.0
    %9322 = vmatpush1.msra.mxu0 %v8775
    %9323 = vmatprep.subr.mxu0 0.0
    %9324 = vmatpush1.msra.mxu0 %v8781
    %9325 = vmatprep.subr.mxu0 0.0
    %9326 = vmatpush1.msra.mxu0 %v8787
    %9327 = vmatprep.subr.mxu0 0.0
    %9328 = vmatpush1.msra.mxu0 %v8793
    %9329 = vmatprep.subr.mxu0 0.0
    %9330 = vmatpush1.msra.mxu0 %v8799
    %9331 = vmatprep.subr.mxu0 0.0
    %9332 = vmatpush1.msra.mxu0 0.0
    %9333 = vmatprep.subr.mxu0 0.0
    %9334 = vmatpush1.msra.mxu0 0.0
    %9335 = vmatprep.subr.mxu0 0.0
    %9336 = vmatpush1.msra.mxu0 0.0
    %9337 = vmatprep.subr.mxu0 0.0
    %9338 = vmatpush1.msra.mxu0 0.0
    %9339 = vmatprep.subr.mxu0 0.0
    %9340 = vmatpush1.msra.mxu0 0.0
    %9341 = vmatprep.subr.mxu0 0.0
    %9342 = vmatpush1.msra.mxu0 0.0
    %9343 = vmatprep.subr.mxu0 0.0
    %9344 = vmatpush1.msra.mxu0 0.0
    %9345 = vmatprep.subr.mxu0 0.0
    %9346 = vmatpush1.msra.mxu0 0.0
    %9347 = vmatprep.subr.mxu0 0.0
    %9348 = vmatpush1.msra.mxu0 0.0
    %9349 = vmatprep.subr.mxu0 0.0
    %9350 = vmatpush1.msra.mxu0 0.0
    %9351 = vmatprep.subr.mxu0 0.0
    %9352 = vmatpush1.msra.mxu0 0.0
    %9353 = vmatprep.subr.mxu0 0.0
    %9354 = vmatpush1.msra.mxu0 0.0
    %9355 = vmatprep.subr.mxu0 0.0
    %9356 = vmatpush1.msra.mxu0 0.0
    %9357 = vmatprep.subr.mxu0 0.0
    %9358 = vmatpush1.msra.mxu0 0.0
    %9359 = vmatprep.subr.mxu0 0.0
    %9360 = vmatpush1.msra.mxu0 0.0
    %9361 = vmatprep.subr.mxu0 0.0
    %9362 = vmatpush1.msra.mxu0 0.0
    %9363 = vmatprep.subr.mxu0 0.0
    %9364 = vmatpush1.msra.mxu0 0.0
    %9365 = vmatprep.subr.mxu0 0.0
    %9366 = vmatpush1.msra.mxu0 0.0
    %9367 = vmatprep.subr.mxu0 0.0
    %9368 = vmatpush1.msra.mxu0 0.0
    %9369 = vmatprep.subr.mxu0 0.0
    %9370 = vmatpush1.msra.mxu0 0.0
    %9371 = vmatprep.subr.mxu0 0.0
    %9372 = vmatpush1.msra.mxu0 0.0
    %9373 = vmatprep.subr.mxu0 0.0
    %9374 = vmatpush1.msra.mxu0 0.0
    %9375 = vmatprep.subr.mxu0 0.0
    %9376 = vmatpush1.msra.mxu0 0.0
    %9377 = vmatprep.subr.mxu0 0.0
    %9378 = vmatpush1.msra.mxu0 0.0
    %9379 = vmatprep.mubr.f32.mxu0 0.0
    %9380 = vmatmul.mubr.f32.gmra.mrb[0].mxu0 %v9242
    %v9381 = vpop.f32.mrb[0].mxu0
    %v9382 = vadd.f32 0.0, %v9381
    %v9383 = vpop.f32.mrb[0].mxu0
    %9384 = vdwg.mxu0
    %v9386 = vsel %vm715, %v9238, 0
    %9388 = vmatprep.subr.mxu0 %v8305
    %9389 = vmatpush1.msra.mxu0 %v8303
    %9390 = vmatprep.subr.mxu0 %v8311
    %9391 = vmatpush1.msra.mxu0 %v8309
    %9392 = vmatprep.subr.mxu0 %v8317
    %9393 = vmatpush1.msra.mxu0 %v8315
    %9394 = vmatprep.subr.mxu0 %v8323
    %9395 = vmatpush1.msra.mxu0 %v8321
    %9396 = vmatprep.subr.mxu0 %v8329
    %9397 = vmatpush1.msra.mxu0 %v8327
    %9398 = vmatprep.subr.mxu0 %v8335
    %9399 = vmatpush1.msra.mxu0 %v8333
    %9400 = vmatprep.subr.mxu0 %v8341
    %9401 = vmatpush1.msra.mxu0 %v8339
    %9402 = vmatprep.subr.mxu0 %v8347
    %9403 = vmatpush1.msra.mxu0 %v8345
    %9404 = vmatprep.subr.mxu0 0.0
    %9405 = vmatpush1.msra.mxu0 0.0
    %9406 = vmatprep.subr.mxu0 0.0
    %9407 = vmatpush1.msra.mxu0 0.0
    %9408 = vmatprep.subr.mxu0 0.0
    %9409 = vmatpush1.msra.mxu0 0.0
    %9410 = vmatprep.subr.mxu0 0.0
    %9411 = vmatpush1.msra.mxu0 0.0
    %9412 = vmatprep.subr.mxu0 0.0
    %9413 = vmatpush1.msra.mxu0 0.0
    %9414 = vmatprep.subr.mxu0 0.0
    %9415 = vmatpush1.msra.mxu0 0.0
    %9416 = vmatprep.subr.mxu0 0.0
    %9417 = vmatpush1.msra.mxu0 0.0
    %9418 = vmatprep.subr.mxu0 0.0
    %9419 = vmatpush1.msra.mxu0 0.0
    %9420 = vmatprep.subr.mxu0 0.0
    %9421 = vmatpush1.msra.mxu0 0.0
    %9422 = vmatprep.subr.mxu0 0.0
    %9423 = vmatpush1.msra.mxu0 0.0
    %9424 = vmatprep.subr.mxu0 0.0
    %9425 = vmatpush1.msra.mxu0 0.0
    %9426 = vmatprep.subr.mxu0 0.0
    %9427 = vmatpush1.msra.mxu0 0.0
    %9428 = vmatprep.subr.mxu0 0.0
    %9429 = vmatpush1.msra.mxu0 0.0
    %9430 = vmatprep.subr.mxu0 0.0
    %9431 = vmatpush1.msra.mxu0 0.0
    %9432 = vmatprep.subr.mxu0 0.0
    %9433 = vmatpush1.msra.mxu0 0.0
    %9434 = vmatprep.subr.mxu0 0.0
    %9435 = vmatpush1.msra.mxu0 0.0
    %9436 = vmatprep.subr.mxu0 0.0
    %9437 = vmatpush1.msra.mxu0 0.0
    %9438 = vmatprep.subr.mxu0 0.0
    %9439 = vmatpush1.msra.mxu0 0.0
    %9440 = vmatprep.subr.mxu0 0.0
    %9441 = vmatpush1.msra.mxu0 0.0
    %9442 = vmatprep.subr.mxu0 0.0
    %9443 = vmatpush1.msra.mxu0 0.0
    %9444 = vmatprep.subr.mxu0 0.0
    %9445 = vmatpush1.msra.mxu0 0.0
    %9446 = vmatprep.subr.mxu0 0.0
    %9447 = vmatpush1.msra.mxu0 0.0
    %9448 = vmatprep.subr.mxu0 0.0
    %9449 = vmatpush1.msra.mxu0 0.0
    %9450 = vmatprep.subr.mxu0 0.0
    %9451 = vmatpush1.msra.mxu0 0.0
    %9452 = vmatprep.mubr.f32.mxu0 0.0
    %9453 = vmatmul.mubr.f32.gmra.mrb[0].mxu0 %v9386
    %v9454 = vpop.f32.mrb[0].mxu0
    %v9455 = vadd.f32 %v9311, %v9454
    %v9456 = vpop.f32.mrb[0].mxu0
    %v9457 = vadd.f32 %v9313, %v9456
    %9458 = vdwg.mxu0
    %9459 = vmatprep.subr.mxu0 0.0
    %9460 = vmatpush1.msra.mxu0 %v8529
    %9461 = vmatprep.subr.mxu0 0.0
    %9462 = vmatpush1.msra.mxu0 %v8535
    %9463 = vmatprep.subr.mxu0 0.0
    %9464 = vmatpush1.msra.mxu0 %v8541
    %9465 = vmatprep.subr.mxu0 0.0
    %9466 = vmatpush1.msra.mxu0 %v8547
    %9467 = vmatprep.subr.mxu0 0.0
    %9468 = vmatpush1.msra.mxu0 %v8553
    %9469 = vmatprep.subr.mxu0 0.0
    %9470 = vmatpush1.msra.mxu0 %v8559
    %9471 = vmatprep.subr.mxu0 0.0
    %9472 = vmatpush1.msra.mxu0 %v8565
    %9473 = vmatprep.subr.mxu0 0.0
    %9474 = vmatpush1.msra.mxu0 %v8571
    %9475 = vmatprep.subr.mxu0 0.0
    %9476 = vmatpush1.msra.mxu0 0.0
    %9477 = vmatprep.subr.mxu0 0.0
    %9478 = vmatpush1.msra.mxu0 0.0
    %9479 = vmatprep.subr.mxu0 0.0
    %9480 = vmatpush1.msra.mxu0 0.0
    %9481 = vmatprep.subr.mxu0 0.0
    %9482 = vmatpush1.msra.mxu0 0.0
    %9483 = vmatprep.subr.mxu0 0.0
    %9484 = vmatpush1.msra.mxu0 0.0
    %9485 = vmatprep.subr.mxu0 0.0
    %9486 = vmatpush1.msra.mxu0 0.0
    %9487 = vmatprep.subr.mxu0 0.0
    %9488 = vmatpush1.msra.mxu0 0.0
    %9489 = vmatprep.subr.mxu0 0.0
    %9490 = vmatpush1.msra.mxu0 0.0
    %9491 = vmatprep.subr.mxu0 0.0
    %9492 = vmatpush1.msra.mxu0 0.0
    %9493 = vmatprep.subr.mxu0 0.0
    %9494 = vmatpush1.msra.mxu0 0.0
    %9495 = vmatprep.subr.mxu0 0.0
    %9496 = vmatpush1.msra.mxu0 0.0
    %9497 = vmatprep.subr.mxu0 0.0
    %9498 = vmatpush1.msra.mxu0 0.0
    %9499 = vmatprep.subr.mxu0 0.0
    %9500 = vmatpush1.msra.mxu0 0.0
    %9501 = vmatprep.subr.mxu0 0.0
    %9502 = vmatpush1.msra.mxu0 0.0
    %9503 = vmatprep.subr.mxu0 0.0
    %9504 = vmatpush1.msra.mxu0 0.0
    %9505 = vmatprep.subr.mxu0 0.0
    %9506 = vmatpush1.msra.mxu0 0.0
    %9507 = vmatprep.subr.mxu0 0.0
    %9508 = vmatpush1.msra.mxu0 0.0
    %9509 = vmatprep.subr.mxu0 0.0
    %9510 = vmatpush1.msra.mxu0 0.0
    %9511 = vmatprep.subr.mxu0 0.0
    %9512 = vmatpush1.msra.mxu0 0.0
    %9513 = vmatprep.subr.mxu0 0.0
    %9514 = vmatpush1.msra.mxu0 0.0
    %9515 = vmatprep.subr.mxu0 0.0
    %9516 = vmatpush1.msra.mxu0 0.0
    %9517 = vmatprep.subr.mxu0 0.0
    %9518 = vmatpush1.msra.mxu0 0.0
    %9519 = vmatprep.subr.mxu0 0.0
    %9520 = vmatpush1.msra.mxu0 0.0
    %9521 = vmatprep.subr.mxu0 0.0
    %9522 = vmatpush1.msra.mxu0 0.0
    %9523 = vmatprep.mubr.f32.mxu0 0.0
    %9524 = vmatmul.mubr.f32.gmra.mrb[0].mxu0 %v9386
    %v9525 = vpop.f32.mrb[0].mxu0
    %v9526 = vadd.f32 %v9382, %v9525
    %v9527 = vpop.f32.mrb[0].mxu0
    %9528 = vdwg.mxu0
    %s9529 = scalar_lea.vmem [#allocation23], 40
    %v9530 = vld [vmem:[%s9529] sm:$0xff]
    %v9532 = vsel %vm715, %v9530, 0
    %9534 = vmatprep.subr.mxu0 %v8983
    %9535 = vmatpush1.msra.mxu0 %v8981
    %9536 = vmatprep.subr.mxu0 %v8989
    %9537 = vmatpush1.msra.mxu0 %v8987
    %9538 = vmatprep.subr.mxu0 %v8995
    %9539 = vmatpush1.msra.mxu0 %v8993
    %9540 = vmatprep.subr.mxu0 %v9001
    %9541 = vmatpush1.msra.mxu0 %v8999
    %9542 = vmatprep.subr.mxu0 %v9007
    %9543 = vmatpush1.msra.mxu0 %v9005
    %9544 = vmatprep.subr.mxu0 %v9013
    %9545 = vmatpush1.msra.mxu0 %v9011
    %9546 = vmatprep.subr.mxu0 %v9019
    %9547 = vmatpush1.msra.mxu0 %v9017
    %9548 = vmatprep.subr.mxu0 %v9025
    %9549 = vmatpush1.msra.mxu0 %v9023
    %9550 = vmatprep.subr.mxu0 0.0
    %9551 = vmatpush1.msra.mxu0 0.0
    %9552 = vmatprep.subr.mxu0 0.0
    %9553 = vmatpush1.msra.mxu0 0.0
    %9554 = vmatprep.subr.mxu0 0.0
    %9555 = vmatpush1.msra.mxu0 0.0
    %9556 = vmatprep.subr.mxu0 0.0
    %9557 = vmatpush1.msra.mxu0 0.0
    %9558 = vmatprep.subr.mxu0 0.0
    %9559 = vmatpush1.msra.mxu0 0.0
    %9560 = vmatprep.subr.mxu0 0.0
    %9561 = vmatpush1.msra.mxu0 0.0
    %9562 = vmatprep.subr.mxu0 0.0
    %9563 = vmatpush1.msra.mxu0 0.0
    %9564 = vmatprep.subr.mxu0 0.0
    %9565 = vmatpush1.msra.mxu0 0.0
    %9566 = vmatprep.subr.mxu0 0.0
    %9567 = vmatpush1.msra.mxu0 0.0
    %9568 = vmatprep.subr.mxu0 0.0
    %9569 = vmatpush1.msra.mxu0 0.0
    %9570 = vmatprep.subr.mxu0 0.0
    %9571 = vmatpush1.msra.mxu0 0.0
    %9572 = vmatprep.subr.mxu0 0.0
    %9573 = vmatpush1.msra.mxu0 0.0
    %9574 = vmatprep.subr.mxu0 0.0
    %9575 = vmatpush1.msra.mxu0 0.0
    %9576 = vmatprep.subr.mxu0 0.0
    %9577 = vmatpush1.msra.mxu0 0.0
    %9578 = vmatprep.subr.mxu0 0.0
    %9579 = vmatpush1.msra.mxu0 0.0
    %9580 = vmatprep.subr.mxu0 0.0
    %9581 = vmatpush1.msra.mxu0 0.0
    %9582 = vmatprep.subr.mxu0 0.0
    %9583 = vmatpush1.msra.mxu0 0.0
    %9584 = vmatprep.subr.mxu0 0.0
    %9585 = vmatpush1.msra.mxu0 0.0
    %9586 = vmatprep.subr.mxu0 0.0
    %9587 = vmatpush1.msra.mxu0 0.0
    %9588 = vmatprep.subr.mxu0 0.0
    %9589 = vmatpush1.msra.mxu0 0.0
    %9590 = vmatprep.subr.mxu0 0.0
    %9591 = vmatpush1.msra.mxu0 0.0
    %9592 = vmatprep.subr.mxu0 0.0
    %9593 = vmatpush1.msra.mxu0 0.0
    %9594 = vmatprep.subr.mxu0 0.0
    %9595 = vmatpush1.msra.mxu0 0.0
    %9596 = vmatprep.subr.mxu0 0.0
    %9597 = vmatpush1.msra.mxu0 0.0
    %9598 = vmatprep.mubr.f32.mxu0 0.0
    %9599 = vmatmul.mubr.f32.gmra.mrb[0].mxu0 %v9532
    %v9600 = vpop.f32.mrb[0].mxu0
    %v9601 = vadd.f32 0.0, %v9600
    %v9602 = vpop.f32.mrb[0].mxu0
    %v9603 = vadd.f32 0.0, %v9602
    %9604 = vdwg.mxu0
    %9605 = vmatprep.subr.mxu0 0.0
    %9606 = vmatpush1.msra.mxu0 %v9199
    %9607 = vmatprep.subr.mxu0 0.0
    %9608 = vmatpush1.msra.mxu0 %v9204
    %9609 = vmatprep.subr.mxu0 0.0
    %9610 = vmatpush1.msra.mxu0 %v9209
    %9611 = vmatprep.subr.mxu0 0.0
    %9612 = vmatpush1.msra.mxu0 %v9214
    %9613 = vmatprep.subr.mxu0 0.0
    %9614 = vmatpush1.msra.mxu0 %v9219
    %9615 = vmatprep.subr.mxu0 0.0
    %9616 = vmatpush1.msra.mxu0 %v9224
    %9617 = vmatprep.subr.mxu0 0.0
    %9618 = vmatpush1.msra.mxu0 %v9229
    %9619 = vmatprep.subr.mxu0 0.0
    %9620 = vmatpush1.msra.mxu0 %v9234
    %9621 = vmatprep.subr.mxu0 0.0
    %9622 = vmatpush1.msra.mxu0 0.0
    %9623 = vmatprep.subr.mxu0 0.0
    %9624 = vmatpush1.msra.mxu0 0.0
    %9625 = vmatprep.subr.mxu0 0.0
    %9626 = vmatpush1.msra.mxu0 0.0
    %9627 = vmatprep.subr.mxu0 0.0
    %9628 = vmatpush1.msra.mxu0 0.0
    %9629 = vmatprep.subr.mxu0 0.0
    %9630 = vmatpush1.msra.mxu0 0.0
    %9631 = vmatprep.subr.mxu0 0.0
    %9632 = vmatpush1.msra.mxu0 0.0
    %9633 = vmatprep.subr.mxu0 0.0
    %9634 = vmatpush1.msra.mxu0 0.0
    %9635 = vmatprep.subr.mxu0 0.0
    %9636 = vmatpush1.msra.mxu0 0.0
    %9637 = vmatprep.subr.mxu0 0.0
    %9638 = vmatpush1.msra.mxu0 0.0
    %9639 = vmatprep.subr.mxu0 0.0
    %9640 = vmatpush1.msra.mxu0 0.0
    %9641 = vmatprep.subr.mxu0 0.0
    %9642 = vmatpush1.msra.mxu0 0.0
    %9643 = vmatprep.subr.mxu0 0.0
    %9644 = vmatpush1.msra.mxu0 0.0
    %9645 = vmatprep.subr.mxu0 0.0
    %9646 = vmatpush1.msra.mxu0 0.0
    %9647 = vmatprep.subr.mxu0 0.0
    %9648 = vmatpush1.msra.mxu0 0.0
    %9649 = vmatprep.subr.mxu0 0.0
    %9650 = vmatpush1.msra.mxu0 0.0
    %9651 = vmatprep.subr.mxu0 0.0
    %9652 = vmatpush1.msra.mxu0 0.0
    %9653 = vmatprep.subr.mxu0 0.0
    %9654 = vmatpush1.msra.mxu0 0.0
    %9655 = vmatprep.subr.mxu0 0.0
    %9656 = vmatpush1.msra.mxu0 0.0
    %9657 = vmatprep.subr.mxu0 0.0
    %9658 = vmatpush1.msra.mxu0 0.0
    %9659 = vmatprep.subr.mxu0 0.0
    %9660 = vmatpush1.msra.mxu0 0.0
    %9661 = vmatprep.subr.mxu0 0.0
    %9662 = vmatpush1.msra.mxu0 0.0
    %9663 = vmatprep.subr.mxu0 0.0
    %9664 = vmatpush1.msra.mxu0 0.0
    %9665 = vmatprep.subr.mxu0 0.0
    %9666 = vmatpush1.msra.mxu0 0.0
    %9667 = vmatprep.subr.mxu0 0.0
    %9668 = vmatpush1.msra.mxu0 0.0
    %9669 = vmatprep.mubr.f32.mxu0 0.0
    %9670 = vmatmul.mubr.f32.gmra.mrb[0].mxu0 %v9532
    %v9671 = vpop.f32.mrb[0].mxu0
    %v9672 = vadd.f32 0.0, %v9671
    %v9673 = vpop.f32.mrb[0].mxu0
    %9674 = vdwg.mxu0
    %v9675 = vadd.f32 %v9455, %v9601
    %v9676 = vadd.f32 %v9457, %v9603
    %v9677 = vadd.f32 %v9526, %v9672
    %s9678 = scalar_lea.vmem %s17, 8
    %v9679 = vld [vmem:[%s9678] sm:$0xff]
    %9681 = vset.pattern.permute.xlu0 0
    %9682 = vperm.xlu0 %9681, %v9679
    %v9683 = vpop.permute.xlu0 %9682
    %v9685 = vadd.f32 %v9675, %v9683
    %v9686 = vadd.f32 %v9676, %v9683
    %v9687 = vadd.f32 %v9677, %v9683
    %v9691 = vcombine.low %v9685, %v9686
    %v9692 = vcombine.high %v9685, %v9686
    %v9693 = vcombine.high %v9687, %v9687
    %v9695 = vunpack.c.l.s4 1966171168
    %v9696 = vunpack.c.0.s8 %v9695
    %v9697 = vlaneseq
    %v9698 = vshrl.u32 %v9697, 7
    %v9699 = vsub.s32 %v9696, %v9698
    %v9700 = vrot.slane %v9691, %v9699
    %v9702 = vunpack.c.l.s4 1966171168
    %v9703 = vunpack.c.0.s8 %v9702
    %v9704 = vlaneseq
    %v9705 = vshrl.u32 %v9704, 7
    %v9706 = vsub.s32 %v9703, %v9705
    %v9707 = vrot.slane %v9692, %v9706
    %v9709 = vunpack.c.l.s4 1966171168
    %v9710 = vunpack.c.0.s8 %v9709
    %v9711 = vlaneseq
    %v9712 = vshrl.u32 %v9711, 7
    %v9713 = vsub.s32 %v9710, %v9712
    %v9714 = vrot.slane %v9687, %v9713
    %v9716 = vunpack.c.l.s4 1966171168
    %v9717 = vunpack.c.0.s8 %v9716
    %v9718 = vlaneseq
    %v9719 = vshrl.u32 %v9718, 7
    %v9720 = vsub.s32 %v9717, %v9719
    %v9721 = vrot.slane %v9693, %v9720
    %v9722 = vcombine.low %v9700, %v9714
    %v9723 = vcombine.high %v9700, %v9714
    %v9724 = vcombine.low %v9707, %v9721
    %v9725 = vcombine.high %v9707, %v9721
    %v9727 = vunpack.c.l.s4 1966171168
    %v9728 = vunpack.c.0.s8 %v9727
    %v9729 = vlaneseq
    %v9730 = vshrl.u32 %v9729, 7
    %v9731 = vsub.s32 %v9728, %v9730
    %v9732 = vrot.slane %v9722, %v9731
    %v9734 = vunpack.c.l.s4 1966171168
    %v9735 = vunpack.c.0.s8 %v9734
    %v9736 = vlaneseq
    %v9737 = vshrl.u32 %v9736, 7
    %v9738 = vsub.s32 %v9735, %v9737
    %v9739 = vrot.slane %v9724, %v9738
    %v9741 = vunpack.c.l.s4 1966171168
    %v9742 = vunpack.c.0.s8 %v9741
    %v9743 = vlaneseq
    %v9744 = vshrl.u32 %v9743, 7
    %v9745 = vsub.s32 %v9742, %v9744
    %v9746 = vrot.slane %v9723, %v9745
    %v9748 = vunpack.c.l.s4 1966171168
    %v9749 = vunpack.c.0.s8 %v9748
    %v9750 = vlaneseq
    %v9751 = vshrl.u32 %v9750, 7
    %v9752 = vsub.s32 %v9749, %v9751
    %v9753 = vrot.slane %v9725, %v9752
    %v9754 = vcombine.high %v9732, %v9732
    %v9755 = vcombine.high %v9739, %v9739
    %v9756 = vcombine.high %v9746, %v9746
    %v9757 = vcombine.high %v9753, %v9753
    %s9766 = scalar_lea.vmem [#allocation25], 1
    %9767 = vst.msk [vmem:[%s9766] ss:$2 sm:$0x7] %vm5126, %v9732
    %s9768 = scalar_lea.vmem [#allocation25], 7
    %9769 = vst.msk [vmem:[%s9768] ss:$2 sm:$0x7] %vm5126, %v9746
    %s9770 = scalar_lea.vmem [#allocation25], 13
    %9771 = vst.msk [vmem:[%s9770] ss:$2 sm:$0x7] %vm5126, %v9754
    %s9772 = scalar_lea.vmem [#allocation25], 19
    %9773 = vst.msk [vmem:[%s9772] ss:$2 sm:$0x7] %vm5126, %v9756
    %s9774 = scalar_lea.vmem [#allocation25], 25
    %9775 = vst.msk [vmem:[%s9774] ss:$2 sm:$0x7] %vm5126, %v9739
    %s9776 = scalar_lea.vmem [#allocation25], 31
    %9777 = vst.msk [vmem:[%s9776] ss:$2 sm:$0x7] %vm5126, %v9753
    %s9778 = scalar_lea.vmem [#allocation25], 37
    %9779 = vst.msk [vmem:[%s9778] ss:$2 sm:$0x7] %vm5126, %v9755
    %s9780 = scalar_lea.vmem [#allocation25], 43
    %9781 = vst.msk [vmem:[%s9780] ss:$2 sm:$0x7] %vm5126, %v9757
    // Predicated region
    $region130: #{_lambda_.1} parent=1 // pred_check
      _
    $region131: #{_lambda_.1} parent=1 // pred_check_branch
      %9783 = sbr.rel (0) target = $region133
    $region132: #{_lambda_.1} parent=1 // pred_region
      %s9785 = ssub.s32 768, 768
      %9786 = vsyncadd [#allocation4], %s9785
      %s9787 = sshll.u32 [#allocation25], 4
      %s9788 = int_to_ptr.vmem [resolvable:$true] %s9787
      %9793 = dma.vmem_to_hbm [thread:$0]  %s9788, 768, %s18, [#allocation4], 96, 96, 6
    $region133: #{_lambda_.1} parent=1 // pred_fallthru
      _
    // Predicated region
    $region134: #{_lambda_.1} parent=1 // pred_check
      _
    $region135: #{_lambda_.1} parent=1 // pred_check_branch
      %9795 = sbr.rel (0) target = $region137
    $region136: #{_lambda_.1} parent=1 // pred_region
      %9796 = dma.done [#allocation4], 768
    $region137: #{_lambda_.1} parent=1 // pred_fallthru
      _
    %9797 = vsyncpa [#allocation3], 1
    %9798 = vsyncpa [#allocation6], 1
    %9799 = vsyncpa [#allocation9], 1
    %9800 = vsyncpa [#allocation12], 1
    %9801 = vsyncpa [#allocation15], 1
    %9802 = vsyncpa [#allocation18], 1
    %9803 = vsyncpa [#allocation21], 1
    %9804 = vsyncpa [#allocation24], 1
    %9805 = vsyncpa [#allocation4], 1

</llo_original>
